<compile_context>
chip_gen: v7x
topology: tpu7x:2x2x1
jax: 0.10.0
libtpu: 0.0.40
codegen_flags: <defaults>
</compile_context>

<pallas_src>
import functools

import jax
import jax.numpy as jnp
from jax.experimental import pallas as pl
from jax.experimental.pallas import tpu as pltpu


def _mha_kernel(x_ref, wqkv_ref, bqkv_ref, wo_ref, bo_ref, o_ref, *,
                n_heads, n_qkv, masked):
    """One grid step = a slab of batch elements (all heads + output proj)."""
    Bb, T, E = x_ref.shape
    H, Dq = n_heads, n_qkv
    HD = H * Dq
    M = Bb * T

    # (Bb, T, E) -> (Bb*T, E): leading-dim collapse only (lane dim untouched).
    x2 = x_ref[...].reshape(M, E)

    # Fused QKV projection: one (M, E) @ (E, 3*H*Dq) matmul instead of 3*H
    # tiny (T, E) @ (E, Dq) matmuls.  Column layout: [Q_heads | K_heads | V_heads].
    qkv = (jnp.dot(x2, wqkv_ref[...], preferred_element_type=jnp.float32)
           + bqkv_ref[...])

    if masked:
        # Hoisted once out of the head loop (JAX does not CSE broadcast_in_dim).
        # NOTE: generalizes the torch buffer (which is (n_embed, n_embed), i.e.
        # requires T == n_embed) to a (T, T) causal mask.
        row = jax.lax.broadcasted_iota(jnp.int32, (T, T), 0)
        col = jax.lax.broadcasted_iota(jnp.int32, (T, T), 1)
        keep = (col <= row)[None]                                   # (1, T, T)

    out_acc = jnp.zeros((M, E), jnp.float32)
    for h in range(H):                              # H is small; static unroll
        # 1/sqrt(Dq) already folded into the Q weights/bias wrapper-side.
        q_h = qkv[:, h * Dq:(h + 1) * Dq].reshape(Bb, T, Dq)
        k_h = qkv[:, HD + h * Dq:HD + (h + 1) * Dq].reshape(Bb, T, Dq)
        v_h = qkv[:, 2 * HD + h * Dq:2 * HD + (h + 1) * Dq].reshape(Bb, T, Dq)

        logits = jnp.einsum('btd,bsd->bts', q_h, k_h,
                            preferred_element_type=jnp.float32)     # (Bb, T, T)
        if masked:
            logits = jnp.where(keep, logits, -jnp.inf)

        m = jnp.max(logits, axis=-1, keepdims=True)
        p = jnp.exp(logits - m)
        denom = jnp.sum(p, axis=-1, keepdims=True)
        probs = p * pl.reciprocal(denom, approx=True)  # divide -> EUP, VALU freed

        head_out = jnp.einsum('bts,bsd->btd', probs, v_h,
                              preferred_element_type=jnp.float32)   # (Bb, T, Dq)

        # Output projection folded per head (no lane-concatenate):
        #   concat(head_outs) @ Wo == sum_h head_out_h @ Wo[h*Dq:(h+1)*Dq, :]
        out_acc = out_acc + jnp.dot(head_out.reshape(M, Dq), wo_ref[h],
                                    preferred_element_type=jnp.float32)

    out = out_acc + bo_ref[...]
    o_ref[...] = out.reshape(Bb, T, E).astype(o_ref.dtype)


def _has_two_tensorcores():
    """v7x has 2 TensorCores per chip; v5e/v6e have 1."""
    try:
        kind = jax.devices()[0].device_kind.lower()
    except Exception:
        return False
    return "v7" in kind or "7x" in kind


def multi_head_attention(x, params, *, masked=False):
    """x: (B, T, E). params: (wq, bq, wk, bk, wv, bv, wo, bo).

    Weight layouts (already transposed to "input @ weight" form):
      wq/wk/wv: (H, E, n_qkv),  bq/bk/bv: (H, 1, n_qkv)
      wo: (E, E),               bo: (1, E)
    """
    wq, bq, wk, bk, wv, bv, wo, bo = params
    B, T, E = x.shape
    H, _, Dq = wq.shape
    assert H * Dq == E
    HD3 = 3 * H * Dq

    # --- one-time wrapper-side weight preprocessing (folds under jit) -------
    scale = 1.0 / (Dq ** 0.5)
    wq_s, bq_s = wq * scale, bq * scale        # fold 1/sqrt(Dq) into Q proj

    def stack_w(w):                            # (H, E, Dq) -> (E, H*Dq)
        return jnp.transpose(w, (1, 0, 2)).reshape(E, H * Dq)

    def stack_b(b):                            # (H, 1, Dq) -> (1, H*Dq)
        return b.reshape(1, H * Dq)

    wqkv = jnp.concatenate([stack_w(wq_s), stack_w(wk), stack_w(wv)], axis=-1)
    bqkv = jnp.concatenate([stack_b(bq_s), stack_b(bk), stack_b(bv)], axis=-1)
    wo_h = wo.reshape(H, Dq, E)                # per-head output projection slabs

    # --- grid: fold batch on single-TC chips, split 2-way on v7x ------------
    G = 2 if (_has_two_tensorcores() and B >= 2 and B % 2 == 0) else 1
    Bb = B // G

    kernel = functools.partial(_mha_kernel, n_heads=H, n_qkv=Dq, masked=masked)

    flops = (2 * B * T * E * HD3          # fused QKV projection
             + 4 * B * H * T * T * Dq     # logits + probs@v
             + 2 * B * T * E * E)         # output projection
    transcendentals = B * H * T * (T + 1)                     # exp + reciprocal
    bytes_accessed = 4 * (x.size + wqkv.size + bqkv.size + wo_h.size + bo.size
                          + B * T * E)

    return pl.pallas_call(
        kernel,
        out_shape=jax.ShapeDtypeStruct((B, T, E), x.dtype),
        grid=(G,),
        in_specs=[
            pl.BlockSpec((Bb, T, E), lambda g: (g, 0, 0)),     # x slab per step
            pl.BlockSpec((E, HD3), lambda g: (0, 0)),          # stacked Wqkv
            pl.BlockSpec((1, HD3), lambda g: (0, 0)),          # stacked bqkv
            pl.BlockSpec((H, Dq, E), lambda g: (0, 0, 0)),     # Wo per head
            pl.BlockSpec((1, E), lambda g: (0, 0)),            # bo
        ],
        out_specs=pl.BlockSpec((Bb, T, E), lambda g: (g, 0, 0)),
        compiler_params=pltpu.CompilerParams(
            dimension_semantics=("parallel",)),
        cost_estimate=pl.CostEstimate(flops=flops,
                                      transcendentals=transcendentals,
                                      bytes_accessed=bytes_accessed),
    )(x, wqkv, bqkv, wo_h, bo)


def reference_mha(x, params, *, masked=False):
    """Pure-JAX reference mirroring the PyTorch forward exactly."""
    wq, bq, wk, bk, wv, bv, wo, bo = params
    H, _, Dq = wq.shape
    T = x.shape[-2]
    outs = []
    for h in range(H):
        q = x @ wq[h] + bq[h]
        k = x @ wk[h] + bk[h]
        v = x @ wv[h] + bv[h]
        logits = q @ jnp.swapaxes(k, -2, -1) / (Dq ** 0.5)
        if masked:
            row = jnp.arange(T)[:, None]
            col = jnp.arange(T)[None, :]
            logits = jnp.where(col <= row, logits, -jnp.inf)
        probs = jax.nn.softmax(logits, axis=-1)
        outs.append(probs @ v)
    concat = jnp.concatenate(outs, axis=-1)
    return concat @ wo + bo


def _make_params(key, n_heads, n_qkv):
    n_embed = n_heads * n_qkv
    keys = jax.random.split(key, 8)
    init = lambda k, shape: (0.1 * jax.random.normal(k, shape)).astype(jnp.float32)
    wq = init(keys[0], (n_heads, n_embed, n_qkv))
    bq = init(keys[1], (n_heads, 1, n_qkv))
    wk = init(keys[2], (n_heads, n_embed, n_qkv))
    bk = init(keys[3], (n_heads, 1, n_qkv))
    wv = init(keys[4], (n_heads, n_embed, n_qkv))
    bv = init(keys[5], (n_heads, 1, n_qkv))
    wo = init(keys[6], (n_embed, n_embed))
    bo = init(keys[7], (1, n_embed))
    return (wq, bq, wk, bk, wv, bv, wo, bo)


if __name__ == "__main__":
    # Use an exact-f32 reference so the only approximation left is the EUP
    # approximate reciprocal in the kernel's softmax.
    jax.config.update("jax_default_matmul_precision", "highest")

    n_heads, n_qkv = 4, 8
    n_embed = n_heads * n_qkv           # 32
    key = jax.random.PRNGKey(0)
    k_param, k_x1, k_x2 = jax.random.split(key, 3)
    params = _make_params(k_param, n_heads, n_qkv)

    # --- test 1: unmasked, B=2, T=8, E=32 ------------------------------------
    B, T = 2, 8
    x = (0.1 * jax.random.normal(k_x1, (B, T, n_embed))).astype(jnp.float32)
    out = jax.block_until_ready(multi_head_attention(x, params, masked=False))
    ref = reference_mha(x, params, masked=False)
    assert out.shape == (B, T, n_embed)
    # tolerance loosened slightly for the approx (EUP) reciprocal in softmax
    assert jnp.allclose(out, ref, rtol=2e-3, atol=2e-3), "mismatch (unmasked)"

    # --- test 2: masked causal path (module semantics need T == n_embed) -----
    Tm = n_embed                        # 32
    xm = (0.1 * jax.random.normal(k_x2, (B, Tm, n_embed))).astype(jnp.float32)
    outm = jax.block_until_ready(multi_head_attention(xm, params, masked=True))
    refm = reference_mha(xm, params, masked=True)
    assert outm.shape == (B, Tm, n_embed)
    assert jnp.allclose(outm, refm, rtol=2e-3, atol=2e-3), "mismatch (masked)"

    print("KERNEL_OK")
</pallas_src>

<mosaic_0001>
module attributes {stable_mosaic.version = 11 : i64} {
  func.func @_mha_kernel(%arg0: i32, %arg1: memref<2x8x32xf32, #tpu.memory_space<vmem>>, %arg2: memref<32x96xf32, #tpu.memory_space<vmem>>, %arg3: memref<1x96xf32, #tpu.memory_space<vmem>>, %arg4: memref<4x8x32xf32, #tpu.memory_space<vmem>>, %arg5: memref<1x32xf32, #tpu.memory_space<vmem>>, %arg6: memref<2x8x32xf32, #tpu.memory_space<vmem>>) attributes {dimension_semantics = [#tpu.dimension_semantics<parallel>], iteration_bounds = array<i64: 1>, scalar_prefetch = 0 : i64, scratch_operands = 0 : i64, tpu.core_type = #tpu.core_type<tc>, window_params = [{transform_indices = @transform_0, window_bounds = array<i64: 2, 8, 32>}, {pipeline_mode = #tpu.pipeline_mode<synchronous>, transform_indices = @transform_1, window_bounds = array<i64: 32, 96>}, {pipeline_mode = #tpu.pipeline_mode<synchronous>, transform_indices = @transform_2, window_bounds = array<i64: 1, 96>}, {pipeline_mode = #tpu.pipeline_mode<synchronous>, transform_indices = @transform_3, window_bounds = array<i64: 4, 8, 32>}, {pipeline_mode = #tpu.pipeline_mode<synchronous>, transform_indices = @transform_4, window_bounds = array<i64: 1, 32>}, {transform_indices = @transform_5, window_bounds = array<i64: 2, 8, 32>}]} {
    %c0 = arith.constant 0 : index
    %c0_0 = arith.constant 0 : index
    %c0_1 = arith.constant 0 : index
    %0 = vector.load %arg1[%c0, %c0_0, %c0_1] : memref<2x8x32xf32, #tpu.memory_space<vmem>>, vector<2x8x32xf32>
    %1 = vector.shape_cast %0 : vector<2x8x32xf32> to vector<16x32xf32>
    %c0_2 = arith.constant 0 : index
    %c0_3 = arith.constant 0 : index
    %2 = vector.load %arg2[%c0_2, %c0_3] : memref<32x96xf32, #tpu.memory_space<vmem>>, vector<32x96xf32>
    %cst = arith.constant dense<0.000000e+00> : vector<16x96xf32>
    %3 = tpu.matmul %1, %2, %cst {dimension_numbers = #tpu.dot_dimension_numbers<[1], [0], [0], [1], [0, 0, 1, 1], [], []>, precision = #tpu.contract_precision<fp32>} : vector<16x32xf32>, vector<32x96xf32>, vector<16x96xf32> -> vector<16x96xf32>
    %c0_4 = arith.constant 0 : index
    %c0_5 = arith.constant 0 : index
    %4 = vector.load %arg3[%c0_4, %c0_5] : memref<1x96xf32, #tpu.memory_space<vmem>>, vector<1x96xf32>
    %5 = vector.broadcast %4 : vector<1x96xf32> to vector<16x96xf32>
    %6 = arith.addf %3, %5 : vector<16x96xf32>
    %cst_6 = arith.constant 0.000000e+00 : f32
    %7 = vector.broadcast %cst_6 : f32 to vector<16x32xf32>
    %8 = vector.extract_strided_slice %6 {offsets = [0, 0], sizes = [16, 8], strides = [1, 1]} : vector<16x96xf32> to vector<16x8xf32>
    %9 = vector.shape_cast %8 : vector<16x8xf32> to vector<2x8x8xf32>
    %10 = vector.extract_strided_slice %6 {offsets = [0, 32], sizes = [16, 8], strides = [1, 1]} : vector<16x96xf32> to vector<16x8xf32>
    %11 = vector.shape_cast %10 : vector<16x8xf32> to vector<2x8x8xf32>
    %12 = vector.extract_strided_slice %6 {offsets = [0, 64], sizes = [16, 8], strides = [1, 1]} : vector<16x96xf32> to vector<16x8xf32>
    %13 = vector.shape_cast %12 : vector<16x8xf32> to vector<2x8x8xf32>
    "tpu.trace_start"() <{level = 10 : i32, message = "btd,bsd->bts"}> : () -> ()
    %cst_7 = arith.constant dense<0.000000e+00> : vector<2x8x8xf32>
    %14 = tpu.matmul %9, %11, %cst_7 {dimension_numbers = #tpu.dot_dimension_numbers<[2], [2], [1], [1], [0, 0, 0, 1, 1, 1], [0], [0]>, precision = #tpu.contract_precision<fp32>} : vector<2x8x8xf32>, vector<2x8x8xf32>, vector<2x8x8xf32> -> vector<2x8x8xf32>
    "tpu.trace_stop"() : () -> ()
    %cst_8 = arith.constant dense<0xFF800000> : vector<2x8xf32>
    %15 = vector.multi_reduction <maximumf>, %14, %cst_8 [2] : vector<2x8x8xf32> to vector<2x8xf32>
    %16 = vector.shape_cast %15 : vector<2x8xf32> to vector<2x8x1xf32>
    %17 = vector.broadcast %16 : vector<2x8x1xf32> to vector<2x8x8xf32>
    %18 = arith.subf %14, %17 : vector<2x8x8xf32>
    %19 = math.exp %18 : vector<2x8x8xf32>
    %cst_9 = arith.constant dense<0.000000e+00> : vector<2x8xf32>
    %20 = vector.multi_reduction <add>, %19, %cst_9 [2] : vector<2x8x8xf32> to vector<2x8xf32>
    %21 = vector.shape_cast %20 : vector<2x8xf32> to vector<2x8x1xf32>
    %22 = tpu.reciprocal %21 {approx = true} : vector<2x8x1xf32> -> vector<2x8x1xf32>
    %23 = vector.broadcast %22 : vector<2x8x1xf32> to vector<2x8x8xf32>
    %24 = arith.mulf %19, %23 : vector<2x8x8xf32>
    "tpu.trace_start"() <{level = 10 : i32, message = "bts,bsd->btd"}> : () -> ()
    %cst_10 = arith.constant dense<0.000000e+00> : vector<2x8x8xf32>
    %25 = tpu.matmul %24, %13, %cst_10 {dimension_numbers = #tpu.dot_dimension_numbers<[2], [1], [1], [2], [0, 0, 0, 1, 1, 2], [0], [0]>, precision = #tpu.contract_precision<fp32>} : vector<2x8x8xf32>, vector<2x8x8xf32>, vector<2x8x8xf32> -> vector<2x8x8xf32>
    "tpu.trace_stop"() : () -> ()
    %26 = vector.shape_cast %25 : vector<2x8x8xf32> to vector<16x8xf32>
    %c0_11 = arith.constant 0 : index
    %c0_12 = arith.constant 0 : index
    %c0_13 = arith.constant 0 : index
    %27 = vector.load %arg4[%c0_11, %c0_12, %c0_13] : memref<4x8x32xf32, #tpu.memory_space<vmem>>, vector<1x8x32xf32>
    %28 = vector.shape_cast %27 : vector<1x8x32xf32> to vector<8x32xf32>
    %cst_14 = arith.constant dense<0.000000e+00> : vector<16x32xf32>
    %29 = tpu.matmul %26, %28, %cst_14 {dimension_numbers = #tpu.dot_dimension_numbers<[1], [0], [0], [1], [0, 0, 1, 1], [], []>, precision = #tpu.contract_precision<fp32>} : vector<16x8xf32>, vector<8x32xf32>, vector<16x32xf32> -> vector<16x32xf32>
    %30 = arith.addf %7, %29 : vector<16x32xf32>
    %31 = vector.extract_strided_slice %6 {offsets = [0, 8], sizes = [16, 8], strides = [1, 1]} : vector<16x96xf32> to vector<16x8xf32>
    %32 = vector.shape_cast %31 : vector<16x8xf32> to vector<2x8x8xf32>
    %33 = vector.extract_strided_slice %6 {offsets = [0, 40], sizes = [16, 8], strides = [1, 1]} : vector<16x96xf32> to vector<16x8xf32>
    %34 = vector.shape_cast %33 : vector<16x8xf32> to vector<2x8x8xf32>
    %35 = vector.extract_strided_slice %6 {offsets = [0, 72], sizes = [16, 8], strides = [1, 1]} : vector<16x96xf32> to vector<16x8xf32>
    %36 = vector.shape_cast %35 : vector<16x8xf32> to vector<2x8x8xf32>
    "tpu.trace_start"() <{level = 10 : i32, message = "btd,bsd->bts"}> : () -> ()
    %cst_15 = arith.constant dense<0.000000e+00> : vector<2x8x8xf32>
    %37 = tpu.matmul %32, %34, %cst_15 {dimension_numbers = #tpu.dot_dimension_numbers<[2], [2], [1], [1], [0, 0, 0, 1, 1, 1], [0], [0]>, precision = #tpu.contract_precision<fp32>} : vector<2x8x8xf32>, vector<2x8x8xf32>, vector<2x8x8xf32> -> vector<2x8x8xf32>
    "tpu.trace_stop"() : () -> ()
    %cst_16 = arith.constant dense<0xFF800000> : vector<2x8xf32>
    %38 = vector.multi_reduction <maximumf>, %37, %cst_16 [2] : vector<2x8x8xf32> to vector<2x8xf32>
    %39 = vector.shape_cast %38 : vector<2x8xf32> to vector<2x8x1xf32>
    %40 = vector.broadcast %39 : vector<2x8x1xf32> to vector<2x8x8xf32>
    %41 = arith.subf %37, %40 : vector<2x8x8xf32>
    %42 = math.exp %41 : vector<2x8x8xf32>
    %cst_17 = arith.constant dense<0.000000e+00> : vector<2x8xf32>
    %43 = vector.multi_reduction <add>, %42, %cst_17 [2] : vector<2x8x8xf32> to vector<2x8xf32>
    %44 = vector.shape_cast %43 : vector<2x8xf32> to vector<2x8x1xf32>
    %45 = tpu.reciprocal %44 {approx = true} : vector<2x8x1xf32> -> vector<2x8x1xf32>
    %46 = vector.broadcast %45 : vector<2x8x1xf32> to vector<2x8x8xf32>
    %47 = arith.mulf %42, %46 : vector<2x8x8xf32>
    "tpu.trace_start"() <{level = 10 : i32, message = "bts,bsd->btd"}> : () -> ()
    %cst_18 = arith.constant dense<0.000000e+00> : vector<2x8x8xf32>
    %48 = tpu.matmul %47, %36, %cst_18 {dimension_numbers = #tpu.dot_dimension_numbers<[2], [1], [1], [2], [0, 0, 0, 1, 1, 2], [0], [0]>, precision = #tpu.contract_precision<fp32>} : vector<2x8x8xf32>, vector<2x8x8xf32>, vector<2x8x8xf32> -> vector<2x8x8xf32>
    "tpu.trace_stop"() : () -> ()
    %49 = vector.shape_cast %48 : vector<2x8x8xf32> to vector<16x8xf32>
    %c1 = arith.constant 1 : index
    %c0_19 = arith.constant 0 : index
    %c0_20 = arith.constant 0 : index
    %50 = vector.load %arg4[%c1, %c0_19, %c0_20] : memref<4x8x32xf32, #tpu.memory_space<vmem>>, vector<1x8x32xf32>
    %51 = vector.shape_cast %50 : vector<1x8x32xf32> to vector<8x32xf32>
    %cst_21 = arith.constant dense<0.000000e+00> : vector<16x32xf32>
    %52 = tpu.matmul %49, %51, %cst_21 {dimension_numbers = #tpu.dot_dimension_numbers<[1], [0], [0], [1], [0, 0, 1, 1], [], []>, precision = #tpu.contract_precision<fp32>} : vector<16x8xf32>, vector<8x32xf32>, vector<16x32xf32> -> vector<16x32xf32>
    %53 = arith.addf %30, %52 : vector<16x32xf32>
    %54 = vector.extract_strided_slice %6 {offsets = [0, 16], sizes = [16, 8], strides = [1, 1]} : vector<16x96xf32> to vector<16x8xf32>
    %55 = vector.shape_cast %54 : vector<16x8xf32> to vector<2x8x8xf32>
    %56 = vector.extract_strided_slice %6 {offsets = [0, 48], sizes = [16, 8], strides = [1, 1]} : vector<16x96xf32> to vector<16x8xf32>
    %57 = vector.shape_cast %56 : vector<16x8xf32> to vector<2x8x8xf32>
    %58 = vector.extract_strided_slice %6 {offsets = [0, 80], sizes = [16, 8], strides = [1, 1]} : vector<16x96xf32> to vector<16x8xf32>
    %59 = vector.shape_cast %58 : vector<16x8xf32> to vector<2x8x8xf32>
    "tpu.trace_start"() <{level = 10 : i32, message = "btd,bsd->bts"}> : () -> ()
    %cst_22 = arith.constant dense<0.000000e+00> : vector<2x8x8xf32>
    %60 = tpu.matmul %55, %57, %cst_22 {dimension_numbers = #tpu.dot_dimension_numbers<[2], [2], [1], [1], [0, 0, 0, 1, 1, 1], [0], [0]>, precision = #tpu.contract_precision<fp32>} : vector<2x8x8xf32>, vector<2x8x8xf32>, vector<2x8x8xf32> -> vector<2x8x8xf32>
    "tpu.trace_stop"() : () -> ()
    %cst_23 = arith.constant dense<0xFF800000> : vector<2x8xf32>
    %61 = vector.multi_reduction <maximumf>, %60, %cst_23 [2] : vector<2x8x8xf32> to vector<2x8xf32>
    %62 = vector.shape_cast %61 : vector<2x8xf32> to vector<2x8x1xf32>
    %63 = vector.broadcast %62 : vector<2x8x1xf32> to vector<2x8x8xf32>
    %64 = arith.subf %60, %63 : vector<2x8x8xf32>
    %65 = math.exp %64 : vector<2x8x8xf32>
    %cst_24 = arith.constant dense<0.000000e+00> : vector<2x8xf32>
    %66 = vector.multi_reduction <add>, %65, %cst_24 [2] : vector<2x8x8xf32> to vector<2x8xf32>
    %67 = vector.shape_cast %66 : vector<2x8xf32> to vector<2x8x1xf32>
    %68 = tpu.reciprocal %67 {approx = true} : vector<2x8x1xf32> -> vector<2x8x1xf32>
    %69 = vector.broadcast %68 : vector<2x8x1xf32> to vector<2x8x8xf32>
    %70 = arith.mulf %65, %69 : vector<2x8x8xf32>
    "tpu.trace_start"() <{level = 10 : i32, message = "bts,bsd->btd"}> : () -> ()
    %cst_25 = arith.constant dense<0.000000e+00> : vector<2x8x8xf32>
    %71 = tpu.matmul %70, %59, %cst_25 {dimension_numbers = #tpu.dot_dimension_numbers<[2], [1], [1], [2], [0, 0, 0, 1, 1, 2], [0], [0]>, precision = #tpu.contract_precision<fp32>} : vector<2x8x8xf32>, vector<2x8x8xf32>, vector<2x8x8xf32> -> vector<2x8x8xf32>
    "tpu.trace_stop"() : () -> ()
    %72 = vector.shape_cast %71 : vector<2x8x8xf32> to vector<16x8xf32>
    %c2 = arith.constant 2 : index
    %c0_26 = arith.constant 0 : index
    %c0_27 = arith.constant 0 : index
    %73 = vector.load %arg4[%c2, %c0_26, %c0_27] : memref<4x8x32xf32, #tpu.memory_space<vmem>>, vector<1x8x32xf32>
    %74 = vector.shape_cast %73 : vector<1x8x32xf32> to vector<8x32xf32>
    %cst_28 = arith.constant dense<0.000000e+00> : vector<16x32xf32>
    %75 = tpu.matmul %72, %74, %cst_28 {dimension_numbers = #tpu.dot_dimension_numbers<[1], [0], [0], [1], [0, 0, 1, 1], [], []>, precision = #tpu.contract_precision<fp32>} : vector<16x8xf32>, vector<8x32xf32>, vector<16x32xf32> -> vector<16x32xf32>
    %76 = arith.addf %53, %75 : vector<16x32xf32>
    %77 = vector.extract_strided_slice %6 {offsets = [0, 24], sizes = [16, 8], strides = [1, 1]} : vector<16x96xf32> to vector<16x8xf32>
    %78 = vector.shape_cast %77 : vector<16x8xf32> to vector<2x8x8xf32>
    %79 = vector.extract_strided_slice %6 {offsets = [0, 56], sizes = [16, 8], strides = [1, 1]} : vector<16x96xf32> to vector<16x8xf32>
    %80 = vector.shape_cast %79 : vector<16x8xf32> to vector<2x8x8xf32>
    %81 = vector.extract_strided_slice %6 {offsets = [0, 88], sizes = [16, 8], strides = [1, 1]} : vector<16x96xf32> to vector<16x8xf32>
    %82 = vector.shape_cast %81 : vector<16x8xf32> to vector<2x8x8xf32>
    "tpu.trace_start"() <{level = 10 : i32, message = "btd,bsd->bts"}> : () -> ()
    %cst_29 = arith.constant dense<0.000000e+00> : vector<2x8x8xf32>
    %83 = tpu.matmul %78, %80, %cst_29 {dimension_numbers = #tpu.dot_dimension_numbers<[2], [2], [1], [1], [0, 0, 0, 1, 1, 1], [0], [0]>, precision = #tpu.contract_precision<fp32>} : vector<2x8x8xf32>, vector<2x8x8xf32>, vector<2x8x8xf32> -> vector<2x8x8xf32>
    "tpu.trace_stop"() : () -> ()
    %cst_30 = arith.constant dense<0xFF800000> : vector<2x8xf32>
    %84 = vector.multi_reduction <maximumf>, %83, %cst_30 [2] : vector<2x8x8xf32> to vector<2x8xf32>
    %85 = vector.shape_cast %84 : vector<2x8xf32> to vector<2x8x1xf32>
    %86 = vector.broadcast %85 : vector<2x8x1xf32> to vector<2x8x8xf32>
    %87 = arith.subf %83, %86 : vector<2x8x8xf32>
    %88 = math.exp %87 : vector<2x8x8xf32>
    %cst_31 = arith.constant dense<0.000000e+00> : vector<2x8xf32>
    %89 = vector.multi_reduction <add>, %88, %cst_31 [2] : vector<2x8x8xf32> to vector<2x8xf32>
    %90 = vector.shape_cast %89 : vector<2x8xf32> to vector<2x8x1xf32>
    %91 = tpu.reciprocal %90 {approx = true} : vector<2x8x1xf32> -> vector<2x8x1xf32>
    %92 = vector.broadcast %91 : vector<2x8x1xf32> to vector<2x8x8xf32>
    %93 = arith.mulf %88, %92 : vector<2x8x8xf32>
    "tpu.trace_start"() <{level = 10 : i32, message = "bts,bsd->btd"}> : () -> ()
    %cst_32 = arith.constant dense<0.000000e+00> : vector<2x8x8xf32>
    %94 = tpu.matmul %93, %82, %cst_32 {dimension_numbers = #tpu.dot_dimension_numbers<[2], [1], [1], [2], [0, 0, 0, 1, 1, 2], [0], [0]>, precision = #tpu.contract_precision<fp32>} : vector<2x8x8xf32>, vector<2x8x8xf32>, vector<2x8x8xf32> -> vector<2x8x8xf32>
    "tpu.trace_stop"() : () -> ()
    %95 = vector.shape_cast %94 : vector<2x8x8xf32> to vector<16x8xf32>
    %c3 = arith.constant 3 : index
    %c0_33 = arith.constant 0 : index
    %c0_34 = arith.constant 0 : index
    %96 = vector.load %arg4[%c3, %c0_33, %c0_34] : memref<4x8x32xf32, #tpu.memory_space<vmem>>, vector<1x8x32xf32>
    %97 = vector.shape_cast %96 : vector<1x8x32xf32> to vector<8x32xf32>
    %cst_35 = arith.constant dense<0.000000e+00> : vector<16x32xf32>
    %98 = tpu.matmul %95, %97, %cst_35 {dimension_numbers = #tpu.dot_dimension_numbers<[1], [0], [0], [1], [0, 0, 1, 1], [], []>, precision = #tpu.contract_precision<fp32>} : vector<16x8xf32>, vector<8x32xf32>, vector<16x32xf32> -> vector<16x32xf32>
    %99 = arith.addf %76, %98 : vector<16x32xf32>
    %c0_36 = arith.constant 0 : index
    %c0_37 = arith.constant 0 : index
    %100 = vector.load %arg5[%c0_36, %c0_37] : memref<1x32xf32, #tpu.memory_space<vmem>>, vector<1x32xf32>
    %101 = vector.broadcast %100 : vector<1x32xf32> to vector<16x32xf32>
    %102 = arith.addf %99, %101 : vector<16x32xf32>
    %103 = vector.shape_cast %102 : vector<16x32xf32> to vector<2x8x32xf32>
    %c0_38 = arith.constant 0 : index
    %c0_39 = arith.constant 0 : index
    %c0_40 = arith.constant 0 : index
    %104 = vector.load %arg6[%c0_38, %c0_39, %c0_40] : memref<2x8x32xf32, #tpu.memory_space<vmem>>, vector<2x8x32xf32>
    tpu.vector_store %arg6[%c0_38, %c0_39, %c0_40], %103 {strides = array<i32>} : memref<2x8x32xf32, #tpu.memory_space<vmem>>, vector<2x8x32xf32>,
    return
  }
  func.func @transform_0(%arg0: i32) -> (i32, i32, i32) {
    %c0_i32 = arith.constant 0 : i32
    %c0_i32_0 = arith.constant 0 : i32
    %c0_i32_1 = arith.constant 0 : i32
    return %arg0, %c0_i32, %c0_i32_0 : i32, i32, i32
  }
  func.func @transform_1(%arg0: i32) -> (i32, i32) {
    %c0_i32 = arith.constant 0 : i32
    %c0_i32_0 = arith.constant 0 : i32
    %c0_i32_1 = arith.constant 0 : i32
    return %c0_i32, %c0_i32_0 : i32, i32
  }
  func.func @transform_2(%arg0: i32) -> (i32, i32) {
    %c0_i32 = arith.constant 0 : i32
    %c0_i32_0 = arith.constant 0 : i32
    %c0_i32_1 = arith.constant 0 : i32
    return %c0_i32, %c0_i32_0 : i32, i32
  }
  func.func @transform_3(%arg0: i32) -> (i32, i32, i32) {
    %c0_i32 = arith.constant 0 : i32
    %c0_i32_0 = arith.constant 0 : i32
    %c0_i32_1 = arith.constant 0 : i32
    %c0_i32_2 = arith.constant 0 : i32
    return %c0_i32, %c0_i32_0, %c0_i32_1 : i32, i32, i32
  }
  func.func @transform_4(%arg0: i32) -> (i32, i32) {
    %c0_i32 = arith.constant 0 : i32
    %c0_i32_0 = arith.constant 0 : i32
    %c0_i32_1 = arith.constant 0 : i32
    return %c0_i32, %c0_i32_0 : i32, i32
  }
  func.func @transform_5(%arg0: i32) -> (i32, i32, i32) {
    %c0_i32 = arith.constant 0 : i32
    %c0_i32_0 = arith.constant 0 : i32
    %c0_i32_1 = arith.constant 0 : i32
    return %arg0, %c0_i32, %c0_i32_0 : i32, i32, i32
  }
}

</mosaic_0001>

<llo_original>
// kernel: tpu_custom_call.1
$region0: #{tpu_custom_call.1}
  #allocation0 [shape = 'u32[]', space=smem, size = 0x4, offset = 0x4, fixed_abs, tag = 'smem constant byte address 0x4 - core index']
  #allocation1 [shape = 'u32[144,128]{1,0:T(1,128)}', space=vmem, size = 0x12000, scoped, tag = 'internal scratch']
  %s0 = inlined_call_operand.hbm [shape: f32[2,8,32], index: 0, kind: input, shape index: {}]
  %s1 = inlined_call_operand.hbm [shape: f32[32,96], index: 1, kind: input, shape index: {}]
  %s2 = inlined_call_operand.vmem [shape: f32[1,96], index: 2, kind: input, shape index: {}]
  %s3 = inlined_call_operand.hbm [shape: f32[4,8,32], index: 3, kind: input, shape index: {}]
  %s4 = inlined_call_operand.vmem [shape: f32[1,32], index: 4, kind: input, shape index: {}]
  %s5 = inlined_call_operand.hbm [shape: f32[2,8,32], index: 5, kind: output, shape index: {}]
  %s6 = sld [smem:[#allocation0]]
  $region42: #{tpu_custom_call.1} parent=0
    _
  %s8 = ssub.s32 1, %s6
  %s9 = scalar_select 0, %s8, %s6
  $region1: #{tpu_custom_call.1} parent=0
    #allocation2 [shape = 'u8[8192]{0}', space=vmem, size = 0x2000, scoped, tag = 'input window, operand 0, single buffered']
    #allocation3 [shape = 's32[1]{0}', space=sflag, size = 0x4, scoped, tag = 'scoped memory for tpu_custom_call.1']
    #allocation4 [shape = 's32[1]{0}', space=sflag, size = 0x4, scoped, tag = 'scoped memory for tpu_custom_call.1']
    #allocation5 [shape = 'u8[16384]{0}', space=vmem, size = 0x4000, scoped, tag = 'input window, operand 1, single buffered']
    #allocation6 [shape = 's32[1]{0}', space=sflag, size = 0x4, scoped, tag = 'scoped memory for tpu_custom_call.1']
    #allocation7 [shape = 'u8[16384]{0}', space=vmem, size = 0x4000, scoped, tag = 'input window, operand 3, single buffered']
    #allocation8 [shape = 'u8[8192]{0}', space=vmem, size = 0x2000, scoped, tag = 'output window, operand 0, single buffered']
    %10 = vsyncpa [#allocation3], 0
    %11 = vsyncpa [#allocation6], 0
    %12 = vsyncpa [#allocation4], 0
    // Predicated region
    $region2: #{tpu_custom_call.1} parent=1 // pred_check
      _
    $region3: #{tpu_custom_call.1} parent=1 // pred_check_branch
      %14 = sbr.rel (0) target = $region5
    $region4: #{tpu_custom_call.1} parent=1 // pred_region
      %s16 = ssub.s32 256, 256
      %17 = vsyncadd [#allocation3], %s16
      %s18 = sshll.u32 [#allocation2], 4
      %s19 = int_to_ptr.vmem [resolvable:$true] %s18
      %24 = dma.hbm_to_vmem [thread:$0]  %s0, 256, %s19, [#allocation3], 128, 128, 8
    $region5: #{tpu_custom_call.1} parent=1 // pred_fallthru
      _
    // Predicated region
    $region6: #{tpu_custom_call.1} parent=1 // pred_check
      _
    $region7: #{tpu_custom_call.1} parent=1 // pred_check_branch
      %26 = sbr.rel (0) target = $region9
    $region8: #{tpu_custom_call.1} parent=1 // pred_region
      %s28 = ssub.s32 512, 512
      %29 = vsyncadd [#allocation6], %s28
      %s30 = sshll.u32 [#allocation5], 4
      %s31 = int_to_ptr.vmem [resolvable:$true] %s30
      %36 = dma.hbm_to_vmem [thread:$0]  %s1, 512, %s31, [#allocation6], 128, 128, 8
    $region9: #{tpu_custom_call.1} parent=1 // pred_fallthru
      _
    // Predicated region
    $region10: #{tpu_custom_call.1} parent=1 // pred_check
      _
    $region11: #{tpu_custom_call.1} parent=1 // pred_check_branch
      %38 = sbr.rel (0) target = $region13
    $region12: #{tpu_custom_call.1} parent=1 // pred_region
      _
    $region13: #{tpu_custom_call.1} parent=1 // pred_fallthru
      _
    // Predicated region
    $region14: #{tpu_custom_call.1} parent=1 // pred_check
      _
    $region15: #{tpu_custom_call.1} parent=1 // pred_check_branch
      %40 = sbr.rel (0) target = $region17
    $region16: #{tpu_custom_call.1} parent=1 // pred_region
      %s42 = ssub.s32 512, 512
      %43 = vsyncadd [#allocation6], %s42
      %s44 = sshll.u32 [#allocation7], 4
      %s45 = int_to_ptr.vmem [resolvable:$true] %s44
      %50 = dma.hbm_to_vmem [thread:$0]  %s3, 512, %s45, [#allocation6], 128, 128, 8
    $region17: #{tpu_custom_call.1} parent=1 // pred_fallthru
      _
    // Predicated region
    $region18: #{tpu_custom_call.1} parent=1 // pred_check
      _
    $region19: #{tpu_custom_call.1} parent=1 // pred_check_branch
      %52 = sbr.rel (0) target = $region21
    $region20: #{tpu_custom_call.1} parent=1 // pred_region
      _
    $region21: #{tpu_custom_call.1} parent=1 // pred_fallthru
      _
    // Predicated region
    $region22: #{tpu_custom_call.1} parent=1 // pred_check
      _
    $region23: #{tpu_custom_call.1} parent=1 // pred_check_branch
      %54 = sbr.rel (0) target = $region25
    $region24: #{tpu_custom_call.1} parent=1 // pred_region
      %55 = dma.done [#allocation3], 256
    $region25: #{tpu_custom_call.1} parent=1 // pred_fallthru
      _
    // Predicated region
    $region26: #{tpu_custom_call.1} parent=1 // pred_check
      _
    $region27: #{tpu_custom_call.1} parent=1 // pred_check_branch
      %57 = sbr.rel (0) target = $region29
    $region28: #{tpu_custom_call.1} parent=1 // pred_region
      %58 = dma.done [#allocation6], 512
    $region29: #{tpu_custom_call.1} parent=1 // pred_fallthru
      _
    // Predicated region
    $region30: #{tpu_custom_call.1} parent=1 // pred_check
      _
    $region31: #{tpu_custom_call.1} parent=1 // pred_check_branch
      %60 = sbr.rel (0) target = $region33
    $region32: #{tpu_custom_call.1} parent=1 // pred_region
      %61 = dma.done [#allocation6], 512
    $region33: #{tpu_custom_call.1} parent=1 // pred_fallthru
      _
    %v62 = vld [vmem:[#allocation2] sm:$0xff]
    %v63 = vld [vmem:[#allocation2 + $0x8] sm:$0xff]
    %v64 = vld [vmem:[#allocation5] sm:$0xff]
    %v65 = vld [vmem:[#allocation5 + $0x8] sm:$0xff]
    %v66 = vld [vmem:[#allocation5 + $0x10] sm:$0xff]
    %v67 = vld [vmem:[#allocation5 + $0x18] sm:$0xff]
    %v68 = vld [vmem:[%s2] sm:$0x1]
    %v70 = vlaneseq
    %v71 = vshrl.u32 %v70, 7
    %v72 = vsub.s32 0, %v71
    %v73 = vrot.slane %v68, %v72
    %vm75 = vcmask 261120
    %v77 = vsel %vm75, %v62, 0
    %v80 = vsel %vm75, %v63, 0
    %82 = vmatprep.subr.mxu0 0.0
    %v83 = vand.u32 %v64, 4294901760
    %84 = vmatpush1.msra.mxu0 %v83
    %85 = vmatprep.subr.mxu0 0.0
    %v86 = vand.u32 %v65, 4294901760
    %87 = vmatpush1.msra.mxu0 %v86
    %88 = vmatprep.subr.mxu0 0.0
    %v89 = vand.u32 %v66, 4294901760
    %90 = vmatpush1.msra.mxu0 %v89
    %91 = vmatprep.subr.mxu0 0.0
    %v92 = vand.u32 %v67, 4294901760
    %93 = vmatpush1.msra.mxu0 %v92
    %94 = vmatprep.subr.mxu0 0.0
    %95 = vmatpush1.msra.mxu0 0.0
    %96 = vmatprep.subr.mxu0 0.0
    %97 = vmatpush1.msra.mxu0 0.0
    %98 = vmatprep.subr.mxu0 0.0
    %99 = vmatpush1.msra.mxu0 0.0
    %100 = vmatprep.subr.mxu0 0.0
    %101 = vmatpush1.msra.mxu0 0.0
    %102 = vmatprep.subr.mxu0 0.0
    %103 = vmatpush1.msra.mxu0 0.0
    %104 = vmatprep.subr.mxu0 0.0
    %105 = vmatpush1.msra.mxu0 0.0
    %106 = vmatprep.subr.mxu0 0.0
    %107 = vmatpush1.msra.mxu0 0.0
    %108 = vmatprep.subr.mxu0 0.0
    %109 = vmatpush1.msra.mxu0 0.0
    %110 = vmatprep.subr.mxu0 0.0
    %111 = vmatpush1.msra.mxu0 0.0
    %112 = vmatprep.subr.mxu0 0.0
    %113 = vmatpush1.msra.mxu0 0.0
    %114 = vmatprep.subr.mxu0 0.0
    %115 = vmatpush1.msra.mxu0 0.0
    %116 = vmatprep.subr.mxu0 0.0
    %117 = vmatpush1.msra.mxu0 0.0
    %118 = vmatprep.subr.mxu0 0.0
    %119 = vmatpush1.msra.mxu0 0.0
    %120 = vmatprep.subr.mxu0 0.0
    %121 = vmatpush1.msra.mxu0 0.0
    %122 = vmatprep.subr.mxu0 0.0
    %123 = vmatpush1.msra.mxu0 0.0
    %124 = vmatprep.subr.mxu0 0.0
    %125 = vmatpush1.msra.mxu0 0.0
    %126 = vmatprep.subr.mxu0 0.0
    %127 = vmatpush1.msra.mxu0 0.0
    %128 = vmatprep.subr.mxu0 0.0
    %129 = vmatpush1.msra.mxu0 0.0
    %130 = vmatprep.subr.mxu0 0.0
    %131 = vmatpush1.msra.mxu0 0.0
    %132 = vmatprep.subr.mxu0 0.0
    %133 = vmatpush1.msra.mxu0 0.0
    %134 = vmatprep.subr.mxu0 0.0
    %135 = vmatpush1.msra.mxu0 0.0
    %136 = vmatprep.subr.mxu0 0.0
    %137 = vmatpush1.msra.mxu0 0.0
    %138 = vmatprep.subr.mxu0 0.0
    %139 = vmatpush1.msra.mxu0 0.0
    %140 = vmatprep.subr.mxu0 0.0
    %141 = vmatpush1.msra.mxu0 0.0
    %142 = vmatprep.subr.mxu0 0.0
    %143 = vmatpush1.msra.mxu0 0.0
    %144 = vmatprep.subr.mxu0 0.0
    %145 = vmatpush1.msra.mxu0 0.0
    %146 = vmatprep.subr.mxu0 0.0
    %147 = vmatpush1.msra.mxu0 0.0
    %148 = vmatprep.subr.mxu0 0.0
    %149 = vmatpush1.msra.mxu0 0.0
    %150 = vmatprep.mubr.f32.mxu0 0.0
    %v151 = vand.u32 %v77, 4294901760
    %v152 = vsub.f32 %v77, %v151
    %v153 = vand.u32 %v152, 4294901760
    %v154 = vsub.f32 %v152, %v153
    %v155 = vand.u32 %v154, 4294901760
    %156 = vmatmul.mubr.f32.gmra.mrb[0].mxu0 %v155
    %v157 = vpop.f32.mrb[0].mxu0
    %v158 = vadd.f32 %v73, %v157
    %v159 = vpop.f32.mrb[0].mxu0
    %160 = vmatprep.mubr.f32.mxu0 0.0
    %v161 = vand.u32 %v80, 4294901760
    %v162 = vsub.f32 %v80, %v161
    %v163 = vand.u32 %v162, 4294901760
    %v164 = vsub.f32 %v162, %v163
    %v165 = vand.u32 %v164, 4294901760
    %166 = vmatmul.mubr.f32.gmra.mrb[0].mxu0 %v165
    %v167 = vpop.f32.mrb[0].mxu0
    %v168 = vadd.f32 %v73, %v167
    %v169 = vpop.f32.mrb[0].mxu0
    %170 = vdwg.mxu0
    %171 = vmatprep.subr.mxu0 0.0
    %v172 = vand.u32 %v64, 4294901760
    %v173 = vsub.f32 %v64, %v172
    %v174 = vand.u32 %v173, 4294901760
    %v175 = vsub.f32 %v173, %v174
    %v176 = vand.u32 %v175, 4294901760
    %177 = vmatpush1.msra.mxu0 %v176
    %178 = vmatprep.subr.mxu0 0.0
    %v179 = vand.u32 %v65, 4294901760
    %v180 = vsub.f32 %v65, %v179
    %v181 = vand.u32 %v180, 4294901760
    %v182 = vsub.f32 %v180, %v181
    %v183 = vand.u32 %v182, 4294901760
    %184 = vmatpush1.msra.mxu0 %v183
    %185 = vmatprep.subr.mxu0 0.0
    %v186 = vand.u32 %v66, 4294901760
    %v187 = vsub.f32 %v66, %v186
    %v188 = vand.u32 %v187, 4294901760
    %v189 = vsub.f32 %v187, %v188
    %v190 = vand.u32 %v189, 4294901760
    %191 = vmatpush1.msra.mxu0 %v190
    %192 = vmatprep.subr.mxu0 0.0
    %v193 = vand.u32 %v67, 4294901760
    %v194 = vsub.f32 %v67, %v193
    %v195 = vand.u32 %v194, 4294901760
    %v196 = vsub.f32 %v194, %v195
    %v197 = vand.u32 %v196, 4294901760
    %198 = vmatpush1.msra.mxu0 %v197
    %199 = vmatprep.subr.mxu0 0.0
    %200 = vmatpush1.msra.mxu0 0.0
    %201 = vmatprep.subr.mxu0 0.0
    %202 = vmatpush1.msra.mxu0 0.0
    %203 = vmatprep.subr.mxu0 0.0
    %204 = vmatpush1.msra.mxu0 0.0
    %205 = vmatprep.subr.mxu0 0.0
    %206 = vmatpush1.msra.mxu0 0.0
    %207 = vmatprep.subr.mxu0 0.0
    %208 = vmatpush1.msra.mxu0 0.0
    %209 = vmatprep.subr.mxu0 0.0
    %210 = vmatpush1.msra.mxu0 0.0
    %211 = vmatprep.subr.mxu0 0.0
    %212 = vmatpush1.msra.mxu0 0.0
    %213 = vmatprep.subr.mxu0 0.0
    %214 = vmatpush1.msra.mxu0 0.0
    %215 = vmatprep.subr.mxu0 0.0
    %216 = vmatpush1.msra.mxu0 0.0
    %217 = vmatprep.subr.mxu0 0.0
    %218 = vmatpush1.msra.mxu0 0.0
    %219 = vmatprep.subr.mxu0 0.0
    %220 = vmatpush1.msra.mxu0 0.0
    %221 = vmatprep.subr.mxu0 0.0
    %222 = vmatpush1.msra.mxu0 0.0
    %223 = vmatprep.subr.mxu0 0.0
    %224 = vmatpush1.msra.mxu0 0.0
    %225 = vmatprep.subr.mxu0 0.0
    %226 = vmatpush1.msra.mxu0 0.0
    %227 = vmatprep.subr.mxu0 0.0
    %228 = vmatpush1.msra.mxu0 0.0
    %229 = vmatprep.subr.mxu0 0.0
    %230 = vmatpush1.msra.mxu0 0.0
    %231 = vmatprep.subr.mxu0 0.0
    %232 = vmatpush1.msra.mxu0 0.0
    %233 = vmatprep.subr.mxu0 0.0
    %234 = vmatpush1.msra.mxu0 0.0
    %235 = vmatprep.subr.mxu0 0.0
    %236 = vmatpush1.msra.mxu0 0.0
    %237 = vmatprep.subr.mxu0 0.0
    %238 = vmatpush1.msra.mxu0 0.0
    %239 = vmatprep.subr.mxu0 0.0
    %240 = vmatpush1.msra.mxu0 0.0
    %241 = vmatprep.subr.mxu0 0.0
    %242 = vmatpush1.msra.mxu0 0.0
    %243 = vmatprep.subr.mxu0 0.0
    %244 = vmatpush1.msra.mxu0 0.0
    %245 = vmatprep.subr.mxu0 0.0
    %246 = vmatpush1.msra.mxu0 0.0
    %247 = vmatprep.subr.mxu0 0.0
    %248 = vmatpush1.msra.mxu0 0.0
    %249 = vmatprep.subr.mxu0 0.0
    %250 = vmatpush1.msra.mxu0 0.0
    %251 = vmatprep.subr.mxu0 0.0
    %252 = vmatpush1.msra.mxu0 0.0
    %253 = vmatprep.subr.mxu0 0.0
    %254 = vmatpush1.msra.mxu0 0.0
    %255 = vmatprep.mubr.f32.mxu0 0.0
    %v256 = vand.u32 %v77, 4294901760
    %257 = vmatmul.mubr.f32.gmra.mrb[0].mxu0 %v256
    %v258 = vpop.f32.mrb[0].mxu0
    %v259 = vadd.f32 %v158, %v258
    %v260 = vpop.f32.mrb[0].mxu0
    %261 = vmatprep.mubr.f32.mxu0 0.0
    %v262 = vand.u32 %v80, 4294901760
    %263 = vmatmul.mubr.f32.gmra.mrb[0].mxu0 %v262
    %v264 = vpop.f32.mrb[0].mxu0
    %v265 = vadd.f32 %v168, %v264
    %v266 = vpop.f32.mrb[0].mxu0
    %267 = vdwg.mxu0
    %268 = vmatprep.subr.mxu0 0.0
    %v269 = vand.u32 %v64, 4294901760
    %v270 = vsub.f32 %v64, %v269
    %271 = vmatpush1.msra.mxu0 %v270
    %272 = vmatprep.subr.mxu0 0.0
    %v273 = vand.u32 %v65, 4294901760
    %v274 = vsub.f32 %v65, %v273
    %275 = vmatpush1.msra.mxu0 %v274
    %276 = vmatprep.subr.mxu0 0.0
    %v277 = vand.u32 %v66, 4294901760
    %v278 = vsub.f32 %v66, %v277
    %279 = vmatpush1.msra.mxu0 %v278
    %280 = vmatprep.subr.mxu0 0.0
    %v281 = vand.u32 %v67, 4294901760
    %v282 = vsub.f32 %v67, %v281
    %283 = vmatpush1.msra.mxu0 %v282
    %284 = vmatprep.subr.mxu0 0.0
    %285 = vmatpush1.msra.mxu0 0.0
    %286 = vmatprep.subr.mxu0 0.0
    %287 = vmatpush1.msra.mxu0 0.0
    %288 = vmatprep.subr.mxu0 0.0
    %289 = vmatpush1.msra.mxu0 0.0
    %290 = vmatprep.subr.mxu0 0.0
    %291 = vmatpush1.msra.mxu0 0.0
    %292 = vmatprep.subr.mxu0 0.0
    %293 = vmatpush1.msra.mxu0 0.0
    %294 = vmatprep.subr.mxu0 0.0
    %295 = vmatpush1.msra.mxu0 0.0
    %296 = vmatprep.subr.mxu0 0.0
    %297 = vmatpush1.msra.mxu0 0.0
    %298 = vmatprep.subr.mxu0 0.0
    %299 = vmatpush1.msra.mxu0 0.0
    %300 = vmatprep.subr.mxu0 0.0
    %301 = vmatpush1.msra.mxu0 0.0
    %302 = vmatprep.subr.mxu0 0.0
    %303 = vmatpush1.msra.mxu0 0.0
    %304 = vmatprep.subr.mxu0 0.0
    %305 = vmatpush1.msra.mxu0 0.0
    %306 = vmatprep.subr.mxu0 0.0
    %307 = vmatpush1.msra.mxu0 0.0
    %308 = vmatprep.subr.mxu0 0.0
    %309 = vmatpush1.msra.mxu0 0.0
    %310 = vmatprep.subr.mxu0 0.0
    %311 = vmatpush1.msra.mxu0 0.0
    %312 = vmatprep.subr.mxu0 0.0
    %313 = vmatpush1.msra.mxu0 0.0
    %314 = vmatprep.subr.mxu0 0.0
    %315 = vmatpush1.msra.mxu0 0.0
    %316 = vmatprep.subr.mxu0 0.0
    %317 = vmatpush1.msra.mxu0 0.0
    %318 = vmatprep.subr.mxu0 0.0
    %319 = vmatpush1.msra.mxu0 0.0
    %320 = vmatprep.subr.mxu0 0.0
    %321 = vmatpush1.msra.mxu0 0.0
    %322 = vmatprep.subr.mxu0 0.0
    %323 = vmatpush1.msra.mxu0 0.0
    %324 = vmatprep.subr.mxu0 0.0
    %325 = vmatpush1.msra.mxu0 0.0
    %326 = vmatprep.subr.mxu0 0.0
    %327 = vmatpush1.msra.mxu0 0.0
    %328 = vmatprep.subr.mxu0 0.0
    %329 = vmatpush1.msra.mxu0 0.0
    %330 = vmatprep.subr.mxu0 0.0
    %331 = vmatpush1.msra.mxu0 0.0
    %332 = vmatprep.subr.mxu0 0.0
    %333 = vmatpush1.msra.mxu0 0.0
    %334 = vmatprep.subr.mxu0 0.0
    %335 = vmatpush1.msra.mxu0 0.0
    %336 = vmatprep.subr.mxu0 0.0
    %337 = vmatpush1.msra.mxu0 0.0
    %338 = vmatprep.subr.mxu0 0.0
    %339 = vmatpush1.msra.mxu0 0.0
    %340 = vmatprep.mubr.f32.mxu0 0.0
    %v341 = vand.u32 %v77, 4294901760
    %v342 = vsub.f32 %v77, %v341
    %343 = vmatmul.mubr.f32.gmra.mrb[0].mxu0 %v342
    %v344 = vpop.f32.mrb[0].mxu0
    %v345 = vadd.f32 %v259, %v344
    %v346 = vpop.f32.mrb[0].mxu0
    %347 = vmatprep.mubr.f32.mxu0 0.0
    %v348 = vand.u32 %v80, 4294901760
    %v349 = vsub.f32 %v80, %v348
    %350 = vmatmul.mubr.f32.gmra.mrb[0].mxu0 %v349
    %v351 = vpop.f32.mrb[0].mxu0
    %v352 = vadd.f32 %v265, %v351
    %v353 = vpop.f32.mrb[0].mxu0
    %354 = vdwg.mxu0
    %355 = vmatprep.subr.mxu0 0.0
    %v356 = vand.u32 %v64, 4294901760
    %357 = vmatpush1.msra.mxu0 %v356
    %358 = vmatprep.subr.mxu0 0.0
    %v359 = vand.u32 %v65, 4294901760
    %360 = vmatpush1.msra.mxu0 %v359
    %361 = vmatprep.subr.mxu0 0.0
    %v362 = vand.u32 %v66, 4294901760
    %363 = vmatpush1.msra.mxu0 %v362
    %364 = vmatprep.subr.mxu0 0.0
    %v365 = vand.u32 %v67, 4294901760
    %366 = vmatpush1.msra.mxu0 %v365
    %367 = vmatprep.subr.mxu0 0.0
    %368 = vmatpush1.msra.mxu0 0.0
    %369 = vmatprep.subr.mxu0 0.0
    %370 = vmatpush1.msra.mxu0 0.0
    %371 = vmatprep.subr.mxu0 0.0
    %372 = vmatpush1.msra.mxu0 0.0
    %373 = vmatprep.subr.mxu0 0.0
    %374 = vmatpush1.msra.mxu0 0.0
    %375 = vmatprep.subr.mxu0 0.0
    %376 = vmatpush1.msra.mxu0 0.0
    %377 = vmatprep.subr.mxu0 0.0
    %378 = vmatpush1.msra.mxu0 0.0
    %379 = vmatprep.subr.mxu0 0.0
    %380 = vmatpush1.msra.mxu0 0.0
    %381 = vmatprep.subr.mxu0 0.0
    %382 = vmatpush1.msra.mxu0 0.0
    %383 = vmatprep.subr.mxu0 0.0
    %384 = vmatpush1.msra.mxu0 0.0
    %385 = vmatprep.subr.mxu0 0.0
    %386 = vmatpush1.msra.mxu0 0.0
    %387 = vmatprep.subr.mxu0 0.0
    %388 = vmatpush1.msra.mxu0 0.0
    %389 = vmatprep.subr.mxu0 0.0
    %390 = vmatpush1.msra.mxu0 0.0
    %391 = vmatprep.subr.mxu0 0.0
    %392 = vmatpush1.msra.mxu0 0.0
    %393 = vmatprep.subr.mxu0 0.0
    %394 = vmatpush1.msra.mxu0 0.0
    %395 = vmatprep.subr.mxu0 0.0
    %396 = vmatpush1.msra.mxu0 0.0
    %397 = vmatprep.subr.mxu0 0.0
    %398 = vmatpush1.msra.mxu0 0.0
    %399 = vmatprep.subr.mxu0 0.0
    %400 = vmatpush1.msra.mxu0 0.0
    %401 = vmatprep.subr.mxu0 0.0
    %402 = vmatpush1.msra.mxu0 0.0
    %403 = vmatprep.subr.mxu0 0.0
    %404 = vmatpush1.msra.mxu0 0.0
    %405 = vmatprep.subr.mxu0 0.0
    %406 = vmatpush1.msra.mxu0 0.0
    %407 = vmatprep.subr.mxu0 0.0
    %408 = vmatpush1.msra.mxu0 0.0
    %409 = vmatprep.subr.mxu0 0.0
    %410 = vmatpush1.msra.mxu0 0.0
    %411 = vmatprep.subr.mxu0 0.0
    %412 = vmatpush1.msra.mxu0 0.0
    %413 = vmatprep.subr.mxu0 0.0
    %414 = vmatpush1.msra.mxu0 0.0
    %415 = vmatprep.subr.mxu0 0.0
    %416 = vmatpush1.msra.mxu0 0.0
    %417 = vmatprep.subr.mxu0 0.0
    %418 = vmatpush1.msra.mxu0 0.0
    %419 = vmatprep.subr.mxu0 0.0
    %420 = vmatpush1.msra.mxu0 0.0
    %421 = vmatprep.subr.mxu0 0.0
    %422 = vmatpush1.msra.mxu0 0.0
    %423 = vmatprep.mubr.f32.mxu0 0.0
    %v424 = vand.u32 %v77, 4294901760
    %v425 = vsub.f32 %v77, %v424
    %v426 = vand.u32 %v425, 4294901760
    %427 = vmatmul.mubr.f32.gmra.mrb[0].mxu0 %v426
    %v428 = vpop.f32.mrb[0].mxu0
    %v429 = vadd.f32 %v345, %v428
    %v430 = vpop.f32.mrb[0].mxu0
    %431 = vmatprep.mubr.f32.mxu0 0.0
    %v432 = vand.u32 %v80, 4294901760
    %v433 = vsub.f32 %v80, %v432
    %v434 = vand.u32 %v433, 4294901760
    %435 = vmatmul.mubr.f32.gmra.mrb[0].mxu0 %v434
    %v436 = vpop.f32.mrb[0].mxu0
    %v437 = vadd.f32 %v352, %v436
    %v438 = vpop.f32.mrb[0].mxu0
    %439 = vdwg.mxu0
    %440 = vmatprep.subr.mxu0 0.0
    %v441 = vand.u32 %v64, 4294901760
    %v442 = vsub.f32 %v64, %v441
    %v443 = vand.u32 %v442, 4294901760
    %444 = vmatpush1.msra.mxu0 %v443
    %445 = vmatprep.subr.mxu0 0.0
    %v446 = vand.u32 %v65, 4294901760
    %v447 = vsub.f32 %v65, %v446
    %v448 = vand.u32 %v447, 4294901760
    %449 = vmatpush1.msra.mxu0 %v448
    %450 = vmatprep.subr.mxu0 0.0
    %v451 = vand.u32 %v66, 4294901760
    %v452 = vsub.f32 %v66, %v451
    %v453 = vand.u32 %v452, 4294901760
    %454 = vmatpush1.msra.mxu0 %v453
    %455 = vmatprep.subr.mxu0 0.0
    %v456 = vand.u32 %v67, 4294901760
    %v457 = vsub.f32 %v67, %v456
    %v458 = vand.u32 %v457, 4294901760
    %459 = vmatpush1.msra.mxu0 %v458
    %460 = vmatprep.subr.mxu0 0.0
    %461 = vmatpush1.msra.mxu0 0.0
    %462 = vmatprep.subr.mxu0 0.0
    %463 = vmatpush1.msra.mxu0 0.0
    %464 = vmatprep.subr.mxu0 0.0
    %465 = vmatpush1.msra.mxu0 0.0
    %466 = vmatprep.subr.mxu0 0.0
    %467 = vmatpush1.msra.mxu0 0.0
    %468 = vmatprep.subr.mxu0 0.0
    %469 = vmatpush1.msra.mxu0 0.0
    %470 = vmatprep.subr.mxu0 0.0
    %471 = vmatpush1.msra.mxu0 0.0
    %472 = vmatprep.subr.mxu0 0.0
    %473 = vmatpush1.msra.mxu0 0.0
    %474 = vmatprep.subr.mxu0 0.0
    %475 = vmatpush1.msra.mxu0 0.0
    %476 = vmatprep.subr.mxu0 0.0
    %477 = vmatpush1.msra.mxu0 0.0
    %478 = vmatprep.subr.mxu0 0.0
    %479 = vmatpush1.msra.mxu0 0.0
    %480 = vmatprep.subr.mxu0 0.0
    %481 = vmatpush1.msra.mxu0 0.0
    %482 = vmatprep.subr.mxu0 0.0
    %483 = vmatpush1.msra.mxu0 0.0
    %484 = vmatprep.subr.mxu0 0.0
    %485 = vmatpush1.msra.mxu0 0.0
    %486 = vmatprep.subr.mxu0 0.0
    %487 = vmatpush1.msra.mxu0 0.0
    %488 = vmatprep.subr.mxu0 0.0
    %489 = vmatpush1.msra.mxu0 0.0
    %490 = vmatprep.subr.mxu0 0.0
    %491 = vmatpush1.msra.mxu0 0.0
    %492 = vmatprep.subr.mxu0 0.0
    %493 = vmatpush1.msra.mxu0 0.0
    %494 = vmatprep.subr.mxu0 0.0
    %495 = vmatpush1.msra.mxu0 0.0
    %496 = vmatprep.subr.mxu0 0.0
    %497 = vmatpush1.msra.mxu0 0.0
    %498 = vmatprep.subr.mxu0 0.0
    %499 = vmatpush1.msra.mxu0 0.0
    %500 = vmatprep.subr.mxu0 0.0
    %501 = vmatpush1.msra.mxu0 0.0
    %502 = vmatprep.subr.mxu0 0.0
    %503 = vmatpush1.msra.mxu0 0.0
    %504 = vmatprep.subr.mxu0 0.0
    %505 = vmatpush1.msra.mxu0 0.0
    %506 = vmatprep.subr.mxu0 0.0
    %507 = vmatpush1.msra.mxu0 0.0
    %508 = vmatprep.subr.mxu0 0.0
    %509 = vmatpush1.msra.mxu0 0.0
    %510 = vmatprep.subr.mxu0 0.0
    %511 = vmatpush1.msra.mxu0 0.0
    %512 = vmatprep.subr.mxu0 0.0
    %513 = vmatpush1.msra.mxu0 0.0
    %514 = vmatprep.subr.mxu0 0.0
    %515 = vmatpush1.msra.mxu0 0.0
    %516 = vmatprep.mubr.f32.mxu0 0.0
    %v517 = vand.u32 %v77, 4294901760
    %518 = vmatmul.mubr.f32.gmra.mrb[0].mxu0 %v517
    %v519 = vpop.f32.mrb[0].mxu0
    %v520 = vadd.f32 %v429, %v519
    %v521 = vpop.f32.mrb[0].mxu0
    %522 = vmatprep.mubr.f32.mxu0 0.0
    %v523 = vand.u32 %v80, 4294901760
    %524 = vmatmul.mubr.f32.gmra.mrb[0].mxu0 %v523
    %v525 = vpop.f32.mrb[0].mxu0
    %v526 = vadd.f32 %v437, %v525
    %v527 = vpop.f32.mrb[0].mxu0
    %528 = vdwg.mxu0
    %529 = vmatprep.subr.mxu0 0.0
    %v530 = vand.u32 %v64, 4294901760
    %531 = vmatpush1.msra.mxu0 %v530
    %532 = vmatprep.subr.mxu0 0.0
    %v533 = vand.u32 %v65, 4294901760
    %534 = vmatpush1.msra.mxu0 %v533
    %535 = vmatprep.subr.mxu0 0.0
    %v536 = vand.u32 %v66, 4294901760
    %537 = vmatpush1.msra.mxu0 %v536
    %538 = vmatprep.subr.mxu0 0.0
    %v539 = vand.u32 %v67, 4294901760
    %540 = vmatpush1.msra.mxu0 %v539
    %541 = vmatprep.subr.mxu0 0.0
    %542 = vmatpush1.msra.mxu0 0.0
    %543 = vmatprep.subr.mxu0 0.0
    %544 = vmatpush1.msra.mxu0 0.0
    %545 = vmatprep.subr.mxu0 0.0
    %546 = vmatpush1.msra.mxu0 0.0
    %547 = vmatprep.subr.mxu0 0.0
    %548 = vmatpush1.msra.mxu0 0.0
    %549 = vmatprep.subr.mxu0 0.0
    %550 = vmatpush1.msra.mxu0 0.0
    %551 = vmatprep.subr.mxu0 0.0
    %552 = vmatpush1.msra.mxu0 0.0
    %553 = vmatprep.subr.mxu0 0.0
    %554 = vmatpush1.msra.mxu0 0.0
    %555 = vmatprep.subr.mxu0 0.0
    %556 = vmatpush1.msra.mxu0 0.0
    %557 = vmatprep.subr.mxu0 0.0
    %558 = vmatpush1.msra.mxu0 0.0
    %559 = vmatprep.subr.mxu0 0.0
    %560 = vmatpush1.msra.mxu0 0.0
    %561 = vmatprep.subr.mxu0 0.0
    %562 = vmatpush1.msra.mxu0 0.0
    %563 = vmatprep.subr.mxu0 0.0
    %564 = vmatpush1.msra.mxu0 0.0
    %565 = vmatprep.subr.mxu0 0.0
    %566 = vmatpush1.msra.mxu0 0.0
    %567 = vmatprep.subr.mxu0 0.0
    %568 = vmatpush1.msra.mxu0 0.0
    %569 = vmatprep.subr.mxu0 0.0
    %570 = vmatpush1.msra.mxu0 0.0
    %571 = vmatprep.subr.mxu0 0.0
    %572 = vmatpush1.msra.mxu0 0.0
    %573 = vmatprep.subr.mxu0 0.0
    %574 = vmatpush1.msra.mxu0 0.0
    %575 = vmatprep.subr.mxu0 0.0
    %576 = vmatpush1.msra.mxu0 0.0
    %577 = vmatprep.subr.mxu0 0.0
    %578 = vmatpush1.msra.mxu0 0.0
    %579 = vmatprep.subr.mxu0 0.0
    %580 = vmatpush1.msra.mxu0 0.0
    %581 = vmatprep.subr.mxu0 0.0
    %582 = vmatpush1.msra.mxu0 0.0
    %583 = vmatprep.subr.mxu0 0.0
    %584 = vmatpush1.msra.mxu0 0.0
    %585 = vmatprep.subr.mxu0 0.0
    %586 = vmatpush1.msra.mxu0 0.0
    %587 = vmatprep.subr.mxu0 0.0
    %588 = vmatpush1.msra.mxu0 0.0
    %589 = vmatprep.subr.mxu0 0.0
    %590 = vmatpush1.msra.mxu0 0.0
    %591 = vmatprep.subr.mxu0 0.0
    %592 = vmatpush1.msra.mxu0 0.0
    %593 = vmatprep.subr.mxu0 0.0
    %594 = vmatpush1.msra.mxu0 0.0
    %595 = vmatprep.subr.mxu0 0.0
    %596 = vmatpush1.msra.mxu0 0.0
    %597 = vmatprep.mubr.f32.mxu0 0.0
    %v598 = vand.u32 %v77, 4294901760
    %599 = vmatmul.mubr.f32.gmra.mrb[0].mxu0 %v598
    %v600 = vpop.f32.mrb[0].mxu0
    %v601 = vadd.f32 %v520, %v600
    %v602 = vpop.f32.mrb[0].mxu0
    %603 = vmatprep.mubr.f32.mxu0 0.0
    %v604 = vand.u32 %v80, 4294901760
    %605 = vmatmul.mubr.f32.gmra.mrb[0].mxu0 %v604
    %v606 = vpop.f32.mrb[0].mxu0
    %v607 = vadd.f32 %v526, %v606
    %v608 = vpop.f32.mrb[0].mxu0
    %609 = vdwg.mxu0
    %611 = vrot.lane.b32.xlu0 %v601, 96
    %v612 = vpop.permute.xlu0 %611
    %vm613 = vcmask 64512
    %v614 = vsel %vm613, %v601, 0
    %v616 = vsel %vm613, %v612, 0
    %618 = vmatprep.subr.mxu0 0.0
    %v619 = vand.u32 %v616, 4294901760
    %620 = vmatpush1.xpose.msra.mxu0 %v619
    %621 = vmatprep.subr.mxu0 0.0
    %622 = vmatpush1.xpose.msra.mxu0 0.0
    %623 = vmatprep.subr.mxu0 0.0
    %624 = vmatpush1.xpose.msra.mxu0 0.0
    %625 = vmatprep.subr.mxu0 0.0
    %626 = vmatpush1.xpose.msra.mxu0 0.0
    %627 = vmatprep.subr.mxu0 0.0
    %628 = vmatpush1.xpose.msra.mxu0 0.0
    %629 = vmatprep.subr.mxu0 0.0
    %630 = vmatpush1.xpose.msra.mxu0 0.0
    %631 = vmatprep.subr.mxu0 0.0
    %632 = vmatpush1.xpose.msra.mxu0 0.0
    %633 = vmatprep.subr.mxu0 0.0
    %634 = vmatpush1.xpose.msra.mxu0 0.0
    %635 = vmatprep.subr.mxu0 0.0
    %636 = vmatpush1.xpose.msra.mxu0 0.0
    %637 = vmatprep.subr.mxu0 0.0
    %638 = vmatpush1.xpose.msra.mxu0 0.0
    %639 = vmatprep.subr.mxu0 0.0
    %640 = vmatpush1.xpose.msra.mxu0 0.0
    %641 = vmatprep.subr.mxu0 0.0
    %642 = vmatpush1.xpose.msra.mxu0 0.0
    %643 = vmatprep.subr.mxu0 0.0
    %644 = vmatpush1.xpose.msra.mxu0 0.0
    %645 = vmatprep.subr.mxu0 0.0
    %646 = vmatpush1.xpose.msra.mxu0 0.0
    %647 = vmatprep.subr.mxu0 0.0
    %648 = vmatpush1.xpose.msra.mxu0 0.0
    %649 = vmatprep.subr.mxu0 0.0
    %650 = vmatpush1.xpose.msra.mxu0 0.0
    %651 = vmatprep.subr.mxu0 0.0
    %652 = vmatpush1.xpose.msra.mxu0 0.0
    %653 = vmatprep.subr.mxu0 0.0
    %654 = vmatpush1.xpose.msra.mxu0 0.0
    %655 = vmatprep.subr.mxu0 0.0
    %656 = vmatpush1.xpose.msra.mxu0 0.0
    %657 = vmatprep.subr.mxu0 0.0
    %658 = vmatpush1.xpose.msra.mxu0 0.0
    %659 = vmatprep.subr.mxu0 0.0
    %660 = vmatpush1.xpose.msra.mxu0 0.0
    %661 = vmatprep.subr.mxu0 0.0
    %662 = vmatpush1.xpose.msra.mxu0 0.0
    %663 = vmatprep.subr.mxu0 0.0
    %664 = vmatpush1.xpose.msra.mxu0 0.0
    %665 = vmatprep.subr.mxu0 0.0
    %666 = vmatpush1.xpose.msra.mxu0 0.0
    %667 = vmatprep.subr.mxu0 0.0
    %668 = vmatpush1.xpose.msra.mxu0 0.0
    %669 = vmatprep.subr.mxu0 0.0
    %670 = vmatpush1.xpose.msra.mxu0 0.0
    %671 = vmatprep.subr.mxu0 0.0
    %672 = vmatpush1.xpose.msra.mxu0 0.0
    %673 = vmatprep.subr.mxu0 0.0
    %674 = vmatpush1.xpose.msra.mxu0 0.0
    %675 = vmatprep.subr.mxu0 0.0
    %676 = vmatpush1.xpose.msra.mxu0 0.0
    %677 = vmatprep.subr.mxu0 0.0
    %678 = vmatpush1.xpose.msra.mxu0 0.0
    %679 = vmatprep.subr.mxu0 0.0
    %680 = vmatpush1.xpose.msra.mxu0 0.0
    %681 = vmatprep.subr.mxu0 0.0
    %682 = vmatpush1.xpose.msra.mxu0 0.0
    %683 = vmatprep.mubr.f32.mxu0 0.0
    %v684 = vand.u32 %v614, 4294901760
    %v685 = vsub.f32 %v614, %v684
    %v686 = vand.u32 %v685, 4294901760
    %v687 = vsub.f32 %v685, %v686
    %v688 = vand.u32 %v687, 4294901760
    %689 = vmatmul.mubr.f32.gmra.mrb[0].mxu0 %v688
    %v690 = vpop.f32.mrb[0].mxu0
    %v691 = vadd.f32 0.0, %v690
    %v692 = vpop.f32.mrb[0].mxu0
    %693 = vdwg.mxu0
    %694 = vmatprep.subr.mxu0 0.0
    %v695 = vand.u32 %v616, 4294901760
    %v696 = vsub.f32 %v616, %v695
    %v697 = vand.u32 %v696, 4294901760
    %v698 = vsub.f32 %v696, %v697
    %v699 = vand.u32 %v698, 4294901760
    %700 = vmatpush1.xpose.msra.mxu0 %v699
    %701 = vmatprep.subr.mxu0 0.0
    %702 = vmatpush1.xpose.msra.mxu0 0.0
    %703 = vmatprep.subr.mxu0 0.0
    %704 = vmatpush1.xpose.msra.mxu0 0.0
    %705 = vmatprep.subr.mxu0 0.0
    %706 = vmatpush1.xpose.msra.mxu0 0.0
    %707 = vmatprep.subr.mxu0 0.0
    %708 = vmatpush1.xpose.msra.mxu0 0.0
    %709 = vmatprep.subr.mxu0 0.0
    %710 = vmatpush1.xpose.msra.mxu0 0.0
    %711 = vmatprep.subr.mxu0 0.0
    %712 = vmatpush1.xpose.msra.mxu0 0.0
    %713 = vmatprep.subr.mxu0 0.0
    %714 = vmatpush1.xpose.msra.mxu0 0.0
    %715 = vmatprep.subr.mxu0 0.0
    %716 = vmatpush1.xpose.msra.mxu0 0.0
    %717 = vmatprep.subr.mxu0 0.0
    %718 = vmatpush1.xpose.msra.mxu0 0.0
    %719 = vmatprep.subr.mxu0 0.0
    %720 = vmatpush1.xpose.msra.mxu0 0.0
    %721 = vmatprep.subr.mxu0 0.0
    %722 = vmatpush1.xpose.msra.mxu0 0.0
    %723 = vmatprep.subr.mxu0 0.0
    %724 = vmatpush1.xpose.msra.mxu0 0.0
    %725 = vmatprep.subr.mxu0 0.0
    %726 = vmatpush1.xpose.msra.mxu0 0.0
    %727 = vmatprep.subr.mxu0 0.0
    %728 = vmatpush1.xpose.msra.mxu0 0.0
    %729 = vmatprep.subr.mxu0 0.0
    %730 = vmatpush1.xpose.msra.mxu0 0.0
    %731 = vmatprep.subr.mxu0 0.0
    %732 = vmatpush1.xpose.msra.mxu0 0.0
    %733 = vmatprep.subr.mxu0 0.0
    %734 = vmatpush1.xpose.msra.mxu0 0.0
    %735 = vmatprep.subr.mxu0 0.0
    %736 = vmatpush1.xpose.msra.mxu0 0.0
    %737 = vmatprep.subr.mxu0 0.0
    %738 = vmatpush1.xpose.msra.mxu0 0.0
    %739 = vmatprep.subr.mxu0 0.0
    %740 = vmatpush1.xpose.msra.mxu0 0.0
    %741 = vmatprep.subr.mxu0 0.0
    %742 = vmatpush1.xpose.msra.mxu0 0.0
    %743 = vmatprep.subr.mxu0 0.0
    %744 = vmatpush1.xpose.msra.mxu0 0.0
    %745 = vmatprep.subr.mxu0 0.0
    %746 = vmatpush1.xpose.msra.mxu0 0.0
    %747 = vmatprep.subr.mxu0 0.0
    %748 = vmatpush1.xpose.msra.mxu0 0.0
    %749 = vmatprep.subr.mxu0 0.0
    %750 = vmatpush1.xpose.msra.mxu0 0.0
    %751 = vmatprep.subr.mxu0 0.0
    %752 = vmatpush1.xpose.msra.mxu0 0.0
    %753 = vmatprep.subr.mxu0 0.0
    %754 = vmatpush1.xpose.msra.mxu0 0.0
    %755 = vmatprep.subr.mxu0 0.0
    %756 = vmatpush1.xpose.msra.mxu0 0.0
    %757 = vmatprep.subr.mxu0 0.0
    %758 = vmatpush1.xpose.msra.mxu0 0.0
    %759 = vmatprep.subr.mxu0 0.0
    %760 = vmatpush1.xpose.msra.mxu0 0.0
    %761 = vmatprep.subr.mxu0 0.0
    %762 = vmatpush1.xpose.msra.mxu0 0.0
    %763 = vmatprep.mubr.f32.mxu0 0.0
    %v764 = vand.u32 %v614, 4294901760
    %765 = vmatmul.mubr.f32.gmra.mrb[0].mxu0 %v764
    %v766 = vpop.f32.mrb[0].mxu0
    %v767 = vadd.f32 %v691, %v766
    %v768 = vpop.f32.mrb[0].mxu0
    %769 = vdwg.mxu0
    %770 = vmatprep.subr.mxu0 0.0
    %v771 = vand.u32 %v616, 4294901760
    %v772 = vsub.f32 %v616, %v771
    %773 = vmatpush1.xpose.msra.mxu0 %v772
    %774 = vmatprep.subr.mxu0 0.0
    %775 = vmatpush1.xpose.msra.mxu0 0.0
    %776 = vmatprep.subr.mxu0 0.0
    %777 = vmatpush1.xpose.msra.mxu0 0.0
    %778 = vmatprep.subr.mxu0 0.0
    %779 = vmatpush1.xpose.msra.mxu0 0.0
    %780 = vmatprep.subr.mxu0 0.0
    %781 = vmatpush1.xpose.msra.mxu0 0.0
    %782 = vmatprep.subr.mxu0 0.0
    %783 = vmatpush1.xpose.msra.mxu0 0.0
    %784 = vmatprep.subr.mxu0 0.0
    %785 = vmatpush1.xpose.msra.mxu0 0.0
    %786 = vmatprep.subr.mxu0 0.0
    %787 = vmatpush1.xpose.msra.mxu0 0.0
    %788 = vmatprep.subr.mxu0 0.0
    %789 = vmatpush1.xpose.msra.mxu0 0.0
    %790 = vmatprep.subr.mxu0 0.0
    %791 = vmatpush1.xpose.msra.mxu0 0.0
    %792 = vmatprep.subr.mxu0 0.0
    %793 = vmatpush1.xpose.msra.mxu0 0.0
    %794 = vmatprep.subr.mxu0 0.0
    %795 = vmatpush1.xpose.msra.mxu0 0.0
    %796 = vmatprep.subr.mxu0 0.0
    %797 = vmatpush1.xpose.msra.mxu0 0.0
    %798 = vmatprep.subr.mxu0 0.0
    %799 = vmatpush1.xpose.msra.mxu0 0.0
    %800 = vmatprep.subr.mxu0 0.0
    %801 = vmatpush1.xpose.msra.mxu0 0.0
    %802 = vmatprep.subr.mxu0 0.0
    %803 = vmatpush1.xpose.msra.mxu0 0.0
    %804 = vmatprep.subr.mxu0 0.0
    %805 = vmatpush1.xpose.msra.mxu0 0.0
    %806 = vmatprep.subr.mxu0 0.0
    %807 = vmatpush1.xpose.msra.mxu0 0.0
    %808 = vmatprep.subr.mxu0 0.0
    %809 = vmatpush1.xpose.msra.mxu0 0.0
    %810 = vmatprep.subr.mxu0 0.0
    %811 = vmatpush1.xpose.msra.mxu0 0.0
    %812 = vmatprep.subr.mxu0 0.0
    %813 = vmatpush1.xpose.msra.mxu0 0.0
    %814 = vmatprep.subr.mxu0 0.0
    %815 = vmatpush1.xpose.msra.mxu0 0.0
    %816 = vmatprep.subr.mxu0 0.0
    %817 = vmatpush1.xpose.msra.mxu0 0.0
    %818 = vmatprep.subr.mxu0 0.0
    %819 = vmatpush1.xpose.msra.mxu0 0.0
    %820 = vmatprep.subr.mxu0 0.0
    %821 = vmatpush1.xpose.msra.mxu0 0.0
    %822 = vmatprep.subr.mxu0 0.0
    %823 = vmatpush1.xpose.msra.mxu0 0.0
    %824 = vmatprep.subr.mxu0 0.0
    %825 = vmatpush1.xpose.msra.mxu0 0.0
    %826 = vmatprep.subr.mxu0 0.0
    %827 = vmatpush1.xpose.msra.mxu0 0.0
    %828 = vmatprep.subr.mxu0 0.0
    %829 = vmatpush1.xpose.msra.mxu0 0.0
    %830 = vmatprep.subr.mxu0 0.0
    %831 = vmatpush1.xpose.msra.mxu0 0.0
    %832 = vmatprep.subr.mxu0 0.0
    %833 = vmatpush1.xpose.msra.mxu0 0.0
    %834 = vmatprep.subr.mxu0 0.0
    %835 = vmatpush1.xpose.msra.mxu0 0.0
    %836 = vmatprep.mubr.f32.mxu0 0.0
    %v837 = vand.u32 %v614, 4294901760
    %v838 = vsub.f32 %v614, %v837
    %839 = vmatmul.mubr.f32.gmra.mrb[0].mxu0 %v838
    %v840 = vpop.f32.mrb[0].mxu0
    %v841 = vadd.f32 %v767, %v840
    %v842 = vpop.f32.mrb[0].mxu0
    %843 = vdwg.mxu0
    %844 = vmatprep.subr.mxu0 0.0
    %v845 = vand.u32 %v616, 4294901760
    %846 = vmatpush1.xpose.msra.mxu0 %v845
    %847 = vmatprep.subr.mxu0 0.0
    %848 = vmatpush1.xpose.msra.mxu0 0.0
    %849 = vmatprep.subr.mxu0 0.0
    %850 = vmatpush1.xpose.msra.mxu0 0.0
    %851 = vmatprep.subr.mxu0 0.0
    %852 = vmatpush1.xpose.msra.mxu0 0.0
    %853 = vmatprep.subr.mxu0 0.0
    %854 = vmatpush1.xpose.msra.mxu0 0.0
    %855 = vmatprep.subr.mxu0 0.0
    %856 = vmatpush1.xpose.msra.mxu0 0.0
    %857 = vmatprep.subr.mxu0 0.0
    %858 = vmatpush1.xpose.msra.mxu0 0.0
    %859 = vmatprep.subr.mxu0 0.0
    %860 = vmatpush1.xpose.msra.mxu0 0.0
    %861 = vmatprep.subr.mxu0 0.0
    %862 = vmatpush1.xpose.msra.mxu0 0.0
    %863 = vmatprep.subr.mxu0 0.0
    %864 = vmatpush1.xpose.msra.mxu0 0.0
    %865 = vmatprep.subr.mxu0 0.0
    %866 = vmatpush1.xpose.msra.mxu0 0.0
    %867 = vmatprep.subr.mxu0 0.0
    %868 = vmatpush1.xpose.msra.mxu0 0.0
    %869 = vmatprep.subr.mxu0 0.0
    %870 = vmatpush1.xpose.msra.mxu0 0.0
    %871 = vmatprep.subr.mxu0 0.0
    %872 = vmatpush1.xpose.msra.mxu0 0.0
    %873 = vmatprep.subr.mxu0 0.0
    %874 = vmatpush1.xpose.msra.mxu0 0.0
    %875 = vmatprep.subr.mxu0 0.0
    %876 = vmatpush1.xpose.msra.mxu0 0.0
    %877 = vmatprep.subr.mxu0 0.0
    %878 = vmatpush1.xpose.msra.mxu0 0.0
    %879 = vmatprep.subr.mxu0 0.0
    %880 = vmatpush1.xpose.msra.mxu0 0.0
    %881 = vmatprep.subr.mxu0 0.0
    %882 = vmatpush1.xpose.msra.mxu0 0.0
    %883 = vmatprep.subr.mxu0 0.0
    %884 = vmatpush1.xpose.msra.mxu0 0.0
    %885 = vmatprep.subr.mxu0 0.0
    %886 = vmatpush1.xpose.msra.mxu0 0.0
    %887 = vmatprep.subr.mxu0 0.0
    %888 = vmatpush1.xpose.msra.mxu0 0.0
    %889 = vmatprep.subr.mxu0 0.0
    %890 = vmatpush1.xpose.msra.mxu0 0.0
    %891 = vmatprep.subr.mxu0 0.0
    %892 = vmatpush1.xpose.msra.mxu0 0.0
    %893 = vmatprep.subr.mxu0 0.0
    %894 = vmatpush1.xpose.msra.mxu0 0.0
    %895 = vmatprep.subr.mxu0 0.0
    %896 = vmatpush1.xpose.msra.mxu0 0.0
    %897 = vmatprep.subr.mxu0 0.0
    %898 = vmatpush1.xpose.msra.mxu0 0.0
    %899 = vmatprep.subr.mxu0 0.0
    %900 = vmatpush1.xpose.msra.mxu0 0.0
    %901 = vmatprep.subr.mxu0 0.0
    %902 = vmatpush1.xpose.msra.mxu0 0.0
    %903 = vmatprep.subr.mxu0 0.0
    %904 = vmatpush1.xpose.msra.mxu0 0.0
    %905 = vmatprep.subr.mxu0 0.0
    %906 = vmatpush1.xpose.msra.mxu0 0.0
    %907 = vmatprep.subr.mxu0 0.0
    %908 = vmatpush1.xpose.msra.mxu0 0.0
    %909 = vmatprep.mubr.f32.mxu0 0.0
    %v910 = vand.u32 %v614, 4294901760
    %v911 = vsub.f32 %v614, %v910
    %v912 = vand.u32 %v911, 4294901760
    %913 = vmatmul.mubr.f32.gmra.mrb[0].mxu0 %v912
    %v914 = vpop.f32.mrb[0].mxu0
    %v915 = vadd.f32 %v841, %v914
    %v916 = vpop.f32.mrb[0].mxu0
    %917 = vdwg.mxu0
    %918 = vmatprep.subr.mxu0 0.0
    %v919 = vand.u32 %v616, 4294901760
    %v920 = vsub.f32 %v616, %v919
    %v921 = vand.u32 %v920, 4294901760
    %922 = vmatpush1.xpose.msra.mxu0 %v921
    %923 = vmatprep.subr.mxu0 0.0
    %924 = vmatpush1.xpose.msra.mxu0 0.0
    %925 = vmatprep.subr.mxu0 0.0
    %926 = vmatpush1.xpose.msra.mxu0 0.0
    %927 = vmatprep.subr.mxu0 0.0
    %928 = vmatpush1.xpose.msra.mxu0 0.0
    %929 = vmatprep.subr.mxu0 0.0
    %930 = vmatpush1.xpose.msra.mxu0 0.0
    %931 = vmatprep.subr.mxu0 0.0
    %932 = vmatpush1.xpose.msra.mxu0 0.0
    %933 = vmatprep.subr.mxu0 0.0
    %934 = vmatpush1.xpose.msra.mxu0 0.0
    %935 = vmatprep.subr.mxu0 0.0
    %936 = vmatpush1.xpose.msra.mxu0 0.0
    %937 = vmatprep.subr.mxu0 0.0
    %938 = vmatpush1.xpose.msra.mxu0 0.0
    %939 = vmatprep.subr.mxu0 0.0
    %940 = vmatpush1.xpose.msra.mxu0 0.0
    %941 = vmatprep.subr.mxu0 0.0
    %942 = vmatpush1.xpose.msra.mxu0 0.0
    %943 = vmatprep.subr.mxu0 0.0
    %944 = vmatpush1.xpose.msra.mxu0 0.0
    %945 = vmatprep.subr.mxu0 0.0
    %946 = vmatpush1.xpose.msra.mxu0 0.0
    %947 = vmatprep.subr.mxu0 0.0
    %948 = vmatpush1.xpose.msra.mxu0 0.0
    %949 = vmatprep.subr.mxu0 0.0
    %950 = vmatpush1.xpose.msra.mxu0 0.0
    %951 = vmatprep.subr.mxu0 0.0
    %952 = vmatpush1.xpose.msra.mxu0 0.0
    %953 = vmatprep.subr.mxu0 0.0
    %954 = vmatpush1.xpose.msra.mxu0 0.0
    %955 = vmatprep.subr.mxu0 0.0
    %956 = vmatpush1.xpose.msra.mxu0 0.0
    %957 = vmatprep.subr.mxu0 0.0
    %958 = vmatpush1.xpose.msra.mxu0 0.0
    %959 = vmatprep.subr.mxu0 0.0
    %960 = vmatpush1.xpose.msra.mxu0 0.0
    %961 = vmatprep.subr.mxu0 0.0
    %962 = vmatpush1.xpose.msra.mxu0 0.0
    %963 = vmatprep.subr.mxu0 0.0
    %964 = vmatpush1.xpose.msra.mxu0 0.0
    %965 = vmatprep.subr.mxu0 0.0
    %966 = vmatpush1.xpose.msra.mxu0 0.0
    %967 = vmatprep.subr.mxu0 0.0
    %968 = vmatpush1.xpose.msra.mxu0 0.0
    %969 = vmatprep.subr.mxu0 0.0
    %970 = vmatpush1.xpose.msra.mxu0 0.0
    %971 = vmatprep.subr.mxu0 0.0
    %972 = vmatpush1.xpose.msra.mxu0 0.0
    %973 = vmatprep.subr.mxu0 0.0
    %974 = vmatpush1.xpose.msra.mxu0 0.0
    %975 = vmatprep.subr.mxu0 0.0
    %976 = vmatpush1.xpose.msra.mxu0 0.0
    %977 = vmatprep.subr.mxu0 0.0
    %978 = vmatpush1.xpose.msra.mxu0 0.0
    %979 = vmatprep.subr.mxu0 0.0
    %980 = vmatpush1.xpose.msra.mxu0 0.0
    %981 = vmatprep.subr.mxu0 0.0
    %982 = vmatpush1.xpose.msra.mxu0 0.0
    %983 = vmatprep.subr.mxu0 0.0
    %984 = vmatpush1.xpose.msra.mxu0 0.0
    %985 = vmatprep.mubr.f32.mxu0 0.0
    %v986 = vand.u32 %v614, 4294901760
    %987 = vmatmul.mubr.f32.gmra.mrb[0].mxu0 %v986
    %v988 = vpop.f32.mrb[0].mxu0
    %v989 = vadd.f32 %v915, %v988
    %v990 = vpop.f32.mrb[0].mxu0
    %991 = vdwg.mxu0
    %992 = vmatprep.subr.mxu0 0.0
    %v993 = vand.u32 %v616, 4294901760
    %994 = vmatpush1.xpose.msra.mxu0 %v993
    %995 = vmatprep.subr.mxu0 0.0
    %996 = vmatpush1.xpose.msra.mxu0 0.0
    %997 = vmatprep.subr.mxu0 0.0
    %998 = vmatpush1.xpose.msra.mxu0 0.0
    %999 = vmatprep.subr.mxu0 0.0
    %1000 = vmatpush1.xpose.msra.mxu0 0.0
    %1001 = vmatprep.subr.mxu0 0.0
    %1002 = vmatpush1.xpose.msra.mxu0 0.0
    %1003 = vmatprep.subr.mxu0 0.0
    %1004 = vmatpush1.xpose.msra.mxu0 0.0
    %1005 = vmatprep.subr.mxu0 0.0
    %1006 = vmatpush1.xpose.msra.mxu0 0.0
    %1007 = vmatprep.subr.mxu0 0.0
    %1008 = vmatpush1.xpose.msra.mxu0 0.0
    %1009 = vmatprep.subr.mxu0 0.0
    %1010 = vmatpush1.xpose.msra.mxu0 0.0
    %1011 = vmatprep.subr.mxu0 0.0
    %1012 = vmatpush1.xpose.msra.mxu0 0.0
    %1013 = vmatprep.subr.mxu0 0.0
    %1014 = vmatpush1.xpose.msra.mxu0 0.0
    %1015 = vmatprep.subr.mxu0 0.0
    %1016 = vmatpush1.xpose.msra.mxu0 0.0
    %1017 = vmatprep.subr.mxu0 0.0
    %1018 = vmatpush1.xpose.msra.mxu0 0.0
    %1019 = vmatprep.subr.mxu0 0.0
    %1020 = vmatpush1.xpose.msra.mxu0 0.0
    %1021 = vmatprep.subr.mxu0 0.0
    %1022 = vmatpush1.xpose.msra.mxu0 0.0
    %1023 = vmatprep.subr.mxu0 0.0
    %1024 = vmatpush1.xpose.msra.mxu0 0.0
    %1025 = vmatprep.subr.mxu0 0.0
    %1026 = vmatpush1.xpose.msra.mxu0 0.0
    %1027 = vmatprep.subr.mxu0 0.0
    %1028 = vmatpush1.xpose.msra.mxu0 0.0
    %1029 = vmatprep.subr.mxu0 0.0
    %1030 = vmatpush1.xpose.msra.mxu0 0.0
    %1031 = vmatprep.subr.mxu0 0.0
    %1032 = vmatpush1.xpose.msra.mxu0 0.0
    %1033 = vmatprep.subr.mxu0 0.0
    %1034 = vmatpush1.xpose.msra.mxu0 0.0
    %1035 = vmatprep.subr.mxu0 0.0
    %1036 = vmatpush1.xpose.msra.mxu0 0.0
    %1037 = vmatprep.subr.mxu0 0.0
    %1038 = vmatpush1.xpose.msra.mxu0 0.0
    %1039 = vmatprep.subr.mxu0 0.0
    %1040 = vmatpush1.xpose.msra.mxu0 0.0
    %1041 = vmatprep.subr.mxu0 0.0
    %1042 = vmatpush1.xpose.msra.mxu0 0.0
    %1043 = vmatprep.subr.mxu0 0.0
    %1044 = vmatpush1.xpose.msra.mxu0 0.0
    %1045 = vmatprep.subr.mxu0 0.0
    %1046 = vmatpush1.xpose.msra.mxu0 0.0
    %1047 = vmatprep.subr.mxu0 0.0
    %1048 = vmatpush1.xpose.msra.mxu0 0.0
    %1049 = vmatprep.subr.mxu0 0.0
    %1050 = vmatpush1.xpose.msra.mxu0 0.0
    %1051 = vmatprep.subr.mxu0 0.0
    %1052 = vmatpush1.xpose.msra.mxu0 0.0
    %1053 = vmatprep.subr.mxu0 0.0
    %1054 = vmatpush1.xpose.msra.mxu0 0.0
    %1055 = vmatprep.subr.mxu0 0.0
    %1056 = vmatpush1.xpose.msra.mxu0 0.0
    %1057 = vmatprep.mubr.f32.mxu0 0.0
    %v1058 = vand.u32 %v614, 4294901760
    %1059 = vmatmul.mubr.f32.gmra.mrb[0].mxu0 %v1058
    %v1060 = vpop.f32.mrb[0].mxu0
    %v1061 = vadd.f32 %v989, %v1060
    %v1062 = vpop.f32.mrb[0].mxu0
    %1063 = vdwg.mxu0
    %1065 = vrot.lane.b32.xlu0 %v607, 96
    %v1066 = vpop.permute.xlu0 %1065
    %v1067 = vsel %vm613, %v607, 0
    %v1069 = vsel %vm613, %v1066, 0
    %1071 = vmatprep.subr.mxu0 0.0
    %v1072 = vand.u32 %v1069, 4294901760
    %1073 = vmatpush1.xpose.msra.mxu0 %v1072
    %1074 = vmatprep.subr.mxu0 0.0
    %1075 = vmatpush1.xpose.msra.mxu0 0.0
    %1076 = vmatprep.subr.mxu0 0.0
    %1077 = vmatpush1.xpose.msra.mxu0 0.0
    %1078 = vmatprep.subr.mxu0 0.0
    %1079 = vmatpush1.xpose.msra.mxu0 0.0
    %1080 = vmatprep.subr.mxu0 0.0
    %1081 = vmatpush1.xpose.msra.mxu0 0.0
    %1082 = vmatprep.subr.mxu0 0.0
    %1083 = vmatpush1.xpose.msra.mxu0 0.0
    %1084 = vmatprep.subr.mxu0 0.0
    %1085 = vmatpush1.xpose.msra.mxu0 0.0
    %1086 = vmatprep.subr.mxu0 0.0
    %1087 = vmatpush1.xpose.msra.mxu0 0.0
    %1088 = vmatprep.subr.mxu0 0.0
    %1089 = vmatpush1.xpose.msra.mxu0 0.0
    %1090 = vmatprep.subr.mxu0 0.0
    %1091 = vmatpush1.xpose.msra.mxu0 0.0
    %1092 = vmatprep.subr.mxu0 0.0
    %1093 = vmatpush1.xpose.msra.mxu0 0.0
    %1094 = vmatprep.subr.mxu0 0.0
    %1095 = vmatpush1.xpose.msra.mxu0 0.0
    %1096 = vmatprep.subr.mxu0 0.0
    %1097 = vmatpush1.xpose.msra.mxu0 0.0
    %1098 = vmatprep.subr.mxu0 0.0
    %1099 = vmatpush1.xpose.msra.mxu0 0.0
    %1100 = vmatprep.subr.mxu0 0.0
    %1101 = vmatpush1.xpose.msra.mxu0 0.0
    %1102 = vmatprep.subr.mxu0 0.0
    %1103 = vmatpush1.xpose.msra.mxu0 0.0
    %1104 = vmatprep.subr.mxu0 0.0
    %1105 = vmatpush1.xpose.msra.mxu0 0.0
    %1106 = vmatprep.subr.mxu0 0.0
    %1107 = vmatpush1.xpose.msra.mxu0 0.0
    %1108 = vmatprep.subr.mxu0 0.0
    %1109 = vmatpush1.xpose.msra.mxu0 0.0
    %1110 = vmatprep.subr.mxu0 0.0
    %1111 = vmatpush1.xpose.msra.mxu0 0.0
    %1112 = vmatprep.subr.mxu0 0.0
    %1113 = vmatpush1.xpose.msra.mxu0 0.0
    %1114 = vmatprep.subr.mxu0 0.0
    %1115 = vmatpush1.xpose.msra.mxu0 0.0
    %1116 = vmatprep.subr.mxu0 0.0
    %1117 = vmatpush1.xpose.msra.mxu0 0.0
    %1118 = vmatprep.subr.mxu0 0.0
    %1119 = vmatpush1.xpose.msra.mxu0 0.0
    %1120 = vmatprep.subr.mxu0 0.0
    %1121 = vmatpush1.xpose.msra.mxu0 0.0
    %1122 = vmatprep.subr.mxu0 0.0
    %1123 = vmatpush1.xpose.msra.mxu0 0.0
    %1124 = vmatprep.subr.mxu0 0.0
    %1125 = vmatpush1.xpose.msra.mxu0 0.0
    %1126 = vmatprep.subr.mxu0 0.0
    %1127 = vmatpush1.xpose.msra.mxu0 0.0
    %1128 = vmatprep.subr.mxu0 0.0
    %1129 = vmatpush1.xpose.msra.mxu0 0.0
    %1130 = vmatprep.subr.mxu0 0.0
    %1131 = vmatpush1.xpose.msra.mxu0 0.0
    %1132 = vmatprep.subr.mxu0 0.0
    %1133 = vmatpush1.xpose.msra.mxu0 0.0
    %1134 = vmatprep.subr.mxu0 0.0
    %1135 = vmatpush1.xpose.msra.mxu0 0.0
    %1136 = vmatprep.mubr.f32.mxu0 0.0
    %v1137 = vand.u32 %v1067, 4294901760
    %v1138 = vsub.f32 %v1067, %v1137
    %v1139 = vand.u32 %v1138, 4294901760
    %v1140 = vsub.f32 %v1138, %v1139
    %v1141 = vand.u32 %v1140, 4294901760
    %1142 = vmatmul.mubr.f32.gmra.mrb[0].mxu0 %v1141
    %v1143 = vpop.f32.mrb[0].mxu0
    %v1144 = vadd.f32 0.0, %v1143
    %v1145 = vpop.f32.mrb[0].mxu0
    %1146 = vdwg.mxu0
    %1147 = vmatprep.subr.mxu0 0.0
    %v1148 = vand.u32 %v1069, 4294901760
    %v1149 = vsub.f32 %v1069, %v1148
    %v1150 = vand.u32 %v1149, 4294901760
    %v1151 = vsub.f32 %v1149, %v1150
    %v1152 = vand.u32 %v1151, 4294901760
    %1153 = vmatpush1.xpose.msra.mxu0 %v1152
    %1154 = vmatprep.subr.mxu0 0.0
    %1155 = vmatpush1.xpose.msra.mxu0 0.0
    %1156 = vmatprep.subr.mxu0 0.0
    %1157 = vmatpush1.xpose.msra.mxu0 0.0
    %1158 = vmatprep.subr.mxu0 0.0
    %1159 = vmatpush1.xpose.msra.mxu0 0.0
    %1160 = vmatprep.subr.mxu0 0.0
    %1161 = vmatpush1.xpose.msra.mxu0 0.0
    %1162 = vmatprep.subr.mxu0 0.0
    %1163 = vmatpush1.xpose.msra.mxu0 0.0
    %1164 = vmatprep.subr.mxu0 0.0
    %1165 = vmatpush1.xpose.msra.mxu0 0.0
    %1166 = vmatprep.subr.mxu0 0.0
    %1167 = vmatpush1.xpose.msra.mxu0 0.0
    %1168 = vmatprep.subr.mxu0 0.0
    %1169 = vmatpush1.xpose.msra.mxu0 0.0
    %1170 = vmatprep.subr.mxu0 0.0
    %1171 = vmatpush1.xpose.msra.mxu0 0.0
    %1172 = vmatprep.subr.mxu0 0.0
    %1173 = vmatpush1.xpose.msra.mxu0 0.0
    %1174 = vmatprep.subr.mxu0 0.0
    %1175 = vmatpush1.xpose.msra.mxu0 0.0
    %1176 = vmatprep.subr.mxu0 0.0
    %1177 = vmatpush1.xpose.msra.mxu0 0.0
    %1178 = vmatprep.subr.mxu0 0.0
    %1179 = vmatpush1.xpose.msra.mxu0 0.0
    %1180 = vmatprep.subr.mxu0 0.0
    %1181 = vmatpush1.xpose.msra.mxu0 0.0
    %1182 = vmatprep.subr.mxu0 0.0
    %1183 = vmatpush1.xpose.msra.mxu0 0.0
    %1184 = vmatprep.subr.mxu0 0.0
    %1185 = vmatpush1.xpose.msra.mxu0 0.0
    %1186 = vmatprep.subr.mxu0 0.0
    %1187 = vmatpush1.xpose.msra.mxu0 0.0
    %1188 = vmatprep.subr.mxu0 0.0
    %1189 = vmatpush1.xpose.msra.mxu0 0.0
    %1190 = vmatprep.subr.mxu0 0.0
    %1191 = vmatpush1.xpose.msra.mxu0 0.0
    %1192 = vmatprep.subr.mxu0 0.0
    %1193 = vmatpush1.xpose.msra.mxu0 0.0
    %1194 = vmatprep.subr.mxu0 0.0
    %1195 = vmatpush1.xpose.msra.mxu0 0.0
    %1196 = vmatprep.subr.mxu0 0.0
    %1197 = vmatpush1.xpose.msra.mxu0 0.0
    %1198 = vmatprep.subr.mxu0 0.0
    %1199 = vmatpush1.xpose.msra.mxu0 0.0
    %1200 = vmatprep.subr.mxu0 0.0
    %1201 = vmatpush1.xpose.msra.mxu0 0.0
    %1202 = vmatprep.subr.mxu0 0.0
    %1203 = vmatpush1.xpose.msra.mxu0 0.0
    %1204 = vmatprep.subr.mxu0 0.0
    %1205 = vmatpush1.xpose.msra.mxu0 0.0
    %1206 = vmatprep.subr.mxu0 0.0
    %1207 = vmatpush1.xpose.msra.mxu0 0.0
    %1208 = vmatprep.subr.mxu0 0.0
    %1209 = vmatpush1.xpose.msra.mxu0 0.0
    %1210 = vmatprep.subr.mxu0 0.0
    %1211 = vmatpush1.xpose.msra.mxu0 0.0
    %1212 = vmatprep.subr.mxu0 0.0
    %1213 = vmatpush1.xpose.msra.mxu0 0.0
    %1214 = vmatprep.subr.mxu0 0.0
    %1215 = vmatpush1.xpose.msra.mxu0 0.0
    %1216 = vmatprep.mubr.f32.mxu0 0.0
    %v1217 = vand.u32 %v1067, 4294901760
    %1218 = vmatmul.mubr.f32.gmra.mrb[0].mxu0 %v1217
    %v1219 = vpop.f32.mrb[0].mxu0
    %v1220 = vadd.f32 %v1144, %v1219
    %v1221 = vpop.f32.mrb[0].mxu0
    %1222 = vdwg.mxu0
    %1223 = vmatprep.subr.mxu0 0.0
    %v1224 = vand.u32 %v1069, 4294901760
    %v1225 = vsub.f32 %v1069, %v1224
    %1226 = vmatpush1.xpose.msra.mxu0 %v1225
    %1227 = vmatprep.subr.mxu0 0.0
    %1228 = vmatpush1.xpose.msra.mxu0 0.0
    %1229 = vmatprep.subr.mxu0 0.0
    %1230 = vmatpush1.xpose.msra.mxu0 0.0
    %1231 = vmatprep.subr.mxu0 0.0
    %1232 = vmatpush1.xpose.msra.mxu0 0.0
    %1233 = vmatprep.subr.mxu0 0.0
    %1234 = vmatpush1.xpose.msra.mxu0 0.0
    %1235 = vmatprep.subr.mxu0 0.0
    %1236 = vmatpush1.xpose.msra.mxu0 0.0
    %1237 = vmatprep.subr.mxu0 0.0
    %1238 = vmatpush1.xpose.msra.mxu0 0.0
    %1239 = vmatprep.subr.mxu0 0.0
    %1240 = vmatpush1.xpose.msra.mxu0 0.0
    %1241 = vmatprep.subr.mxu0 0.0
    %1242 = vmatpush1.xpose.msra.mxu0 0.0
    %1243 = vmatprep.subr.mxu0 0.0
    %1244 = vmatpush1.xpose.msra.mxu0 0.0
    %1245 = vmatprep.subr.mxu0 0.0
    %1246 = vmatpush1.xpose.msra.mxu0 0.0
    %1247 = vmatprep.subr.mxu0 0.0
    %1248 = vmatpush1.xpose.msra.mxu0 0.0
    %1249 = vmatprep.subr.mxu0 0.0
    %1250 = vmatpush1.xpose.msra.mxu0 0.0
    %1251 = vmatprep.subr.mxu0 0.0
    %1252 = vmatpush1.xpose.msra.mxu0 0.0
    %1253 = vmatprep.subr.mxu0 0.0
    %1254 = vmatpush1.xpose.msra.mxu0 0.0
    %1255 = vmatprep.subr.mxu0 0.0
    %1256 = vmatpush1.xpose.msra.mxu0 0.0
    %1257 = vmatprep.subr.mxu0 0.0
    %1258 = vmatpush1.xpose.msra.mxu0 0.0
    %1259 = vmatprep.subr.mxu0 0.0
    %1260 = vmatpush1.xpose.msra.mxu0 0.0
    %1261 = vmatprep.subr.mxu0 0.0
    %1262 = vmatpush1.xpose.msra.mxu0 0.0
    %1263 = vmatprep.subr.mxu0 0.0
    %1264 = vmatpush1.xpose.msra.mxu0 0.0
    %1265 = vmatprep.subr.mxu0 0.0
    %1266 = vmatpush1.xpose.msra.mxu0 0.0
    %1267 = vmatprep.subr.mxu0 0.0
    %1268 = vmatpush1.xpose.msra.mxu0 0.0
    %1269 = vmatprep.subr.mxu0 0.0
    %1270 = vmatpush1.xpose.msra.mxu0 0.0
    %1271 = vmatprep.subr.mxu0 0.0
    %1272 = vmatpush1.xpose.msra.mxu0 0.0
    %1273 = vmatprep.subr.mxu0 0.0
    %1274 = vmatpush1.xpose.msra.mxu0 0.0
    %1275 = vmatprep.subr.mxu0 0.0
    %1276 = vmatpush1.xpose.msra.mxu0 0.0
    %1277 = vmatprep.subr.mxu0 0.0
    %1278 = vmatpush1.xpose.msra.mxu0 0.0
    %1279 = vmatprep.subr.mxu0 0.0
    %1280 = vmatpush1.xpose.msra.mxu0 0.0
    %1281 = vmatprep.subr.mxu0 0.0
    %1282 = vmatpush1.xpose.msra.mxu0 0.0
    %1283 = vmatprep.subr.mxu0 0.0
    %1284 = vmatpush1.xpose.msra.mxu0 0.0
    %1285 = vmatprep.subr.mxu0 0.0
    %1286 = vmatpush1.xpose.msra.mxu0 0.0
    %1287 = vmatprep.subr.mxu0 0.0
    %1288 = vmatpush1.xpose.msra.mxu0 0.0
    %1289 = vmatprep.mubr.f32.mxu0 0.0
    %v1290 = vand.u32 %v1067, 4294901760
    %v1291 = vsub.f32 %v1067, %v1290
    %1292 = vmatmul.mubr.f32.gmra.mrb[0].mxu0 %v1291
    %v1293 = vpop.f32.mrb[0].mxu0
    %v1294 = vadd.f32 %v1220, %v1293
    %v1295 = vpop.f32.mrb[0].mxu0
    %1296 = vdwg.mxu0
    %1297 = vmatprep.subr.mxu0 0.0
    %v1298 = vand.u32 %v1069, 4294901760
    %1299 = vmatpush1.xpose.msra.mxu0 %v1298
    %1300 = vmatprep.subr.mxu0 0.0
    %1301 = vmatpush1.xpose.msra.mxu0 0.0
    %1302 = vmatprep.subr.mxu0 0.0
    %1303 = vmatpush1.xpose.msra.mxu0 0.0
    %1304 = vmatprep.subr.mxu0 0.0
    %1305 = vmatpush1.xpose.msra.mxu0 0.0
    %1306 = vmatprep.subr.mxu0 0.0
    %1307 = vmatpush1.xpose.msra.mxu0 0.0
    %1308 = vmatprep.subr.mxu0 0.0
    %1309 = vmatpush1.xpose.msra.mxu0 0.0
    %1310 = vmatprep.subr.mxu0 0.0
    %1311 = vmatpush1.xpose.msra.mxu0 0.0
    %1312 = vmatprep.subr.mxu0 0.0
    %1313 = vmatpush1.xpose.msra.mxu0 0.0
    %1314 = vmatprep.subr.mxu0 0.0
    %1315 = vmatpush1.xpose.msra.mxu0 0.0
    %1316 = vmatprep.subr.mxu0 0.0
    %1317 = vmatpush1.xpose.msra.mxu0 0.0
    %1318 = vmatprep.subr.mxu0 0.0
    %1319 = vmatpush1.xpose.msra.mxu0 0.0
    %1320 = vmatprep.subr.mxu0 0.0
    %1321 = vmatpush1.xpose.msra.mxu0 0.0
    %1322 = vmatprep.subr.mxu0 0.0
    %1323 = vmatpush1.xpose.msra.mxu0 0.0
    %1324 = vmatprep.subr.mxu0 0.0
    %1325 = vmatpush1.xpose.msra.mxu0 0.0
    %1326 = vmatprep.subr.mxu0 0.0
    %1327 = vmatpush1.xpose.msra.mxu0 0.0
    %1328 = vmatprep.subr.mxu0 0.0
    %1329 = vmatpush1.xpose.msra.mxu0 0.0
    %1330 = vmatprep.subr.mxu0 0.0
    %1331 = vmatpush1.xpose.msra.mxu0 0.0
    %1332 = vmatprep.subr.mxu0 0.0
    %1333 = vmatpush1.xpose.msra.mxu0 0.0
    %1334 = vmatprep.subr.mxu0 0.0
    %1335 = vmatpush1.xpose.msra.mxu0 0.0
    %1336 = vmatprep.subr.mxu0 0.0
    %1337 = vmatpush1.xpose.msra.mxu0 0.0
    %1338 = vmatprep.subr.mxu0 0.0
    %1339 = vmatpush1.xpose.msra.mxu0 0.0
    %1340 = vmatprep.subr.mxu0 0.0
    %1341 = vmatpush1.xpose.msra.mxu0 0.0
    %1342 = vmatprep.subr.mxu0 0.0
    %1343 = vmatpush1.xpose.msra.mxu0 0.0
    %1344 = vmatprep.subr.mxu0 0.0
    %1345 = vmatpush1.xpose.msra.mxu0 0.0
    %1346 = vmatprep.subr.mxu0 0.0
    %1347 = vmatpush1.xpose.msra.mxu0 0.0
    %1348 = vmatprep.subr.mxu0 0.0
    %1349 = vmatpush1.xpose.msra.mxu0 0.0
    %1350 = vmatprep.subr.mxu0 0.0
    %1351 = vmatpush1.xpose.msra.mxu0 0.0
    %1352 = vmatprep.subr.mxu0 0.0
    %1353 = vmatpush1.xpose.msra.mxu0 0.0
    %1354 = vmatprep.subr.mxu0 0.0
    %1355 = vmatpush1.xpose.msra.mxu0 0.0
    %1356 = vmatprep.subr.mxu0 0.0
    %1357 = vmatpush1.xpose.msra.mxu0 0.0
    %1358 = vmatprep.subr.mxu0 0.0
    %1359 = vmatpush1.xpose.msra.mxu0 0.0
    %1360 = vmatprep.subr.mxu0 0.0
    %1361 = vmatpush1.xpose.msra.mxu0 0.0
    %1362 = vmatprep.mubr.f32.mxu0 0.0
    %v1363 = vand.u32 %v1067, 4294901760
    %v1364 = vsub.f32 %v1067, %v1363
    %v1365 = vand.u32 %v1364, 4294901760
    %1366 = vmatmul.mubr.f32.gmra.mrb[0].mxu0 %v1365
    %v1367 = vpop.f32.mrb[0].mxu0
    %v1368 = vadd.f32 %v1294, %v1367
    %v1369 = vpop.f32.mrb[0].mxu0
    %1370 = vdwg.mxu0
    %1371 = vmatprep.subr.mxu0 0.0
    %v1372 = vand.u32 %v1069, 4294901760
    %v1373 = vsub.f32 %v1069, %v1372
    %v1374 = vand.u32 %v1373, 4294901760
    %1375 = vmatpush1.xpose.msra.mxu0 %v1374
    %1376 = vmatprep.subr.mxu0 0.0
    %1377 = vmatpush1.xpose.msra.mxu0 0.0
    %1378 = vmatprep.subr.mxu0 0.0
    %1379 = vmatpush1.xpose.msra.mxu0 0.0
    %1380 = vmatprep.subr.mxu0 0.0
    %1381 = vmatpush1.xpose.msra.mxu0 0.0
    %1382 = vmatprep.subr.mxu0 0.0
    %1383 = vmatpush1.xpose.msra.mxu0 0.0
    %1384 = vmatprep.subr.mxu0 0.0
    %1385 = vmatpush1.xpose.msra.mxu0 0.0
    %1386 = vmatprep.subr.mxu0 0.0
    %1387 = vmatpush1.xpose.msra.mxu0 0.0
    %1388 = vmatprep.subr.mxu0 0.0
    %1389 = vmatpush1.xpose.msra.mxu0 0.0
    %1390 = vmatprep.subr.mxu0 0.0
    %1391 = vmatpush1.xpose.msra.mxu0 0.0
    %1392 = vmatprep.subr.mxu0 0.0
    %1393 = vmatpush1.xpose.msra.mxu0 0.0
    %1394 = vmatprep.subr.mxu0 0.0
    %1395 = vmatpush1.xpose.msra.mxu0 0.0
    %1396 = vmatprep.subr.mxu0 0.0
    %1397 = vmatpush1.xpose.msra.mxu0 0.0
    %1398 = vmatprep.subr.mxu0 0.0
    %1399 = vmatpush1.xpose.msra.mxu0 0.0
    %1400 = vmatprep.subr.mxu0 0.0
    %1401 = vmatpush1.xpose.msra.mxu0 0.0
    %1402 = vmatprep.subr.mxu0 0.0
    %1403 = vmatpush1.xpose.msra.mxu0 0.0
    %1404 = vmatprep.subr.mxu0 0.0
    %1405 = vmatpush1.xpose.msra.mxu0 0.0
    %1406 = vmatprep.subr.mxu0 0.0
    %1407 = vmatpush1.xpose.msra.mxu0 0.0
    %1408 = vmatprep.subr.mxu0 0.0
    %1409 = vmatpush1.xpose.msra.mxu0 0.0
    %1410 = vmatprep.subr.mxu0 0.0
    %1411 = vmatpush1.xpose.msra.mxu0 0.0
    %1412 = vmatprep.subr.mxu0 0.0
    %1413 = vmatpush1.xpose.msra.mxu0 0.0
    %1414 = vmatprep.subr.mxu0 0.0
    %1415 = vmatpush1.xpose.msra.mxu0 0.0
    %1416 = vmatprep.subr.mxu0 0.0
    %1417 = vmatpush1.xpose.msra.mxu0 0.0
    %1418 = vmatprep.subr.mxu0 0.0
    %1419 = vmatpush1.xpose.msra.mxu0 0.0
    %1420 = vmatprep.subr.mxu0 0.0
    %1421 = vmatpush1.xpose.msra.mxu0 0.0
    %1422 = vmatprep.subr.mxu0 0.0
    %1423 = vmatpush1.xpose.msra.mxu0 0.0
    %1424 = vmatprep.subr.mxu0 0.0
    %1425 = vmatpush1.xpose.msra.mxu0 0.0
    %1426 = vmatprep.subr.mxu0 0.0
    %1427 = vmatpush1.xpose.msra.mxu0 0.0
    %1428 = vmatprep.subr.mxu0 0.0
    %1429 = vmatpush1.xpose.msra.mxu0 0.0
    %1430 = vmatprep.subr.mxu0 0.0
    %1431 = vmatpush1.xpose.msra.mxu0 0.0
    %1432 = vmatprep.subr.mxu0 0.0
    %1433 = vmatpush1.xpose.msra.mxu0 0.0
    %1434 = vmatprep.subr.mxu0 0.0
    %1435 = vmatpush1.xpose.msra.mxu0 0.0
    %1436 = vmatprep.subr.mxu0 0.0
    %1437 = vmatpush1.xpose.msra.mxu0 0.0
    %1438 = vmatprep.mubr.f32.mxu0 0.0
    %v1439 = vand.u32 %v1067, 4294901760
    %1440 = vmatmul.mubr.f32.gmra.mrb[0].mxu0 %v1439
    %v1441 = vpop.f32.mrb[0].mxu0
    %v1442 = vadd.f32 %v1368, %v1441
    %v1443 = vpop.f32.mrb[0].mxu0
    %1444 = vdwg.mxu0
    %1445 = vmatprep.subr.mxu0 0.0
    %v1446 = vand.u32 %v1069, 4294901760
    %1447 = vmatpush1.xpose.msra.mxu0 %v1446
    %1448 = vmatprep.subr.mxu0 0.0
    %1449 = vmatpush1.xpose.msra.mxu0 0.0
    %1450 = vmatprep.subr.mxu0 0.0
    %1451 = vmatpush1.xpose.msra.mxu0 0.0
    %1452 = vmatprep.subr.mxu0 0.0
    %1453 = vmatpush1.xpose.msra.mxu0 0.0
    %1454 = vmatprep.subr.mxu0 0.0
    %1455 = vmatpush1.xpose.msra.mxu0 0.0
    %1456 = vmatprep.subr.mxu0 0.0
    %1457 = vmatpush1.xpose.msra.mxu0 0.0
    %1458 = vmatprep.subr.mxu0 0.0
    %1459 = vmatpush1.xpose.msra.mxu0 0.0
    %1460 = vmatprep.subr.mxu0 0.0
    %1461 = vmatpush1.xpose.msra.mxu0 0.0
    %1462 = vmatprep.subr.mxu0 0.0
    %1463 = vmatpush1.xpose.msra.mxu0 0.0
    %1464 = vmatprep.subr.mxu0 0.0
    %1465 = vmatpush1.xpose.msra.mxu0 0.0
    %1466 = vmatprep.subr.mxu0 0.0
    %1467 = vmatpush1.xpose.msra.mxu0 0.0
    %1468 = vmatprep.subr.mxu0 0.0
    %1469 = vmatpush1.xpose.msra.mxu0 0.0
    %1470 = vmatprep.subr.mxu0 0.0
    %1471 = vmatpush1.xpose.msra.mxu0 0.0
    %1472 = vmatprep.subr.mxu0 0.0
    %1473 = vmatpush1.xpose.msra.mxu0 0.0
    %1474 = vmatprep.subr.mxu0 0.0
    %1475 = vmatpush1.xpose.msra.mxu0 0.0
    %1476 = vmatprep.subr.mxu0 0.0
    %1477 = vmatpush1.xpose.msra.mxu0 0.0
    %1478 = vmatprep.subr.mxu0 0.0
    %1479 = vmatpush1.xpose.msra.mxu0 0.0
    %1480 = vmatprep.subr.mxu0 0.0
    %1481 = vmatpush1.xpose.msra.mxu0 0.0
    %1482 = vmatprep.subr.mxu0 0.0
    %1483 = vmatpush1.xpose.msra.mxu0 0.0
    %1484 = vmatprep.subr.mxu0 0.0
    %1485 = vmatpush1.xpose.msra.mxu0 0.0
    %1486 = vmatprep.subr.mxu0 0.0
    %1487 = vmatpush1.xpose.msra.mxu0 0.0
    %1488 = vmatprep.subr.mxu0 0.0
    %1489 = vmatpush1.xpose.msra.mxu0 0.0
    %1490 = vmatprep.subr.mxu0 0.0
    %1491 = vmatpush1.xpose.msra.mxu0 0.0
    %1492 = vmatprep.subr.mxu0 0.0
    %1493 = vmatpush1.xpose.msra.mxu0 0.0
    %1494 = vmatprep.subr.mxu0 0.0
    %1495 = vmatpush1.xpose.msra.mxu0 0.0
    %1496 = vmatprep.subr.mxu0 0.0
    %1497 = vmatpush1.xpose.msra.mxu0 0.0
    %1498 = vmatprep.subr.mxu0 0.0
    %1499 = vmatpush1.xpose.msra.mxu0 0.0
    %1500 = vmatprep.subr.mxu0 0.0
    %1501 = vmatpush1.xpose.msra.mxu0 0.0
    %1502 = vmatprep.subr.mxu0 0.0
    %1503 = vmatpush1.xpose.msra.mxu0 0.0
    %1504 = vmatprep.subr.mxu0 0.0
    %1505 = vmatpush1.xpose.msra.mxu0 0.0
    %1506 = vmatprep.subr.mxu0 0.0
    %1507 = vmatpush1.xpose.msra.mxu0 0.0
    %1508 = vmatprep.subr.mxu0 0.0
    %1509 = vmatpush1.xpose.msra.mxu0 0.0
    %1510 = vmatprep.mubr.f32.mxu0 0.0
    %v1511 = vand.u32 %v1067, 4294901760
    %1512 = vmatmul.mubr.f32.gmra.mrb[0].mxu0 %v1511
    %v1513 = vpop.f32.mrb[0].mxu0
    %v1514 = vadd.f32 %v1442, %v1513
    %v1515 = vpop.f32.mrb[0].mxu0
    %1516 = vdwg.mxu0
    %v1517 = vsel %vm613, %v1061, -inf
    %1518 = vmax.xlane.f32.xlu0 %v1517
    %v1519 = vpop.xlane.xlu0 %1518
    %v1520 = vsel %vm613, %v1514, -inf
    %1521 = vmax.xlane.f32.xlu0 %v1520
    %v1522 = vpop.xlane.xlu0 %1521
    %v1523 = vsub.f32 %v1061, %v1519
    %v1524 = vsub.f32 %v1514, %v1522
    %v1525 = vmul.f32 %v1523, 1.442695
    %v1526 = vpow.pop %v1525
    %v1527 = vmul.f32 %v1524, 1.442695
    %v1528 = vpow.pop %v1527
    %v1529 = vsel %vm613, %v1526, 0.0
    %1530 = vadd.xlane.f32.xlu0 %v1529
    %v1531 = vpop.xlane.xlu0 %1530
    %v1532 = vsel %vm613, %v1528, 0.0
    %1533 = vadd.xlane.f32.xlu0 %v1532
    %v1534 = vpop.xlane.xlu0 %1533
    %v1535 = vrcp.pop %v1531
    %v1536 = vrcp.pop %v1534
    %v1537 = vmul.f32 %v1526, %v1535
    %v1538 = vmul.f32 %v1528, %v1536
    %1539 = vrot.lane.b32.xlu0 %v601, 64
    %v1540 = vpop.permute.xlu0 %1539
    %v1543 = vsel %vm613, %v1537, 0
    %1545 = vmatprep.subr.mxu0 0.0
    %v1546 = vand.u32 %v1540, 4294901760
    %1547 = vmatpush1.msra.mxu0 %v1546
    %1548 = vmatprep.subr.mxu0 0.0
    %1549 = vmatpush1.msra.mxu0 0.0
    %1550 = vmatprep.subr.mxu0 0.0
    %1551 = vmatpush1.msra.mxu0 0.0
    %1552 = vmatprep.subr.mxu0 0.0
    %1553 = vmatpush1.msra.mxu0 0.0
    %1554 = vmatprep.subr.mxu0 0.0
    %1555 = vmatpush1.msra.mxu0 0.0
    %1556 = vmatprep.subr.mxu0 0.0
    %1557 = vmatpush1.msra.mxu0 0.0
    %1558 = vmatprep.subr.mxu0 0.0
    %1559 = vmatpush1.msra.mxu0 0.0
    %1560 = vmatprep.subr.mxu0 0.0
    %1561 = vmatpush1.msra.mxu0 0.0
    %1562 = vmatprep.subr.mxu0 0.0
    %1563 = vmatpush1.msra.mxu0 0.0
    %1564 = vmatprep.subr.mxu0 0.0
    %1565 = vmatpush1.msra.mxu0 0.0
    %1566 = vmatprep.subr.mxu0 0.0
    %1567 = vmatpush1.msra.mxu0 0.0
    %1568 = vmatprep.subr.mxu0 0.0
    %1569 = vmatpush1.msra.mxu0 0.0
    %1570 = vmatprep.subr.mxu0 0.0
    %1571 = vmatpush1.msra.mxu0 0.0
    %1572 = vmatprep.subr.mxu0 0.0
    %1573 = vmatpush1.msra.mxu0 0.0
    %1574 = vmatprep.subr.mxu0 0.0
    %1575 = vmatpush1.msra.mxu0 0.0
    %1576 = vmatprep.subr.mxu0 0.0
    %1577 = vmatpush1.msra.mxu0 0.0
    %1578 = vmatprep.subr.mxu0 0.0
    %1579 = vmatpush1.msra.mxu0 0.0
    %1580 = vmatprep.subr.mxu0 0.0
    %1581 = vmatpush1.msra.mxu0 0.0
    %1582 = vmatprep.subr.mxu0 0.0
    %1583 = vmatpush1.msra.mxu0 0.0
    %1584 = vmatprep.subr.mxu0 0.0
    %1585 = vmatpush1.msra.mxu0 0.0
    %1586 = vmatprep.subr.mxu0 0.0
    %1587 = vmatpush1.msra.mxu0 0.0
    %1588 = vmatprep.subr.mxu0 0.0
    %1589 = vmatpush1.msra.mxu0 0.0
    %1590 = vmatprep.subr.mxu0 0.0
    %1591 = vmatpush1.msra.mxu0 0.0
    %1592 = vmatprep.subr.mxu0 0.0
    %1593 = vmatpush1.msra.mxu0 0.0
    %1594 = vmatprep.subr.mxu0 0.0
    %1595 = vmatpush1.msra.mxu0 0.0
    %1596 = vmatprep.subr.mxu0 0.0
    %1597 = vmatpush1.msra.mxu0 0.0
    %1598 = vmatprep.subr.mxu0 0.0
    %1599 = vmatpush1.msra.mxu0 0.0
    %1600 = vmatprep.subr.mxu0 0.0
    %1601 = vmatpush1.msra.mxu0 0.0
    %1602 = vmatprep.subr.mxu0 0.0
    %1603 = vmatpush1.msra.mxu0 0.0
    %1604 = vmatprep.subr.mxu0 0.0
    %1605 = vmatpush1.msra.mxu0 0.0
    %1606 = vmatprep.subr.mxu0 0.0
    %1607 = vmatpush1.msra.mxu0 0.0
    %1608 = vmatprep.subr.mxu0 0.0
    %1609 = vmatpush1.msra.mxu0 0.0
    %1610 = vmatprep.mubr.f32.mxu0 0.0
    %v1611 = vand.u32 %v1543, 4294901760
    %v1612 = vsub.f32 %v1543, %v1611
    %v1613 = vand.u32 %v1612, 4294901760
    %v1614 = vsub.f32 %v1612, %v1613
    %v1615 = vand.u32 %v1614, 4294901760
    %1616 = vmatmul.mubr.f32.gmra.mrb[0].mxu0 %v1615
    %v1617 = vpop.f32.mrb[0].mxu0
    %v1618 = vadd.f32 0.0, %v1617
    %v1619 = vpop.f32.mrb[0].mxu0
    %1620 = vdwg.mxu0
    %1621 = vmatprep.subr.mxu0 0.0
    %v1622 = vand.u32 %v1540, 4294901760
    %v1623 = vsub.f32 %v1540, %v1622
    %v1624 = vand.u32 %v1623, 4294901760
    %v1625 = vsub.f32 %v1623, %v1624
    %v1626 = vand.u32 %v1625, 4294901760
    %1627 = vmatpush1.msra.mxu0 %v1626
    %1628 = vmatprep.subr.mxu0 0.0
    %1629 = vmatpush1.msra.mxu0 0.0
    %1630 = vmatprep.subr.mxu0 0.0
    %1631 = vmatpush1.msra.mxu0 0.0
    %1632 = vmatprep.subr.mxu0 0.0
    %1633 = vmatpush1.msra.mxu0 0.0
    %1634 = vmatprep.subr.mxu0 0.0
    %1635 = vmatpush1.msra.mxu0 0.0
    %1636 = vmatprep.subr.mxu0 0.0
    %1637 = vmatpush1.msra.mxu0 0.0
    %1638 = vmatprep.subr.mxu0 0.0
    %1639 = vmatpush1.msra.mxu0 0.0
    %1640 = vmatprep.subr.mxu0 0.0
    %1641 = vmatpush1.msra.mxu0 0.0
    %1642 = vmatprep.subr.mxu0 0.0
    %1643 = vmatpush1.msra.mxu0 0.0
    %1644 = vmatprep.subr.mxu0 0.0
    %1645 = vmatpush1.msra.mxu0 0.0
    %1646 = vmatprep.subr.mxu0 0.0
    %1647 = vmatpush1.msra.mxu0 0.0
    %1648 = vmatprep.subr.mxu0 0.0
    %1649 = vmatpush1.msra.mxu0 0.0
    %1650 = vmatprep.subr.mxu0 0.0
    %1651 = vmatpush1.msra.mxu0 0.0
    %1652 = vmatprep.subr.mxu0 0.0
    %1653 = vmatpush1.msra.mxu0 0.0
    %1654 = vmatprep.subr.mxu0 0.0
    %1655 = vmatpush1.msra.mxu0 0.0
    %1656 = vmatprep.subr.mxu0 0.0
    %1657 = vmatpush1.msra.mxu0 0.0
    %1658 = vmatprep.subr.mxu0 0.0
    %1659 = vmatpush1.msra.mxu0 0.0
    %1660 = vmatprep.subr.mxu0 0.0
    %1661 = vmatpush1.msra.mxu0 0.0
    %1662 = vmatprep.subr.mxu0 0.0
    %1663 = vmatpush1.msra.mxu0 0.0
    %1664 = vmatprep.subr.mxu0 0.0
    %1665 = vmatpush1.msra.mxu0 0.0
    %1666 = vmatprep.subr.mxu0 0.0
    %1667 = vmatpush1.msra.mxu0 0.0
    %1668 = vmatprep.subr.mxu0 0.0
    %1669 = vmatpush1.msra.mxu0 0.0
    %1670 = vmatprep.subr.mxu0 0.0
    %1671 = vmatpush1.msra.mxu0 0.0
    %1672 = vmatprep.subr.mxu0 0.0
    %1673 = vmatpush1.msra.mxu0 0.0
    %1674 = vmatprep.subr.mxu0 0.0
    %1675 = vmatpush1.msra.mxu0 0.0
    %1676 = vmatprep.subr.mxu0 0.0
    %1677 = vmatpush1.msra.mxu0 0.0
    %1678 = vmatprep.subr.mxu0 0.0
    %1679 = vmatpush1.msra.mxu0 0.0
    %1680 = vmatprep.subr.mxu0 0.0
    %1681 = vmatpush1.msra.mxu0 0.0
    %1682 = vmatprep.subr.mxu0 0.0
    %1683 = vmatpush1.msra.mxu0 0.0
    %1684 = vmatprep.subr.mxu0 0.0
    %1685 = vmatpush1.msra.mxu0 0.0
    %1686 = vmatprep.subr.mxu0 0.0
    %1687 = vmatpush1.msra.mxu0 0.0
    %1688 = vmatprep.subr.mxu0 0.0
    %1689 = vmatpush1.msra.mxu0 0.0
    %1690 = vmatprep.mubr.f32.mxu0 0.0
    %v1691 = vand.u32 %v1543, 4294901760
    %1692 = vmatmul.mubr.f32.gmra.mrb[0].mxu0 %v1691
    %v1693 = vpop.f32.mrb[0].mxu0
    %v1694 = vadd.f32 %v1618, %v1693
    %v1695 = vpop.f32.mrb[0].mxu0
    %1696 = vdwg.mxu0
    %1697 = vmatprep.subr.mxu0 0.0
    %v1698 = vand.u32 %v1540, 4294901760
    %v1699 = vsub.f32 %v1540, %v1698
    %1700 = vmatpush1.msra.mxu0 %v1699
    %1701 = vmatprep.subr.mxu0 0.0
    %1702 = vmatpush1.msra.mxu0 0.0
    %1703 = vmatprep.subr.mxu0 0.0
    %1704 = vmatpush1.msra.mxu0 0.0
    %1705 = vmatprep.subr.mxu0 0.0
    %1706 = vmatpush1.msra.mxu0 0.0
    %1707 = vmatprep.subr.mxu0 0.0
    %1708 = vmatpush1.msra.mxu0 0.0
    %1709 = vmatprep.subr.mxu0 0.0
    %1710 = vmatpush1.msra.mxu0 0.0
    %1711 = vmatprep.subr.mxu0 0.0
    %1712 = vmatpush1.msra.mxu0 0.0
    %1713 = vmatprep.subr.mxu0 0.0
    %1714 = vmatpush1.msra.mxu0 0.0
    %1715 = vmatprep.subr.mxu0 0.0
    %1716 = vmatpush1.msra.mxu0 0.0
    %1717 = vmatprep.subr.mxu0 0.0
    %1718 = vmatpush1.msra.mxu0 0.0
    %1719 = vmatprep.subr.mxu0 0.0
    %1720 = vmatpush1.msra.mxu0 0.0
    %1721 = vmatprep.subr.mxu0 0.0
    %1722 = vmatpush1.msra.mxu0 0.0
    %1723 = vmatprep.subr.mxu0 0.0
    %1724 = vmatpush1.msra.mxu0 0.0
    %1725 = vmatprep.subr.mxu0 0.0
    %1726 = vmatpush1.msra.mxu0 0.0
    %1727 = vmatprep.subr.mxu0 0.0
    %1728 = vmatpush1.msra.mxu0 0.0
    %1729 = vmatprep.subr.mxu0 0.0
    %1730 = vmatpush1.msra.mxu0 0.0
    %1731 = vmatprep.subr.mxu0 0.0
    %1732 = vmatpush1.msra.mxu0 0.0
    %1733 = vmatprep.subr.mxu0 0.0
    %1734 = vmatpush1.msra.mxu0 0.0
    %1735 = vmatprep.subr.mxu0 0.0
    %1736 = vmatpush1.msra.mxu0 0.0
    %1737 = vmatprep.subr.mxu0 0.0
    %1738 = vmatpush1.msra.mxu0 0.0
    %1739 = vmatprep.subr.mxu0 0.0
    %1740 = vmatpush1.msra.mxu0 0.0
    %1741 = vmatprep.subr.mxu0 0.0
    %1742 = vmatpush1.msra.mxu0 0.0
    %1743 = vmatprep.subr.mxu0 0.0
    %1744 = vmatpush1.msra.mxu0 0.0
    %1745 = vmatprep.subr.mxu0 0.0
    %1746 = vmatpush1.msra.mxu0 0.0
    %1747 = vmatprep.subr.mxu0 0.0
    %1748 = vmatpush1.msra.mxu0 0.0
    %1749 = vmatprep.subr.mxu0 0.0
    %1750 = vmatpush1.msra.mxu0 0.0
    %1751 = vmatprep.subr.mxu0 0.0
    %1752 = vmatpush1.msra.mxu0 0.0
    %1753 = vmatprep.subr.mxu0 0.0
    %1754 = vmatpush1.msra.mxu0 0.0
    %1755 = vmatprep.subr.mxu0 0.0
    %1756 = vmatpush1.msra.mxu0 0.0
    %1757 = vmatprep.subr.mxu0 0.0
    %1758 = vmatpush1.msra.mxu0 0.0
    %1759 = vmatprep.subr.mxu0 0.0
    %1760 = vmatpush1.msra.mxu0 0.0
    %1761 = vmatprep.subr.mxu0 0.0
    %1762 = vmatpush1.msra.mxu0 0.0
    %1763 = vmatprep.mubr.f32.mxu0 0.0
    %v1764 = vand.u32 %v1543, 4294901760
    %v1765 = vsub.f32 %v1543, %v1764
    %1766 = vmatmul.mubr.f32.gmra.mrb[0].mxu0 %v1765
    %v1767 = vpop.f32.mrb[0].mxu0
    %v1768 = vadd.f32 %v1694, %v1767
    %v1769 = vpop.f32.mrb[0].mxu0
    %1770 = vdwg.mxu0
    %1771 = vmatprep.subr.mxu0 0.0
    %v1772 = vand.u32 %v1540, 4294901760
    %1773 = vmatpush1.msra.mxu0 %v1772
    %1774 = vmatprep.subr.mxu0 0.0
    %1775 = vmatpush1.msra.mxu0 0.0
    %1776 = vmatprep.subr.mxu0 0.0
    %1777 = vmatpush1.msra.mxu0 0.0
    %1778 = vmatprep.subr.mxu0 0.0
    %1779 = vmatpush1.msra.mxu0 0.0
    %1780 = vmatprep.subr.mxu0 0.0
    %1781 = vmatpush1.msra.mxu0 0.0
    %1782 = vmatprep.subr.mxu0 0.0
    %1783 = vmatpush1.msra.mxu0 0.0
    %1784 = vmatprep.subr.mxu0 0.0
    %1785 = vmatpush1.msra.mxu0 0.0
    %1786 = vmatprep.subr.mxu0 0.0
    %1787 = vmatpush1.msra.mxu0 0.0
    %1788 = vmatprep.subr.mxu0 0.0
    %1789 = vmatpush1.msra.mxu0 0.0
    %1790 = vmatprep.subr.mxu0 0.0
    %1791 = vmatpush1.msra.mxu0 0.0
    %1792 = vmatprep.subr.mxu0 0.0
    %1793 = vmatpush1.msra.mxu0 0.0
    %1794 = vmatprep.subr.mxu0 0.0
    %1795 = vmatpush1.msra.mxu0 0.0
    %1796 = vmatprep.subr.mxu0 0.0
    %1797 = vmatpush1.msra.mxu0 0.0
    %1798 = vmatprep.subr.mxu0 0.0
    %1799 = vmatpush1.msra.mxu0 0.0
    %1800 = vmatprep.subr.mxu0 0.0
    %1801 = vmatpush1.msra.mxu0 0.0
    %1802 = vmatprep.subr.mxu0 0.0
    %1803 = vmatpush1.msra.mxu0 0.0
    %1804 = vmatprep.subr.mxu0 0.0
    %1805 = vmatpush1.msra.mxu0 0.0
    %1806 = vmatprep.subr.mxu0 0.0
    %1807 = vmatpush1.msra.mxu0 0.0
    %1808 = vmatprep.subr.mxu0 0.0
    %1809 = vmatpush1.msra.mxu0 0.0
    %1810 = vmatprep.subr.mxu0 0.0
    %1811 = vmatpush1.msra.mxu0 0.0
    %1812 = vmatprep.subr.mxu0 0.0
    %1813 = vmatpush1.msra.mxu0 0.0
    %1814 = vmatprep.subr.mxu0 0.0
    %1815 = vmatpush1.msra.mxu0 0.0
    %1816 = vmatprep.subr.mxu0 0.0
    %1817 = vmatpush1.msra.mxu0 0.0
    %1818 = vmatprep.subr.mxu0 0.0
    %1819 = vmatpush1.msra.mxu0 0.0
    %1820 = vmatprep.subr.mxu0 0.0
    %1821 = vmatpush1.msra.mxu0 0.0
    %1822 = vmatprep.subr.mxu0 0.0
    %1823 = vmatpush1.msra.mxu0 0.0
    %1824 = vmatprep.subr.mxu0 0.0
    %1825 = vmatpush1.msra.mxu0 0.0
    %1826 = vmatprep.subr.mxu0 0.0
    %1827 = vmatpush1.msra.mxu0 0.0
    %1828 = vmatprep.subr.mxu0 0.0
    %1829 = vmatpush1.msra.mxu0 0.0
    %1830 = vmatprep.subr.mxu0 0.0
    %1831 = vmatpush1.msra.mxu0 0.0
    %1832 = vmatprep.subr.mxu0 0.0
    %1833 = vmatpush1.msra.mxu0 0.0
    %1834 = vmatprep.subr.mxu0 0.0
    %1835 = vmatpush1.msra.mxu0 0.0
    %1836 = vmatprep.mubr.f32.mxu0 0.0
    %v1837 = vand.u32 %v1543, 4294901760
    %v1838 = vsub.f32 %v1543, %v1837
    %v1839 = vand.u32 %v1838, 4294901760
    %1840 = vmatmul.mubr.f32.gmra.mrb[0].mxu0 %v1839
    %v1841 = vpop.f32.mrb[0].mxu0
    %v1842 = vadd.f32 %v1768, %v1841
    %v1843 = vpop.f32.mrb[0].mxu0
    %1844 = vdwg.mxu0
    %1845 = vmatprep.subr.mxu0 0.0
    %v1846 = vand.u32 %v1540, 4294901760
    %v1847 = vsub.f32 %v1540, %v1846
    %v1848 = vand.u32 %v1847, 4294901760
    %1849 = vmatpush1.msra.mxu0 %v1848
    %1850 = vmatprep.subr.mxu0 0.0
    %1851 = vmatpush1.msra.mxu0 0.0
    %1852 = vmatprep.subr.mxu0 0.0
    %1853 = vmatpush1.msra.mxu0 0.0
    %1854 = vmatprep.subr.mxu0 0.0
    %1855 = vmatpush1.msra.mxu0 0.0
    %1856 = vmatprep.subr.mxu0 0.0
    %1857 = vmatpush1.msra.mxu0 0.0
    %1858 = vmatprep.subr.mxu0 0.0
    %1859 = vmatpush1.msra.mxu0 0.0
    %1860 = vmatprep.subr.mxu0 0.0
    %1861 = vmatpush1.msra.mxu0 0.0
    %1862 = vmatprep.subr.mxu0 0.0
    %1863 = vmatpush1.msra.mxu0 0.0
    %1864 = vmatprep.subr.mxu0 0.0
    %1865 = vmatpush1.msra.mxu0 0.0
    %1866 = vmatprep.subr.mxu0 0.0
    %1867 = vmatpush1.msra.mxu0 0.0
    %1868 = vmatprep.subr.mxu0 0.0
    %1869 = vmatpush1.msra.mxu0 0.0
    %1870 = vmatprep.subr.mxu0 0.0
    %1871 = vmatpush1.msra.mxu0 0.0
    %1872 = vmatprep.subr.mxu0 0.0
    %1873 = vmatpush1.msra.mxu0 0.0
    %1874 = vmatprep.subr.mxu0 0.0
    %1875 = vmatpush1.msra.mxu0 0.0
    %1876 = vmatprep.subr.mxu0 0.0
    %1877 = vmatpush1.msra.mxu0 0.0
    %1878 = vmatprep.subr.mxu0 0.0
    %1879 = vmatpush1.msra.mxu0 0.0
    %1880 = vmatprep.subr.mxu0 0.0
    %1881 = vmatpush1.msra.mxu0 0.0
    %1882 = vmatprep.subr.mxu0 0.0
    %1883 = vmatpush1.msra.mxu0 0.0
    %1884 = vmatprep.subr.mxu0 0.0
    %1885 = vmatpush1.msra.mxu0 0.0
    %1886 = vmatprep.subr.mxu0 0.0
    %1887 = vmatpush1.msra.mxu0 0.0
    %1888 = vmatprep.subr.mxu0 0.0
    %1889 = vmatpush1.msra.mxu0 0.0
    %1890 = vmatprep.subr.mxu0 0.0
    %1891 = vmatpush1.msra.mxu0 0.0
    %1892 = vmatprep.subr.mxu0 0.0
    %1893 = vmatpush1.msra.mxu0 0.0
    %1894 = vmatprep.subr.mxu0 0.0
    %1895 = vmatpush1.msra.mxu0 0.0
    %1896 = vmatprep.subr.mxu0 0.0
    %1897 = vmatpush1.msra.mxu0 0.0
    %1898 = vmatprep.subr.mxu0 0.0
    %1899 = vmatpush1.msra.mxu0 0.0
    %1900 = vmatprep.subr.mxu0 0.0
    %1901 = vmatpush1.msra.mxu0 0.0
    %1902 = vmatprep.subr.mxu0 0.0
    %1903 = vmatpush1.msra.mxu0 0.0
    %1904 = vmatprep.subr.mxu0 0.0
    %1905 = vmatpush1.msra.mxu0 0.0
    %1906 = vmatprep.subr.mxu0 0.0
    %1907 = vmatpush1.msra.mxu0 0.0
    %1908 = vmatprep.subr.mxu0 0.0
    %1909 = vmatpush1.msra.mxu0 0.0
    %1910 = vmatprep.subr.mxu0 0.0
    %1911 = vmatpush1.msra.mxu0 0.0
    %1912 = vmatprep.mubr.f32.mxu0 0.0
    %v1913 = vand.u32 %v1543, 4294901760
    %1914 = vmatmul.mubr.f32.gmra.mrb[0].mxu0 %v1913
    %v1915 = vpop.f32.mrb[0].mxu0
    %v1916 = vadd.f32 %v1842, %v1915
    %v1917 = vpop.f32.mrb[0].mxu0
    %1918 = vdwg.mxu0
    %1919 = vmatprep.subr.mxu0 0.0
    %v1920 = vand.u32 %v1540, 4294901760
    %1921 = vmatpush1.msra.mxu0 %v1920
    %1922 = vmatprep.subr.mxu0 0.0
    %1923 = vmatpush1.msra.mxu0 0.0
    %1924 = vmatprep.subr.mxu0 0.0
    %1925 = vmatpush1.msra.mxu0 0.0
    %1926 = vmatprep.subr.mxu0 0.0
    %1927 = vmatpush1.msra.mxu0 0.0
    %1928 = vmatprep.subr.mxu0 0.0
    %1929 = vmatpush1.msra.mxu0 0.0
    %1930 = vmatprep.subr.mxu0 0.0
    %1931 = vmatpush1.msra.mxu0 0.0
    %1932 = vmatprep.subr.mxu0 0.0
    %1933 = vmatpush1.msra.mxu0 0.0
    %1934 = vmatprep.subr.mxu0 0.0
    %1935 = vmatpush1.msra.mxu0 0.0
    %1936 = vmatprep.subr.mxu0 0.0
    %1937 = vmatpush1.msra.mxu0 0.0
    %1938 = vmatprep.subr.mxu0 0.0
    %1939 = vmatpush1.msra.mxu0 0.0
    %1940 = vmatprep.subr.mxu0 0.0
    %1941 = vmatpush1.msra.mxu0 0.0
    %1942 = vmatprep.subr.mxu0 0.0
    %1943 = vmatpush1.msra.mxu0 0.0
    %1944 = vmatprep.subr.mxu0 0.0
    %1945 = vmatpush1.msra.mxu0 0.0
    %1946 = vmatprep.subr.mxu0 0.0
    %1947 = vmatpush1.msra.mxu0 0.0
    %1948 = vmatprep.subr.mxu0 0.0
    %1949 = vmatpush1.msra.mxu0 0.0
    %1950 = vmatprep.subr.mxu0 0.0
    %1951 = vmatpush1.msra.mxu0 0.0
    %1952 = vmatprep.subr.mxu0 0.0
    %1953 = vmatpush1.msra.mxu0 0.0
    %1954 = vmatprep.subr.mxu0 0.0
    %1955 = vmatpush1.msra.mxu0 0.0
    %1956 = vmatprep.subr.mxu0 0.0
    %1957 = vmatpush1.msra.mxu0 0.0
    %1958 = vmatprep.subr.mxu0 0.0
    %1959 = vmatpush1.msra.mxu0 0.0
    %1960 = vmatprep.subr.mxu0 0.0
    %1961 = vmatpush1.msra.mxu0 0.0
    %1962 = vmatprep.subr.mxu0 0.0
    %1963 = vmatpush1.msra.mxu0 0.0
    %1964 = vmatprep.subr.mxu0 0.0
    %1965 = vmatpush1.msra.mxu0 0.0
    %1966 = vmatprep.subr.mxu0 0.0
    %1967 = vmatpush1.msra.mxu0 0.0
    %1968 = vmatprep.subr.mxu0 0.0
    %1969 = vmatpush1.msra.mxu0 0.0
    %1970 = vmatprep.subr.mxu0 0.0
    %1971 = vmatpush1.msra.mxu0 0.0
    %1972 = vmatprep.subr.mxu0 0.0
    %1973 = vmatpush1.msra.mxu0 0.0
    %1974 = vmatprep.subr.mxu0 0.0
    %1975 = vmatpush1.msra.mxu0 0.0
    %1976 = vmatprep.subr.mxu0 0.0
    %1977 = vmatpush1.msra.mxu0 0.0
    %1978 = vmatprep.subr.mxu0 0.0
    %1979 = vmatpush1.msra.mxu0 0.0
    %1980 = vmatprep.subr.mxu0 0.0
    %1981 = vmatpush1.msra.mxu0 0.0
    %1982 = vmatprep.subr.mxu0 0.0
    %1983 = vmatpush1.msra.mxu0 0.0
    %1984 = vmatprep.mubr.f32.mxu0 0.0
    %v1985 = vand.u32 %v1543, 4294901760
    %1986 = vmatmul.mubr.f32.gmra.mrb[0].mxu0 %v1985
    %v1987 = vpop.f32.mrb[0].mxu0
    %v1988 = vadd.f32 %v1916, %v1987
    %v1989 = vpop.f32.mrb[0].mxu0
    %1990 = vdwg.mxu0
    %1991 = vrot.lane.b32.xlu0 %v607, 64
    %v1992 = vpop.permute.xlu0 %1991
    %v1995 = vsel %vm613, %v1538, 0
    %1997 = vmatprep.subr.mxu0 0.0
    %v1998 = vand.u32 %v1992, 4294901760
    %1999 = vmatpush1.msra.mxu0 %v1998
    %2000 = vmatprep.subr.mxu0 0.0
    %2001 = vmatpush1.msra.mxu0 0.0
    %2002 = vmatprep.subr.mxu0 0.0
    %2003 = vmatpush1.msra.mxu0 0.0
    %2004 = vmatprep.subr.mxu0 0.0
    %2005 = vmatpush1.msra.mxu0 0.0
    %2006 = vmatprep.subr.mxu0 0.0
    %2007 = vmatpush1.msra.mxu0 0.0
    %2008 = vmatprep.subr.mxu0 0.0
    %2009 = vmatpush1.msra.mxu0 0.0
    %2010 = vmatprep.subr.mxu0 0.0
    %2011 = vmatpush1.msra.mxu0 0.0
    %2012 = vmatprep.subr.mxu0 0.0
    %2013 = vmatpush1.msra.mxu0 0.0
    %2014 = vmatprep.subr.mxu0 0.0
    %2015 = vmatpush1.msra.mxu0 0.0
    %2016 = vmatprep.subr.mxu0 0.0
    %2017 = vmatpush1.msra.mxu0 0.0
    %2018 = vmatprep.subr.mxu0 0.0
    %2019 = vmatpush1.msra.mxu0 0.0
    %2020 = vmatprep.subr.mxu0 0.0
    %2021 = vmatpush1.msra.mxu0 0.0
    %2022 = vmatprep.subr.mxu0 0.0
    %2023 = vmatpush1.msra.mxu0 0.0
    %2024 = vmatprep.subr.mxu0 0.0
    %2025 = vmatpush1.msra.mxu0 0.0
    %2026 = vmatprep.subr.mxu0 0.0
    %2027 = vmatpush1.msra.mxu0 0.0
    %2028 = vmatprep.subr.mxu0 0.0
    %2029 = vmatpush1.msra.mxu0 0.0
    %2030 = vmatprep.subr.mxu0 0.0
    %2031 = vmatpush1.msra.mxu0 0.0
    %2032 = vmatprep.subr.mxu0 0.0
    %2033 = vmatpush1.msra.mxu0 0.0
    %2034 = vmatprep.subr.mxu0 0.0
    %2035 = vmatpush1.msra.mxu0 0.0
    %2036 = vmatprep.subr.mxu0 0.0
    %2037 = vmatpush1.msra.mxu0 0.0
    %2038 = vmatprep.subr.mxu0 0.0
    %2039 = vmatpush1.msra.mxu0 0.0
    %2040 = vmatprep.subr.mxu0 0.0
    %2041 = vmatpush1.msra.mxu0 0.0
    %2042 = vmatprep.subr.mxu0 0.0
    %2043 = vmatpush1.msra.mxu0 0.0
    %2044 = vmatprep.subr.mxu0 0.0
    %2045 = vmatpush1.msra.mxu0 0.0
    %2046 = vmatprep.subr.mxu0 0.0
    %2047 = vmatpush1.msra.mxu0 0.0
    %2048 = vmatprep.subr.mxu0 0.0
    %2049 = vmatpush1.msra.mxu0 0.0
    %2050 = vmatprep.subr.mxu0 0.0
    %2051 = vmatpush1.msra.mxu0 0.0
    %2052 = vmatprep.subr.mxu0 0.0
    %2053 = vmatpush1.msra.mxu0 0.0
    %2054 = vmatprep.subr.mxu0 0.0
    %2055 = vmatpush1.msra.mxu0 0.0
    %2056 = vmatprep.subr.mxu0 0.0
    %2057 = vmatpush1.msra.mxu0 0.0
    %2058 = vmatprep.subr.mxu0 0.0
    %2059 = vmatpush1.msra.mxu0 0.0
    %2060 = vmatprep.subr.mxu0 0.0
    %2061 = vmatpush1.msra.mxu0 0.0
    %2062 = vmatprep.mubr.f32.mxu0 0.0
    %v2063 = vand.u32 %v1995, 4294901760
    %v2064 = vsub.f32 %v1995, %v2063
    %v2065 = vand.u32 %v2064, 4294901760
    %v2066 = vsub.f32 %v2064, %v2065
    %v2067 = vand.u32 %v2066, 4294901760
    %2068 = vmatmul.mubr.f32.gmra.mrb[0].mxu0 %v2067
    %v2069 = vpop.f32.mrb[0].mxu0
    %v2070 = vadd.f32 0.0, %v2069
    %v2071 = vpop.f32.mrb[0].mxu0
    %2072 = vdwg.mxu0
    %2073 = vmatprep.subr.mxu0 0.0
    %v2074 = vand.u32 %v1992, 4294901760
    %v2075 = vsub.f32 %v1992, %v2074
    %v2076 = vand.u32 %v2075, 4294901760
    %v2077 = vsub.f32 %v2075, %v2076
    %v2078 = vand.u32 %v2077, 4294901760
    %2079 = vmatpush1.msra.mxu0 %v2078
    %2080 = vmatprep.subr.mxu0 0.0
    %2081 = vmatpush1.msra.mxu0 0.0
    %2082 = vmatprep.subr.mxu0 0.0
    %2083 = vmatpush1.msra.mxu0 0.0
    %2084 = vmatprep.subr.mxu0 0.0
    %2085 = vmatpush1.msra.mxu0 0.0
    %2086 = vmatprep.subr.mxu0 0.0
    %2087 = vmatpush1.msra.mxu0 0.0
    %2088 = vmatprep.subr.mxu0 0.0
    %2089 = vmatpush1.msra.mxu0 0.0
    %2090 = vmatprep.subr.mxu0 0.0
    %2091 = vmatpush1.msra.mxu0 0.0
    %2092 = vmatprep.subr.mxu0 0.0
    %2093 = vmatpush1.msra.mxu0 0.0
    %2094 = vmatprep.subr.mxu0 0.0
    %2095 = vmatpush1.msra.mxu0 0.0
    %2096 = vmatprep.subr.mxu0 0.0
    %2097 = vmatpush1.msra.mxu0 0.0
    %2098 = vmatprep.subr.mxu0 0.0
    %2099 = vmatpush1.msra.mxu0 0.0
    %2100 = vmatprep.subr.mxu0 0.0
    %2101 = vmatpush1.msra.mxu0 0.0
    %2102 = vmatprep.subr.mxu0 0.0
    %2103 = vmatpush1.msra.mxu0 0.0
    %2104 = vmatprep.subr.mxu0 0.0
    %2105 = vmatpush1.msra.mxu0 0.0
    %2106 = vmatprep.subr.mxu0 0.0
    %2107 = vmatpush1.msra.mxu0 0.0
    %2108 = vmatprep.subr.mxu0 0.0
    %2109 = vmatpush1.msra.mxu0 0.0
    %2110 = vmatprep.subr.mxu0 0.0
    %2111 = vmatpush1.msra.mxu0 0.0
    %2112 = vmatprep.subr.mxu0 0.0
    %2113 = vmatpush1.msra.mxu0 0.0
    %2114 = vmatprep.subr.mxu0 0.0
    %2115 = vmatpush1.msra.mxu0 0.0
    %2116 = vmatprep.subr.mxu0 0.0
    %2117 = vmatpush1.msra.mxu0 0.0
    %2118 = vmatprep.subr.mxu0 0.0
    %2119 = vmatpush1.msra.mxu0 0.0
    %2120 = vmatprep.subr.mxu0 0.0
    %2121 = vmatpush1.msra.mxu0 0.0
    %2122 = vmatprep.subr.mxu0 0.0
    %2123 = vmatpush1.msra.mxu0 0.0
    %2124 = vmatprep.subr.mxu0 0.0
    %2125 = vmatpush1.msra.mxu0 0.0
    %2126 = vmatprep.subr.mxu0 0.0
    %2127 = vmatpush1.msra.mxu0 0.0
    %2128 = vmatprep.subr.mxu0 0.0
    %2129 = vmatpush1.msra.mxu0 0.0
    %2130 = vmatprep.subr.mxu0 0.0
    %2131 = vmatpush1.msra.mxu0 0.0
    %2132 = vmatprep.subr.mxu0 0.0
    %2133 = vmatpush1.msra.mxu0 0.0
    %2134 = vmatprep.subr.mxu0 0.0
    %2135 = vmatpush1.msra.mxu0 0.0
    %2136 = vmatprep.subr.mxu0 0.0
    %2137 = vmatpush1.msra.mxu0 0.0
    %2138 = vmatprep.subr.mxu0 0.0
    %2139 = vmatpush1.msra.mxu0 0.0
    %2140 = vmatprep.subr.mxu0 0.0
    %2141 = vmatpush1.msra.mxu0 0.0
    %2142 = vmatprep.mubr.f32.mxu0 0.0
    %v2143 = vand.u32 %v1995, 4294901760
    %2144 = vmatmul.mubr.f32.gmra.mrb[0].mxu0 %v2143
    %v2145 = vpop.f32.mrb[0].mxu0
    %v2146 = vadd.f32 %v2070, %v2145
    %v2147 = vpop.f32.mrb[0].mxu0
    %2148 = vdwg.mxu0
    %2149 = vmatprep.subr.mxu0 0.0
    %v2150 = vand.u32 %v1992, 4294901760
    %v2151 = vsub.f32 %v1992, %v2150
    %2152 = vmatpush1.msra.mxu0 %v2151
    %2153 = vmatprep.subr.mxu0 0.0
    %2154 = vmatpush1.msra.mxu0 0.0
    %2155 = vmatprep.subr.mxu0 0.0
    %2156 = vmatpush1.msra.mxu0 0.0
    %2157 = vmatprep.subr.mxu0 0.0
    %2158 = vmatpush1.msra.mxu0 0.0
    %2159 = vmatprep.subr.mxu0 0.0
    %2160 = vmatpush1.msra.mxu0 0.0
    %2161 = vmatprep.subr.mxu0 0.0
    %2162 = vmatpush1.msra.mxu0 0.0
    %2163 = vmatprep.subr.mxu0 0.0
    %2164 = vmatpush1.msra.mxu0 0.0
    %2165 = vmatprep.subr.mxu0 0.0
    %2166 = vmatpush1.msra.mxu0 0.0
    %2167 = vmatprep.subr.mxu0 0.0
    %2168 = vmatpush1.msra.mxu0 0.0
    %2169 = vmatprep.subr.mxu0 0.0
    %2170 = vmatpush1.msra.mxu0 0.0
    %2171 = vmatprep.subr.mxu0 0.0
    %2172 = vmatpush1.msra.mxu0 0.0
    %2173 = vmatprep.subr.mxu0 0.0
    %2174 = vmatpush1.msra.mxu0 0.0
    %2175 = vmatprep.subr.mxu0 0.0
    %2176 = vmatpush1.msra.mxu0 0.0
    %2177 = vmatprep.subr.mxu0 0.0
    %2178 = vmatpush1.msra.mxu0 0.0
    %2179 = vmatprep.subr.mxu0 0.0
    %2180 = vmatpush1.msra.mxu0 0.0
    %2181 = vmatprep.subr.mxu0 0.0
    %2182 = vmatpush1.msra.mxu0 0.0
    %2183 = vmatprep.subr.mxu0 0.0
    %2184 = vmatpush1.msra.mxu0 0.0
    %2185 = vmatprep.subr.mxu0 0.0
    %2186 = vmatpush1.msra.mxu0 0.0
    %2187 = vmatprep.subr.mxu0 0.0
    %2188 = vmatpush1.msra.mxu0 0.0
    %2189 = vmatprep.subr.mxu0 0.0
    %2190 = vmatpush1.msra.mxu0 0.0
    %2191 = vmatprep.subr.mxu0 0.0
    %2192 = vmatpush1.msra.mxu0 0.0
    %2193 = vmatprep.subr.mxu0 0.0
    %2194 = vmatpush1.msra.mxu0 0.0
    %2195 = vmatprep.subr.mxu0 0.0
    %2196 = vmatpush1.msra.mxu0 0.0
    %2197 = vmatprep.subr.mxu0 0.0
    %2198 = vmatpush1.msra.mxu0 0.0
    %2199 = vmatprep.subr.mxu0 0.0
    %2200 = vmatpush1.msra.mxu0 0.0
    %2201 = vmatprep.subr.mxu0 0.0
    %2202 = vmatpush1.msra.mxu0 0.0
    %2203 = vmatprep.subr.mxu0 0.0
    %2204 = vmatpush1.msra.mxu0 0.0
    %2205 = vmatprep.subr.mxu0 0.0
    %2206 = vmatpush1.msra.mxu0 0.0
    %2207 = vmatprep.subr.mxu0 0.0
    %2208 = vmatpush1.msra.mxu0 0.0
    %2209 = vmatprep.subr.mxu0 0.0
    %2210 = vmatpush1.msra.mxu0 0.0
    %2211 = vmatprep.subr.mxu0 0.0
    %2212 = vmatpush1.msra.mxu0 0.0
    %2213 = vmatprep.subr.mxu0 0.0
    %2214 = vmatpush1.msra.mxu0 0.0
    %2215 = vmatprep.mubr.f32.mxu0 0.0
    %v2216 = vand.u32 %v1995, 4294901760
    %v2217 = vsub.f32 %v1995, %v2216
    %2218 = vmatmul.mubr.f32.gmra.mrb[0].mxu0 %v2217
    %v2219 = vpop.f32.mrb[0].mxu0
    %v2220 = vadd.f32 %v2146, %v2219
    %v2221 = vpop.f32.mrb[0].mxu0
    %2222 = vdwg.mxu0
    %2223 = vmatprep.subr.mxu0 0.0
    %v2224 = vand.u32 %v1992, 4294901760
    %2225 = vmatpush1.msra.mxu0 %v2224
    %2226 = vmatprep.subr.mxu0 0.0
    %2227 = vmatpush1.msra.mxu0 0.0
    %2228 = vmatprep.subr.mxu0 0.0
    %2229 = vmatpush1.msra.mxu0 0.0
    %2230 = vmatprep.subr.mxu0 0.0
    %2231 = vmatpush1.msra.mxu0 0.0
    %2232 = vmatprep.subr.mxu0 0.0
    %2233 = vmatpush1.msra.mxu0 0.0
    %2234 = vmatprep.subr.mxu0 0.0
    %2235 = vmatpush1.msra.mxu0 0.0
    %2236 = vmatprep.subr.mxu0 0.0
    %2237 = vmatpush1.msra.mxu0 0.0
    %2238 = vmatprep.subr.mxu0 0.0
    %2239 = vmatpush1.msra.mxu0 0.0
    %2240 = vmatprep.subr.mxu0 0.0
    %2241 = vmatpush1.msra.mxu0 0.0
    %2242 = vmatprep.subr.mxu0 0.0
    %2243 = vmatpush1.msra.mxu0 0.0
    %2244 = vmatprep.subr.mxu0 0.0
    %2245 = vmatpush1.msra.mxu0 0.0
    %2246 = vmatprep.subr.mxu0 0.0
    %2247 = vmatpush1.msra.mxu0 0.0
    %2248 = vmatprep.subr.mxu0 0.0
    %2249 = vmatpush1.msra.mxu0 0.0
    %2250 = vmatprep.subr.mxu0 0.0
    %2251 = vmatpush1.msra.mxu0 0.0
    %2252 = vmatprep.subr.mxu0 0.0
    %2253 = vmatpush1.msra.mxu0 0.0
    %2254 = vmatprep.subr.mxu0 0.0
    %2255 = vmatpush1.msra.mxu0 0.0
    %2256 = vmatprep.subr.mxu0 0.0
    %2257 = vmatpush1.msra.mxu0 0.0
    %2258 = vmatprep.subr.mxu0 0.0
    %2259 = vmatpush1.msra.mxu0 0.0
    %2260 = vmatprep.subr.mxu0 0.0
    %2261 = vmatpush1.msra.mxu0 0.0
    %2262 = vmatprep.subr.mxu0 0.0
    %2263 = vmatpush1.msra.mxu0 0.0
    %2264 = vmatprep.subr.mxu0 0.0
    %2265 = vmatpush1.msra.mxu0 0.0
    %2266 = vmatprep.subr.mxu0 0.0
    %2267 = vmatpush1.msra.mxu0 0.0
    %2268 = vmatprep.subr.mxu0 0.0
    %2269 = vmatpush1.msra.mxu0 0.0
    %2270 = vmatprep.subr.mxu0 0.0
    %2271 = vmatpush1.msra.mxu0 0.0
    %2272 = vmatprep.subr.mxu0 0.0
    %2273 = vmatpush1.msra.mxu0 0.0
    %2274 = vmatprep.subr.mxu0 0.0
    %2275 = vmatpush1.msra.mxu0 0.0
    %2276 = vmatprep.subr.mxu0 0.0
    %2277 = vmatpush1.msra.mxu0 0.0
    %2278 = vmatprep.subr.mxu0 0.0
    %2279 = vmatpush1.msra.mxu0 0.0
    %2280 = vmatprep.subr.mxu0 0.0
    %2281 = vmatpush1.msra.mxu0 0.0
    %2282 = vmatprep.subr.mxu0 0.0
    %2283 = vmatpush1.msra.mxu0 0.0
    %2284 = vmatprep.subr.mxu0 0.0
    %2285 = vmatpush1.msra.mxu0 0.0
    %2286 = vmatprep.subr.mxu0 0.0
    %2287 = vmatpush1.msra.mxu0 0.0
    %2288 = vmatprep.mubr.f32.mxu0 0.0
    %v2289 = vand.u32 %v1995, 4294901760
    %v2290 = vsub.f32 %v1995, %v2289
    %v2291 = vand.u32 %v2290, 4294901760
    %2292 = vmatmul.mubr.f32.gmra.mrb[0].mxu0 %v2291
    %v2293 = vpop.f32.mrb[0].mxu0
    %v2294 = vadd.f32 %v2220, %v2293
    %v2295 = vpop.f32.mrb[0].mxu0
    %2296 = vdwg.mxu0
    %2297 = vmatprep.subr.mxu0 0.0
    %v2298 = vand.u32 %v1992, 4294901760
    %v2299 = vsub.f32 %v1992, %v2298
    %v2300 = vand.u32 %v2299, 4294901760
    %2301 = vmatpush1.msra.mxu0 %v2300
    %2302 = vmatprep.subr.mxu0 0.0
    %2303 = vmatpush1.msra.mxu0 0.0
    %2304 = vmatprep.subr.mxu0 0.0
    %2305 = vmatpush1.msra.mxu0 0.0
    %2306 = vmatprep.subr.mxu0 0.0
    %2307 = vmatpush1.msra.mxu0 0.0
    %2308 = vmatprep.subr.mxu0 0.0
    %2309 = vmatpush1.msra.mxu0 0.0
    %2310 = vmatprep.subr.mxu0 0.0
    %2311 = vmatpush1.msra.mxu0 0.0
    %2312 = vmatprep.subr.mxu0 0.0
    %2313 = vmatpush1.msra.mxu0 0.0
    %2314 = vmatprep.subr.mxu0 0.0
    %2315 = vmatpush1.msra.mxu0 0.0
    %2316 = vmatprep.subr.mxu0 0.0
    %2317 = vmatpush1.msra.mxu0 0.0
    %2318 = vmatprep.subr.mxu0 0.0
    %2319 = vmatpush1.msra.mxu0 0.0
    %2320 = vmatprep.subr.mxu0 0.0
    %2321 = vmatpush1.msra.mxu0 0.0
    %2322 = vmatprep.subr.mxu0 0.0
    %2323 = vmatpush1.msra.mxu0 0.0
    %2324 = vmatprep.subr.mxu0 0.0
    %2325 = vmatpush1.msra.mxu0 0.0
    %2326 = vmatprep.subr.mxu0 0.0
    %2327 = vmatpush1.msra.mxu0 0.0
    %2328 = vmatprep.subr.mxu0 0.0
    %2329 = vmatpush1.msra.mxu0 0.0
    %2330 = vmatprep.subr.mxu0 0.0
    %2331 = vmatpush1.msra.mxu0 0.0
    %2332 = vmatprep.subr.mxu0 0.0
    %2333 = vmatpush1.msra.mxu0 0.0
    %2334 = vmatprep.subr.mxu0 0.0
    %2335 = vmatpush1.msra.mxu0 0.0
    %2336 = vmatprep.subr.mxu0 0.0
    %2337 = vmatpush1.msra.mxu0 0.0
    %2338 = vmatprep.subr.mxu0 0.0
    %2339 = vmatpush1.msra.mxu0 0.0
    %2340 = vmatprep.subr.mxu0 0.0
    %2341 = vmatpush1.msra.mxu0 0.0
    %2342 = vmatprep.subr.mxu0 0.0
    %2343 = vmatpush1.msra.mxu0 0.0
    %2344 = vmatprep.subr.mxu0 0.0
    %2345 = vmatpush1.msra.mxu0 0.0
    %2346 = vmatprep.subr.mxu0 0.0
    %2347 = vmatpush1.msra.mxu0 0.0
    %2348 = vmatprep.subr.mxu0 0.0
    %2349 = vmatpush1.msra.mxu0 0.0
    %2350 = vmatprep.subr.mxu0 0.0
    %2351 = vmatpush1.msra.mxu0 0.0
    %2352 = vmatprep.subr.mxu0 0.0
    %2353 = vmatpush1.msra.mxu0 0.0
    %2354 = vmatprep.subr.mxu0 0.0
    %2355 = vmatpush1.msra.mxu0 0.0
    %2356 = vmatprep.subr.mxu0 0.0
    %2357 = vmatpush1.msra.mxu0 0.0
    %2358 = vmatprep.subr.mxu0 0.0
    %2359 = vmatpush1.msra.mxu0 0.0
    %2360 = vmatprep.subr.mxu0 0.0
    %2361 = vmatpush1.msra.mxu0 0.0
    %2362 = vmatprep.subr.mxu0 0.0
    %2363 = vmatpush1.msra.mxu0 0.0
    %2364 = vmatprep.mubr.f32.mxu0 0.0
    %v2365 = vand.u32 %v1995, 4294901760
    %2366 = vmatmul.mubr.f32.gmra.mrb[0].mxu0 %v2365
    %v2367 = vpop.f32.mrb[0].mxu0
    %v2368 = vadd.f32 %v2294, %v2367
    %v2369 = vpop.f32.mrb[0].mxu0
    %2370 = vdwg.mxu0
    %2371 = vmatprep.subr.mxu0 0.0
    %v2372 = vand.u32 %v1992, 4294901760
    %2373 = vmatpush1.msra.mxu0 %v2372
    %2374 = vmatprep.subr.mxu0 0.0
    %2375 = vmatpush1.msra.mxu0 0.0
    %2376 = vmatprep.subr.mxu0 0.0
    %2377 = vmatpush1.msra.mxu0 0.0
    %2378 = vmatprep.subr.mxu0 0.0
    %2379 = vmatpush1.msra.mxu0 0.0
    %2380 = vmatprep.subr.mxu0 0.0
    %2381 = vmatpush1.msra.mxu0 0.0
    %2382 = vmatprep.subr.mxu0 0.0
    %2383 = vmatpush1.msra.mxu0 0.0
    %2384 = vmatprep.subr.mxu0 0.0
    %2385 = vmatpush1.msra.mxu0 0.0
    %2386 = vmatprep.subr.mxu0 0.0
    %2387 = vmatpush1.msra.mxu0 0.0
    %2388 = vmatprep.subr.mxu0 0.0
    %2389 = vmatpush1.msra.mxu0 0.0
    %2390 = vmatprep.subr.mxu0 0.0
    %2391 = vmatpush1.msra.mxu0 0.0
    %2392 = vmatprep.subr.mxu0 0.0
    %2393 = vmatpush1.msra.mxu0 0.0
    %2394 = vmatprep.subr.mxu0 0.0
    %2395 = vmatpush1.msra.mxu0 0.0
    %2396 = vmatprep.subr.mxu0 0.0
    %2397 = vmatpush1.msra.mxu0 0.0
    %2398 = vmatprep.subr.mxu0 0.0
    %2399 = vmatpush1.msra.mxu0 0.0
    %2400 = vmatprep.subr.mxu0 0.0
    %2401 = vmatpush1.msra.mxu0 0.0
    %2402 = vmatprep.subr.mxu0 0.0
    %2403 = vmatpush1.msra.mxu0 0.0
    %2404 = vmatprep.subr.mxu0 0.0
    %2405 = vmatpush1.msra.mxu0 0.0
    %2406 = vmatprep.subr.mxu0 0.0
    %2407 = vmatpush1.msra.mxu0 0.0
    %2408 = vmatprep.subr.mxu0 0.0
    %2409 = vmatpush1.msra.mxu0 0.0
    %2410 = vmatprep.subr.mxu0 0.0
    %2411 = vmatpush1.msra.mxu0 0.0
    %2412 = vmatprep.subr.mxu0 0.0
    %2413 = vmatpush1.msra.mxu0 0.0
    %2414 = vmatprep.subr.mxu0 0.0
    %2415 = vmatpush1.msra.mxu0 0.0
    %2416 = vmatprep.subr.mxu0 0.0
    %2417 = vmatpush1.msra.mxu0 0.0
    %2418 = vmatprep.subr.mxu0 0.0
    %2419 = vmatpush1.msra.mxu0 0.0
    %2420 = vmatprep.subr.mxu0 0.0
    %2421 = vmatpush1.msra.mxu0 0.0
    %2422 = vmatprep.subr.mxu0 0.0
    %2423 = vmatpush1.msra.mxu0 0.0
    %2424 = vmatprep.subr.mxu0 0.0
    %2425 = vmatpush1.msra.mxu0 0.0
    %2426 = vmatprep.subr.mxu0 0.0
    %2427 = vmatpush1.msra.mxu0 0.0
    %2428 = vmatprep.subr.mxu0 0.0
    %2429 = vmatpush1.msra.mxu0 0.0
    %2430 = vmatprep.subr.mxu0 0.0
    %2431 = vmatpush1.msra.mxu0 0.0
    %2432 = vmatprep.subr.mxu0 0.0
    %2433 = vmatpush1.msra.mxu0 0.0
    %2434 = vmatprep.subr.mxu0 0.0
    %2435 = vmatpush1.msra.mxu0 0.0
    %2436 = vmatprep.mubr.f32.mxu0 0.0
    %v2437 = vand.u32 %v1995, 4294901760
    %2438 = vmatmul.mubr.f32.gmra.mrb[0].mxu0 %v2437
    %v2439 = vpop.f32.mrb[0].mxu0
    %v2440 = vadd.f32 %v2368, %v2439
    %v2441 = vpop.f32.mrb[0].mxu0
    %2442 = vdwg.mxu0
    %v2443 = vld [vmem:[#allocation7] sm:$0xff]
    %2444 = vrot.lane.b32.xlu0 %v601, 120
    %v2445 = vpop.permute.xlu0 %2444
    %2446 = vrot.lane.b32.xlu0 %v601, 88
    %v2447 = vpop.permute.xlu0 %2446
    %v2448 = vsel %vm613, %v2445, 0
    %v2450 = vsel %vm613, %v2447, 0
    %2452 = vmatprep.subr.mxu0 0.0
    %v2453 = vand.u32 %v2450, 4294901760
    %2454 = vmatpush1.xpose.msra.mxu0 %v2453
    %2455 = vmatprep.subr.mxu0 0.0
    %2456 = vmatpush1.xpose.msra.mxu0 0.0
    %2457 = vmatprep.subr.mxu0 0.0
    %2458 = vmatpush1.xpose.msra.mxu0 0.0
    %2459 = vmatprep.subr.mxu0 0.0
    %2460 = vmatpush1.xpose.msra.mxu0 0.0
    %2461 = vmatprep.subr.mxu0 0.0
    %2462 = vmatpush1.xpose.msra.mxu0 0.0
    %2463 = vmatprep.subr.mxu0 0.0
    %2464 = vmatpush1.xpose.msra.mxu0 0.0
    %2465 = vmatprep.subr.mxu0 0.0
    %2466 = vmatpush1.xpose.msra.mxu0 0.0
    %2467 = vmatprep.subr.mxu0 0.0
    %2468 = vmatpush1.xpose.msra.mxu0 0.0
    %2469 = vmatprep.subr.mxu0 0.0
    %2470 = vmatpush1.xpose.msra.mxu0 0.0
    %2471 = vmatprep.subr.mxu0 0.0
    %2472 = vmatpush1.xpose.msra.mxu0 0.0
    %2473 = vmatprep.subr.mxu0 0.0
    %2474 = vmatpush1.xpose.msra.mxu0 0.0
    %2475 = vmatprep.subr.mxu0 0.0
    %2476 = vmatpush1.xpose.msra.mxu0 0.0
    %2477 = vmatprep.subr.mxu0 0.0
    %2478 = vmatpush1.xpose.msra.mxu0 0.0
    %2479 = vmatprep.subr.mxu0 0.0
    %2480 = vmatpush1.xpose.msra.mxu0 0.0
    %2481 = vmatprep.subr.mxu0 0.0
    %2482 = vmatpush1.xpose.msra.mxu0 0.0
    %2483 = vmatprep.subr.mxu0 0.0
    %2484 = vmatpush1.xpose.msra.mxu0 0.0
    %2485 = vmatprep.subr.mxu0 0.0
    %2486 = vmatpush1.xpose.msra.mxu0 0.0
    %2487 = vmatprep.subr.mxu0 0.0
    %2488 = vmatpush1.xpose.msra.mxu0 0.0
    %2489 = vmatprep.subr.mxu0 0.0
    %2490 = vmatpush1.xpose.msra.mxu0 0.0
    %2491 = vmatprep.subr.mxu0 0.0
    %2492 = vmatpush1.xpose.msra.mxu0 0.0
    %2493 = vmatprep.subr.mxu0 0.0
    %2494 = vmatpush1.xpose.msra.mxu0 0.0
    %2495 = vmatprep.subr.mxu0 0.0
    %2496 = vmatpush1.xpose.msra.mxu0 0.0
    %2497 = vmatprep.subr.mxu0 0.0
    %2498 = vmatpush1.xpose.msra.mxu0 0.0
    %2499 = vmatprep.subr.mxu0 0.0
    %2500 = vmatpush1.xpose.msra.mxu0 0.0
    %2501 = vmatprep.subr.mxu0 0.0
    %2502 = vmatpush1.xpose.msra.mxu0 0.0
    %2503 = vmatprep.subr.mxu0 0.0
    %2504 = vmatpush1.xpose.msra.mxu0 0.0
    %2505 = vmatprep.subr.mxu0 0.0
    %2506 = vmatpush1.xpose.msra.mxu0 0.0
    %2507 = vmatprep.subr.mxu0 0.0
    %2508 = vmatpush1.xpose.msra.mxu0 0.0
    %2509 = vmatprep.subr.mxu0 0.0
    %2510 = vmatpush1.xpose.msra.mxu0 0.0
    %2511 = vmatprep.subr.mxu0 0.0
    %2512 = vmatpush1.xpose.msra.mxu0 0.0
    %2513 = vmatprep.subr.mxu0 0.0
    %2514 = vmatpush1.xpose.msra.mxu0 0.0
    %2515 = vmatprep.subr.mxu0 0.0
    %2516 = vmatpush1.xpose.msra.mxu0 0.0
    %2517 = vmatprep.mubr.f32.mxu0 0.0
    %v2518 = vand.u32 %v2448, 4294901760
    %v2519 = vsub.f32 %v2448, %v2518
    %v2520 = vand.u32 %v2519, 4294901760
    %v2521 = vsub.f32 %v2519, %v2520
    %v2522 = vand.u32 %v2521, 4294901760
    %2523 = vmatmul.mubr.f32.gmra.mrb[0].mxu0 %v2522
    %v2524 = vpop.f32.mrb[0].mxu0
    %v2525 = vadd.f32 0.0, %v2524
    %v2526 = vpop.f32.mrb[0].mxu0
    %2527 = vdwg.mxu0
    %2528 = vmatprep.subr.mxu0 0.0
    %v2529 = vand.u32 %v2450, 4294901760
    %v2530 = vsub.f32 %v2450, %v2529
    %v2531 = vand.u32 %v2530, 4294901760
    %v2532 = vsub.f32 %v2530, %v2531
    %v2533 = vand.u32 %v2532, 4294901760
    %2534 = vmatpush1.xpose.msra.mxu0 %v2533
    %2535 = vmatprep.subr.mxu0 0.0
    %2536 = vmatpush1.xpose.msra.mxu0 0.0
    %2537 = vmatprep.subr.mxu0 0.0
    %2538 = vmatpush1.xpose.msra.mxu0 0.0
    %2539 = vmatprep.subr.mxu0 0.0
    %2540 = vmatpush1.xpose.msra.mxu0 0.0
    %2541 = vmatprep.subr.mxu0 0.0
    %2542 = vmatpush1.xpose.msra.mxu0 0.0
    %2543 = vmatprep.subr.mxu0 0.0
    %2544 = vmatpush1.xpose.msra.mxu0 0.0
    %2545 = vmatprep.subr.mxu0 0.0
    %2546 = vmatpush1.xpose.msra.mxu0 0.0
    %2547 = vmatprep.subr.mxu0 0.0
    %2548 = vmatpush1.xpose.msra.mxu0 0.0
    %2549 = vmatprep.subr.mxu0 0.0
    %2550 = vmatpush1.xpose.msra.mxu0 0.0
    %2551 = vmatprep.subr.mxu0 0.0
    %2552 = vmatpush1.xpose.msra.mxu0 0.0
    %2553 = vmatprep.subr.mxu0 0.0
    %2554 = vmatpush1.xpose.msra.mxu0 0.0
    %2555 = vmatprep.subr.mxu0 0.0
    %2556 = vmatpush1.xpose.msra.mxu0 0.0
    %2557 = vmatprep.subr.mxu0 0.0
    %2558 = vmatpush1.xpose.msra.mxu0 0.0
    %2559 = vmatprep.subr.mxu0 0.0
    %2560 = vmatpush1.xpose.msra.mxu0 0.0
    %2561 = vmatprep.subr.mxu0 0.0
    %2562 = vmatpush1.xpose.msra.mxu0 0.0
    %2563 = vmatprep.subr.mxu0 0.0
    %2564 = vmatpush1.xpose.msra.mxu0 0.0
    %2565 = vmatprep.subr.mxu0 0.0
    %2566 = vmatpush1.xpose.msra.mxu0 0.0
    %2567 = vmatprep.subr.mxu0 0.0
    %2568 = vmatpush1.xpose.msra.mxu0 0.0
    %2569 = vmatprep.subr.mxu0 0.0
    %2570 = vmatpush1.xpose.msra.mxu0 0.0
    %2571 = vmatprep.subr.mxu0 0.0
    %2572 = vmatpush1.xpose.msra.mxu0 0.0
    %2573 = vmatprep.subr.mxu0 0.0
    %2574 = vmatpush1.xpose.msra.mxu0 0.0
    %2575 = vmatprep.subr.mxu0 0.0
    %2576 = vmatpush1.xpose.msra.mxu0 0.0
    %2577 = vmatprep.subr.mxu0 0.0
    %2578 = vmatpush1.xpose.msra.mxu0 0.0
    %2579 = vmatprep.subr.mxu0 0.0
    %2580 = vmatpush1.xpose.msra.mxu0 0.0
    %2581 = vmatprep.subr.mxu0 0.0
    %2582 = vmatpush1.xpose.msra.mxu0 0.0
    %2583 = vmatprep.subr.mxu0 0.0
    %2584 = vmatpush1.xpose.msra.mxu0 0.0
    %2585 = vmatprep.subr.mxu0 0.0
    %2586 = vmatpush1.xpose.msra.mxu0 0.0
    %2587 = vmatprep.subr.mxu0 0.0
    %2588 = vmatpush1.xpose.msra.mxu0 0.0
    %2589 = vmatprep.subr.mxu0 0.0
    %2590 = vmatpush1.xpose.msra.mxu0 0.0
    %2591 = vmatprep.subr.mxu0 0.0
    %2592 = vmatpush1.xpose.msra.mxu0 0.0
    %2593 = vmatprep.subr.mxu0 0.0
    %2594 = vmatpush1.xpose.msra.mxu0 0.0
    %2595 = vmatprep.subr.mxu0 0.0
    %2596 = vmatpush1.xpose.msra.mxu0 0.0
    %2597 = vmatprep.mubr.f32.mxu0 0.0
    %v2598 = vand.u32 %v2448, 4294901760
    %2599 = vmatmul.mubr.f32.gmra.mrb[0].mxu0 %v2598
    %v2600 = vpop.f32.mrb[0].mxu0
    %v2601 = vadd.f32 %v2525, %v2600
    %v2602 = vpop.f32.mrb[0].mxu0
    %2603 = vdwg.mxu0
    %2604 = vmatprep.subr.mxu0 0.0
    %v2605 = vand.u32 %v2450, 4294901760
    %v2606 = vsub.f32 %v2450, %v2605
    %2607 = vmatpush1.xpose.msra.mxu0 %v2606
    %2608 = vmatprep.subr.mxu0 0.0
    %2609 = vmatpush1.xpose.msra.mxu0 0.0
    %2610 = vmatprep.subr.mxu0 0.0
    %2611 = vmatpush1.xpose.msra.mxu0 0.0
    %2612 = vmatprep.subr.mxu0 0.0
    %2613 = vmatpush1.xpose.msra.mxu0 0.0
    %2614 = vmatprep.subr.mxu0 0.0
    %2615 = vmatpush1.xpose.msra.mxu0 0.0
    %2616 = vmatprep.subr.mxu0 0.0
    %2617 = vmatpush1.xpose.msra.mxu0 0.0
    %2618 = vmatprep.subr.mxu0 0.0
    %2619 = vmatpush1.xpose.msra.mxu0 0.0
    %2620 = vmatprep.subr.mxu0 0.0
    %2621 = vmatpush1.xpose.msra.mxu0 0.0
    %2622 = vmatprep.subr.mxu0 0.0
    %2623 = vmatpush1.xpose.msra.mxu0 0.0
    %2624 = vmatprep.subr.mxu0 0.0
    %2625 = vmatpush1.xpose.msra.mxu0 0.0
    %2626 = vmatprep.subr.mxu0 0.0
    %2627 = vmatpush1.xpose.msra.mxu0 0.0
    %2628 = vmatprep.subr.mxu0 0.0
    %2629 = vmatpush1.xpose.msra.mxu0 0.0
    %2630 = vmatprep.subr.mxu0 0.0
    %2631 = vmatpush1.xpose.msra.mxu0 0.0
    %2632 = vmatprep.subr.mxu0 0.0
    %2633 = vmatpush1.xpose.msra.mxu0 0.0
    %2634 = vmatprep.subr.mxu0 0.0
    %2635 = vmatpush1.xpose.msra.mxu0 0.0
    %2636 = vmatprep.subr.mxu0 0.0
    %2637 = vmatpush1.xpose.msra.mxu0 0.0
    %2638 = vmatprep.subr.mxu0 0.0
    %2639 = vmatpush1.xpose.msra.mxu0 0.0
    %2640 = vmatprep.subr.mxu0 0.0
    %2641 = vmatpush1.xpose.msra.mxu0 0.0
    %2642 = vmatprep.subr.mxu0 0.0
    %2643 = vmatpush1.xpose.msra.mxu0 0.0
    %2644 = vmatprep.subr.mxu0 0.0
    %2645 = vmatpush1.xpose.msra.mxu0 0.0
    %2646 = vmatprep.subr.mxu0 0.0
    %2647 = vmatpush1.xpose.msra.mxu0 0.0
    %2648 = vmatprep.subr.mxu0 0.0
    %2649 = vmatpush1.xpose.msra.mxu0 0.0
    %2650 = vmatprep.subr.mxu0 0.0
    %2651 = vmatpush1.xpose.msra.mxu0 0.0
    %2652 = vmatprep.subr.mxu0 0.0
    %2653 = vmatpush1.xpose.msra.mxu0 0.0
    %2654 = vmatprep.subr.mxu0 0.0
    %2655 = vmatpush1.xpose.msra.mxu0 0.0
    %2656 = vmatprep.subr.mxu0 0.0
    %2657 = vmatpush1.xpose.msra.mxu0 0.0
    %2658 = vmatprep.subr.mxu0 0.0
    %2659 = vmatpush1.xpose.msra.mxu0 0.0
    %2660 = vmatprep.subr.mxu0 0.0
    %2661 = vmatpush1.xpose.msra.mxu0 0.0
    %2662 = vmatprep.subr.mxu0 0.0
    %2663 = vmatpush1.xpose.msra.mxu0 0.0
    %2664 = vmatprep.subr.mxu0 0.0
    %2665 = vmatpush1.xpose.msra.mxu0 0.0
    %2666 = vmatprep.subr.mxu0 0.0
    %2667 = vmatpush1.xpose.msra.mxu0 0.0
    %2668 = vmatprep.subr.mxu0 0.0
    %2669 = vmatpush1.xpose.msra.mxu0 0.0
    %2670 = vmatprep.mubr.f32.mxu0 0.0
    %v2671 = vand.u32 %v2448, 4294901760
    %v2672 = vsub.f32 %v2448, %v2671
    %2673 = vmatmul.mubr.f32.gmra.mrb[0].mxu0 %v2672
    %v2674 = vpop.f32.mrb[0].mxu0
    %v2675 = vadd.f32 %v2601, %v2674
    %v2676 = vpop.f32.mrb[0].mxu0
    %2677 = vdwg.mxu0
    %2678 = vmatprep.subr.mxu0 0.0
    %v2679 = vand.u32 %v2450, 4294901760
    %2680 = vmatpush1.xpose.msra.mxu0 %v2679
    %2681 = vmatprep.subr.mxu0 0.0
    %2682 = vmatpush1.xpose.msra.mxu0 0.0
    %2683 = vmatprep.subr.mxu0 0.0
    %2684 = vmatpush1.xpose.msra.mxu0 0.0
    %2685 = vmatprep.subr.mxu0 0.0
    %2686 = vmatpush1.xpose.msra.mxu0 0.0
    %2687 = vmatprep.subr.mxu0 0.0
    %2688 = vmatpush1.xpose.msra.mxu0 0.0
    %2689 = vmatprep.subr.mxu0 0.0
    %2690 = vmatpush1.xpose.msra.mxu0 0.0
    %2691 = vmatprep.subr.mxu0 0.0
    %2692 = vmatpush1.xpose.msra.mxu0 0.0
    %2693 = vmatprep.subr.mxu0 0.0
    %2694 = vmatpush1.xpose.msra.mxu0 0.0
    %2695 = vmatprep.subr.mxu0 0.0
    %2696 = vmatpush1.xpose.msra.mxu0 0.0
    %2697 = vmatprep.subr.mxu0 0.0
    %2698 = vmatpush1.xpose.msra.mxu0 0.0
    %2699 = vmatprep.subr.mxu0 0.0
    %2700 = vmatpush1.xpose.msra.mxu0 0.0
    %2701 = vmatprep.subr.mxu0 0.0
    %2702 = vmatpush1.xpose.msra.mxu0 0.0
    %2703 = vmatprep.subr.mxu0 0.0
    %2704 = vmatpush1.xpose.msra.mxu0 0.0
    %2705 = vmatprep.subr.mxu0 0.0
    %2706 = vmatpush1.xpose.msra.mxu0 0.0
    %2707 = vmatprep.subr.mxu0 0.0
    %2708 = vmatpush1.xpose.msra.mxu0 0.0
    %2709 = vmatprep.subr.mxu0 0.0
    %2710 = vmatpush1.xpose.msra.mxu0 0.0
    %2711 = vmatprep.subr.mxu0 0.0
    %2712 = vmatpush1.xpose.msra.mxu0 0.0
    %2713 = vmatprep.subr.mxu0 0.0
    %2714 = vmatpush1.xpose.msra.mxu0 0.0
    %2715 = vmatprep.subr.mxu0 0.0
    %2716 = vmatpush1.xpose.msra.mxu0 0.0
    %2717 = vmatprep.subr.mxu0 0.0
    %2718 = vmatpush1.xpose.msra.mxu0 0.0
    %2719 = vmatprep.subr.mxu0 0.0
    %2720 = vmatpush1.xpose.msra.mxu0 0.0
    %2721 = vmatprep.subr.mxu0 0.0
    %2722 = vmatpush1.xpose.msra.mxu0 0.0
    %2723 = vmatprep.subr.mxu0 0.0
    %2724 = vmatpush1.xpose.msra.mxu0 0.0
    %2725 = vmatprep.subr.mxu0 0.0
    %2726 = vmatpush1.xpose.msra.mxu0 0.0
    %2727 = vmatprep.subr.mxu0 0.0
    %2728 = vmatpush1.xpose.msra.mxu0 0.0
    %2729 = vmatprep.subr.mxu0 0.0
    %2730 = vmatpush1.xpose.msra.mxu0 0.0
    %2731 = vmatprep.subr.mxu0 0.0
    %2732 = vmatpush1.xpose.msra.mxu0 0.0
    %2733 = vmatprep.subr.mxu0 0.0
    %2734 = vmatpush1.xpose.msra.mxu0 0.0
    %2735 = vmatprep.subr.mxu0 0.0
    %2736 = vmatpush1.xpose.msra.mxu0 0.0
    %2737 = vmatprep.subr.mxu0 0.0
    %2738 = vmatpush1.xpose.msra.mxu0 0.0
    %2739 = vmatprep.subr.mxu0 0.0
    %2740 = vmatpush1.xpose.msra.mxu0 0.0
    %2741 = vmatprep.subr.mxu0 0.0
    %2742 = vmatpush1.xpose.msra.mxu0 0.0
    %2743 = vmatprep.mubr.f32.mxu0 0.0
    %v2744 = vand.u32 %v2448, 4294901760
    %v2745 = vsub.f32 %v2448, %v2744
    %v2746 = vand.u32 %v2745, 4294901760
    %2747 = vmatmul.mubr.f32.gmra.mrb[0].mxu0 %v2746
    %v2748 = vpop.f32.mrb[0].mxu0
    %v2749 = vadd.f32 %v2675, %v2748
    %v2750 = vpop.f32.mrb[0].mxu0
    %2751 = vdwg.mxu0
    %2752 = vmatprep.subr.mxu0 0.0
    %v2753 = vand.u32 %v2450, 4294901760
    %v2754 = vsub.f32 %v2450, %v2753
    %v2755 = vand.u32 %v2754, 4294901760
    %2756 = vmatpush1.xpose.msra.mxu0 %v2755
    %2757 = vmatprep.subr.mxu0 0.0
    %2758 = vmatpush1.xpose.msra.mxu0 0.0
    %2759 = vmatprep.subr.mxu0 0.0
    %2760 = vmatpush1.xpose.msra.mxu0 0.0
    %2761 = vmatprep.subr.mxu0 0.0
    %2762 = vmatpush1.xpose.msra.mxu0 0.0
    %2763 = vmatprep.subr.mxu0 0.0
    %2764 = vmatpush1.xpose.msra.mxu0 0.0
    %2765 = vmatprep.subr.mxu0 0.0
    %2766 = vmatpush1.xpose.msra.mxu0 0.0
    %2767 = vmatprep.subr.mxu0 0.0
    %2768 = vmatpush1.xpose.msra.mxu0 0.0
    %2769 = vmatprep.subr.mxu0 0.0
    %2770 = vmatpush1.xpose.msra.mxu0 0.0
    %2771 = vmatprep.subr.mxu0 0.0
    %2772 = vmatpush1.xpose.msra.mxu0 0.0
    %2773 = vmatprep.subr.mxu0 0.0
    %2774 = vmatpush1.xpose.msra.mxu0 0.0
    %2775 = vmatprep.subr.mxu0 0.0
    %2776 = vmatpush1.xpose.msra.mxu0 0.0
    %2777 = vmatprep.subr.mxu0 0.0
    %2778 = vmatpush1.xpose.msra.mxu0 0.0
    %2779 = vmatprep.subr.mxu0 0.0
    %2780 = vmatpush1.xpose.msra.mxu0 0.0
    %2781 = vmatprep.subr.mxu0 0.0
    %2782 = vmatpush1.xpose.msra.mxu0 0.0
    %2783 = vmatprep.subr.mxu0 0.0
    %2784 = vmatpush1.xpose.msra.mxu0 0.0
    %2785 = vmatprep.subr.mxu0 0.0
    %2786 = vmatpush1.xpose.msra.mxu0 0.0
    %2787 = vmatprep.subr.mxu0 0.0
    %2788 = vmatpush1.xpose.msra.mxu0 0.0
    %2789 = vmatprep.subr.mxu0 0.0
    %2790 = vmatpush1.xpose.msra.mxu0 0.0
    %2791 = vmatprep.subr.mxu0 0.0
    %2792 = vmatpush1.xpose.msra.mxu0 0.0
    %2793 = vmatprep.subr.mxu0 0.0
    %2794 = vmatpush1.xpose.msra.mxu0 0.0
    %2795 = vmatprep.subr.mxu0 0.0
    %2796 = vmatpush1.xpose.msra.mxu0 0.0
    %2797 = vmatprep.subr.mxu0 0.0
    %2798 = vmatpush1.xpose.msra.mxu0 0.0
    %2799 = vmatprep.subr.mxu0 0.0
    %2800 = vmatpush1.xpose.msra.mxu0 0.0
    %2801 = vmatprep.subr.mxu0 0.0
    %2802 = vmatpush1.xpose.msra.mxu0 0.0
    %2803 = vmatprep.subr.mxu0 0.0
    %2804 = vmatpush1.xpose.msra.mxu0 0.0
    %2805 = vmatprep.subr.mxu0 0.0
    %2806 = vmatpush1.xpose.msra.mxu0 0.0
    %2807 = vmatprep.subr.mxu0 0.0
    %2808 = vmatpush1.xpose.msra.mxu0 0.0
    %2809 = vmatprep.subr.mxu0 0.0
    %2810 = vmatpush1.xpose.msra.mxu0 0.0
    %2811 = vmatprep.subr.mxu0 0.0
    %2812 = vmatpush1.xpose.msra.mxu0 0.0
    %2813 = vmatprep.subr.mxu0 0.0
    %2814 = vmatpush1.xpose.msra.mxu0 0.0
    %2815 = vmatprep.subr.mxu0 0.0
    %2816 = vmatpush1.xpose.msra.mxu0 0.0
    %2817 = vmatprep.subr.mxu0 0.0
    %2818 = vmatpush1.xpose.msra.mxu0 0.0
    %2819 = vmatprep.mubr.f32.mxu0 0.0
    %v2820 = vand.u32 %v2448, 4294901760
    %2821 = vmatmul.mubr.f32.gmra.mrb[0].mxu0 %v2820
    %v2822 = vpop.f32.mrb[0].mxu0
    %v2823 = vadd.f32 %v2749, %v2822
    %v2824 = vpop.f32.mrb[0].mxu0
    %2825 = vdwg.mxu0
    %2826 = vmatprep.subr.mxu0 0.0
    %v2827 = vand.u32 %v2450, 4294901760
    %2828 = vmatpush1.xpose.msra.mxu0 %v2827
    %2829 = vmatprep.subr.mxu0 0.0
    %2830 = vmatpush1.xpose.msra.mxu0 0.0
    %2831 = vmatprep.subr.mxu0 0.0
    %2832 = vmatpush1.xpose.msra.mxu0 0.0
    %2833 = vmatprep.subr.mxu0 0.0
    %2834 = vmatpush1.xpose.msra.mxu0 0.0
    %2835 = vmatprep.subr.mxu0 0.0
    %2836 = vmatpush1.xpose.msra.mxu0 0.0
    %2837 = vmatprep.subr.mxu0 0.0
    %2838 = vmatpush1.xpose.msra.mxu0 0.0
    %2839 = vmatprep.subr.mxu0 0.0
    %2840 = vmatpush1.xpose.msra.mxu0 0.0
    %2841 = vmatprep.subr.mxu0 0.0
    %2842 = vmatpush1.xpose.msra.mxu0 0.0
    %2843 = vmatprep.subr.mxu0 0.0
    %2844 = vmatpush1.xpose.msra.mxu0 0.0
    %2845 = vmatprep.subr.mxu0 0.0
    %2846 = vmatpush1.xpose.msra.mxu0 0.0
    %2847 = vmatprep.subr.mxu0 0.0
    %2848 = vmatpush1.xpose.msra.mxu0 0.0
    %2849 = vmatprep.subr.mxu0 0.0
    %2850 = vmatpush1.xpose.msra.mxu0 0.0
    %2851 = vmatprep.subr.mxu0 0.0
    %2852 = vmatpush1.xpose.msra.mxu0 0.0
    %2853 = vmatprep.subr.mxu0 0.0
    %2854 = vmatpush1.xpose.msra.mxu0 0.0
    %2855 = vmatprep.subr.mxu0 0.0
    %2856 = vmatpush1.xpose.msra.mxu0 0.0
    %2857 = vmatprep.subr.mxu0 0.0
    %2858 = vmatpush1.xpose.msra.mxu0 0.0
    %2859 = vmatprep.subr.mxu0 0.0
    %2860 = vmatpush1.xpose.msra.mxu0 0.0
    %2861 = vmatprep.subr.mxu0 0.0
    %2862 = vmatpush1.xpose.msra.mxu0 0.0
    %2863 = vmatprep.subr.mxu0 0.0
    %2864 = vmatpush1.xpose.msra.mxu0 0.0
    %2865 = vmatprep.subr.mxu0 0.0
    %2866 = vmatpush1.xpose.msra.mxu0 0.0
    %2867 = vmatprep.subr.mxu0 0.0
    %2868 = vmatpush1.xpose.msra.mxu0 0.0
    %2869 = vmatprep.subr.mxu0 0.0
    %2870 = vmatpush1.xpose.msra.mxu0 0.0
    %2871 = vmatprep.subr.mxu0 0.0
    %2872 = vmatpush1.xpose.msra.mxu0 0.0
    %2873 = vmatprep.subr.mxu0 0.0
    %2874 = vmatpush1.xpose.msra.mxu0 0.0
    %2875 = vmatprep.subr.mxu0 0.0
    %2876 = vmatpush1.xpose.msra.mxu0 0.0
    %2877 = vmatprep.subr.mxu0 0.0
    %2878 = vmatpush1.xpose.msra.mxu0 0.0
    %2879 = vmatprep.subr.mxu0 0.0
    %2880 = vmatpush1.xpose.msra.mxu0 0.0
    %2881 = vmatprep.subr.mxu0 0.0
    %2882 = vmatpush1.xpose.msra.mxu0 0.0
    %2883 = vmatprep.subr.mxu0 0.0
    %2884 = vmatpush1.xpose.msra.mxu0 0.0
    %2885 = vmatprep.subr.mxu0 0.0
    %2886 = vmatpush1.xpose.msra.mxu0 0.0
    %2887 = vmatprep.subr.mxu0 0.0
    %2888 = vmatpush1.xpose.msra.mxu0 0.0
    %2889 = vmatprep.subr.mxu0 0.0
    %2890 = vmatpush1.xpose.msra.mxu0 0.0
    %2891 = vmatprep.mubr.f32.mxu0 0.0
    %v2892 = vand.u32 %v2448, 4294901760
    %2893 = vmatmul.mubr.f32.gmra.mrb[0].mxu0 %v2892
    %v2894 = vpop.f32.mrb[0].mxu0
    %v2895 = vadd.f32 %v2823, %v2894
    %v2896 = vpop.f32.mrb[0].mxu0
    %2897 = vdwg.mxu0
    %2898 = vrot.lane.b32.xlu0 %v607, 120
    %v2899 = vpop.permute.xlu0 %2898
    %2900 = vrot.lane.b32.xlu0 %v607, 88
    %v2901 = vpop.permute.xlu0 %2900
    %v2902 = vsel %vm613, %v2899, 0
    %v2904 = vsel %vm613, %v2901, 0
    %2906 = vmatprep.subr.mxu0 0.0
    %v2907 = vand.u32 %v2904, 4294901760
    %2908 = vmatpush1.xpose.msra.mxu0 %v2907
    %2909 = vmatprep.subr.mxu0 0.0
    %2910 = vmatpush1.xpose.msra.mxu0 0.0
    %2911 = vmatprep.subr.mxu0 0.0
    %2912 = vmatpush1.xpose.msra.mxu0 0.0
    %2913 = vmatprep.subr.mxu0 0.0
    %2914 = vmatpush1.xpose.msra.mxu0 0.0
    %2915 = vmatprep.subr.mxu0 0.0
    %2916 = vmatpush1.xpose.msra.mxu0 0.0
    %2917 = vmatprep.subr.mxu0 0.0
    %2918 = vmatpush1.xpose.msra.mxu0 0.0
    %2919 = vmatprep.subr.mxu0 0.0
    %2920 = vmatpush1.xpose.msra.mxu0 0.0
    %2921 = vmatprep.subr.mxu0 0.0
    %2922 = vmatpush1.xpose.msra.mxu0 0.0
    %2923 = vmatprep.subr.mxu0 0.0
    %2924 = vmatpush1.xpose.msra.mxu0 0.0
    %2925 = vmatprep.subr.mxu0 0.0
    %2926 = vmatpush1.xpose.msra.mxu0 0.0
    %2927 = vmatprep.subr.mxu0 0.0
    %2928 = vmatpush1.xpose.msra.mxu0 0.0
    %2929 = vmatprep.subr.mxu0 0.0
    %2930 = vmatpush1.xpose.msra.mxu0 0.0
    %2931 = vmatprep.subr.mxu0 0.0
    %2932 = vmatpush1.xpose.msra.mxu0 0.0
    %2933 = vmatprep.subr.mxu0 0.0
    %2934 = vmatpush1.xpose.msra.mxu0 0.0
    %2935 = vmatprep.subr.mxu0 0.0
    %2936 = vmatpush1.xpose.msra.mxu0 0.0
    %2937 = vmatprep.subr.mxu0 0.0
    %2938 = vmatpush1.xpose.msra.mxu0 0.0
    %2939 = vmatprep.subr.mxu0 0.0
    %2940 = vmatpush1.xpose.msra.mxu0 0.0
    %2941 = vmatprep.subr.mxu0 0.0
    %2942 = vmatpush1.xpose.msra.mxu0 0.0
    %2943 = vmatprep.subr.mxu0 0.0
    %2944 = vmatpush1.xpose.msra.mxu0 0.0
    %2945 = vmatprep.subr.mxu0 0.0
    %2946 = vmatpush1.xpose.msra.mxu0 0.0
    %2947 = vmatprep.subr.mxu0 0.0
    %2948 = vmatpush1.xpose.msra.mxu0 0.0
    %2949 = vmatprep.subr.mxu0 0.0
    %2950 = vmatpush1.xpose.msra.mxu0 0.0
    %2951 = vmatprep.subr.mxu0 0.0
    %2952 = vmatpush1.xpose.msra.mxu0 0.0
    %2953 = vmatprep.subr.mxu0 0.0
    %2954 = vmatpush1.xpose.msra.mxu0 0.0
    %2955 = vmatprep.subr.mxu0 0.0
    %2956 = vmatpush1.xpose.msra.mxu0 0.0
    %2957 = vmatprep.subr.mxu0 0.0
    %2958 = vmatpush1.xpose.msra.mxu0 0.0
    %2959 = vmatprep.subr.mxu0 0.0
    %2960 = vmatpush1.xpose.msra.mxu0 0.0
    %2961 = vmatprep.subr.mxu0 0.0
    %2962 = vmatpush1.xpose.msra.mxu0 0.0
    %2963 = vmatprep.subr.mxu0 0.0
    %2964 = vmatpush1.xpose.msra.mxu0 0.0
    %2965 = vmatprep.subr.mxu0 0.0
    %2966 = vmatpush1.xpose.msra.mxu0 0.0
    %2967 = vmatprep.subr.mxu0 0.0
    %2968 = vmatpush1.xpose.msra.mxu0 0.0
    %2969 = vmatprep.subr.mxu0 0.0
    %2970 = vmatpush1.xpose.msra.mxu0 0.0
    %2971 = vmatprep.mubr.f32.mxu0 0.0
    %v2972 = vand.u32 %v2902, 4294901760
    %v2973 = vsub.f32 %v2902, %v2972
    %v2974 = vand.u32 %v2973, 4294901760
    %v2975 = vsub.f32 %v2973, %v2974
    %v2976 = vand.u32 %v2975, 4294901760
    %2977 = vmatmul.mubr.f32.gmra.mrb[0].mxu0 %v2976
    %v2978 = vpop.f32.mrb[0].mxu0
    %v2979 = vadd.f32 0.0, %v2978
    %v2980 = vpop.f32.mrb[0].mxu0
    %2981 = vdwg.mxu0
    %2982 = vmatprep.subr.mxu0 0.0
    %v2983 = vand.u32 %v2904, 4294901760
    %v2984 = vsub.f32 %v2904, %v2983
    %v2985 = vand.u32 %v2984, 4294901760
    %v2986 = vsub.f32 %v2984, %v2985
    %v2987 = vand.u32 %v2986, 4294901760
    %2988 = vmatpush1.xpose.msra.mxu0 %v2987
    %2989 = vmatprep.subr.mxu0 0.0
    %2990 = vmatpush1.xpose.msra.mxu0 0.0
    %2991 = vmatprep.subr.mxu0 0.0
    %2992 = vmatpush1.xpose.msra.mxu0 0.0
    %2993 = vmatprep.subr.mxu0 0.0
    %2994 = vmatpush1.xpose.msra.mxu0 0.0
    %2995 = vmatprep.subr.mxu0 0.0
    %2996 = vmatpush1.xpose.msra.mxu0 0.0
    %2997 = vmatprep.subr.mxu0 0.0
    %2998 = vmatpush1.xpose.msra.mxu0 0.0
    %2999 = vmatprep.subr.mxu0 0.0
    %3000 = vmatpush1.xpose.msra.mxu0 0.0
    %3001 = vmatprep.subr.mxu0 0.0
    %3002 = vmatpush1.xpose.msra.mxu0 0.0
    %3003 = vmatprep.subr.mxu0 0.0
    %3004 = vmatpush1.xpose.msra.mxu0 0.0
    %3005 = vmatprep.subr.mxu0 0.0
    %3006 = vmatpush1.xpose.msra.mxu0 0.0
    %3007 = vmatprep.subr.mxu0 0.0
    %3008 = vmatpush1.xpose.msra.mxu0 0.0
    %3009 = vmatprep.subr.mxu0 0.0
    %3010 = vmatpush1.xpose.msra.mxu0 0.0
    %3011 = vmatprep.subr.mxu0 0.0
    %3012 = vmatpush1.xpose.msra.mxu0 0.0
    %3013 = vmatprep.subr.mxu0 0.0
    %3014 = vmatpush1.xpose.msra.mxu0 0.0
    %3015 = vmatprep.subr.mxu0 0.0
    %3016 = vmatpush1.xpose.msra.mxu0 0.0
    %3017 = vmatprep.subr.mxu0 0.0
    %3018 = vmatpush1.xpose.msra.mxu0 0.0
    %3019 = vmatprep.subr.mxu0 0.0
    %3020 = vmatpush1.xpose.msra.mxu0 0.0
    %3021 = vmatprep.subr.mxu0 0.0
    %3022 = vmatpush1.xpose.msra.mxu0 0.0
    %3023 = vmatprep.subr.mxu0 0.0
    %3024 = vmatpush1.xpose.msra.mxu0 0.0
    %3025 = vmatprep.subr.mxu0 0.0
    %3026 = vmatpush1.xpose.msra.mxu0 0.0
    %3027 = vmatprep.subr.mxu0 0.0
    %3028 = vmatpush1.xpose.msra.mxu0 0.0
    %3029 = vmatprep.subr.mxu0 0.0
    %3030 = vmatpush1.xpose.msra.mxu0 0.0
    %3031 = vmatprep.subr.mxu0 0.0
    %3032 = vmatpush1.xpose.msra.mxu0 0.0
    %3033 = vmatprep.subr.mxu0 0.0
    %3034 = vmatpush1.xpose.msra.mxu0 0.0
    %3035 = vmatprep.subr.mxu0 0.0
    %3036 = vmatpush1.xpose.msra.mxu0 0.0
    %3037 = vmatprep.subr.mxu0 0.0
    %3038 = vmatpush1.xpose.msra.mxu0 0.0
    %3039 = vmatprep.subr.mxu0 0.0
    %3040 = vmatpush1.xpose.msra.mxu0 0.0
    %3041 = vmatprep.subr.mxu0 0.0
    %3042 = vmatpush1.xpose.msra.mxu0 0.0
    %3043 = vmatprep.subr.mxu0 0.0
    %3044 = vmatpush1.xpose.msra.mxu0 0.0
    %3045 = vmatprep.subr.mxu0 0.0
    %3046 = vmatpush1.xpose.msra.mxu0 0.0
    %3047 = vmatprep.subr.mxu0 0.0
    %3048 = vmatpush1.xpose.msra.mxu0 0.0
    %3049 = vmatprep.subr.mxu0 0.0
    %3050 = vmatpush1.xpose.msra.mxu0 0.0
    %3051 = vmatprep.mubr.f32.mxu0 0.0
    %v3052 = vand.u32 %v2902, 4294901760
    %3053 = vmatmul.mubr.f32.gmra.mrb[0].mxu0 %v3052
    %v3054 = vpop.f32.mrb[0].mxu0
    %v3055 = vadd.f32 %v2979, %v3054
    %v3056 = vpop.f32.mrb[0].mxu0
    %3057 = vdwg.mxu0
    %3058 = vmatprep.subr.mxu0 0.0
    %v3059 = vand.u32 %v2904, 4294901760
    %v3060 = vsub.f32 %v2904, %v3059
    %3061 = vmatpush1.xpose.msra.mxu0 %v3060
    %3062 = vmatprep.subr.mxu0 0.0
    %3063 = vmatpush1.xpose.msra.mxu0 0.0
    %3064 = vmatprep.subr.mxu0 0.0
    %3065 = vmatpush1.xpose.msra.mxu0 0.0
    %3066 = vmatprep.subr.mxu0 0.0
    %3067 = vmatpush1.xpose.msra.mxu0 0.0
    %3068 = vmatprep.subr.mxu0 0.0
    %3069 = vmatpush1.xpose.msra.mxu0 0.0
    %3070 = vmatprep.subr.mxu0 0.0
    %3071 = vmatpush1.xpose.msra.mxu0 0.0
    %3072 = vmatprep.subr.mxu0 0.0
    %3073 = vmatpush1.xpose.msra.mxu0 0.0
    %3074 = vmatprep.subr.mxu0 0.0
    %3075 = vmatpush1.xpose.msra.mxu0 0.0
    %3076 = vmatprep.subr.mxu0 0.0
    %3077 = vmatpush1.xpose.msra.mxu0 0.0
    %3078 = vmatprep.subr.mxu0 0.0
    %3079 = vmatpush1.xpose.msra.mxu0 0.0
    %3080 = vmatprep.subr.mxu0 0.0
    %3081 = vmatpush1.xpose.msra.mxu0 0.0
    %3082 = vmatprep.subr.mxu0 0.0
    %3083 = vmatpush1.xpose.msra.mxu0 0.0
    %3084 = vmatprep.subr.mxu0 0.0
    %3085 = vmatpush1.xpose.msra.mxu0 0.0
    %3086 = vmatprep.subr.mxu0 0.0
    %3087 = vmatpush1.xpose.msra.mxu0 0.0
    %3088 = vmatprep.subr.mxu0 0.0
    %3089 = vmatpush1.xpose.msra.mxu0 0.0
    %3090 = vmatprep.subr.mxu0 0.0
    %3091 = vmatpush1.xpose.msra.mxu0 0.0
    %3092 = vmatprep.subr.mxu0 0.0
    %3093 = vmatpush1.xpose.msra.mxu0 0.0
    %3094 = vmatprep.subr.mxu0 0.0
    %3095 = vmatpush1.xpose.msra.mxu0 0.0
    %3096 = vmatprep.subr.mxu0 0.0
    %3097 = vmatpush1.xpose.msra.mxu0 0.0
    %3098 = vmatprep.subr.mxu0 0.0
    %3099 = vmatpush1.xpose.msra.mxu0 0.0
    %3100 = vmatprep.subr.mxu0 0.0
    %3101 = vmatpush1.xpose.msra.mxu0 0.0
    %3102 = vmatprep.subr.mxu0 0.0
    %3103 = vmatpush1.xpose.msra.mxu0 0.0
    %3104 = vmatprep.subr.mxu0 0.0
    %3105 = vmatpush1.xpose.msra.mxu0 0.0
    %3106 = vmatprep.subr.mxu0 0.0
    %3107 = vmatpush1.xpose.msra.mxu0 0.0
    %3108 = vmatprep.subr.mxu0 0.0
    %3109 = vmatpush1.xpose.msra.mxu0 0.0
    %3110 = vmatprep.subr.mxu0 0.0
    %3111 = vmatpush1.xpose.msra.mxu0 0.0
    %3112 = vmatprep.subr.mxu0 0.0
    %3113 = vmatpush1.xpose.msra.mxu0 0.0
    %3114 = vmatprep.subr.mxu0 0.0
    %3115 = vmatpush1.xpose.msra.mxu0 0.0
    %3116 = vmatprep.subr.mxu0 0.0
    %3117 = vmatpush1.xpose.msra.mxu0 0.0
    %3118 = vmatprep.subr.mxu0 0.0
    %3119 = vmatpush1.xpose.msra.mxu0 0.0
    %3120 = vmatprep.subr.mxu0 0.0
    %3121 = vmatpush1.xpose.msra.mxu0 0.0
    %3122 = vmatprep.subr.mxu0 0.0
    %3123 = vmatpush1.xpose.msra.mxu0 0.0
    %3124 = vmatprep.mubr.f32.mxu0 0.0
    %v3125 = vand.u32 %v2902, 4294901760
    %v3126 = vsub.f32 %v2902, %v3125
    %3127 = vmatmul.mubr.f32.gmra.mrb[0].mxu0 %v3126
    %v3128 = vpop.f32.mrb[0].mxu0
    %v3129 = vadd.f32 %v3055, %v3128
    %v3130 = vpop.f32.mrb[0].mxu0
    %3131 = vdwg.mxu0
    %3132 = vmatprep.subr.mxu0 0.0
    %v3133 = vand.u32 %v2904, 4294901760
    %3134 = vmatpush1.xpose.msra.mxu0 %v3133
    %3135 = vmatprep.subr.mxu0 0.0
    %3136 = vmatpush1.xpose.msra.mxu0 0.0
    %3137 = vmatprep.subr.mxu0 0.0
    %3138 = vmatpush1.xpose.msra.mxu0 0.0
    %3139 = vmatprep.subr.mxu0 0.0
    %3140 = vmatpush1.xpose.msra.mxu0 0.0
    %3141 = vmatprep.subr.mxu0 0.0
    %3142 = vmatpush1.xpose.msra.mxu0 0.0
    %3143 = vmatprep.subr.mxu0 0.0
    %3144 = vmatpush1.xpose.msra.mxu0 0.0
    %3145 = vmatprep.subr.mxu0 0.0
    %3146 = vmatpush1.xpose.msra.mxu0 0.0
    %3147 = vmatprep.subr.mxu0 0.0
    %3148 = vmatpush1.xpose.msra.mxu0 0.0
    %3149 = vmatprep.subr.mxu0 0.0
    %3150 = vmatpush1.xpose.msra.mxu0 0.0
    %3151 = vmatprep.subr.mxu0 0.0
    %3152 = vmatpush1.xpose.msra.mxu0 0.0
    %3153 = vmatprep.subr.mxu0 0.0
    %3154 = vmatpush1.xpose.msra.mxu0 0.0
    %3155 = vmatprep.subr.mxu0 0.0
    %3156 = vmatpush1.xpose.msra.mxu0 0.0
    %3157 = vmatprep.subr.mxu0 0.0
    %3158 = vmatpush1.xpose.msra.mxu0 0.0
    %3159 = vmatprep.subr.mxu0 0.0
    %3160 = vmatpush1.xpose.msra.mxu0 0.0
    %3161 = vmatprep.subr.mxu0 0.0
    %3162 = vmatpush1.xpose.msra.mxu0 0.0
    %3163 = vmatprep.subr.mxu0 0.0
    %3164 = vmatpush1.xpose.msra.mxu0 0.0
    %3165 = vmatprep.subr.mxu0 0.0
    %3166 = vmatpush1.xpose.msra.mxu0 0.0
    %3167 = vmatprep.subr.mxu0 0.0
    %3168 = vmatpush1.xpose.msra.mxu0 0.0
    %3169 = vmatprep.subr.mxu0 0.0
    %3170 = vmatpush1.xpose.msra.mxu0 0.0
    %3171 = vmatprep.subr.mxu0 0.0
    %3172 = vmatpush1.xpose.msra.mxu0 0.0
    %3173 = vmatprep.subr.mxu0 0.0
    %3174 = vmatpush1.xpose.msra.mxu0 0.0
    %3175 = vmatprep.subr.mxu0 0.0
    %3176 = vmatpush1.xpose.msra.mxu0 0.0
    %3177 = vmatprep.subr.mxu0 0.0
    %3178 = vmatpush1.xpose.msra.mxu0 0.0
    %3179 = vmatprep.subr.mxu0 0.0
    %3180 = vmatpush1.xpose.msra.mxu0 0.0
    %3181 = vmatprep.subr.mxu0 0.0
    %3182 = vmatpush1.xpose.msra.mxu0 0.0
    %3183 = vmatprep.subr.mxu0 0.0
    %3184 = vmatpush1.xpose.msra.mxu0 0.0
    %3185 = vmatprep.subr.mxu0 0.0
    %3186 = vmatpush1.xpose.msra.mxu0 0.0
    %3187 = vmatprep.subr.mxu0 0.0
    %3188 = vmatpush1.xpose.msra.mxu0 0.0
    %3189 = vmatprep.subr.mxu0 0.0
    %3190 = vmatpush1.xpose.msra.mxu0 0.0
    %3191 = vmatprep.subr.mxu0 0.0
    %3192 = vmatpush1.xpose.msra.mxu0 0.0
    %3193 = vmatprep.subr.mxu0 0.0
    %3194 = vmatpush1.xpose.msra.mxu0 0.0
    %3195 = vmatprep.subr.mxu0 0.0
    %3196 = vmatpush1.xpose.msra.mxu0 0.0
    %3197 = vmatprep.mubr.f32.mxu0 0.0
    %v3198 = vand.u32 %v2902, 4294901760
    %v3199 = vsub.f32 %v2902, %v3198
    %v3200 = vand.u32 %v3199, 4294901760
    %3201 = vmatmul.mubr.f32.gmra.mrb[0].mxu0 %v3200
    %v3202 = vpop.f32.mrb[0].mxu0
    %v3203 = vadd.f32 %v3129, %v3202
    %v3204 = vpop.f32.mrb[0].mxu0
    %3205 = vdwg.mxu0
    %3206 = vmatprep.subr.mxu0 0.0
    %v3207 = vand.u32 %v2904, 4294901760
    %v3208 = vsub.f32 %v2904, %v3207
    %v3209 = vand.u32 %v3208, 4294901760
    %3210 = vmatpush1.xpose.msra.mxu0 %v3209
    %3211 = vmatprep.subr.mxu0 0.0
    %3212 = vmatpush1.xpose.msra.mxu0 0.0
    %3213 = vmatprep.subr.mxu0 0.0
    %3214 = vmatpush1.xpose.msra.mxu0 0.0
    %3215 = vmatprep.subr.mxu0 0.0
    %3216 = vmatpush1.xpose.msra.mxu0 0.0
    %3217 = vmatprep.subr.mxu0 0.0
    %3218 = vmatpush1.xpose.msra.mxu0 0.0
    %3219 = vmatprep.subr.mxu0 0.0
    %3220 = vmatpush1.xpose.msra.mxu0 0.0
    %3221 = vmatprep.subr.mxu0 0.0
    %3222 = vmatpush1.xpose.msra.mxu0 0.0
    %3223 = vmatprep.subr.mxu0 0.0
    %3224 = vmatpush1.xpose.msra.mxu0 0.0
    %3225 = vmatprep.subr.mxu0 0.0
    %3226 = vmatpush1.xpose.msra.mxu0 0.0
    %3227 = vmatprep.subr.mxu0 0.0
    %3228 = vmatpush1.xpose.msra.mxu0 0.0
    %3229 = vmatprep.subr.mxu0 0.0
    %3230 = vmatpush1.xpose.msra.mxu0 0.0
    %3231 = vmatprep.subr.mxu0 0.0
    %3232 = vmatpush1.xpose.msra.mxu0 0.0
    %3233 = vmatprep.subr.mxu0 0.0
    %3234 = vmatpush1.xpose.msra.mxu0 0.0
    %3235 = vmatprep.subr.mxu0 0.0
    %3236 = vmatpush1.xpose.msra.mxu0 0.0
    %3237 = vmatprep.subr.mxu0 0.0
    %3238 = vmatpush1.xpose.msra.mxu0 0.0
    %3239 = vmatprep.subr.mxu0 0.0
    %3240 = vmatpush1.xpose.msra.mxu0 0.0
    %3241 = vmatprep.subr.mxu0 0.0
    %3242 = vmatpush1.xpose.msra.mxu0 0.0
    %3243 = vmatprep.subr.mxu0 0.0
    %3244 = vmatpush1.xpose.msra.mxu0 0.0
    %3245 = vmatprep.subr.mxu0 0.0
    %3246 = vmatpush1.xpose.msra.mxu0 0.0
    %3247 = vmatprep.subr.mxu0 0.0
    %3248 = vmatpush1.xpose.msra.mxu0 0.0
    %3249 = vmatprep.subr.mxu0 0.0
    %3250 = vmatpush1.xpose.msra.mxu0 0.0
    %3251 = vmatprep.subr.mxu0 0.0
    %3252 = vmatpush1.xpose.msra.mxu0 0.0
    %3253 = vmatprep.subr.mxu0 0.0
    %3254 = vmatpush1.xpose.msra.mxu0 0.0
    %3255 = vmatprep.subr.mxu0 0.0
    %3256 = vmatpush1.xpose.msra.mxu0 0.0
    %3257 = vmatprep.subr.mxu0 0.0
    %3258 = vmatpush1.xpose.msra.mxu0 0.0
    %3259 = vmatprep.subr.mxu0 0.0
    %3260 = vmatpush1.xpose.msra.mxu0 0.0
    %3261 = vmatprep.subr.mxu0 0.0
    %3262 = vmatpush1.xpose.msra.mxu0 0.0
    %3263 = vmatprep.subr.mxu0 0.0
    %3264 = vmatpush1.xpose.msra.mxu0 0.0
    %3265 = vmatprep.subr.mxu0 0.0
    %3266 = vmatpush1.xpose.msra.mxu0 0.0
    %3267 = vmatprep.subr.mxu0 0.0
    %3268 = vmatpush1.xpose.msra.mxu0 0.0
    %3269 = vmatprep.subr.mxu0 0.0
    %3270 = vmatpush1.xpose.msra.mxu0 0.0
    %3271 = vmatprep.subr.mxu0 0.0
    %3272 = vmatpush1.xpose.msra.mxu0 0.0
    %3273 = vmatprep.mubr.f32.mxu0 0.0
    %v3274 = vand.u32 %v2902, 4294901760
    %3275 = vmatmul.mubr.f32.gmra.mrb[0].mxu0 %v3274
    %v3276 = vpop.f32.mrb[0].mxu0
    %v3277 = vadd.f32 %v3203, %v3276
    %v3278 = vpop.f32.mrb[0].mxu0
    %3279 = vdwg.mxu0
    %3280 = vmatprep.subr.mxu0 0.0
    %v3281 = vand.u32 %v2904, 4294901760
    %3282 = vmatpush1.xpose.msra.mxu0 %v3281
    %3283 = vmatprep.subr.mxu0 0.0
    %3284 = vmatpush1.xpose.msra.mxu0 0.0
    %3285 = vmatprep.subr.mxu0 0.0
    %3286 = vmatpush1.xpose.msra.mxu0 0.0
    %3287 = vmatprep.subr.mxu0 0.0
    %3288 = vmatpush1.xpose.msra.mxu0 0.0
    %3289 = vmatprep.subr.mxu0 0.0
    %3290 = vmatpush1.xpose.msra.mxu0 0.0
    %3291 = vmatprep.subr.mxu0 0.0
    %3292 = vmatpush1.xpose.msra.mxu0 0.0
    %3293 = vmatprep.subr.mxu0 0.0
    %3294 = vmatpush1.xpose.msra.mxu0 0.0
    %3295 = vmatprep.subr.mxu0 0.0
    %3296 = vmatpush1.xpose.msra.mxu0 0.0
    %3297 = vmatprep.subr.mxu0 0.0
    %3298 = vmatpush1.xpose.msra.mxu0 0.0
    %3299 = vmatprep.subr.mxu0 0.0
    %3300 = vmatpush1.xpose.msra.mxu0 0.0
    %3301 = vmatprep.subr.mxu0 0.0
    %3302 = vmatpush1.xpose.msra.mxu0 0.0
    %3303 = vmatprep.subr.mxu0 0.0
    %3304 = vmatpush1.xpose.msra.mxu0 0.0
    %3305 = vmatprep.subr.mxu0 0.0
    %3306 = vmatpush1.xpose.msra.mxu0 0.0
    %3307 = vmatprep.subr.mxu0 0.0
    %3308 = vmatpush1.xpose.msra.mxu0 0.0
    %3309 = vmatprep.subr.mxu0 0.0
    %3310 = vmatpush1.xpose.msra.mxu0 0.0
    %3311 = vmatprep.subr.mxu0 0.0
    %3312 = vmatpush1.xpose.msra.mxu0 0.0
    %3313 = vmatprep.subr.mxu0 0.0
    %3314 = vmatpush1.xpose.msra.mxu0 0.0
    %3315 = vmatprep.subr.mxu0 0.0
    %3316 = vmatpush1.xpose.msra.mxu0 0.0
    %3317 = vmatprep.subr.mxu0 0.0
    %3318 = vmatpush1.xpose.msra.mxu0 0.0
    %3319 = vmatprep.subr.mxu0 0.0
    %3320 = vmatpush1.xpose.msra.mxu0 0.0
    %3321 = vmatprep.subr.mxu0 0.0
    %3322 = vmatpush1.xpose.msra.mxu0 0.0
    %3323 = vmatprep.subr.mxu0 0.0
    %3324 = vmatpush1.xpose.msra.mxu0 0.0
    %3325 = vmatprep.subr.mxu0 0.0
    %3326 = vmatpush1.xpose.msra.mxu0 0.0
    %3327 = vmatprep.subr.mxu0 0.0
    %3328 = vmatpush1.xpose.msra.mxu0 0.0
    %3329 = vmatprep.subr.mxu0 0.0
    %3330 = vmatpush1.xpose.msra.mxu0 0.0
    %3331 = vmatprep.subr.mxu0 0.0
    %3332 = vmatpush1.xpose.msra.mxu0 0.0
    %3333 = vmatprep.subr.mxu0 0.0
    %3334 = vmatpush1.xpose.msra.mxu0 0.0
    %3335 = vmatprep.subr.mxu0 0.0
    %3336 = vmatpush1.xpose.msra.mxu0 0.0
    %3337 = vmatprep.subr.mxu0 0.0
    %3338 = vmatpush1.xpose.msra.mxu0 0.0
    %3339 = vmatprep.subr.mxu0 0.0
    %3340 = vmatpush1.xpose.msra.mxu0 0.0
    %3341 = vmatprep.subr.mxu0 0.0
    %3342 = vmatpush1.xpose.msra.mxu0 0.0
    %3343 = vmatprep.subr.mxu0 0.0
    %3344 = vmatpush1.xpose.msra.mxu0 0.0
    %3345 = vmatprep.mubr.f32.mxu0 0.0
    %v3346 = vand.u32 %v2902, 4294901760
    %3347 = vmatmul.mubr.f32.gmra.mrb[0].mxu0 %v3346
    %v3348 = vpop.f32.mrb[0].mxu0
    %v3349 = vadd.f32 %v3277, %v3348
    %v3350 = vpop.f32.mrb[0].mxu0
    %3351 = vdwg.mxu0
    %v3352 = vsel %vm613, %v2895, -inf
    %3353 = vmax.xlane.f32.xlu0 %v3352
    %v3354 = vpop.xlane.xlu0 %3353
    %v3355 = vsel %vm613, %v3349, -inf
    %3356 = vmax.xlane.f32.xlu0 %v3355
    %v3357 = vpop.xlane.xlu0 %3356
    %v3358 = vsub.f32 %v2895, %v3354
    %v3359 = vsub.f32 %v3349, %v3357
    %v3360 = vmul.f32 %v3358, 1.442695
    %v3361 = vpow.pop %v3360
    %v3362 = vmul.f32 %v3359, 1.442695
    %v3363 = vpow.pop %v3362
    %v3364 = vsel %vm613, %v3361, 0.0
    %3365 = vadd.xlane.f32.xlu0 %v3364
    %v3366 = vpop.xlane.xlu0 %3365
    %v3367 = vsel %vm613, %v3363, 0.0
    %3368 = vadd.xlane.f32.xlu0 %v3367
    %v3369 = vpop.xlane.xlu0 %3368
    %v3370 = vrcp.pop %v3366
    %v3371 = vrcp.pop %v3369
    %v3372 = vmul.f32 %v3361, %v3370
    %v3373 = vmul.f32 %v3363, %v3371
    %3374 = vrot.lane.b32.xlu0 %v601, 56
    %v3375 = vpop.permute.xlu0 %3374
    %v3378 = vsel %vm613, %v3372, 0
    %3380 = vmatprep.subr.mxu0 0.0
    %v3381 = vand.u32 %v3375, 4294901760
    %3382 = vmatpush1.msra.mxu0 %v3381
    %3383 = vmatprep.subr.mxu0 0.0
    %3384 = vmatpush1.msra.mxu0 0.0
    %3385 = vmatprep.subr.mxu0 0.0
    %3386 = vmatpush1.msra.mxu0 0.0
    %3387 = vmatprep.subr.mxu0 0.0
    %3388 = vmatpush1.msra.mxu0 0.0
    %3389 = vmatprep.subr.mxu0 0.0
    %3390 = vmatpush1.msra.mxu0 0.0
    %3391 = vmatprep.subr.mxu0 0.0
    %3392 = vmatpush1.msra.mxu0 0.0
    %3393 = vmatprep.subr.mxu0 0.0
    %3394 = vmatpush1.msra.mxu0 0.0
    %3395 = vmatprep.subr.mxu0 0.0
    %3396 = vmatpush1.msra.mxu0 0.0
    %3397 = vmatprep.subr.mxu0 0.0
    %3398 = vmatpush1.msra.mxu0 0.0
    %3399 = vmatprep.subr.mxu0 0.0
    %3400 = vmatpush1.msra.mxu0 0.0
    %3401 = vmatprep.subr.mxu0 0.0
    %3402 = vmatpush1.msra.mxu0 0.0
    %3403 = vmatprep.subr.mxu0 0.0
    %3404 = vmatpush1.msra.mxu0 0.0
    %3405 = vmatprep.subr.mxu0 0.0
    %3406 = vmatpush1.msra.mxu0 0.0
    %3407 = vmatprep.subr.mxu0 0.0
    %3408 = vmatpush1.msra.mxu0 0.0
    %3409 = vmatprep.subr.mxu0 0.0
    %3410 = vmatpush1.msra.mxu0 0.0
    %3411 = vmatprep.subr.mxu0 0.0
    %3412 = vmatpush1.msra.mxu0 0.0
    %3413 = vmatprep.subr.mxu0 0.0
    %3414 = vmatpush1.msra.mxu0 0.0
    %3415 = vmatprep.subr.mxu0 0.0
    %3416 = vmatpush1.msra.mxu0 0.0
    %3417 = vmatprep.subr.mxu0 0.0
    %3418 = vmatpush1.msra.mxu0 0.0
    %3419 = vmatprep.subr.mxu0 0.0
    %3420 = vmatpush1.msra.mxu0 0.0
    %3421 = vmatprep.subr.mxu0 0.0
    %3422 = vmatpush1.msra.mxu0 0.0
    %3423 = vmatprep.subr.mxu0 0.0
    %3424 = vmatpush1.msra.mxu0 0.0
    %3425 = vmatprep.subr.mxu0 0.0
    %3426 = vmatpush1.msra.mxu0 0.0
    %3427 = vmatprep.subr.mxu0 0.0
    %3428 = vmatpush1.msra.mxu0 0.0
    %3429 = vmatprep.subr.mxu0 0.0
    %3430 = vmatpush1.msra.mxu0 0.0
    %3431 = vmatprep.subr.mxu0 0.0
    %3432 = vmatpush1.msra.mxu0 0.0
    %3433 = vmatprep.subr.mxu0 0.0
    %3434 = vmatpush1.msra.mxu0 0.0
    %3435 = vmatprep.subr.mxu0 0.0
    %3436 = vmatpush1.msra.mxu0 0.0
    %3437 = vmatprep.subr.mxu0 0.0
    %3438 = vmatpush1.msra.mxu0 0.0
    %3439 = vmatprep.subr.mxu0 0.0
    %3440 = vmatpush1.msra.mxu0 0.0
    %3441 = vmatprep.subr.mxu0 0.0
    %3442 = vmatpush1.msra.mxu0 0.0
    %3443 = vmatprep.subr.mxu0 0.0
    %3444 = vmatpush1.msra.mxu0 0.0
    %3445 = vmatprep.mubr.f32.mxu0 0.0
    %v3446 = vand.u32 %v3378, 4294901760
    %v3447 = vsub.f32 %v3378, %v3446
    %v3448 = vand.u32 %v3447, 4294901760
    %v3449 = vsub.f32 %v3447, %v3448
    %v3450 = vand.u32 %v3449, 4294901760
    %3451 = vmatmul.mubr.f32.gmra.mrb[0].mxu0 %v3450
    %v3452 = vpop.f32.mrb[0].mxu0
    %v3453 = vadd.f32 0.0, %v3452
    %v3454 = vpop.f32.mrb[0].mxu0
    %3455 = vdwg.mxu0
    %3456 = vmatprep.subr.mxu0 0.0
    %v3457 = vand.u32 %v3375, 4294901760
    %v3458 = vsub.f32 %v3375, %v3457
    %v3459 = vand.u32 %v3458, 4294901760
    %v3460 = vsub.f32 %v3458, %v3459
    %v3461 = vand.u32 %v3460, 4294901760
    %3462 = vmatpush1.msra.mxu0 %v3461
    %3463 = vmatprep.subr.mxu0 0.0
    %3464 = vmatpush1.msra.mxu0 0.0
    %3465 = vmatprep.subr.mxu0 0.0
    %3466 = vmatpush1.msra.mxu0 0.0
    %3467 = vmatprep.subr.mxu0 0.0
    %3468 = vmatpush1.msra.mxu0 0.0
    %3469 = vmatprep.subr.mxu0 0.0
    %3470 = vmatpush1.msra.mxu0 0.0
    %3471 = vmatprep.subr.mxu0 0.0
    %3472 = vmatpush1.msra.mxu0 0.0
    %3473 = vmatprep.subr.mxu0 0.0
    %3474 = vmatpush1.msra.mxu0 0.0
    %3475 = vmatprep.subr.mxu0 0.0
    %3476 = vmatpush1.msra.mxu0 0.0
    %3477 = vmatprep.subr.mxu0 0.0
    %3478 = vmatpush1.msra.mxu0 0.0
    %3479 = vmatprep.subr.mxu0 0.0
    %3480 = vmatpush1.msra.mxu0 0.0
    %3481 = vmatprep.subr.mxu0 0.0
    %3482 = vmatpush1.msra.mxu0 0.0
    %3483 = vmatprep.subr.mxu0 0.0
    %3484 = vmatpush1.msra.mxu0 0.0
    %3485 = vmatprep.subr.mxu0 0.0
    %3486 = vmatpush1.msra.mxu0 0.0
    %3487 = vmatprep.subr.mxu0 0.0
    %3488 = vmatpush1.msra.mxu0 0.0
    %3489 = vmatprep.subr.mxu0 0.0
    %3490 = vmatpush1.msra.mxu0 0.0
    %3491 = vmatprep.subr.mxu0 0.0
    %3492 = vmatpush1.msra.mxu0 0.0
    %3493 = vmatprep.subr.mxu0 0.0
    %3494 = vmatpush1.msra.mxu0 0.0
    %3495 = vmatprep.subr.mxu0 0.0
    %3496 = vmatpush1.msra.mxu0 0.0
    %3497 = vmatprep.subr.mxu0 0.0
    %3498 = vmatpush1.msra.mxu0 0.0
    %3499 = vmatprep.subr.mxu0 0.0
    %3500 = vmatpush1.msra.mxu0 0.0
    %3501 = vmatprep.subr.mxu0 0.0
    %3502 = vmatpush1.msra.mxu0 0.0
    %3503 = vmatprep.subr.mxu0 0.0
    %3504 = vmatpush1.msra.mxu0 0.0
    %3505 = vmatprep.subr.mxu0 0.0
    %3506 = vmatpush1.msra.mxu0 0.0
    %3507 = vmatprep.subr.mxu0 0.0
    %3508 = vmatpush1.msra.mxu0 0.0
    %3509 = vmatprep.subr.mxu0 0.0
    %3510 = vmatpush1.msra.mxu0 0.0
    %3511 = vmatprep.subr.mxu0 0.0
    %3512 = vmatpush1.msra.mxu0 0.0
    %3513 = vmatprep.subr.mxu0 0.0
    %3514 = vmatpush1.msra.mxu0 0.0
    %3515 = vmatprep.subr.mxu0 0.0
    %3516 = vmatpush1.msra.mxu0 0.0
    %3517 = vmatprep.subr.mxu0 0.0
    %3518 = vmatpush1.msra.mxu0 0.0
    %3519 = vmatprep.subr.mxu0 0.0
    %3520 = vmatpush1.msra.mxu0 0.0
    %3521 = vmatprep.subr.mxu0 0.0
    %3522 = vmatpush1.msra.mxu0 0.0
    %3523 = vmatprep.subr.mxu0 0.0
    %3524 = vmatpush1.msra.mxu0 0.0
    %3525 = vmatprep.mubr.f32.mxu0 0.0
    %v3526 = vand.u32 %v3378, 4294901760
    %3527 = vmatmul.mubr.f32.gmra.mrb[0].mxu0 %v3526
    %v3528 = vpop.f32.mrb[0].mxu0
    %v3529 = vadd.f32 %v3453, %v3528
    %v3530 = vpop.f32.mrb[0].mxu0
    %3531 = vdwg.mxu0
    %3532 = vmatprep.subr.mxu0 0.0
    %v3533 = vand.u32 %v3375, 4294901760
    %v3534 = vsub.f32 %v3375, %v3533
    %3535 = vmatpush1.msra.mxu0 %v3534
    %3536 = vmatprep.subr.mxu0 0.0
    %3537 = vmatpush1.msra.mxu0 0.0
    %3538 = vmatprep.subr.mxu0 0.0
    %3539 = vmatpush1.msra.mxu0 0.0
    %3540 = vmatprep.subr.mxu0 0.0
    %3541 = vmatpush1.msra.mxu0 0.0
    %3542 = vmatprep.subr.mxu0 0.0
    %3543 = vmatpush1.msra.mxu0 0.0
    %3544 = vmatprep.subr.mxu0 0.0
    %3545 = vmatpush1.msra.mxu0 0.0
    %3546 = vmatprep.subr.mxu0 0.0
    %3547 = vmatpush1.msra.mxu0 0.0
    %3548 = vmatprep.subr.mxu0 0.0
    %3549 = vmatpush1.msra.mxu0 0.0
    %3550 = vmatprep.subr.mxu0 0.0
    %3551 = vmatpush1.msra.mxu0 0.0
    %3552 = vmatprep.subr.mxu0 0.0
    %3553 = vmatpush1.msra.mxu0 0.0
    %3554 = vmatprep.subr.mxu0 0.0
    %3555 = vmatpush1.msra.mxu0 0.0
    %3556 = vmatprep.subr.mxu0 0.0
    %3557 = vmatpush1.msra.mxu0 0.0
    %3558 = vmatprep.subr.mxu0 0.0
    %3559 = vmatpush1.msra.mxu0 0.0
    %3560 = vmatprep.subr.mxu0 0.0
    %3561 = vmatpush1.msra.mxu0 0.0
    %3562 = vmatprep.subr.mxu0 0.0
    %3563 = vmatpush1.msra.mxu0 0.0
    %3564 = vmatprep.subr.mxu0 0.0
    %3565 = vmatpush1.msra.mxu0 0.0
    %3566 = vmatprep.subr.mxu0 0.0
    %3567 = vmatpush1.msra.mxu0 0.0
    %3568 = vmatprep.subr.mxu0 0.0
    %3569 = vmatpush1.msra.mxu0 0.0
    %3570 = vmatprep.subr.mxu0 0.0
    %3571 = vmatpush1.msra.mxu0 0.0
    %3572 = vmatprep.subr.mxu0 0.0
    %3573 = vmatpush1.msra.mxu0 0.0
    %3574 = vmatprep.subr.mxu0 0.0
    %3575 = vmatpush1.msra.mxu0 0.0
    %3576 = vmatprep.subr.mxu0 0.0
    %3577 = vmatpush1.msra.mxu0 0.0
    %3578 = vmatprep.subr.mxu0 0.0
    %3579 = vmatpush1.msra.mxu0 0.0
    %3580 = vmatprep.subr.mxu0 0.0
    %3581 = vmatpush1.msra.mxu0 0.0
    %3582 = vmatprep.subr.mxu0 0.0
    %3583 = vmatpush1.msra.mxu0 0.0
    %3584 = vmatprep.subr.mxu0 0.0
    %3585 = vmatpush1.msra.mxu0 0.0
    %3586 = vmatprep.subr.mxu0 0.0
    %3587 = vmatpush1.msra.mxu0 0.0
    %3588 = vmatprep.subr.mxu0 0.0
    %3589 = vmatpush1.msra.mxu0 0.0
    %3590 = vmatprep.subr.mxu0 0.0
    %3591 = vmatpush1.msra.mxu0 0.0
    %3592 = vmatprep.subr.mxu0 0.0
    %3593 = vmatpush1.msra.mxu0 0.0
    %3594 = vmatprep.subr.mxu0 0.0
    %3595 = vmatpush1.msra.mxu0 0.0
    %3596 = vmatprep.subr.mxu0 0.0
    %3597 = vmatpush1.msra.mxu0 0.0
    %3598 = vmatprep.mubr.f32.mxu0 0.0
    %v3599 = vand.u32 %v3378, 4294901760
    %v3600 = vsub.f32 %v3378, %v3599
    %3601 = vmatmul.mubr.f32.gmra.mrb[0].mxu0 %v3600
    %v3602 = vpop.f32.mrb[0].mxu0
    %v3603 = vadd.f32 %v3529, %v3602
    %v3604 = vpop.f32.mrb[0].mxu0
    %3605 = vdwg.mxu0
    %3606 = vmatprep.subr.mxu0 0.0
    %v3607 = vand.u32 %v3375, 4294901760
    %3608 = vmatpush1.msra.mxu0 %v3607
    %3609 = vmatprep.subr.mxu0 0.0
    %3610 = vmatpush1.msra.mxu0 0.0
    %3611 = vmatprep.subr.mxu0 0.0
    %3612 = vmatpush1.msra.mxu0 0.0
    %3613 = vmatprep.subr.mxu0 0.0
    %3614 = vmatpush1.msra.mxu0 0.0
    %3615 = vmatprep.subr.mxu0 0.0
    %3616 = vmatpush1.msra.mxu0 0.0
    %3617 = vmatprep.subr.mxu0 0.0
    %3618 = vmatpush1.msra.mxu0 0.0
    %3619 = vmatprep.subr.mxu0 0.0
    %3620 = vmatpush1.msra.mxu0 0.0
    %3621 = vmatprep.subr.mxu0 0.0
    %3622 = vmatpush1.msra.mxu0 0.0
    %3623 = vmatprep.subr.mxu0 0.0
    %3624 = vmatpush1.msra.mxu0 0.0
    %3625 = vmatprep.subr.mxu0 0.0
    %3626 = vmatpush1.msra.mxu0 0.0
    %3627 = vmatprep.subr.mxu0 0.0
    %3628 = vmatpush1.msra.mxu0 0.0
    %3629 = vmatprep.subr.mxu0 0.0
    %3630 = vmatpush1.msra.mxu0 0.0
    %3631 = vmatprep.subr.mxu0 0.0
    %3632 = vmatpush1.msra.mxu0 0.0
    %3633 = vmatprep.subr.mxu0 0.0
    %3634 = vmatpush1.msra.mxu0 0.0
    %3635 = vmatprep.subr.mxu0 0.0
    %3636 = vmatpush1.msra.mxu0 0.0
    %3637 = vmatprep.subr.mxu0 0.0
    %3638 = vmatpush1.msra.mxu0 0.0
    %3639 = vmatprep.subr.mxu0 0.0
    %3640 = vmatpush1.msra.mxu0 0.0
    %3641 = vmatprep.subr.mxu0 0.0
    %3642 = vmatpush1.msra.mxu0 0.0
    %3643 = vmatprep.subr.mxu0 0.0
    %3644 = vmatpush1.msra.mxu0 0.0
    %3645 = vmatprep.subr.mxu0 0.0
    %3646 = vmatpush1.msra.mxu0 0.0
    %3647 = vmatprep.subr.mxu0 0.0
    %3648 = vmatpush1.msra.mxu0 0.0
    %3649 = vmatprep.subr.mxu0 0.0
    %3650 = vmatpush1.msra.mxu0 0.0
    %3651 = vmatprep.subr.mxu0 0.0
    %3652 = vmatpush1.msra.mxu0 0.0
    %3653 = vmatprep.subr.mxu0 0.0
    %3654 = vmatpush1.msra.mxu0 0.0
    %3655 = vmatprep.subr.mxu0 0.0
    %3656 = vmatpush1.msra.mxu0 0.0
    %3657 = vmatprep.subr.mxu0 0.0
    %3658 = vmatpush1.msra.mxu0 0.0
    %3659 = vmatprep.subr.mxu0 0.0
    %3660 = vmatpush1.msra.mxu0 0.0
    %3661 = vmatprep.subr.mxu0 0.0
    %3662 = vmatpush1.msra.mxu0 0.0
    %3663 = vmatprep.subr.mxu0 0.0
    %3664 = vmatpush1.msra.mxu0 0.0
    %3665 = vmatprep.subr.mxu0 0.0
    %3666 = vmatpush1.msra.mxu0 0.0
    %3667 = vmatprep.subr.mxu0 0.0
    %3668 = vmatpush1.msra.mxu0 0.0
    %3669 = vmatprep.subr.mxu0 0.0
    %3670 = vmatpush1.msra.mxu0 0.0
    %3671 = vmatprep.mubr.f32.mxu0 0.0
    %v3672 = vand.u32 %v3378, 4294901760
    %v3673 = vsub.f32 %v3378, %v3672
    %v3674 = vand.u32 %v3673, 4294901760
    %3675 = vmatmul.mubr.f32.gmra.mrb[0].mxu0 %v3674
    %v3676 = vpop.f32.mrb[0].mxu0
    %v3677 = vadd.f32 %v3603, %v3676
    %v3678 = vpop.f32.mrb[0].mxu0
    %3679 = vdwg.mxu0
    %3680 = vmatprep.subr.mxu0 0.0
    %v3681 = vand.u32 %v3375, 4294901760
    %v3682 = vsub.f32 %v3375, %v3681
    %v3683 = vand.u32 %v3682, 4294901760
    %3684 = vmatpush1.msra.mxu0 %v3683
    %3685 = vmatprep.subr.mxu0 0.0
    %3686 = vmatpush1.msra.mxu0 0.0
    %3687 = vmatprep.subr.mxu0 0.0
    %3688 = vmatpush1.msra.mxu0 0.0
    %3689 = vmatprep.subr.mxu0 0.0
    %3690 = vmatpush1.msra.mxu0 0.0
    %3691 = vmatprep.subr.mxu0 0.0
    %3692 = vmatpush1.msra.mxu0 0.0
    %3693 = vmatprep.subr.mxu0 0.0
    %3694 = vmatpush1.msra.mxu0 0.0
    %3695 = vmatprep.subr.mxu0 0.0
    %3696 = vmatpush1.msra.mxu0 0.0
    %3697 = vmatprep.subr.mxu0 0.0
    %3698 = vmatpush1.msra.mxu0 0.0
    %3699 = vmatprep.subr.mxu0 0.0
    %3700 = vmatpush1.msra.mxu0 0.0
    %3701 = vmatprep.subr.mxu0 0.0
    %3702 = vmatpush1.msra.mxu0 0.0
    %3703 = vmatprep.subr.mxu0 0.0
    %3704 = vmatpush1.msra.mxu0 0.0
    %3705 = vmatprep.subr.mxu0 0.0
    %3706 = vmatpush1.msra.mxu0 0.0
    %3707 = vmatprep.subr.mxu0 0.0
    %3708 = vmatpush1.msra.mxu0 0.0
    %3709 = vmatprep.subr.mxu0 0.0
    %3710 = vmatpush1.msra.mxu0 0.0
    %3711 = vmatprep.subr.mxu0 0.0
    %3712 = vmatpush1.msra.mxu0 0.0
    %3713 = vmatprep.subr.mxu0 0.0
    %3714 = vmatpush1.msra.mxu0 0.0
    %3715 = vmatprep.subr.mxu0 0.0
    %3716 = vmatpush1.msra.mxu0 0.0
    %3717 = vmatprep.subr.mxu0 0.0
    %3718 = vmatpush1.msra.mxu0 0.0
    %3719 = vmatprep.subr.mxu0 0.0
    %3720 = vmatpush1.msra.mxu0 0.0
    %3721 = vmatprep.subr.mxu0 0.0
    %3722 = vmatpush1.msra.mxu0 0.0
    %3723 = vmatprep.subr.mxu0 0.0
    %3724 = vmatpush1.msra.mxu0 0.0
    %3725 = vmatprep.subr.mxu0 0.0
    %3726 = vmatpush1.msra.mxu0 0.0
    %3727 = vmatprep.subr.mxu0 0.0
    %3728 = vmatpush1.msra.mxu0 0.0
    %3729 = vmatprep.subr.mxu0 0.0
    %3730 = vmatpush1.msra.mxu0 0.0
    %3731 = vmatprep.subr.mxu0 0.0
    %3732 = vmatpush1.msra.mxu0 0.0
    %3733 = vmatprep.subr.mxu0 0.0
    %3734 = vmatpush1.msra.mxu0 0.0
    %3735 = vmatprep.subr.mxu0 0.0
    %3736 = vmatpush1.msra.mxu0 0.0
    %3737 = vmatprep.subr.mxu0 0.0
    %3738 = vmatpush1.msra.mxu0 0.0
    %3739 = vmatprep.subr.mxu0 0.0
    %3740 = vmatpush1.msra.mxu0 0.0
    %3741 = vmatprep.subr.mxu0 0.0
    %3742 = vmatpush1.msra.mxu0 0.0
    %3743 = vmatprep.subr.mxu0 0.0
    %3744 = vmatpush1.msra.mxu0 0.0
    %3745 = vmatprep.subr.mxu0 0.0
    %3746 = vmatpush1.msra.mxu0 0.0
    %3747 = vmatprep.mubr.f32.mxu0 0.0
    %v3748 = vand.u32 %v3378, 4294901760
    %3749 = vmatmul.mubr.f32.gmra.mrb[0].mxu0 %v3748
    %v3750 = vpop.f32.mrb[0].mxu0
    %v3751 = vadd.f32 %v3677, %v3750
    %v3752 = vpop.f32.mrb[0].mxu0
    %3753 = vdwg.mxu0
    %3754 = vmatprep.subr.mxu0 0.0
    %v3755 = vand.u32 %v3375, 4294901760
    %3756 = vmatpush1.msra.mxu0 %v3755
    %3757 = vmatprep.subr.mxu0 0.0
    %3758 = vmatpush1.msra.mxu0 0.0
    %3759 = vmatprep.subr.mxu0 0.0
    %3760 = vmatpush1.msra.mxu0 0.0
    %3761 = vmatprep.subr.mxu0 0.0
    %3762 = vmatpush1.msra.mxu0 0.0
    %3763 = vmatprep.subr.mxu0 0.0
    %3764 = vmatpush1.msra.mxu0 0.0
    %3765 = vmatprep.subr.mxu0 0.0
    %3766 = vmatpush1.msra.mxu0 0.0
    %3767 = vmatprep.subr.mxu0 0.0
    %3768 = vmatpush1.msra.mxu0 0.0
    %3769 = vmatprep.subr.mxu0 0.0
    %3770 = vmatpush1.msra.mxu0 0.0
    %3771 = vmatprep.subr.mxu0 0.0
    %3772 = vmatpush1.msra.mxu0 0.0
    %3773 = vmatprep.subr.mxu0 0.0
    %3774 = vmatpush1.msra.mxu0 0.0
    %3775 = vmatprep.subr.mxu0 0.0
    %3776 = vmatpush1.msra.mxu0 0.0
    %3777 = vmatprep.subr.mxu0 0.0
    %3778 = vmatpush1.msra.mxu0 0.0
    %3779 = vmatprep.subr.mxu0 0.0
    %3780 = vmatpush1.msra.mxu0 0.0
    %3781 = vmatprep.subr.mxu0 0.0
    %3782 = vmatpush1.msra.mxu0 0.0
    %3783 = vmatprep.subr.mxu0 0.0
    %3784 = vmatpush1.msra.mxu0 0.0
    %3785 = vmatprep.subr.mxu0 0.0
    %3786 = vmatpush1.msra.mxu0 0.0
    %3787 = vmatprep.subr.mxu0 0.0
    %3788 = vmatpush1.msra.mxu0 0.0
    %3789 = vmatprep.subr.mxu0 0.0
    %3790 = vmatpush1.msra.mxu0 0.0
    %3791 = vmatprep.subr.mxu0 0.0
    %3792 = vmatpush1.msra.mxu0 0.0
    %3793 = vmatprep.subr.mxu0 0.0
    %3794 = vmatpush1.msra.mxu0 0.0
    %3795 = vmatprep.subr.mxu0 0.0
    %3796 = vmatpush1.msra.mxu0 0.0
    %3797 = vmatprep.subr.mxu0 0.0
    %3798 = vmatpush1.msra.mxu0 0.0
    %3799 = vmatprep.subr.mxu0 0.0
    %3800 = vmatpush1.msra.mxu0 0.0
    %3801 = vmatprep.subr.mxu0 0.0
    %3802 = vmatpush1.msra.mxu0 0.0
    %3803 = vmatprep.subr.mxu0 0.0
    %3804 = vmatpush1.msra.mxu0 0.0
    %3805 = vmatprep.subr.mxu0 0.0
    %3806 = vmatpush1.msra.mxu0 0.0
    %3807 = vmatprep.subr.mxu0 0.0
    %3808 = vmatpush1.msra.mxu0 0.0
    %3809 = vmatprep.subr.mxu0 0.0
    %3810 = vmatpush1.msra.mxu0 0.0
    %3811 = vmatprep.subr.mxu0 0.0
    %3812 = vmatpush1.msra.mxu0 0.0
    %3813 = vmatprep.subr.mxu0 0.0
    %3814 = vmatpush1.msra.mxu0 0.0
    %3815 = vmatprep.subr.mxu0 0.0
    %3816 = vmatpush1.msra.mxu0 0.0
    %3817 = vmatprep.subr.mxu0 0.0
    %3818 = vmatpush1.msra.mxu0 0.0
    %3819 = vmatprep.mubr.f32.mxu0 0.0
    %v3820 = vand.u32 %v3378, 4294901760
    %3821 = vmatmul.mubr.f32.gmra.mrb[0].mxu0 %v3820
    %v3822 = vpop.f32.mrb[0].mxu0
    %v3823 = vadd.f32 %v3751, %v3822
    %v3824 = vpop.f32.mrb[0].mxu0
    %3825 = vdwg.mxu0
    %3826 = vrot.lane.b32.xlu0 %v607, 56
    %v3827 = vpop.permute.xlu0 %3826
    %v3830 = vsel %vm613, %v3373, 0
    %3832 = vmatprep.subr.mxu0 0.0
    %v3833 = vand.u32 %v3827, 4294901760
    %3834 = vmatpush1.msra.mxu0 %v3833
    %3835 = vmatprep.subr.mxu0 0.0
    %3836 = vmatpush1.msra.mxu0 0.0
    %3837 = vmatprep.subr.mxu0 0.0
    %3838 = vmatpush1.msra.mxu0 0.0
    %3839 = vmatprep.subr.mxu0 0.0
    %3840 = vmatpush1.msra.mxu0 0.0
    %3841 = vmatprep.subr.mxu0 0.0
    %3842 = vmatpush1.msra.mxu0 0.0
    %3843 = vmatprep.subr.mxu0 0.0
    %3844 = vmatpush1.msra.mxu0 0.0
    %3845 = vmatprep.subr.mxu0 0.0
    %3846 = vmatpush1.msra.mxu0 0.0
    %3847 = vmatprep.subr.mxu0 0.0
    %3848 = vmatpush1.msra.mxu0 0.0
    %3849 = vmatprep.subr.mxu0 0.0
    %3850 = vmatpush1.msra.mxu0 0.0
    %3851 = vmatprep.subr.mxu0 0.0
    %3852 = vmatpush1.msra.mxu0 0.0
    %3853 = vmatprep.subr.mxu0 0.0
    %3854 = vmatpush1.msra.mxu0 0.0
    %3855 = vmatprep.subr.mxu0 0.0
    %3856 = vmatpush1.msra.mxu0 0.0
    %3857 = vmatprep.subr.mxu0 0.0
    %3858 = vmatpush1.msra.mxu0 0.0
    %3859 = vmatprep.subr.mxu0 0.0
    %3860 = vmatpush1.msra.mxu0 0.0
    %3861 = vmatprep.subr.mxu0 0.0
    %3862 = vmatpush1.msra.mxu0 0.0
    %3863 = vmatprep.subr.mxu0 0.0
    %3864 = vmatpush1.msra.mxu0 0.0
    %3865 = vmatprep.subr.mxu0 0.0
    %3866 = vmatpush1.msra.mxu0 0.0
    %3867 = vmatprep.subr.mxu0 0.0
    %3868 = vmatpush1.msra.mxu0 0.0
    %3869 = vmatprep.subr.mxu0 0.0
    %3870 = vmatpush1.msra.mxu0 0.0
    %3871 = vmatprep.subr.mxu0 0.0
    %3872 = vmatpush1.msra.mxu0 0.0
    %3873 = vmatprep.subr.mxu0 0.0
    %3874 = vmatpush1.msra.mxu0 0.0
    %3875 = vmatprep.subr.mxu0 0.0
    %3876 = vmatpush1.msra.mxu0 0.0
    %3877 = vmatprep.subr.mxu0 0.0
    %3878 = vmatpush1.msra.mxu0 0.0
    %3879 = vmatprep.subr.mxu0 0.0
    %3880 = vmatpush1.msra.mxu0 0.0
    %3881 = vmatprep.subr.mxu0 0.0
    %3882 = vmatpush1.msra.mxu0 0.0
    %3883 = vmatprep.subr.mxu0 0.0
    %3884 = vmatpush1.msra.mxu0 0.0
    %3885 = vmatprep.subr.mxu0 0.0
    %3886 = vmatpush1.msra.mxu0 0.0
    %3887 = vmatprep.subr.mxu0 0.0
    %3888 = vmatpush1.msra.mxu0 0.0
    %3889 = vmatprep.subr.mxu0 0.0
    %3890 = vmatpush1.msra.mxu0 0.0
    %3891 = vmatprep.subr.mxu0 0.0
    %3892 = vmatpush1.msra.mxu0 0.0
    %3893 = vmatprep.subr.mxu0 0.0
    %3894 = vmatpush1.msra.mxu0 0.0
    %3895 = vmatprep.subr.mxu0 0.0
    %3896 = vmatpush1.msra.mxu0 0.0
    %3897 = vmatprep.mubr.f32.mxu0 0.0
    %v3898 = vand.u32 %v3830, 4294901760
    %v3899 = vsub.f32 %v3830, %v3898
    %v3900 = vand.u32 %v3899, 4294901760
    %v3901 = vsub.f32 %v3899, %v3900
    %v3902 = vand.u32 %v3901, 4294901760
    %3903 = vmatmul.mubr.f32.gmra.mrb[0].mxu0 %v3902
    %v3904 = vpop.f32.mrb[0].mxu0
    %v3905 = vadd.f32 0.0, %v3904
    %v3906 = vpop.f32.mrb[0].mxu0
    %3907 = vdwg.mxu0
    %3908 = vmatprep.subr.mxu0 0.0
    %v3909 = vand.u32 %v3827, 4294901760
    %v3910 = vsub.f32 %v3827, %v3909
    %v3911 = vand.u32 %v3910, 4294901760
    %v3912 = vsub.f32 %v3910, %v3911
    %v3913 = vand.u32 %v3912, 4294901760
    %3914 = vmatpush1.msra.mxu0 %v3913
    %3915 = vmatprep.subr.mxu0 0.0
    %3916 = vmatpush1.msra.mxu0 0.0
    %3917 = vmatprep.subr.mxu0 0.0
    %3918 = vmatpush1.msra.mxu0 0.0
    %3919 = vmatprep.subr.mxu0 0.0
    %3920 = vmatpush1.msra.mxu0 0.0
    %3921 = vmatprep.subr.mxu0 0.0
    %3922 = vmatpush1.msra.mxu0 0.0
    %3923 = vmatprep.subr.mxu0 0.0
    %3924 = vmatpush1.msra.mxu0 0.0
    %3925 = vmatprep.subr.mxu0 0.0
    %3926 = vmatpush1.msra.mxu0 0.0
    %3927 = vmatprep.subr.mxu0 0.0
    %3928 = vmatpush1.msra.mxu0 0.0
    %3929 = vmatprep.subr.mxu0 0.0
    %3930 = vmatpush1.msra.mxu0 0.0
    %3931 = vmatprep.subr.mxu0 0.0
    %3932 = vmatpush1.msra.mxu0 0.0
    %3933 = vmatprep.subr.mxu0 0.0
    %3934 = vmatpush1.msra.mxu0 0.0
    %3935 = vmatprep.subr.mxu0 0.0
    %3936 = vmatpush1.msra.mxu0 0.0
    %3937 = vmatprep.subr.mxu0 0.0
    %3938 = vmatpush1.msra.mxu0 0.0
    %3939 = vmatprep.subr.mxu0 0.0
    %3940 = vmatpush1.msra.mxu0 0.0
    %3941 = vmatprep.subr.mxu0 0.0
    %3942 = vmatpush1.msra.mxu0 0.0
    %3943 = vmatprep.subr.mxu0 0.0
    %3944 = vmatpush1.msra.mxu0 0.0
    %3945 = vmatprep.subr.mxu0 0.0
    %3946 = vmatpush1.msra.mxu0 0.0
    %3947 = vmatprep.subr.mxu0 0.0
    %3948 = vmatpush1.msra.mxu0 0.0
    %3949 = vmatprep.subr.mxu0 0.0
    %3950 = vmatpush1.msra.mxu0 0.0
    %3951 = vmatprep.subr.mxu0 0.0
    %3952 = vmatpush1.msra.mxu0 0.0
    %3953 = vmatprep.subr.mxu0 0.0
    %3954 = vmatpush1.msra.mxu0 0.0
    %3955 = vmatprep.subr.mxu0 0.0
    %3956 = vmatpush1.msra.mxu0 0.0
    %3957 = vmatprep.subr.mxu0 0.0
    %3958 = vmatpush1.msra.mxu0 0.0
    %3959 = vmatprep.subr.mxu0 0.0
    %3960 = vmatpush1.msra.mxu0 0.0
    %3961 = vmatprep.subr.mxu0 0.0
    %3962 = vmatpush1.msra.mxu0 0.0
    %3963 = vmatprep.subr.mxu0 0.0
    %3964 = vmatpush1.msra.mxu0 0.0
    %3965 = vmatprep.subr.mxu0 0.0
    %3966 = vmatpush1.msra.mxu0 0.0
    %3967 = vmatprep.subr.mxu0 0.0
    %3968 = vmatpush1.msra.mxu0 0.0
    %3969 = vmatprep.subr.mxu0 0.0
    %3970 = vmatpush1.msra.mxu0 0.0
    %3971 = vmatprep.subr.mxu0 0.0
    %3972 = vmatpush1.msra.mxu0 0.0
    %3973 = vmatprep.subr.mxu0 0.0
    %3974 = vmatpush1.msra.mxu0 0.0
    %3975 = vmatprep.subr.mxu0 0.0
    %3976 = vmatpush1.msra.mxu0 0.0
    %3977 = vmatprep.mubr.f32.mxu0 0.0
    %v3978 = vand.u32 %v3830, 4294901760
    %3979 = vmatmul.mubr.f32.gmra.mrb[0].mxu0 %v3978
    %v3980 = vpop.f32.mrb[0].mxu0
    %v3981 = vadd.f32 %v3905, %v3980
    %v3982 = vpop.f32.mrb[0].mxu0
    %3983 = vdwg.mxu0
    %3984 = vmatprep.subr.mxu0 0.0
    %v3985 = vand.u32 %v3827, 4294901760
    %v3986 = vsub.f32 %v3827, %v3985
    %3987 = vmatpush1.msra.mxu0 %v3986
    %3988 = vmatprep.subr.mxu0 0.0
    %3989 = vmatpush1.msra.mxu0 0.0
    %3990 = vmatprep.subr.mxu0 0.0
    %3991 = vmatpush1.msra.mxu0 0.0
    %3992 = vmatprep.subr.mxu0 0.0
    %3993 = vmatpush1.msra.mxu0 0.0
    %3994 = vmatprep.subr.mxu0 0.0
    %3995 = vmatpush1.msra.mxu0 0.0
    %3996 = vmatprep.subr.mxu0 0.0
    %3997 = vmatpush1.msra.mxu0 0.0
    %3998 = vmatprep.subr.mxu0 0.0
    %3999 = vmatpush1.msra.mxu0 0.0
    %4000 = vmatprep.subr.mxu0 0.0
    %4001 = vmatpush1.msra.mxu0 0.0
    %4002 = vmatprep.subr.mxu0 0.0
    %4003 = vmatpush1.msra.mxu0 0.0
    %4004 = vmatprep.subr.mxu0 0.0
    %4005 = vmatpush1.msra.mxu0 0.0
    %4006 = vmatprep.subr.mxu0 0.0
    %4007 = vmatpush1.msra.mxu0 0.0
    %4008 = vmatprep.subr.mxu0 0.0
    %4009 = vmatpush1.msra.mxu0 0.0
    %4010 = vmatprep.subr.mxu0 0.0
    %4011 = vmatpush1.msra.mxu0 0.0
    %4012 = vmatprep.subr.mxu0 0.0
    %4013 = vmatpush1.msra.mxu0 0.0
    %4014 = vmatprep.subr.mxu0 0.0
    %4015 = vmatpush1.msra.mxu0 0.0
    %4016 = vmatprep.subr.mxu0 0.0
    %4017 = vmatpush1.msra.mxu0 0.0
    %4018 = vmatprep.subr.mxu0 0.0
    %4019 = vmatpush1.msra.mxu0 0.0
    %4020 = vmatprep.subr.mxu0 0.0
    %4021 = vmatpush1.msra.mxu0 0.0
    %4022 = vmatprep.subr.mxu0 0.0
    %4023 = vmatpush1.msra.mxu0 0.0
    %4024 = vmatprep.subr.mxu0 0.0
    %4025 = vmatpush1.msra.mxu0 0.0
    %4026 = vmatprep.subr.mxu0 0.0
    %4027 = vmatpush1.msra.mxu0 0.0
    %4028 = vmatprep.subr.mxu0 0.0
    %4029 = vmatpush1.msra.mxu0 0.0
    %4030 = vmatprep.subr.mxu0 0.0
    %4031 = vmatpush1.msra.mxu0 0.0
    %4032 = vmatprep.subr.mxu0 0.0
    %4033 = vmatpush1.msra.mxu0 0.0
    %4034 = vmatprep.subr.mxu0 0.0
    %4035 = vmatpush1.msra.mxu0 0.0
    %4036 = vmatprep.subr.mxu0 0.0
    %4037 = vmatpush1.msra.mxu0 0.0
    %4038 = vmatprep.subr.mxu0 0.0
    %4039 = vmatpush1.msra.mxu0 0.0
    %4040 = vmatprep.subr.mxu0 0.0
    %4041 = vmatpush1.msra.mxu0 0.0
    %4042 = vmatprep.subr.mxu0 0.0
    %4043 = vmatpush1.msra.mxu0 0.0
    %4044 = vmatprep.subr.mxu0 0.0
    %4045 = vmatpush1.msra.mxu0 0.0
    %4046 = vmatprep.subr.mxu0 0.0
    %4047 = vmatpush1.msra.mxu0 0.0
    %4048 = vmatprep.subr.mxu0 0.0
    %4049 = vmatpush1.msra.mxu0 0.0
    %4050 = vmatprep.mubr.f32.mxu0 0.0
    %v4051 = vand.u32 %v3830, 4294901760
    %v4052 = vsub.f32 %v3830, %v4051
    %4053 = vmatmul.mubr.f32.gmra.mrb[0].mxu0 %v4052
    %v4054 = vpop.f32.mrb[0].mxu0
    %v4055 = vadd.f32 %v3981, %v4054
    %v4056 = vpop.f32.mrb[0].mxu0
    %4057 = vdwg.mxu0
    %4058 = vmatprep.subr.mxu0 0.0
    %v4059 = vand.u32 %v3827, 4294901760
    %4060 = vmatpush1.msra.mxu0 %v4059
    %4061 = vmatprep.subr.mxu0 0.0
    %4062 = vmatpush1.msra.mxu0 0.0
    %4063 = vmatprep.subr.mxu0 0.0
    %4064 = vmatpush1.msra.mxu0 0.0
    %4065 = vmatprep.subr.mxu0 0.0
    %4066 = vmatpush1.msra.mxu0 0.0
    %4067 = vmatprep.subr.mxu0 0.0
    %4068 = vmatpush1.msra.mxu0 0.0
    %4069 = vmatprep.subr.mxu0 0.0
    %4070 = vmatpush1.msra.mxu0 0.0
    %4071 = vmatprep.subr.mxu0 0.0
    %4072 = vmatpush1.msra.mxu0 0.0
    %4073 = vmatprep.subr.mxu0 0.0
    %4074 = vmatpush1.msra.mxu0 0.0
    %4075 = vmatprep.subr.mxu0 0.0
    %4076 = vmatpush1.msra.mxu0 0.0
    %4077 = vmatprep.subr.mxu0 0.0
    %4078 = vmatpush1.msra.mxu0 0.0
    %4079 = vmatprep.subr.mxu0 0.0
    %4080 = vmatpush1.msra.mxu0 0.0
    %4081 = vmatprep.subr.mxu0 0.0
    %4082 = vmatpush1.msra.mxu0 0.0
    %4083 = vmatprep.subr.mxu0 0.0
    %4084 = vmatpush1.msra.mxu0 0.0
    %4085 = vmatprep.subr.mxu0 0.0
    %4086 = vmatpush1.msra.mxu0 0.0
    %4087 = vmatprep.subr.mxu0 0.0
    %4088 = vmatpush1.msra.mxu0 0.0
    %4089 = vmatprep.subr.mxu0 0.0
    %4090 = vmatpush1.msra.mxu0 0.0
    %4091 = vmatprep.subr.mxu0 0.0
    %4092 = vmatpush1.msra.mxu0 0.0
    %4093 = vmatprep.subr.mxu0 0.0
    %4094 = vmatpush1.msra.mxu0 0.0
    %4095 = vmatprep.subr.mxu0 0.0
    %4096 = vmatpush1.msra.mxu0 0.0
    %4097 = vmatprep.subr.mxu0 0.0
    %4098 = vmatpush1.msra.mxu0 0.0
    %4099 = vmatprep.subr.mxu0 0.0
    %4100 = vmatpush1.msra.mxu0 0.0
    %4101 = vmatprep.subr.mxu0 0.0
    %4102 = vmatpush1.msra.mxu0 0.0
    %4103 = vmatprep.subr.mxu0 0.0
    %4104 = vmatpush1.msra.mxu0 0.0
    %4105 = vmatprep.subr.mxu0 0.0
    %4106 = vmatpush1.msra.mxu0 0.0
    %4107 = vmatprep.subr.mxu0 0.0
    %4108 = vmatpush1.msra.mxu0 0.0
    %4109 = vmatprep.subr.mxu0 0.0
    %4110 = vmatpush1.msra.mxu0 0.0
    %4111 = vmatprep.subr.mxu0 0.0
    %4112 = vmatpush1.msra.mxu0 0.0
    %4113 = vmatprep.subr.mxu0 0.0
    %4114 = vmatpush1.msra.mxu0 0.0
    %4115 = vmatprep.subr.mxu0 0.0
    %4116 = vmatpush1.msra.mxu0 0.0
    %4117 = vmatprep.subr.mxu0 0.0
    %4118 = vmatpush1.msra.mxu0 0.0
    %4119 = vmatprep.subr.mxu0 0.0
    %4120 = vmatpush1.msra.mxu0 0.0
    %4121 = vmatprep.subr.mxu0 0.0
    %4122 = vmatpush1.msra.mxu0 0.0
    %4123 = vmatprep.mubr.f32.mxu0 0.0
    %v4124 = vand.u32 %v3830, 4294901760
    %v4125 = vsub.f32 %v3830, %v4124
    %v4126 = vand.u32 %v4125, 4294901760
    %4127 = vmatmul.mubr.f32.gmra.mrb[0].mxu0 %v4126
    %v4128 = vpop.f32.mrb[0].mxu0
    %v4129 = vadd.f32 %v4055, %v4128
    %v4130 = vpop.f32.mrb[0].mxu0
    %4131 = vdwg.mxu0
    %4132 = vmatprep.subr.mxu0 0.0
    %v4133 = vand.u32 %v3827, 4294901760
    %v4134 = vsub.f32 %v3827, %v4133
    %v4135 = vand.u32 %v4134, 4294901760
    %4136 = vmatpush1.msra.mxu0 %v4135
    %4137 = vmatprep.subr.mxu0 0.0
    %4138 = vmatpush1.msra.mxu0 0.0
    %4139 = vmatprep.subr.mxu0 0.0
    %4140 = vmatpush1.msra.mxu0 0.0
    %4141 = vmatprep.subr.mxu0 0.0
    %4142 = vmatpush1.msra.mxu0 0.0
    %4143 = vmatprep.subr.mxu0 0.0
    %4144 = vmatpush1.msra.mxu0 0.0
    %4145 = vmatprep.subr.mxu0 0.0
    %4146 = vmatpush1.msra.mxu0 0.0
    %4147 = vmatprep.subr.mxu0 0.0
    %4148 = vmatpush1.msra.mxu0 0.0
    %4149 = vmatprep.subr.mxu0 0.0
    %4150 = vmatpush1.msra.mxu0 0.0
    %4151 = vmatprep.subr.mxu0 0.0
    %4152 = vmatpush1.msra.mxu0 0.0
    %4153 = vmatprep.subr.mxu0 0.0
    %4154 = vmatpush1.msra.mxu0 0.0
    %4155 = vmatprep.subr.mxu0 0.0
    %4156 = vmatpush1.msra.mxu0 0.0
    %4157 = vmatprep.subr.mxu0 0.0
    %4158 = vmatpush1.msra.mxu0 0.0
    %4159 = vmatprep.subr.mxu0 0.0
    %4160 = vmatpush1.msra.mxu0 0.0
    %4161 = vmatprep.subr.mxu0 0.0
    %4162 = vmatpush1.msra.mxu0 0.0
    %4163 = vmatprep.subr.mxu0 0.0
    %4164 = vmatpush1.msra.mxu0 0.0
    %4165 = vmatprep.subr.mxu0 0.0
    %4166 = vmatpush1.msra.mxu0 0.0
    %4167 = vmatprep.subr.mxu0 0.0
    %4168 = vmatpush1.msra.mxu0 0.0
    %4169 = vmatprep.subr.mxu0 0.0
    %4170 = vmatpush1.msra.mxu0 0.0
    %4171 = vmatprep.subr.mxu0 0.0
    %4172 = vmatpush1.msra.mxu0 0.0
    %4173 = vmatprep.subr.mxu0 0.0
    %4174 = vmatpush1.msra.mxu0 0.0
    %4175 = vmatprep.subr.mxu0 0.0
    %4176 = vmatpush1.msra.mxu0 0.0
    %4177 = vmatprep.subr.mxu0 0.0
    %4178 = vmatpush1.msra.mxu0 0.0
    %4179 = vmatprep.subr.mxu0 0.0
    %4180 = vmatpush1.msra.mxu0 0.0
    %4181 = vmatprep.subr.mxu0 0.0
    %4182 = vmatpush1.msra.mxu0 0.0
    %4183 = vmatprep.subr.mxu0 0.0
    %4184 = vmatpush1.msra.mxu0 0.0
    %4185 = vmatprep.subr.mxu0 0.0
    %4186 = vmatpush1.msra.mxu0 0.0
    %4187 = vmatprep.subr.mxu0 0.0
    %4188 = vmatpush1.msra.mxu0 0.0
    %4189 = vmatprep.subr.mxu0 0.0
    %4190 = vmatpush1.msra.mxu0 0.0
    %4191 = vmatprep.subr.mxu0 0.0
    %4192 = vmatpush1.msra.mxu0 0.0
    %4193 = vmatprep.subr.mxu0 0.0
    %4194 = vmatpush1.msra.mxu0 0.0
    %4195 = vmatprep.subr.mxu0 0.0
    %4196 = vmatpush1.msra.mxu0 0.0
    %4197 = vmatprep.subr.mxu0 0.0
    %4198 = vmatpush1.msra.mxu0 0.0
    %4199 = vmatprep.mubr.f32.mxu0 0.0
    %v4200 = vand.u32 %v3830, 4294901760
    %4201 = vmatmul.mubr.f32.gmra.mrb[0].mxu0 %v4200
    %v4202 = vpop.f32.mrb[0].mxu0
    %v4203 = vadd.f32 %v4129, %v4202
    %v4204 = vpop.f32.mrb[0].mxu0
    %4205 = vdwg.mxu0
    %4206 = vmatprep.subr.mxu0 0.0
    %v4207 = vand.u32 %v3827, 4294901760
    %4208 = vmatpush1.msra.mxu0 %v4207
    %4209 = vmatprep.subr.mxu0 0.0
    %4210 = vmatpush1.msra.mxu0 0.0
    %4211 = vmatprep.subr.mxu0 0.0
    %4212 = vmatpush1.msra.mxu0 0.0
    %4213 = vmatprep.subr.mxu0 0.0
    %4214 = vmatpush1.msra.mxu0 0.0
    %4215 = vmatprep.subr.mxu0 0.0
    %4216 = vmatpush1.msra.mxu0 0.0
    %4217 = vmatprep.subr.mxu0 0.0
    %4218 = vmatpush1.msra.mxu0 0.0
    %4219 = vmatprep.subr.mxu0 0.0
    %4220 = vmatpush1.msra.mxu0 0.0
    %4221 = vmatprep.subr.mxu0 0.0
    %4222 = vmatpush1.msra.mxu0 0.0
    %4223 = vmatprep.subr.mxu0 0.0
    %4224 = vmatpush1.msra.mxu0 0.0
    %4225 = vmatprep.subr.mxu0 0.0
    %4226 = vmatpush1.msra.mxu0 0.0
    %4227 = vmatprep.subr.mxu0 0.0
    %4228 = vmatpush1.msra.mxu0 0.0
    %4229 = vmatprep.subr.mxu0 0.0
    %4230 = vmatpush1.msra.mxu0 0.0
    %4231 = vmatprep.subr.mxu0 0.0
    %4232 = vmatpush1.msra.mxu0 0.0
    %4233 = vmatprep.subr.mxu0 0.0
    %4234 = vmatpush1.msra.mxu0 0.0
    %4235 = vmatprep.subr.mxu0 0.0
    %4236 = vmatpush1.msra.mxu0 0.0
    %4237 = vmatprep.subr.mxu0 0.0
    %4238 = vmatpush1.msra.mxu0 0.0
    %4239 = vmatprep.subr.mxu0 0.0
    %4240 = vmatpush1.msra.mxu0 0.0
    %4241 = vmatprep.subr.mxu0 0.0
    %4242 = vmatpush1.msra.mxu0 0.0
    %4243 = vmatprep.subr.mxu0 0.0
    %4244 = vmatpush1.msra.mxu0 0.0
    %4245 = vmatprep.subr.mxu0 0.0
    %4246 = vmatpush1.msra.mxu0 0.0
    %4247 = vmatprep.subr.mxu0 0.0
    %4248 = vmatpush1.msra.mxu0 0.0
    %4249 = vmatprep.subr.mxu0 0.0
    %4250 = vmatpush1.msra.mxu0 0.0
    %4251 = vmatprep.subr.mxu0 0.0
    %4252 = vmatpush1.msra.mxu0 0.0
    %4253 = vmatprep.subr.mxu0 0.0
    %4254 = vmatpush1.msra.mxu0 0.0
    %4255 = vmatprep.subr.mxu0 0.0
    %4256 = vmatpush1.msra.mxu0 0.0
    %4257 = vmatprep.subr.mxu0 0.0
    %4258 = vmatpush1.msra.mxu0 0.0
    %4259 = vmatprep.subr.mxu0 0.0
    %4260 = vmatpush1.msra.mxu0 0.0
    %4261 = vmatprep.subr.mxu0 0.0
    %4262 = vmatpush1.msra.mxu0 0.0
    %4263 = vmatprep.subr.mxu0 0.0
    %4264 = vmatpush1.msra.mxu0 0.0
    %4265 = vmatprep.subr.mxu0 0.0
    %4266 = vmatpush1.msra.mxu0 0.0
    %4267 = vmatprep.subr.mxu0 0.0
    %4268 = vmatpush1.msra.mxu0 0.0
    %4269 = vmatprep.subr.mxu0 0.0
    %4270 = vmatpush1.msra.mxu0 0.0
    %4271 = vmatprep.mubr.f32.mxu0 0.0
    %v4272 = vand.u32 %v3830, 4294901760
    %4273 = vmatmul.mubr.f32.gmra.mrb[0].mxu0 %v4272
    %v4274 = vpop.f32.mrb[0].mxu0
    %v4275 = vadd.f32 %v4203, %v4274
    %v4276 = vpop.f32.mrb[0].mxu0
    %4277 = vdwg.mxu0
    %s4278 = scalar_lea.vmem [#allocation7], 8
    %v4279 = vld [vmem:[%s4278] sm:$0xff]
    %v4281 = vsel %vm613, %v3823, 0
    %v4284 = vsel %vm613, %v4275, 0
    %4286 = vmatprep.subr.mxu0 0.0
    %v4287 = vand.u32 %v4279, 4294901760
    %4288 = vmatpush1.msra.mxu0 %v4287
    %4289 = vmatprep.subr.mxu0 0.0
    %4290 = vmatpush1.msra.mxu0 0.0
    %4291 = vmatprep.subr.mxu0 0.0
    %4292 = vmatpush1.msra.mxu0 0.0
    %4293 = vmatprep.subr.mxu0 0.0
    %4294 = vmatpush1.msra.mxu0 0.0
    %4295 = vmatprep.subr.mxu0 0.0
    %4296 = vmatpush1.msra.mxu0 0.0
    %4297 = vmatprep.subr.mxu0 0.0
    %4298 = vmatpush1.msra.mxu0 0.0
    %4299 = vmatprep.subr.mxu0 0.0
    %4300 = vmatpush1.msra.mxu0 0.0
    %4301 = vmatprep.subr.mxu0 0.0
    %4302 = vmatpush1.msra.mxu0 0.0
    %4303 = vmatprep.subr.mxu0 0.0
    %4304 = vmatpush1.msra.mxu0 0.0
    %4305 = vmatprep.subr.mxu0 0.0
    %4306 = vmatpush1.msra.mxu0 0.0
    %4307 = vmatprep.subr.mxu0 0.0
    %4308 = vmatpush1.msra.mxu0 0.0
    %4309 = vmatprep.subr.mxu0 0.0
    %4310 = vmatpush1.msra.mxu0 0.0
    %4311 = vmatprep.subr.mxu0 0.0
    %4312 = vmatpush1.msra.mxu0 0.0
    %4313 = vmatprep.subr.mxu0 0.0
    %4314 = vmatpush1.msra.mxu0 0.0
    %4315 = vmatprep.subr.mxu0 0.0
    %4316 = vmatpush1.msra.mxu0 0.0
    %4317 = vmatprep.subr.mxu0 0.0
    %4318 = vmatpush1.msra.mxu0 0.0
    %4319 = vmatprep.subr.mxu0 0.0
    %4320 = vmatpush1.msra.mxu0 0.0
    %4321 = vmatprep.subr.mxu0 0.0
    %4322 = vmatpush1.msra.mxu0 0.0
    %4323 = vmatprep.subr.mxu0 0.0
    %4324 = vmatpush1.msra.mxu0 0.0
    %4325 = vmatprep.subr.mxu0 0.0
    %4326 = vmatpush1.msra.mxu0 0.0
    %4327 = vmatprep.subr.mxu0 0.0
    %4328 = vmatpush1.msra.mxu0 0.0
    %4329 = vmatprep.subr.mxu0 0.0
    %4330 = vmatpush1.msra.mxu0 0.0
    %4331 = vmatprep.subr.mxu0 0.0
    %4332 = vmatpush1.msra.mxu0 0.0
    %4333 = vmatprep.subr.mxu0 0.0
    %4334 = vmatpush1.msra.mxu0 0.0
    %4335 = vmatprep.subr.mxu0 0.0
    %4336 = vmatpush1.msra.mxu0 0.0
    %4337 = vmatprep.subr.mxu0 0.0
    %4338 = vmatpush1.msra.mxu0 0.0
    %4339 = vmatprep.subr.mxu0 0.0
    %4340 = vmatpush1.msra.mxu0 0.0
    %4341 = vmatprep.subr.mxu0 0.0
    %4342 = vmatpush1.msra.mxu0 0.0
    %4343 = vmatprep.subr.mxu0 0.0
    %4344 = vmatpush1.msra.mxu0 0.0
    %4345 = vmatprep.subr.mxu0 0.0
    %4346 = vmatpush1.msra.mxu0 0.0
    %4347 = vmatprep.subr.mxu0 0.0
    %4348 = vmatpush1.msra.mxu0 0.0
    %4349 = vmatprep.subr.mxu0 0.0
    %4350 = vmatpush1.msra.mxu0 0.0
    %4351 = vmatprep.mubr.f32.mxu0 0.0
    %v4352 = vand.u32 %v4281, 4294901760
    %v4353 = vsub.f32 %v4281, %v4352
    %v4354 = vand.u32 %v4353, 4294901760
    %v4355 = vsub.f32 %v4353, %v4354
    %v4356 = vand.u32 %v4355, 4294901760
    %4357 = vmatmul.mubr.f32.gmra.mrb[0].mxu0 %v4356
    %v4358 = vpop.f32.mrb[0].mxu0
    %v4359 = vadd.f32 0.0, %v4358
    %v4360 = vpop.f32.mrb[0].mxu0
    %4361 = vmatprep.mubr.f32.mxu0 0.0
    %v4362 = vand.u32 %v4284, 4294901760
    %v4363 = vsub.f32 %v4284, %v4362
    %v4364 = vand.u32 %v4363, 4294901760
    %v4365 = vsub.f32 %v4363, %v4364
    %v4366 = vand.u32 %v4365, 4294901760
    %4367 = vmatmul.mubr.f32.gmra.mrb[0].mxu0 %v4366
    %v4368 = vpop.f32.mrb[0].mxu0
    %v4369 = vadd.f32 0.0, %v4368
    %v4370 = vpop.f32.mrb[0].mxu0
    %4371 = vdwg.mxu0
    %4372 = vmatprep.subr.mxu0 0.0
    %v4373 = vand.u32 %v4279, 4294901760
    %v4374 = vsub.f32 %v4279, %v4373
    %v4375 = vand.u32 %v4374, 4294901760
    %v4376 = vsub.f32 %v4374, %v4375
    %v4377 = vand.u32 %v4376, 4294901760
    %4378 = vmatpush1.msra.mxu0 %v4377
    %4379 = vmatprep.subr.mxu0 0.0
    %4380 = vmatpush1.msra.mxu0 0.0
    %4381 = vmatprep.subr.mxu0 0.0
    %4382 = vmatpush1.msra.mxu0 0.0
    %4383 = vmatprep.subr.mxu0 0.0
    %4384 = vmatpush1.msra.mxu0 0.0
    %4385 = vmatprep.subr.mxu0 0.0
    %4386 = vmatpush1.msra.mxu0 0.0
    %4387 = vmatprep.subr.mxu0 0.0
    %4388 = vmatpush1.msra.mxu0 0.0
    %4389 = vmatprep.subr.mxu0 0.0
    %4390 = vmatpush1.msra.mxu0 0.0
    %4391 = vmatprep.subr.mxu0 0.0
    %4392 = vmatpush1.msra.mxu0 0.0
    %4393 = vmatprep.subr.mxu0 0.0
    %4394 = vmatpush1.msra.mxu0 0.0
    %4395 = vmatprep.subr.mxu0 0.0
    %4396 = vmatpush1.msra.mxu0 0.0
    %4397 = vmatprep.subr.mxu0 0.0
    %4398 = vmatpush1.msra.mxu0 0.0
    %4399 = vmatprep.subr.mxu0 0.0
    %4400 = vmatpush1.msra.mxu0 0.0
    %4401 = vmatprep.subr.mxu0 0.0
    %4402 = vmatpush1.msra.mxu0 0.0
    %4403 = vmatprep.subr.mxu0 0.0
    %4404 = vmatpush1.msra.mxu0 0.0
    %4405 = vmatprep.subr.mxu0 0.0
    %4406 = vmatpush1.msra.mxu0 0.0
    %4407 = vmatprep.subr.mxu0 0.0
    %4408 = vmatpush1.msra.mxu0 0.0
    %4409 = vmatprep.subr.mxu0 0.0
    %4410 = vmatpush1.msra.mxu0 0.0
    %4411 = vmatprep.subr.mxu0 0.0
    %4412 = vmatpush1.msra.mxu0 0.0
    %4413 = vmatprep.subr.mxu0 0.0
    %4414 = vmatpush1.msra.mxu0 0.0
    %4415 = vmatprep.subr.mxu0 0.0
    %4416 = vmatpush1.msra.mxu0 0.0
    %4417 = vmatprep.subr.mxu0 0.0
    %4418 = vmatpush1.msra.mxu0 0.0
    %4419 = vmatprep.subr.mxu0 0.0
    %4420 = vmatpush1.msra.mxu0 0.0
    %4421 = vmatprep.subr.mxu0 0.0
    %4422 = vmatpush1.msra.mxu0 0.0
    %4423 = vmatprep.subr.mxu0 0.0
    %4424 = vmatpush1.msra.mxu0 0.0
    %4425 = vmatprep.subr.mxu0 0.0
    %4426 = vmatpush1.msra.mxu0 0.0
    %4427 = vmatprep.subr.mxu0 0.0
    %4428 = vmatpush1.msra.mxu0 0.0
    %4429 = vmatprep.subr.mxu0 0.0
    %4430 = vmatpush1.msra.mxu0 0.0
    %4431 = vmatprep.subr.mxu0 0.0
    %4432 = vmatpush1.msra.mxu0 0.0
    %4433 = vmatprep.subr.mxu0 0.0
    %4434 = vmatpush1.msra.mxu0 0.0
    %4435 = vmatprep.subr.mxu0 0.0
    %4436 = vmatpush1.msra.mxu0 0.0
    %4437 = vmatprep.subr.mxu0 0.0
    %4438 = vmatpush1.msra.mxu0 0.0
    %4439 = vmatprep.subr.mxu0 0.0
    %4440 = vmatpush1.msra.mxu0 0.0
    %4441 = vmatprep.mubr.f32.mxu0 0.0
    %v4442 = vand.u32 %v4281, 4294901760
    %4443 = vmatmul.mubr.f32.gmra.mrb[0].mxu0 %v4442
    %v4444 = vpop.f32.mrb[0].mxu0
    %v4445 = vadd.f32 %v4359, %v4444
    %v4446 = vpop.f32.mrb[0].mxu0
    %4447 = vmatprep.mubr.f32.mxu0 0.0
    %v4448 = vand.u32 %v4284, 4294901760
    %4449 = vmatmul.mubr.f32.gmra.mrb[0].mxu0 %v4448
    %v4450 = vpop.f32.mrb[0].mxu0
    %v4451 = vadd.f32 %v4369, %v4450
    %v4452 = vpop.f32.mrb[0].mxu0
    %4453 = vdwg.mxu0
    %4454 = vmatprep.subr.mxu0 0.0
    %v4455 = vand.u32 %v4279, 4294901760
    %v4456 = vsub.f32 %v4279, %v4455
    %4457 = vmatpush1.msra.mxu0 %v4456
    %4458 = vmatprep.subr.mxu0 0.0
    %4459 = vmatpush1.msra.mxu0 0.0
    %4460 = vmatprep.subr.mxu0 0.0
    %4461 = vmatpush1.msra.mxu0 0.0
    %4462 = vmatprep.subr.mxu0 0.0
    %4463 = vmatpush1.msra.mxu0 0.0
    %4464 = vmatprep.subr.mxu0 0.0
    %4465 = vmatpush1.msra.mxu0 0.0
    %4466 = vmatprep.subr.mxu0 0.0
    %4467 = vmatpush1.msra.mxu0 0.0
    %4468 = vmatprep.subr.mxu0 0.0
    %4469 = vmatpush1.msra.mxu0 0.0
    %4470 = vmatprep.subr.mxu0 0.0
    %4471 = vmatpush1.msra.mxu0 0.0
    %4472 = vmatprep.subr.mxu0 0.0
    %4473 = vmatpush1.msra.mxu0 0.0
    %4474 = vmatprep.subr.mxu0 0.0
    %4475 = vmatpush1.msra.mxu0 0.0
    %4476 = vmatprep.subr.mxu0 0.0
    %4477 = vmatpush1.msra.mxu0 0.0
    %4478 = vmatprep.subr.mxu0 0.0
    %4479 = vmatpush1.msra.mxu0 0.0
    %4480 = vmatprep.subr.mxu0 0.0
    %4481 = vmatpush1.msra.mxu0 0.0
    %4482 = vmatprep.subr.mxu0 0.0
    %4483 = vmatpush1.msra.mxu0 0.0
    %4484 = vmatprep.subr.mxu0 0.0
    %4485 = vmatpush1.msra.mxu0 0.0
    %4486 = vmatprep.subr.mxu0 0.0
    %4487 = vmatpush1.msra.mxu0 0.0
    %4488 = vmatprep.subr.mxu0 0.0
    %4489 = vmatpush1.msra.mxu0 0.0
    %4490 = vmatprep.subr.mxu0 0.0
    %4491 = vmatpush1.msra.mxu0 0.0
    %4492 = vmatprep.subr.mxu0 0.0
    %4493 = vmatpush1.msra.mxu0 0.0
    %4494 = vmatprep.subr.mxu0 0.0
    %4495 = vmatpush1.msra.mxu0 0.0
    %4496 = vmatprep.subr.mxu0 0.0
    %4497 = vmatpush1.msra.mxu0 0.0
    %4498 = vmatprep.subr.mxu0 0.0
    %4499 = vmatpush1.msra.mxu0 0.0
    %4500 = vmatprep.subr.mxu0 0.0
    %4501 = vmatpush1.msra.mxu0 0.0
    %4502 = vmatprep.subr.mxu0 0.0
    %4503 = vmatpush1.msra.mxu0 0.0
    %4504 = vmatprep.subr.mxu0 0.0
    %4505 = vmatpush1.msra.mxu0 0.0
    %4506 = vmatprep.subr.mxu0 0.0
    %4507 = vmatpush1.msra.mxu0 0.0
    %4508 = vmatprep.subr.mxu0 0.0
    %4509 = vmatpush1.msra.mxu0 0.0
    %4510 = vmatprep.subr.mxu0 0.0
    %4511 = vmatpush1.msra.mxu0 0.0
    %4512 = vmatprep.subr.mxu0 0.0
    %4513 = vmatpush1.msra.mxu0 0.0
    %4514 = vmatprep.subr.mxu0 0.0
    %4515 = vmatpush1.msra.mxu0 0.0
    %4516 = vmatprep.subr.mxu0 0.0
    %4517 = vmatpush1.msra.mxu0 0.0
    %4518 = vmatprep.subr.mxu0 0.0
    %4519 = vmatpush1.msra.mxu0 0.0
    %4520 = vmatprep.mubr.f32.mxu0 0.0
    %v4521 = vand.u32 %v4281, 4294901760
    %v4522 = vsub.f32 %v4281, %v4521
    %4523 = vmatmul.mubr.f32.gmra.mrb[0].mxu0 %v4522
    %v4524 = vpop.f32.mrb[0].mxu0
    %v4525 = vadd.f32 %v4445, %v4524
    %v4526 = vpop.f32.mrb[0].mxu0
    %4527 = vmatprep.mubr.f32.mxu0 0.0
    %v4528 = vand.u32 %v4284, 4294901760
    %v4529 = vsub.f32 %v4284, %v4528
    %4530 = vmatmul.mubr.f32.gmra.mrb[0].mxu0 %v4529
    %v4531 = vpop.f32.mrb[0].mxu0
    %v4532 = vadd.f32 %v4451, %v4531
    %v4533 = vpop.f32.mrb[0].mxu0
    %4534 = vdwg.mxu0
    %4535 = vmatprep.subr.mxu0 0.0
    %v4536 = vand.u32 %v4279, 4294901760
    %4537 = vmatpush1.msra.mxu0 %v4536
    %4538 = vmatprep.subr.mxu0 0.0
    %4539 = vmatpush1.msra.mxu0 0.0
    %4540 = vmatprep.subr.mxu0 0.0
    %4541 = vmatpush1.msra.mxu0 0.0
    %4542 = vmatprep.subr.mxu0 0.0
    %4543 = vmatpush1.msra.mxu0 0.0
    %4544 = vmatprep.subr.mxu0 0.0
    %4545 = vmatpush1.msra.mxu0 0.0
    %4546 = vmatprep.subr.mxu0 0.0
    %4547 = vmatpush1.msra.mxu0 0.0
    %4548 = vmatprep.subr.mxu0 0.0
    %4549 = vmatpush1.msra.mxu0 0.0
    %4550 = vmatprep.subr.mxu0 0.0
    %4551 = vmatpush1.msra.mxu0 0.0
    %4552 = vmatprep.subr.mxu0 0.0
    %4553 = vmatpush1.msra.mxu0 0.0
    %4554 = vmatprep.subr.mxu0 0.0
    %4555 = vmatpush1.msra.mxu0 0.0
    %4556 = vmatprep.subr.mxu0 0.0
    %4557 = vmatpush1.msra.mxu0 0.0
    %4558 = vmatprep.subr.mxu0 0.0
    %4559 = vmatpush1.msra.mxu0 0.0
    %4560 = vmatprep.subr.mxu0 0.0
    %4561 = vmatpush1.msra.mxu0 0.0
    %4562 = vmatprep.subr.mxu0 0.0
    %4563 = vmatpush1.msra.mxu0 0.0
    %4564 = vmatprep.subr.mxu0 0.0
    %4565 = vmatpush1.msra.mxu0 0.0
    %4566 = vmatprep.subr.mxu0 0.0
    %4567 = vmatpush1.msra.mxu0 0.0
    %4568 = vmatprep.subr.mxu0 0.0
    %4569 = vmatpush1.msra.mxu0 0.0
    %4570 = vmatprep.subr.mxu0 0.0
    %4571 = vmatpush1.msra.mxu0 0.0
    %4572 = vmatprep.subr.mxu0 0.0
    %4573 = vmatpush1.msra.mxu0 0.0
    %4574 = vmatprep.subr.mxu0 0.0
    %4575 = vmatpush1.msra.mxu0 0.0
    %4576 = vmatprep.subr.mxu0 0.0
    %4577 = vmatpush1.msra.mxu0 0.0
    %4578 = vmatprep.subr.mxu0 0.0
    %4579 = vmatpush1.msra.mxu0 0.0
    %4580 = vmatprep.subr.mxu0 0.0
    %4581 = vmatpush1.msra.mxu0 0.0
    %4582 = vmatprep.subr.mxu0 0.0
    %4583 = vmatpush1.msra.mxu0 0.0
    %4584 = vmatprep.subr.mxu0 0.0
    %4585 = vmatpush1.msra.mxu0 0.0
    %4586 = vmatprep.subr.mxu0 0.0
    %4587 = vmatpush1.msra.mxu0 0.0
    %4588 = vmatprep.subr.mxu0 0.0
    %4589 = vmatpush1.msra.mxu0 0.0
    %4590 = vmatprep.subr.mxu0 0.0
    %4591 = vmatpush1.msra.mxu0 0.0
    %4592 = vmatprep.subr.mxu0 0.0
    %4593 = vmatpush1.msra.mxu0 0.0
    %4594 = vmatprep.subr.mxu0 0.0
    %4595 = vmatpush1.msra.mxu0 0.0
    %4596 = vmatprep.subr.mxu0 0.0
    %4597 = vmatpush1.msra.mxu0 0.0
    %4598 = vmatprep.subr.mxu0 0.0
    %4599 = vmatpush1.msra.mxu0 0.0
    %4600 = vmatprep.mubr.f32.mxu0 0.0
    %v4601 = vand.u32 %v4281, 4294901760
    %v4602 = vsub.f32 %v4281, %v4601
    %v4603 = vand.u32 %v4602, 4294901760
    %4604 = vmatmul.mubr.f32.gmra.mrb[0].mxu0 %v4603
    %v4605 = vpop.f32.mrb[0].mxu0
    %v4606 = vadd.f32 %v4525, %v4605
    %v4607 = vpop.f32.mrb[0].mxu0
    %4608 = vmatprep.mubr.f32.mxu0 0.0
    %v4609 = vand.u32 %v4284, 4294901760
    %v4610 = vsub.f32 %v4284, %v4609
    %v4611 = vand.u32 %v4610, 4294901760
    %4612 = vmatmul.mubr.f32.gmra.mrb[0].mxu0 %v4611
    %v4613 = vpop.f32.mrb[0].mxu0
    %v4614 = vadd.f32 %v4532, %v4613
    %v4615 = vpop.f32.mrb[0].mxu0
    %4616 = vdwg.mxu0
    %4617 = vmatprep.subr.mxu0 0.0
    %v4618 = vand.u32 %v4279, 4294901760
    %v4619 = vsub.f32 %v4279, %v4618
    %v4620 = vand.u32 %v4619, 4294901760
    %4621 = vmatpush1.msra.mxu0 %v4620
    %4622 = vmatprep.subr.mxu0 0.0
    %4623 = vmatpush1.msra.mxu0 0.0
    %4624 = vmatprep.subr.mxu0 0.0
    %4625 = vmatpush1.msra.mxu0 0.0
    %4626 = vmatprep.subr.mxu0 0.0
    %4627 = vmatpush1.msra.mxu0 0.0
    %4628 = vmatprep.subr.mxu0 0.0
    %4629 = vmatpush1.msra.mxu0 0.0
    %4630 = vmatprep.subr.mxu0 0.0
    %4631 = vmatpush1.msra.mxu0 0.0
    %4632 = vmatprep.subr.mxu0 0.0
    %4633 = vmatpush1.msra.mxu0 0.0
    %4634 = vmatprep.subr.mxu0 0.0
    %4635 = vmatpush1.msra.mxu0 0.0
    %4636 = vmatprep.subr.mxu0 0.0
    %4637 = vmatpush1.msra.mxu0 0.0
    %4638 = vmatprep.subr.mxu0 0.0
    %4639 = vmatpush1.msra.mxu0 0.0
    %4640 = vmatprep.subr.mxu0 0.0
    %4641 = vmatpush1.msra.mxu0 0.0
    %4642 = vmatprep.subr.mxu0 0.0
    %4643 = vmatpush1.msra.mxu0 0.0
    %4644 = vmatprep.subr.mxu0 0.0
    %4645 = vmatpush1.msra.mxu0 0.0
    %4646 = vmatprep.subr.mxu0 0.0
    %4647 = vmatpush1.msra.mxu0 0.0
    %4648 = vmatprep.subr.mxu0 0.0
    %4649 = vmatpush1.msra.mxu0 0.0
    %4650 = vmatprep.subr.mxu0 0.0
    %4651 = vmatpush1.msra.mxu0 0.0
    %4652 = vmatprep.subr.mxu0 0.0
    %4653 = vmatpush1.msra.mxu0 0.0
    %4654 = vmatprep.subr.mxu0 0.0
    %4655 = vmatpush1.msra.mxu0 0.0
    %4656 = vmatprep.subr.mxu0 0.0
    %4657 = vmatpush1.msra.mxu0 0.0
    %4658 = vmatprep.subr.mxu0 0.0
    %4659 = vmatpush1.msra.mxu0 0.0
    %4660 = vmatprep.subr.mxu0 0.0
    %4661 = vmatpush1.msra.mxu0 0.0
    %4662 = vmatprep.subr.mxu0 0.0
    %4663 = vmatpush1.msra.mxu0 0.0
    %4664 = vmatprep.subr.mxu0 0.0
    %4665 = vmatpush1.msra.mxu0 0.0
    %4666 = vmatprep.subr.mxu0 0.0
    %4667 = vmatpush1.msra.mxu0 0.0
    %4668 = vmatprep.subr.mxu0 0.0
    %4669 = vmatpush1.msra.mxu0 0.0
    %4670 = vmatprep.subr.mxu0 0.0
    %4671 = vmatpush1.msra.mxu0 0.0
    %4672 = vmatprep.subr.mxu0 0.0
    %4673 = vmatpush1.msra.mxu0 0.0
    %4674 = vmatprep.subr.mxu0 0.0
    %4675 = vmatpush1.msra.mxu0 0.0
    %4676 = vmatprep.subr.mxu0 0.0
    %4677 = vmatpush1.msra.mxu0 0.0
    %4678 = vmatprep.subr.mxu0 0.0
    %4679 = vmatpush1.msra.mxu0 0.0
    %4680 = vmatprep.subr.mxu0 0.0
    %4681 = vmatpush1.msra.mxu0 0.0
    %4682 = vmatprep.subr.mxu0 0.0
    %4683 = vmatpush1.msra.mxu0 0.0
    %4684 = vmatprep.mubr.f32.mxu0 0.0
    %v4685 = vand.u32 %v4281, 4294901760
    %4686 = vmatmul.mubr.f32.gmra.mrb[0].mxu0 %v4685
    %v4687 = vpop.f32.mrb[0].mxu0
    %v4688 = vadd.f32 %v4606, %v4687
    %v4689 = vpop.f32.mrb[0].mxu0
    %4690 = vmatprep.mubr.f32.mxu0 0.0
    %v4691 = vand.u32 %v4284, 4294901760
    %4692 = vmatmul.mubr.f32.gmra.mrb[0].mxu0 %v4691
    %v4693 = vpop.f32.mrb[0].mxu0
    %v4694 = vadd.f32 %v4614, %v4693
    %v4695 = vpop.f32.mrb[0].mxu0
    %4696 = vdwg.mxu0
    %4697 = vmatprep.subr.mxu0 0.0
    %v4698 = vand.u32 %v4279, 4294901760
    %4699 = vmatpush1.msra.mxu0 %v4698
    %4700 = vmatprep.subr.mxu0 0.0
    %4701 = vmatpush1.msra.mxu0 0.0
    %4702 = vmatprep.subr.mxu0 0.0
    %4703 = vmatpush1.msra.mxu0 0.0
    %4704 = vmatprep.subr.mxu0 0.0
    %4705 = vmatpush1.msra.mxu0 0.0
    %4706 = vmatprep.subr.mxu0 0.0
    %4707 = vmatpush1.msra.mxu0 0.0
    %4708 = vmatprep.subr.mxu0 0.0
    %4709 = vmatpush1.msra.mxu0 0.0
    %4710 = vmatprep.subr.mxu0 0.0
    %4711 = vmatpush1.msra.mxu0 0.0
    %4712 = vmatprep.subr.mxu0 0.0
    %4713 = vmatpush1.msra.mxu0 0.0
    %4714 = vmatprep.subr.mxu0 0.0
    %4715 = vmatpush1.msra.mxu0 0.0
    %4716 = vmatprep.subr.mxu0 0.0
    %4717 = vmatpush1.msra.mxu0 0.0
    %4718 = vmatprep.subr.mxu0 0.0
    %4719 = vmatpush1.msra.mxu0 0.0
    %4720 = vmatprep.subr.mxu0 0.0
    %4721 = vmatpush1.msra.mxu0 0.0
    %4722 = vmatprep.subr.mxu0 0.0
    %4723 = vmatpush1.msra.mxu0 0.0
    %4724 = vmatprep.subr.mxu0 0.0
    %4725 = vmatpush1.msra.mxu0 0.0
    %4726 = vmatprep.subr.mxu0 0.0
    %4727 = vmatpush1.msra.mxu0 0.0
    %4728 = vmatprep.subr.mxu0 0.0
    %4729 = vmatpush1.msra.mxu0 0.0
    %4730 = vmatprep.subr.mxu0 0.0
    %4731 = vmatpush1.msra.mxu0 0.0
    %4732 = vmatprep.subr.mxu0 0.0
    %4733 = vmatpush1.msra.mxu0 0.0
    %4734 = vmatprep.subr.mxu0 0.0
    %4735 = vmatpush1.msra.mxu0 0.0
    %4736 = vmatprep.subr.mxu0 0.0
    %4737 = vmatpush1.msra.mxu0 0.0
    %4738 = vmatprep.subr.mxu0 0.0
    %4739 = vmatpush1.msra.mxu0 0.0
    %4740 = vmatprep.subr.mxu0 0.0
    %4741 = vmatpush1.msra.mxu0 0.0
    %4742 = vmatprep.subr.mxu0 0.0
    %4743 = vmatpush1.msra.mxu0 0.0
    %4744 = vmatprep.subr.mxu0 0.0
    %4745 = vmatpush1.msra.mxu0 0.0
    %4746 = vmatprep.subr.mxu0 0.0
    %4747 = vmatpush1.msra.mxu0 0.0
    %4748 = vmatprep.subr.mxu0 0.0
    %4749 = vmatpush1.msra.mxu0 0.0
    %4750 = vmatprep.subr.mxu0 0.0
    %4751 = vmatpush1.msra.mxu0 0.0
    %4752 = vmatprep.subr.mxu0 0.0
    %4753 = vmatpush1.msra.mxu0 0.0
    %4754 = vmatprep.subr.mxu0 0.0
    %4755 = vmatpush1.msra.mxu0 0.0
    %4756 = vmatprep.subr.mxu0 0.0
    %4757 = vmatpush1.msra.mxu0 0.0
    %4758 = vmatprep.subr.mxu0 0.0
    %4759 = vmatpush1.msra.mxu0 0.0
    %4760 = vmatprep.subr.mxu0 0.0
    %4761 = vmatpush1.msra.mxu0 0.0
    %4762 = vmatprep.mubr.f32.mxu0 0.0
    %v4763 = vand.u32 %v4281, 4294901760
    %4764 = vmatmul.mubr.f32.gmra.mrb[0].mxu0 %v4763
    %v4765 = vpop.f32.mrb[0].mxu0
    %v4766 = vadd.f32 %v4688, %v4765
    %v4767 = vpop.f32.mrb[0].mxu0
    %4768 = vmatprep.mubr.f32.mxu0 0.0
    %v4769 = vand.u32 %v4284, 4294901760
    %4770 = vmatmul.mubr.f32.gmra.mrb[0].mxu0 %v4769
    %v4771 = vpop.f32.mrb[0].mxu0
    %v4772 = vadd.f32 %v4694, %v4771
    %v4773 = vpop.f32.mrb[0].mxu0
    %4774 = vdwg.mxu0
    %v4776 = vsel %vm613, %v1988, 0
    %v4779 = vsel %vm613, %v2440, 0
    %4781 = vmatprep.subr.mxu0 0.0
    %v4782 = vand.u32 %v2443, 4294901760
    %4783 = vmatpush1.msra.mxu0 %v4782
    %4784 = vmatprep.subr.mxu0 0.0
    %4785 = vmatpush1.msra.mxu0 0.0
    %4786 = vmatprep.subr.mxu0 0.0
    %4787 = vmatpush1.msra.mxu0 0.0
    %4788 = vmatprep.subr.mxu0 0.0
    %4789 = vmatpush1.msra.mxu0 0.0
    %4790 = vmatprep.subr.mxu0 0.0
    %4791 = vmatpush1.msra.mxu0 0.0
    %4792 = vmatprep.subr.mxu0 0.0
    %4793 = vmatpush1.msra.mxu0 0.0
    %4794 = vmatprep.subr.mxu0 0.0
    %4795 = vmatpush1.msra.mxu0 0.0
    %4796 = vmatprep.subr.mxu0 0.0
    %4797 = vmatpush1.msra.mxu0 0.0
    %4798 = vmatprep.subr.mxu0 0.0
    %4799 = vmatpush1.msra.mxu0 0.0
    %4800 = vmatprep.subr.mxu0 0.0
    %4801 = vmatpush1.msra.mxu0 0.0
    %4802 = vmatprep.subr.mxu0 0.0
    %4803 = vmatpush1.msra.mxu0 0.0
    %4804 = vmatprep.subr.mxu0 0.0
    %4805 = vmatpush1.msra.mxu0 0.0
    %4806 = vmatprep.subr.mxu0 0.0
    %4807 = vmatpush1.msra.mxu0 0.0
    %4808 = vmatprep.subr.mxu0 0.0
    %4809 = vmatpush1.msra.mxu0 0.0
    %4810 = vmatprep.subr.mxu0 0.0
    %4811 = vmatpush1.msra.mxu0 0.0
    %4812 = vmatprep.subr.mxu0 0.0
    %4813 = vmatpush1.msra.mxu0 0.0
    %4814 = vmatprep.subr.mxu0 0.0
    %4815 = vmatpush1.msra.mxu0 0.0
    %4816 = vmatprep.subr.mxu0 0.0
    %4817 = vmatpush1.msra.mxu0 0.0
    %4818 = vmatprep.subr.mxu0 0.0
    %4819 = vmatpush1.msra.mxu0 0.0
    %4820 = vmatprep.subr.mxu0 0.0
    %4821 = vmatpush1.msra.mxu0 0.0
    %4822 = vmatprep.subr.mxu0 0.0
    %4823 = vmatpush1.msra.mxu0 0.0
    %4824 = vmatprep.subr.mxu0 0.0
    %4825 = vmatpush1.msra.mxu0 0.0
    %4826 = vmatprep.subr.mxu0 0.0
    %4827 = vmatpush1.msra.mxu0 0.0
    %4828 = vmatprep.subr.mxu0 0.0
    %4829 = vmatpush1.msra.mxu0 0.0
    %4830 = vmatprep.subr.mxu0 0.0
    %4831 = vmatpush1.msra.mxu0 0.0
    %4832 = vmatprep.subr.mxu0 0.0
    %4833 = vmatpush1.msra.mxu0 0.0
    %4834 = vmatprep.subr.mxu0 0.0
    %4835 = vmatpush1.msra.mxu0 0.0
    %4836 = vmatprep.subr.mxu0 0.0
    %4837 = vmatpush1.msra.mxu0 0.0
    %4838 = vmatprep.subr.mxu0 0.0
    %4839 = vmatpush1.msra.mxu0 0.0
    %4840 = vmatprep.subr.mxu0 0.0
    %4841 = vmatpush1.msra.mxu0 0.0
    %4842 = vmatprep.subr.mxu0 0.0
    %4843 = vmatpush1.msra.mxu0 0.0
    %4844 = vmatprep.subr.mxu0 0.0
    %4845 = vmatpush1.msra.mxu0 0.0
    %4846 = vmatprep.mubr.f32.mxu0 0.0
    %v4847 = vand.u32 %v4776, 4294901760
    %v4848 = vsub.f32 %v4776, %v4847
    %v4849 = vand.u32 %v4848, 4294901760
    %v4850 = vsub.f32 %v4848, %v4849
    %v4851 = vand.u32 %v4850, 4294901760
    %4852 = vmatmul.mubr.f32.gmra.mrb[0].mxu0 %v4851
    %v4853 = vpop.f32.mrb[0].mxu0
    %v4854 = vadd.f32 %v4766, %v4853
    %v4855 = vpop.f32.mrb[0].mxu0
    %4856 = vmatprep.mubr.f32.mxu0 0.0
    %v4857 = vand.u32 %v4779, 4294901760
    %v4858 = vsub.f32 %v4779, %v4857
    %v4859 = vand.u32 %v4858, 4294901760
    %v4860 = vsub.f32 %v4858, %v4859
    %v4861 = vand.u32 %v4860, 4294901760
    %4862 = vmatmul.mubr.f32.gmra.mrb[0].mxu0 %v4861
    %v4863 = vpop.f32.mrb[0].mxu0
    %v4864 = vadd.f32 %v4772, %v4863
    %v4865 = vpop.f32.mrb[0].mxu0
    %4866 = vdwg.mxu0
    %4867 = vmatprep.subr.mxu0 0.0
    %v4868 = vand.u32 %v2443, 4294901760
    %v4869 = vsub.f32 %v2443, %v4868
    %v4870 = vand.u32 %v4869, 4294901760
    %v4871 = vsub.f32 %v4869, %v4870
    %v4872 = vand.u32 %v4871, 4294901760
    %4873 = vmatpush1.msra.mxu0 %v4872
    %4874 = vmatprep.subr.mxu0 0.0
    %4875 = vmatpush1.msra.mxu0 0.0
    %4876 = vmatprep.subr.mxu0 0.0
    %4877 = vmatpush1.msra.mxu0 0.0
    %4878 = vmatprep.subr.mxu0 0.0
    %4879 = vmatpush1.msra.mxu0 0.0
    %4880 = vmatprep.subr.mxu0 0.0
    %4881 = vmatpush1.msra.mxu0 0.0
    %4882 = vmatprep.subr.mxu0 0.0
    %4883 = vmatpush1.msra.mxu0 0.0
    %4884 = vmatprep.subr.mxu0 0.0
    %4885 = vmatpush1.msra.mxu0 0.0
    %4886 = vmatprep.subr.mxu0 0.0
    %4887 = vmatpush1.msra.mxu0 0.0
    %4888 = vmatprep.subr.mxu0 0.0
    %4889 = vmatpush1.msra.mxu0 0.0
    %4890 = vmatprep.subr.mxu0 0.0
    %4891 = vmatpush1.msra.mxu0 0.0
    %4892 = vmatprep.subr.mxu0 0.0
    %4893 = vmatpush1.msra.mxu0 0.0
    %4894 = vmatprep.subr.mxu0 0.0
    %4895 = vmatpush1.msra.mxu0 0.0
    %4896 = vmatprep.subr.mxu0 0.0
    %4897 = vmatpush1.msra.mxu0 0.0
    %4898 = vmatprep.subr.mxu0 0.0
    %4899 = vmatpush1.msra.mxu0 0.0
    %4900 = vmatprep.subr.mxu0 0.0
    %4901 = vmatpush1.msra.mxu0 0.0
    %4902 = vmatprep.subr.mxu0 0.0
    %4903 = vmatpush1.msra.mxu0 0.0
    %4904 = vmatprep.subr.mxu0 0.0
    %4905 = vmatpush1.msra.mxu0 0.0
    %4906 = vmatprep.subr.mxu0 0.0
    %4907 = vmatpush1.msra.mxu0 0.0
    %4908 = vmatprep.subr.mxu0 0.0
    %4909 = vmatpush1.msra.mxu0 0.0
    %4910 = vmatprep.subr.mxu0 0.0
    %4911 = vmatpush1.msra.mxu0 0.0
    %4912 = vmatprep.subr.mxu0 0.0
    %4913 = vmatpush1.msra.mxu0 0.0
    %4914 = vmatprep.subr.mxu0 0.0
    %4915 = vmatpush1.msra.mxu0 0.0
    %4916 = vmatprep.subr.mxu0 0.0
    %4917 = vmatpush1.msra.mxu0 0.0
    %4918 = vmatprep.subr.mxu0 0.0
    %4919 = vmatpush1.msra.mxu0 0.0
    %4920 = vmatprep.subr.mxu0 0.0
    %4921 = vmatpush1.msra.mxu0 0.0
    %4922 = vmatprep.subr.mxu0 0.0
    %4923 = vmatpush1.msra.mxu0 0.0
    %4924 = vmatprep.subr.mxu0 0.0
    %4925 = vmatpush1.msra.mxu0 0.0
    %4926 = vmatprep.subr.mxu0 0.0
    %4927 = vmatpush1.msra.mxu0 0.0
    %4928 = vmatprep.subr.mxu0 0.0
    %4929 = vmatpush1.msra.mxu0 0.0
    %4930 = vmatprep.subr.mxu0 0.0
    %4931 = vmatpush1.msra.mxu0 0.0
    %4932 = vmatprep.subr.mxu0 0.0
    %4933 = vmatpush1.msra.mxu0 0.0
    %4934 = vmatprep.subr.mxu0 0.0
    %4935 = vmatpush1.msra.mxu0 0.0
    %4936 = vmatprep.mubr.f32.mxu0 0.0
    %v4937 = vand.u32 %v4776, 4294901760
    %4938 = vmatmul.mubr.f32.gmra.mrb[0].mxu0 %v4937
    %v4939 = vpop.f32.mrb[0].mxu0
    %v4940 = vadd.f32 %v4854, %v4939
    %v4941 = vpop.f32.mrb[0].mxu0
    %4942 = vmatprep.mubr.f32.mxu0 0.0
    %v4943 = vand.u32 %v4779, 4294901760
    %4944 = vmatmul.mubr.f32.gmra.mrb[0].mxu0 %v4943
    %v4945 = vpop.f32.mrb[0].mxu0
    %v4946 = vadd.f32 %v4864, %v4945
    %v4947 = vpop.f32.mrb[0].mxu0
    %4948 = vdwg.mxu0
    %4949 = vmatprep.subr.mxu0 0.0
    %v4950 = vand.u32 %v2443, 4294901760
    %v4951 = vsub.f32 %v2443, %v4950
    %4952 = vmatpush1.msra.mxu0 %v4951
    %4953 = vmatprep.subr.mxu0 0.0
    %4954 = vmatpush1.msra.mxu0 0.0
    %4955 = vmatprep.subr.mxu0 0.0
    %4956 = vmatpush1.msra.mxu0 0.0
    %4957 = vmatprep.subr.mxu0 0.0
    %4958 = vmatpush1.msra.mxu0 0.0
    %4959 = vmatprep.subr.mxu0 0.0
    %4960 = vmatpush1.msra.mxu0 0.0
    %4961 = vmatprep.subr.mxu0 0.0
    %4962 = vmatpush1.msra.mxu0 0.0
    %4963 = vmatprep.subr.mxu0 0.0
    %4964 = vmatpush1.msra.mxu0 0.0
    %4965 = vmatprep.subr.mxu0 0.0
    %4966 = vmatpush1.msra.mxu0 0.0
    %4967 = vmatprep.subr.mxu0 0.0
    %4968 = vmatpush1.msra.mxu0 0.0
    %4969 = vmatprep.subr.mxu0 0.0
    %4970 = vmatpush1.msra.mxu0 0.0
    %4971 = vmatprep.subr.mxu0 0.0
    %4972 = vmatpush1.msra.mxu0 0.0
    %4973 = vmatprep.subr.mxu0 0.0
    %4974 = vmatpush1.msra.mxu0 0.0
    %4975 = vmatprep.subr.mxu0 0.0
    %4976 = vmatpush1.msra.mxu0 0.0
    %4977 = vmatprep.subr.mxu0 0.0
    %4978 = vmatpush1.msra.mxu0 0.0
    %4979 = vmatprep.subr.mxu0 0.0
    %4980 = vmatpush1.msra.mxu0 0.0
    %4981 = vmatprep.subr.mxu0 0.0
    %4982 = vmatpush1.msra.mxu0 0.0
    %4983 = vmatprep.subr.mxu0 0.0
    %4984 = vmatpush1.msra.mxu0 0.0
    %4985 = vmatprep.subr.mxu0 0.0
    %4986 = vmatpush1.msra.mxu0 0.0
    %4987 = vmatprep.subr.mxu0 0.0
    %4988 = vmatpush1.msra.mxu0 0.0
    %4989 = vmatprep.subr.mxu0 0.0
    %4990 = vmatpush1.msra.mxu0 0.0
    %4991 = vmatprep.subr.mxu0 0.0
    %4992 = vmatpush1.msra.mxu0 0.0
    %4993 = vmatprep.subr.mxu0 0.0
    %4994 = vmatpush1.msra.mxu0 0.0
    %4995 = vmatprep.subr.mxu0 0.0
    %4996 = vmatpush1.msra.mxu0 0.0
    %4997 = vmatprep.subr.mxu0 0.0
    %4998 = vmatpush1.msra.mxu0 0.0
    %4999 = vmatprep.subr.mxu0 0.0
    %5000 = vmatpush1.msra.mxu0 0.0
    %5001 = vmatprep.subr.mxu0 0.0
    %5002 = vmatpush1.msra.mxu0 0.0
    %5003 = vmatprep.subr.mxu0 0.0
    %5004 = vmatpush1.msra.mxu0 0.0
    %5005 = vmatprep.subr.mxu0 0.0
    %5006 = vmatpush1.msra.mxu0 0.0
    %5007 = vmatprep.subr.mxu0 0.0
    %5008 = vmatpush1.msra.mxu0 0.0
    %5009 = vmatprep.subr.mxu0 0.0
    %5010 = vmatpush1.msra.mxu0 0.0
    %5011 = vmatprep.subr.mxu0 0.0
    %5012 = vmatpush1.msra.mxu0 0.0
    %5013 = vmatprep.subr.mxu0 0.0
    %5014 = vmatpush1.msra.mxu0 0.0
    %5015 = vmatprep.mubr.f32.mxu0 0.0
    %v5016 = vand.u32 %v4776, 4294901760
    %v5017 = vsub.f32 %v4776, %v5016
    %5018 = vmatmul.mubr.f32.gmra.mrb[0].mxu0 %v5017
    %v5019 = vpop.f32.mrb[0].mxu0
    %v5020 = vadd.f32 %v4940, %v5019
    %v5021 = vpop.f32.mrb[0].mxu0
    %5022 = vmatprep.mubr.f32.mxu0 0.0
    %v5023 = vand.u32 %v4779, 4294901760
    %v5024 = vsub.f32 %v4779, %v5023
    %5025 = vmatmul.mubr.f32.gmra.mrb[0].mxu0 %v5024
    %v5026 = vpop.f32.mrb[0].mxu0
    %v5027 = vadd.f32 %v4946, %v5026
    %v5028 = vpop.f32.mrb[0].mxu0
    %5029 = vdwg.mxu0
    %5030 = vmatprep.subr.mxu0 0.0
    %v5031 = vand.u32 %v2443, 4294901760
    %5032 = vmatpush1.msra.mxu0 %v5031
    %5033 = vmatprep.subr.mxu0 0.0
    %5034 = vmatpush1.msra.mxu0 0.0
    %5035 = vmatprep.subr.mxu0 0.0
    %5036 = vmatpush1.msra.mxu0 0.0
    %5037 = vmatprep.subr.mxu0 0.0
    %5038 = vmatpush1.msra.mxu0 0.0
    %5039 = vmatprep.subr.mxu0 0.0
    %5040 = vmatpush1.msra.mxu0 0.0
    %5041 = vmatprep.subr.mxu0 0.0
    %5042 = vmatpush1.msra.mxu0 0.0
    %5043 = vmatprep.subr.mxu0 0.0
    %5044 = vmatpush1.msra.mxu0 0.0
    %5045 = vmatprep.subr.mxu0 0.0
    %5046 = vmatpush1.msra.mxu0 0.0
    %5047 = vmatprep.subr.mxu0 0.0
    %5048 = vmatpush1.msra.mxu0 0.0
    %5049 = vmatprep.subr.mxu0 0.0
    %5050 = vmatpush1.msra.mxu0 0.0
    %5051 = vmatprep.subr.mxu0 0.0
    %5052 = vmatpush1.msra.mxu0 0.0
    %5053 = vmatprep.subr.mxu0 0.0
    %5054 = vmatpush1.msra.mxu0 0.0
    %5055 = vmatprep.subr.mxu0 0.0
    %5056 = vmatpush1.msra.mxu0 0.0
    %5057 = vmatprep.subr.mxu0 0.0
    %5058 = vmatpush1.msra.mxu0 0.0
    %5059 = vmatprep.subr.mxu0 0.0
    %5060 = vmatpush1.msra.mxu0 0.0
    %5061 = vmatprep.subr.mxu0 0.0
    %5062 = vmatpush1.msra.mxu0 0.0
    %5063 = vmatprep.subr.mxu0 0.0
    %5064 = vmatpush1.msra.mxu0 0.0
    %5065 = vmatprep.subr.mxu0 0.0
    %5066 = vmatpush1.msra.mxu0 0.0
    %5067 = vmatprep.subr.mxu0 0.0
    %5068 = vmatpush1.msra.mxu0 0.0
    %5069 = vmatprep.subr.mxu0 0.0
    %5070 = vmatpush1.msra.mxu0 0.0
    %5071 = vmatprep.subr.mxu0 0.0
    %5072 = vmatpush1.msra.mxu0 0.0
    %5073 = vmatprep.subr.mxu0 0.0
    %5074 = vmatpush1.msra.mxu0 0.0
    %5075 = vmatprep.subr.mxu0 0.0
    %5076 = vmatpush1.msra.mxu0 0.0
    %5077 = vmatprep.subr.mxu0 0.0
    %5078 = vmatpush1.msra.mxu0 0.0
    %5079 = vmatprep.subr.mxu0 0.0
    %5080 = vmatpush1.msra.mxu0 0.0
    %5081 = vmatprep.subr.mxu0 0.0
    %5082 = vmatpush1.msra.mxu0 0.0
    %5083 = vmatprep.subr.mxu0 0.0
    %5084 = vmatpush1.msra.mxu0 0.0
    %5085 = vmatprep.subr.mxu0 0.0
    %5086 = vmatpush1.msra.mxu0 0.0
    %5087 = vmatprep.subr.mxu0 0.0
    %5088 = vmatpush1.msra.mxu0 0.0
    %5089 = vmatprep.subr.mxu0 0.0
    %5090 = vmatpush1.msra.mxu0 0.0
    %5091 = vmatprep.subr.mxu0 0.0
    %5092 = vmatpush1.msra.mxu0 0.0
    %5093 = vmatprep.subr.mxu0 0.0
    %5094 = vmatpush1.msra.mxu0 0.0
    %5095 = vmatprep.mubr.f32.mxu0 0.0
    %v5096 = vand.u32 %v4776, 4294901760
    %v5097 = vsub.f32 %v4776, %v5096
    %v5098 = vand.u32 %v5097, 4294901760
    %5099 = vmatmul.mubr.f32.gmra.mrb[0].mxu0 %v5098
    %v5100 = vpop.f32.mrb[0].mxu0
    %v5101 = vadd.f32 %v5020, %v5100
    %v5102 = vpop.f32.mrb[0].mxu0
    %5103 = vmatprep.mubr.f32.mxu0 0.0
    %v5104 = vand.u32 %v4779, 4294901760
    %v5105 = vsub.f32 %v4779, %v5104
    %v5106 = vand.u32 %v5105, 4294901760
    %5107 = vmatmul.mubr.f32.gmra.mrb[0].mxu0 %v5106
    %v5108 = vpop.f32.mrb[0].mxu0
    %v5109 = vadd.f32 %v5027, %v5108
    %v5110 = vpop.f32.mrb[0].mxu0
    %5111 = vdwg.mxu0
    %5112 = vmatprep.subr.mxu0 0.0
    %v5113 = vand.u32 %v2443, 4294901760
    %v5114 = vsub.f32 %v2443, %v5113
    %v5115 = vand.u32 %v5114, 4294901760
    %5116 = vmatpush1.msra.mxu0 %v5115
    %5117 = vmatprep.subr.mxu0 0.0
    %5118 = vmatpush1.msra.mxu0 0.0
    %5119 = vmatprep.subr.mxu0 0.0
    %5120 = vmatpush1.msra.mxu0 0.0
    %5121 = vmatprep.subr.mxu0 0.0
    %5122 = vmatpush1.msra.mxu0 0.0
    %5123 = vmatprep.subr.mxu0 0.0
    %5124 = vmatpush1.msra.mxu0 0.0
    %5125 = vmatprep.subr.mxu0 0.0
    %5126 = vmatpush1.msra.mxu0 0.0
    %5127 = vmatprep.subr.mxu0 0.0
    %5128 = vmatpush1.msra.mxu0 0.0
    %5129 = vmatprep.subr.mxu0 0.0
    %5130 = vmatpush1.msra.mxu0 0.0
    %5131 = vmatprep.subr.mxu0 0.0
    %5132 = vmatpush1.msra.mxu0 0.0
    %5133 = vmatprep.subr.mxu0 0.0
    %5134 = vmatpush1.msra.mxu0 0.0
    %5135 = vmatprep.subr.mxu0 0.0
    %5136 = vmatpush1.msra.mxu0 0.0
    %5137 = vmatprep.subr.mxu0 0.0
    %5138 = vmatpush1.msra.mxu0 0.0
    %5139 = vmatprep.subr.mxu0 0.0
    %5140 = vmatpush1.msra.mxu0 0.0
    %5141 = vmatprep.subr.mxu0 0.0
    %5142 = vmatpush1.msra.mxu0 0.0
    %5143 = vmatprep.subr.mxu0 0.0
    %5144 = vmatpush1.msra.mxu0 0.0
    %5145 = vmatprep.subr.mxu0 0.0
    %5146 = vmatpush1.msra.mxu0 0.0
    %5147 = vmatprep.subr.mxu0 0.0
    %5148 = vmatpush1.msra.mxu0 0.0
    %5149 = vmatprep.subr.mxu0 0.0
    %5150 = vmatpush1.msra.mxu0 0.0
    %5151 = vmatprep.subr.mxu0 0.0
    %5152 = vmatpush1.msra.mxu0 0.0
    %5153 = vmatprep.subr.mxu0 0.0
    %5154 = vmatpush1.msra.mxu0 0.0
    %5155 = vmatprep.subr.mxu0 0.0
    %5156 = vmatpush1.msra.mxu0 0.0
    %5157 = vmatprep.subr.mxu0 0.0
    %5158 = vmatpush1.msra.mxu0 0.0
    %5159 = vmatprep.subr.mxu0 0.0
    %5160 = vmatpush1.msra.mxu0 0.0
    %5161 = vmatprep.subr.mxu0 0.0
    %5162 = vmatpush1.msra.mxu0 0.0
    %5163 = vmatprep.subr.mxu0 0.0
    %5164 = vmatpush1.msra.mxu0 0.0
    %5165 = vmatprep.subr.mxu0 0.0
    %5166 = vmatpush1.msra.mxu0 0.0
    %5167 = vmatprep.subr.mxu0 0.0
    %5168 = vmatpush1.msra.mxu0 0.0
    %5169 = vmatprep.subr.mxu0 0.0
    %5170 = vmatpush1.msra.mxu0 0.0
    %5171 = vmatprep.subr.mxu0 0.0
    %5172 = vmatpush1.msra.mxu0 0.0
    %5173 = vmatprep.subr.mxu0 0.0
    %5174 = vmatpush1.msra.mxu0 0.0
    %5175 = vmatprep.subr.mxu0 0.0
    %5176 = vmatpush1.msra.mxu0 0.0
    %5177 = vmatprep.subr.mxu0 0.0
    %5178 = vmatpush1.msra.mxu0 0.0
    %5179 = vmatprep.mubr.f32.mxu0 0.0
    %v5180 = vand.u32 %v4776, 4294901760
    %5181 = vmatmul.mubr.f32.gmra.mrb[0].mxu0 %v5180
    %v5182 = vpop.f32.mrb[0].mxu0
    %v5183 = vadd.f32 %v5101, %v5182
    %v5184 = vpop.f32.mrb[0].mxu0
    %5185 = vmatprep.mubr.f32.mxu0 0.0
    %v5186 = vand.u32 %v4779, 4294901760
    %5187 = vmatmul.mubr.f32.gmra.mrb[0].mxu0 %v5186
    %v5188 = vpop.f32.mrb[0].mxu0
    %v5189 = vadd.f32 %v5109, %v5188
    %v5190 = vpop.f32.mrb[0].mxu0
    %5191 = vdwg.mxu0
    %5192 = vmatprep.subr.mxu0 0.0
    %v5193 = vand.u32 %v2443, 4294901760
    %5194 = vmatpush1.msra.mxu0 %v5193
    %5195 = vmatprep.subr.mxu0 0.0
    %5196 = vmatpush1.msra.mxu0 0.0
    %5197 = vmatprep.subr.mxu0 0.0
    %5198 = vmatpush1.msra.mxu0 0.0
    %5199 = vmatprep.subr.mxu0 0.0
    %5200 = vmatpush1.msra.mxu0 0.0
    %5201 = vmatprep.subr.mxu0 0.0
    %5202 = vmatpush1.msra.mxu0 0.0
    %5203 = vmatprep.subr.mxu0 0.0
    %5204 = vmatpush1.msra.mxu0 0.0
    %5205 = vmatprep.subr.mxu0 0.0
    %5206 = vmatpush1.msra.mxu0 0.0
    %5207 = vmatprep.subr.mxu0 0.0
    %5208 = vmatpush1.msra.mxu0 0.0
    %5209 = vmatprep.subr.mxu0 0.0
    %5210 = vmatpush1.msra.mxu0 0.0
    %5211 = vmatprep.subr.mxu0 0.0
    %5212 = vmatpush1.msra.mxu0 0.0
    %5213 = vmatprep.subr.mxu0 0.0
    %5214 = vmatpush1.msra.mxu0 0.0
    %5215 = vmatprep.subr.mxu0 0.0
    %5216 = vmatpush1.msra.mxu0 0.0
    %5217 = vmatprep.subr.mxu0 0.0
    %5218 = vmatpush1.msra.mxu0 0.0
    %5219 = vmatprep.subr.mxu0 0.0
    %5220 = vmatpush1.msra.mxu0 0.0
    %5221 = vmatprep.subr.mxu0 0.0
    %5222 = vmatpush1.msra.mxu0 0.0
    %5223 = vmatprep.subr.mxu0 0.0
    %5224 = vmatpush1.msra.mxu0 0.0
    %5225 = vmatprep.subr.mxu0 0.0
    %5226 = vmatpush1.msra.mxu0 0.0
    %5227 = vmatprep.subr.mxu0 0.0
    %5228 = vmatpush1.msra.mxu0 0.0
    %5229 = vmatprep.subr.mxu0 0.0
    %5230 = vmatpush1.msra.mxu0 0.0
    %5231 = vmatprep.subr.mxu0 0.0
    %5232 = vmatpush1.msra.mxu0 0.0
    %5233 = vmatprep.subr.mxu0 0.0
    %5234 = vmatpush1.msra.mxu0 0.0
    %5235 = vmatprep.subr.mxu0 0.0
    %5236 = vmatpush1.msra.mxu0 0.0
    %5237 = vmatprep.subr.mxu0 0.0
    %5238 = vmatpush1.msra.mxu0 0.0
    %5239 = vmatprep.subr.mxu0 0.0
    %5240 = vmatpush1.msra.mxu0 0.0
    %5241 = vmatprep.subr.mxu0 0.0
    %5242 = vmatpush1.msra.mxu0 0.0
    %5243 = vmatprep.subr.mxu0 0.0
    %5244 = vmatpush1.msra.mxu0 0.0
    %5245 = vmatprep.subr.mxu0 0.0
    %5246 = vmatpush1.msra.mxu0 0.0
    %5247 = vmatprep.subr.mxu0 0.0
    %5248 = vmatpush1.msra.mxu0 0.0
    %5249 = vmatprep.subr.mxu0 0.0
    %5250 = vmatpush1.msra.mxu0 0.0
    %5251 = vmatprep.subr.mxu0 0.0
    %5252 = vmatpush1.msra.mxu0 0.0
    %5253 = vmatprep.subr.mxu0 0.0
    %5254 = vmatpush1.msra.mxu0 0.0
    %5255 = vmatprep.subr.mxu0 0.0
    %5256 = vmatpush1.msra.mxu0 0.0
    %5257 = vmatprep.mubr.f32.mxu0 0.0
    %v5258 = vand.u32 %v4776, 4294901760
    %5259 = vmatmul.mubr.f32.gmra.mrb[0].mxu0 %v5258
    %v5260 = vpop.f32.mrb[0].mxu0
    %v5261 = vadd.f32 %v5183, %v5260
    %v5262 = vpop.f32.mrb[0].mxu0
    %5263 = vmatprep.mubr.f32.mxu0 0.0
    %v5264 = vand.u32 %v4779, 4294901760
    %5265 = vmatmul.mubr.f32.gmra.mrb[0].mxu0 %v5264
    %v5266 = vpop.f32.mrb[0].mxu0
    %v5267 = vadd.f32 %v5189, %v5266
    %v5268 = vpop.f32.mrb[0].mxu0
    %5269 = vdwg.mxu0
    %5270 = vrot.lane.b32.xlu0 %v601, 112
    %v5271 = vpop.permute.xlu0 %5270
    %5272 = vrot.lane.b32.xlu0 %v601, 80
    %v5273 = vpop.permute.xlu0 %5272
    %v5274 = vsel %vm613, %v5271, 0
    %v5276 = vsel %vm613, %v5273, 0
    %5278 = vmatprep.subr.mxu0 0.0
    %v5279 = vand.u32 %v5276, 4294901760
    %5280 = vmatpush1.xpose.msra.mxu0 %v5279
    %5281 = vmatprep.subr.mxu0 0.0
    %5282 = vmatpush1.xpose.msra.mxu0 0.0
    %5283 = vmatprep.subr.mxu0 0.0
    %5284 = vmatpush1.xpose.msra.mxu0 0.0
    %5285 = vmatprep.subr.mxu0 0.0
    %5286 = vmatpush1.xpose.msra.mxu0 0.0
    %5287 = vmatprep.subr.mxu0 0.0
    %5288 = vmatpush1.xpose.msra.mxu0 0.0
    %5289 = vmatprep.subr.mxu0 0.0
    %5290 = vmatpush1.xpose.msra.mxu0 0.0
    %5291 = vmatprep.subr.mxu0 0.0
    %5292 = vmatpush1.xpose.msra.mxu0 0.0
    %5293 = vmatprep.subr.mxu0 0.0
    %5294 = vmatpush1.xpose.msra.mxu0 0.0
    %5295 = vmatprep.subr.mxu0 0.0
    %5296 = vmatpush1.xpose.msra.mxu0 0.0
    %5297 = vmatprep.subr.mxu0 0.0
    %5298 = vmatpush1.xpose.msra.mxu0 0.0
    %5299 = vmatprep.subr.mxu0 0.0
    %5300 = vmatpush1.xpose.msra.mxu0 0.0
    %5301 = vmatprep.subr.mxu0 0.0
    %5302 = vmatpush1.xpose.msra.mxu0 0.0
    %5303 = vmatprep.subr.mxu0 0.0
    %5304 = vmatpush1.xpose.msra.mxu0 0.0
    %5305 = vmatprep.subr.mxu0 0.0
    %5306 = vmatpush1.xpose.msra.mxu0 0.0
    %5307 = vmatprep.subr.mxu0 0.0
    %5308 = vmatpush1.xpose.msra.mxu0 0.0
    %5309 = vmatprep.subr.mxu0 0.0
    %5310 = vmatpush1.xpose.msra.mxu0 0.0
    %5311 = vmatprep.subr.mxu0 0.0
    %5312 = vmatpush1.xpose.msra.mxu0 0.0
    %5313 = vmatprep.subr.mxu0 0.0
    %5314 = vmatpush1.xpose.msra.mxu0 0.0
    %5315 = vmatprep.subr.mxu0 0.0
    %5316 = vmatpush1.xpose.msra.mxu0 0.0
    %5317 = vmatprep.subr.mxu0 0.0
    %5318 = vmatpush1.xpose.msra.mxu0 0.0
    %5319 = vmatprep.subr.mxu0 0.0
    %5320 = vmatpush1.xpose.msra.mxu0 0.0
    %5321 = vmatprep.subr.mxu0 0.0
    %5322 = vmatpush1.xpose.msra.mxu0 0.0
    %5323 = vmatprep.subr.mxu0 0.0
    %5324 = vmatpush1.xpose.msra.mxu0 0.0
    %5325 = vmatprep.subr.mxu0 0.0
    %5326 = vmatpush1.xpose.msra.mxu0 0.0
    %5327 = vmatprep.subr.mxu0 0.0
    %5328 = vmatpush1.xpose.msra.mxu0 0.0
    %5329 = vmatprep.subr.mxu0 0.0
    %5330 = vmatpush1.xpose.msra.mxu0 0.0
    %5331 = vmatprep.subr.mxu0 0.0
    %5332 = vmatpush1.xpose.msra.mxu0 0.0
    %5333 = vmatprep.subr.mxu0 0.0
    %5334 = vmatpush1.xpose.msra.mxu0 0.0
    %5335 = vmatprep.subr.mxu0 0.0
    %5336 = vmatpush1.xpose.msra.mxu0 0.0
    %5337 = vmatprep.subr.mxu0 0.0
    %5338 = vmatpush1.xpose.msra.mxu0 0.0
    %5339 = vmatprep.subr.mxu0 0.0
    %5340 = vmatpush1.xpose.msra.mxu0 0.0
    %5341 = vmatprep.subr.mxu0 0.0
    %5342 = vmatpush1.xpose.msra.mxu0 0.0
    %5343 = vmatprep.mubr.f32.mxu0 0.0
    %v5344 = vand.u32 %v5274, 4294901760
    %v5345 = vsub.f32 %v5274, %v5344
    %v5346 = vand.u32 %v5345, 4294901760
    %v5347 = vsub.f32 %v5345, %v5346
    %v5348 = vand.u32 %v5347, 4294901760
    %5349 = vmatmul.mubr.f32.gmra.mrb[0].mxu0 %v5348
    %v5350 = vpop.f32.mrb[0].mxu0
    %v5351 = vadd.f32 0.0, %v5350
    %v5352 = vpop.f32.mrb[0].mxu0
    %5353 = vdwg.mxu0
    %5354 = vmatprep.subr.mxu0 0.0
    %v5355 = vand.u32 %v5276, 4294901760
    %v5356 = vsub.f32 %v5276, %v5355
    %v5357 = vand.u32 %v5356, 4294901760
    %v5358 = vsub.f32 %v5356, %v5357
    %v5359 = vand.u32 %v5358, 4294901760
    %5360 = vmatpush1.xpose.msra.mxu0 %v5359
    %5361 = vmatprep.subr.mxu0 0.0
    %5362 = vmatpush1.xpose.msra.mxu0 0.0
    %5363 = vmatprep.subr.mxu0 0.0
    %5364 = vmatpush1.xpose.msra.mxu0 0.0
    %5365 = vmatprep.subr.mxu0 0.0
    %5366 = vmatpush1.xpose.msra.mxu0 0.0
    %5367 = vmatprep.subr.mxu0 0.0
    %5368 = vmatpush1.xpose.msra.mxu0 0.0
    %5369 = vmatprep.subr.mxu0 0.0
    %5370 = vmatpush1.xpose.msra.mxu0 0.0
    %5371 = vmatprep.subr.mxu0 0.0
    %5372 = vmatpush1.xpose.msra.mxu0 0.0
    %5373 = vmatprep.subr.mxu0 0.0
    %5374 = vmatpush1.xpose.msra.mxu0 0.0
    %5375 = vmatprep.subr.mxu0 0.0
    %5376 = vmatpush1.xpose.msra.mxu0 0.0
    %5377 = vmatprep.subr.mxu0 0.0
    %5378 = vmatpush1.xpose.msra.mxu0 0.0
    %5379 = vmatprep.subr.mxu0 0.0
    %5380 = vmatpush1.xpose.msra.mxu0 0.0
    %5381 = vmatprep.subr.mxu0 0.0
    %5382 = vmatpush1.xpose.msra.mxu0 0.0
    %5383 = vmatprep.subr.mxu0 0.0
    %5384 = vmatpush1.xpose.msra.mxu0 0.0
    %5385 = vmatprep.subr.mxu0 0.0
    %5386 = vmatpush1.xpose.msra.mxu0 0.0
    %5387 = vmatprep.subr.mxu0 0.0
    %5388 = vmatpush1.xpose.msra.mxu0 0.0
    %5389 = vmatprep.subr.mxu0 0.0
    %5390 = vmatpush1.xpose.msra.mxu0 0.0
    %5391 = vmatprep.subr.mxu0 0.0
    %5392 = vmatpush1.xpose.msra.mxu0 0.0
    %5393 = vmatprep.subr.mxu0 0.0
    %5394 = vmatpush1.xpose.msra.mxu0 0.0
    %5395 = vmatprep.subr.mxu0 0.0
    %5396 = vmatpush1.xpose.msra.mxu0 0.0
    %5397 = vmatprep.subr.mxu0 0.0
    %5398 = vmatpush1.xpose.msra.mxu0 0.0
    %5399 = vmatprep.subr.mxu0 0.0
    %5400 = vmatpush1.xpose.msra.mxu0 0.0
    %5401 = vmatprep.subr.mxu0 0.0
    %5402 = vmatpush1.xpose.msra.mxu0 0.0
    %5403 = vmatprep.subr.mxu0 0.0
    %5404 = vmatpush1.xpose.msra.mxu0 0.0
    %5405 = vmatprep.subr.mxu0 0.0
    %5406 = vmatpush1.xpose.msra.mxu0 0.0
    %5407 = vmatprep.subr.mxu0 0.0
    %5408 = vmatpush1.xpose.msra.mxu0 0.0
    %5409 = vmatprep.subr.mxu0 0.0
    %5410 = vmatpush1.xpose.msra.mxu0 0.0
    %5411 = vmatprep.subr.mxu0 0.0
    %5412 = vmatpush1.xpose.msra.mxu0 0.0
    %5413 = vmatprep.subr.mxu0 0.0
    %5414 = vmatpush1.xpose.msra.mxu0 0.0
    %5415 = vmatprep.subr.mxu0 0.0
    %5416 = vmatpush1.xpose.msra.mxu0 0.0
    %5417 = vmatprep.subr.mxu0 0.0
    %5418 = vmatpush1.xpose.msra.mxu0 0.0
    %5419 = vmatprep.subr.mxu0 0.0
    %5420 = vmatpush1.xpose.msra.mxu0 0.0
    %5421 = vmatprep.subr.mxu0 0.0
    %5422 = vmatpush1.xpose.msra.mxu0 0.0
    %5423 = vmatprep.mubr.f32.mxu0 0.0
    %v5424 = vand.u32 %v5274, 4294901760
    %5425 = vmatmul.mubr.f32.gmra.mrb[0].mxu0 %v5424
    %v5426 = vpop.f32.mrb[0].mxu0
    %v5427 = vadd.f32 %v5351, %v5426
    %v5428 = vpop.f32.mrb[0].mxu0
    %5429 = vdwg.mxu0
    %5430 = vmatprep.subr.mxu0 0.0
    %v5431 = vand.u32 %v5276, 4294901760
    %v5432 = vsub.f32 %v5276, %v5431
    %5433 = vmatpush1.xpose.msra.mxu0 %v5432
    %5434 = vmatprep.subr.mxu0 0.0
    %5435 = vmatpush1.xpose.msra.mxu0 0.0
    %5436 = vmatprep.subr.mxu0 0.0
    %5437 = vmatpush1.xpose.msra.mxu0 0.0
    %5438 = vmatprep.subr.mxu0 0.0
    %5439 = vmatpush1.xpose.msra.mxu0 0.0
    %5440 = vmatprep.subr.mxu0 0.0
    %5441 = vmatpush1.xpose.msra.mxu0 0.0
    %5442 = vmatprep.subr.mxu0 0.0
    %5443 = vmatpush1.xpose.msra.mxu0 0.0
    %5444 = vmatprep.subr.mxu0 0.0
    %5445 = vmatpush1.xpose.msra.mxu0 0.0
    %5446 = vmatprep.subr.mxu0 0.0
    %5447 = vmatpush1.xpose.msra.mxu0 0.0
    %5448 = vmatprep.subr.mxu0 0.0
    %5449 = vmatpush1.xpose.msra.mxu0 0.0
    %5450 = vmatprep.subr.mxu0 0.0
    %5451 = vmatpush1.xpose.msra.mxu0 0.0
    %5452 = vmatprep.subr.mxu0 0.0
    %5453 = vmatpush1.xpose.msra.mxu0 0.0
    %5454 = vmatprep.subr.mxu0 0.0
    %5455 = vmatpush1.xpose.msra.mxu0 0.0
    %5456 = vmatprep.subr.mxu0 0.0
    %5457 = vmatpush1.xpose.msra.mxu0 0.0
    %5458 = vmatprep.subr.mxu0 0.0
    %5459 = vmatpush1.xpose.msra.mxu0 0.0
    %5460 = vmatprep.subr.mxu0 0.0
    %5461 = vmatpush1.xpose.msra.mxu0 0.0
    %5462 = vmatprep.subr.mxu0 0.0
    %5463 = vmatpush1.xpose.msra.mxu0 0.0
    %5464 = vmatprep.subr.mxu0 0.0
    %5465 = vmatpush1.xpose.msra.mxu0 0.0
    %5466 = vmatprep.subr.mxu0 0.0
    %5467 = vmatpush1.xpose.msra.mxu0 0.0
    %5468 = vmatprep.subr.mxu0 0.0
    %5469 = vmatpush1.xpose.msra.mxu0 0.0
    %5470 = vmatprep.subr.mxu0 0.0
    %5471 = vmatpush1.xpose.msra.mxu0 0.0
    %5472 = vmatprep.subr.mxu0 0.0
    %5473 = vmatpush1.xpose.msra.mxu0 0.0
    %5474 = vmatprep.subr.mxu0 0.0
    %5475 = vmatpush1.xpose.msra.mxu0 0.0
    %5476 = vmatprep.subr.mxu0 0.0
    %5477 = vmatpush1.xpose.msra.mxu0 0.0
    %5478 = vmatprep.subr.mxu0 0.0
    %5479 = vmatpush1.xpose.msra.mxu0 0.0
    %5480 = vmatprep.subr.mxu0 0.0
    %5481 = vmatpush1.xpose.msra.mxu0 0.0
    %5482 = vmatprep.subr.mxu0 0.0
    %5483 = vmatpush1.xpose.msra.mxu0 0.0
    %5484 = vmatprep.subr.mxu0 0.0
    %5485 = vmatpush1.xpose.msra.mxu0 0.0
    %5486 = vmatprep.subr.mxu0 0.0
    %5487 = vmatpush1.xpose.msra.mxu0 0.0
    %5488 = vmatprep.subr.mxu0 0.0
    %5489 = vmatpush1.xpose.msra.mxu0 0.0
    %5490 = vmatprep.subr.mxu0 0.0
    %5491 = vmatpush1.xpose.msra.mxu0 0.0
    %5492 = vmatprep.subr.mxu0 0.0
    %5493 = vmatpush1.xpose.msra.mxu0 0.0
    %5494 = vmatprep.subr.mxu0 0.0
    %5495 = vmatpush1.xpose.msra.mxu0 0.0
    %5496 = vmatprep.mubr.f32.mxu0 0.0
    %v5497 = vand.u32 %v5274, 4294901760
    %v5498 = vsub.f32 %v5274, %v5497
    %5499 = vmatmul.mubr.f32.gmra.mrb[0].mxu0 %v5498
    %v5500 = vpop.f32.mrb[0].mxu0
    %v5501 = vadd.f32 %v5427, %v5500
    %v5502 = vpop.f32.mrb[0].mxu0
    %5503 = vdwg.mxu0
    %5504 = vmatprep.subr.mxu0 0.0
    %v5505 = vand.u32 %v5276, 4294901760
    %5506 = vmatpush1.xpose.msra.mxu0 %v5505
    %5507 = vmatprep.subr.mxu0 0.0
    %5508 = vmatpush1.xpose.msra.mxu0 0.0
    %5509 = vmatprep.subr.mxu0 0.0
    %5510 = vmatpush1.xpose.msra.mxu0 0.0
    %5511 = vmatprep.subr.mxu0 0.0
    %5512 = vmatpush1.xpose.msra.mxu0 0.0
    %5513 = vmatprep.subr.mxu0 0.0
    %5514 = vmatpush1.xpose.msra.mxu0 0.0
    %5515 = vmatprep.subr.mxu0 0.0
    %5516 = vmatpush1.xpose.msra.mxu0 0.0
    %5517 = vmatprep.subr.mxu0 0.0
    %5518 = vmatpush1.xpose.msra.mxu0 0.0
    %5519 = vmatprep.subr.mxu0 0.0
    %5520 = vmatpush1.xpose.msra.mxu0 0.0
    %5521 = vmatprep.subr.mxu0 0.0
    %5522 = vmatpush1.xpose.msra.mxu0 0.0
    %5523 = vmatprep.subr.mxu0 0.0
    %5524 = vmatpush1.xpose.msra.mxu0 0.0
    %5525 = vmatprep.subr.mxu0 0.0
    %5526 = vmatpush1.xpose.msra.mxu0 0.0
    %5527 = vmatprep.subr.mxu0 0.0
    %5528 = vmatpush1.xpose.msra.mxu0 0.0
    %5529 = vmatprep.subr.mxu0 0.0
    %5530 = vmatpush1.xpose.msra.mxu0 0.0
    %5531 = vmatprep.subr.mxu0 0.0
    %5532 = vmatpush1.xpose.msra.mxu0 0.0
    %5533 = vmatprep.subr.mxu0 0.0
    %5534 = vmatpush1.xpose.msra.mxu0 0.0
    %5535 = vmatprep.subr.mxu0 0.0
    %5536 = vmatpush1.xpose.msra.mxu0 0.0
    %5537 = vmatprep.subr.mxu0 0.0
    %5538 = vmatpush1.xpose.msra.mxu0 0.0
    %5539 = vmatprep.subr.mxu0 0.0
    %5540 = vmatpush1.xpose.msra.mxu0 0.0
    %5541 = vmatprep.subr.mxu0 0.0
    %5542 = vmatpush1.xpose.msra.mxu0 0.0
    %5543 = vmatprep.subr.mxu0 0.0
    %5544 = vmatpush1.xpose.msra.mxu0 0.0
    %5545 = vmatprep.subr.mxu0 0.0
    %5546 = vmatpush1.xpose.msra.mxu0 0.0
    %5547 = vmatprep.subr.mxu0 0.0
    %5548 = vmatpush1.xpose.msra.mxu0 0.0
    %5549 = vmatprep.subr.mxu0 0.0
    %5550 = vmatpush1.xpose.msra.mxu0 0.0
    %5551 = vmatprep.subr.mxu0 0.0
    %5552 = vmatpush1.xpose.msra.mxu0 0.0
    %5553 = vmatprep.subr.mxu0 0.0
    %5554 = vmatpush1.xpose.msra.mxu0 0.0
    %5555 = vmatprep.subr.mxu0 0.0
    %5556 = vmatpush1.xpose.msra.mxu0 0.0
    %5557 = vmatprep.subr.mxu0 0.0
    %5558 = vmatpush1.xpose.msra.mxu0 0.0
    %5559 = vmatprep.subr.mxu0 0.0
    %5560 = vmatpush1.xpose.msra.mxu0 0.0
    %5561 = vmatprep.subr.mxu0 0.0
    %5562 = vmatpush1.xpose.msra.mxu0 0.0
    %5563 = vmatprep.subr.mxu0 0.0
    %5564 = vmatpush1.xpose.msra.mxu0 0.0
    %5565 = vmatprep.subr.mxu0 0.0
    %5566 = vmatpush1.xpose.msra.mxu0 0.0
    %5567 = vmatprep.subr.mxu0 0.0
    %5568 = vmatpush1.xpose.msra.mxu0 0.0
    %5569 = vmatprep.mubr.f32.mxu0 0.0
    %v5570 = vand.u32 %v5274, 4294901760
    %v5571 = vsub.f32 %v5274, %v5570
    %v5572 = vand.u32 %v5571, 4294901760
    %5573 = vmatmul.mubr.f32.gmra.mrb[0].mxu0 %v5572
    %v5574 = vpop.f32.mrb[0].mxu0
    %v5575 = vadd.f32 %v5501, %v5574
    %v5576 = vpop.f32.mrb[0].mxu0
    %5577 = vdwg.mxu0
    %5578 = vmatprep.subr.mxu0 0.0
    %v5579 = vand.u32 %v5276, 4294901760
    %v5580 = vsub.f32 %v5276, %v5579
    %v5581 = vand.u32 %v5580, 4294901760
    %5582 = vmatpush1.xpose.msra.mxu0 %v5581
    %5583 = vmatprep.subr.mxu0 0.0
    %5584 = vmatpush1.xpose.msra.mxu0 0.0
    %5585 = vmatprep.subr.mxu0 0.0
    %5586 = vmatpush1.xpose.msra.mxu0 0.0
    %5587 = vmatprep.subr.mxu0 0.0
    %5588 = vmatpush1.xpose.msra.mxu0 0.0
    %5589 = vmatprep.subr.mxu0 0.0
    %5590 = vmatpush1.xpose.msra.mxu0 0.0
    %5591 = vmatprep.subr.mxu0 0.0
    %5592 = vmatpush1.xpose.msra.mxu0 0.0
    %5593 = vmatprep.subr.mxu0 0.0
    %5594 = vmatpush1.xpose.msra.mxu0 0.0
    %5595 = vmatprep.subr.mxu0 0.0
    %5596 = vmatpush1.xpose.msra.mxu0 0.0
    %5597 = vmatprep.subr.mxu0 0.0
    %5598 = vmatpush1.xpose.msra.mxu0 0.0
    %5599 = vmatprep.subr.mxu0 0.0
    %5600 = vmatpush1.xpose.msra.mxu0 0.0
    %5601 = vmatprep.subr.mxu0 0.0
    %5602 = vmatpush1.xpose.msra.mxu0 0.0
    %5603 = vmatprep.subr.mxu0 0.0
    %5604 = vmatpush1.xpose.msra.mxu0 0.0
    %5605 = vmatprep.subr.mxu0 0.0
    %5606 = vmatpush1.xpose.msra.mxu0 0.0
    %5607 = vmatprep.subr.mxu0 0.0
    %5608 = vmatpush1.xpose.msra.mxu0 0.0
    %5609 = vmatprep.subr.mxu0 0.0
    %5610 = vmatpush1.xpose.msra.mxu0 0.0
    %5611 = vmatprep.subr.mxu0 0.0
    %5612 = vmatpush1.xpose.msra.mxu0 0.0
    %5613 = vmatprep.subr.mxu0 0.0
    %5614 = vmatpush1.xpose.msra.mxu0 0.0
    %5615 = vmatprep.subr.mxu0 0.0
    %5616 = vmatpush1.xpose.msra.mxu0 0.0
    %5617 = vmatprep.subr.mxu0 0.0
    %5618 = vmatpush1.xpose.msra.mxu0 0.0
    %5619 = vmatprep.subr.mxu0 0.0
    %5620 = vmatpush1.xpose.msra.mxu0 0.0
    %5621 = vmatprep.subr.mxu0 0.0
    %5622 = vmatpush1.xpose.msra.mxu0 0.0
    %5623 = vmatprep.subr.mxu0 0.0
    %5624 = vmatpush1.xpose.msra.mxu0 0.0
    %5625 = vmatprep.subr.mxu0 0.0
    %5626 = vmatpush1.xpose.msra.mxu0 0.0
    %5627 = vmatprep.subr.mxu0 0.0
    %5628 = vmatpush1.xpose.msra.mxu0 0.0
    %5629 = vmatprep.subr.mxu0 0.0
    %5630 = vmatpush1.xpose.msra.mxu0 0.0
    %5631 = vmatprep.subr.mxu0 0.0
    %5632 = vmatpush1.xpose.msra.mxu0 0.0
    %5633 = vmatprep.subr.mxu0 0.0
    %5634 = vmatpush1.xpose.msra.mxu0 0.0
    %5635 = vmatprep.subr.mxu0 0.0
    %5636 = vmatpush1.xpose.msra.mxu0 0.0
    %5637 = vmatprep.subr.mxu0 0.0
    %5638 = vmatpush1.xpose.msra.mxu0 0.0
    %5639 = vmatprep.subr.mxu0 0.0
    %5640 = vmatpush1.xpose.msra.mxu0 0.0
    %5641 = vmatprep.subr.mxu0 0.0
    %5642 = vmatpush1.xpose.msra.mxu0 0.0
    %5643 = vmatprep.subr.mxu0 0.0
    %5644 = vmatpush1.xpose.msra.mxu0 0.0
    %5645 = vmatprep.mubr.f32.mxu0 0.0
    %v5646 = vand.u32 %v5274, 4294901760
    %5647 = vmatmul.mubr.f32.gmra.mrb[0].mxu0 %v5646
    %v5648 = vpop.f32.mrb[0].mxu0
    %v5649 = vadd.f32 %v5575, %v5648
    %v5650 = vpop.f32.mrb[0].mxu0
    %5651 = vdwg.mxu0
    %5652 = vmatprep.subr.mxu0 0.0
    %v5653 = vand.u32 %v5276, 4294901760
    %5654 = vmatpush1.xpose.msra.mxu0 %v5653
    %5655 = vmatprep.subr.mxu0 0.0
    %5656 = vmatpush1.xpose.msra.mxu0 0.0
    %5657 = vmatprep.subr.mxu0 0.0
    %5658 = vmatpush1.xpose.msra.mxu0 0.0
    %5659 = vmatprep.subr.mxu0 0.0
    %5660 = vmatpush1.xpose.msra.mxu0 0.0
    %5661 = vmatprep.subr.mxu0 0.0
    %5662 = vmatpush1.xpose.msra.mxu0 0.0
    %5663 = vmatprep.subr.mxu0 0.0
    %5664 = vmatpush1.xpose.msra.mxu0 0.0
    %5665 = vmatprep.subr.mxu0 0.0
    %5666 = vmatpush1.xpose.msra.mxu0 0.0
    %5667 = vmatprep.subr.mxu0 0.0
    %5668 = vmatpush1.xpose.msra.mxu0 0.0
    %5669 = vmatprep.subr.mxu0 0.0
    %5670 = vmatpush1.xpose.msra.mxu0 0.0
    %5671 = vmatprep.subr.mxu0 0.0
    %5672 = vmatpush1.xpose.msra.mxu0 0.0
    %5673 = vmatprep.subr.mxu0 0.0
    %5674 = vmatpush1.xpose.msra.mxu0 0.0
    %5675 = vmatprep.subr.mxu0 0.0
    %5676 = vmatpush1.xpose.msra.mxu0 0.0
    %5677 = vmatprep.subr.mxu0 0.0
    %5678 = vmatpush1.xpose.msra.mxu0 0.0
    %5679 = vmatprep.subr.mxu0 0.0
    %5680 = vmatpush1.xpose.msra.mxu0 0.0
    %5681 = vmatprep.subr.mxu0 0.0
    %5682 = vmatpush1.xpose.msra.mxu0 0.0
    %5683 = vmatprep.subr.mxu0 0.0
    %5684 = vmatpush1.xpose.msra.mxu0 0.0
    %5685 = vmatprep.subr.mxu0 0.0
    %5686 = vmatpush1.xpose.msra.mxu0 0.0
    %5687 = vmatprep.subr.mxu0 0.0
    %5688 = vmatpush1.xpose.msra.mxu0 0.0
    %5689 = vmatprep.subr.mxu0 0.0
    %5690 = vmatpush1.xpose.msra.mxu0 0.0
    %5691 = vmatprep.subr.mxu0 0.0
    %5692 = vmatpush1.xpose.msra.mxu0 0.0
    %5693 = vmatprep.subr.mxu0 0.0
    %5694 = vmatpush1.xpose.msra.mxu0 0.0
    %5695 = vmatprep.subr.mxu0 0.0
    %5696 = vmatpush1.xpose.msra.mxu0 0.0
    %5697 = vmatprep.subr.mxu0 0.0
    %5698 = vmatpush1.xpose.msra.mxu0 0.0
    %5699 = vmatprep.subr.mxu0 0.0
    %5700 = vmatpush1.xpose.msra.mxu0 0.0
    %5701 = vmatprep.subr.mxu0 0.0
    %5702 = vmatpush1.xpose.msra.mxu0 0.0
    %5703 = vmatprep.subr.mxu0 0.0
    %5704 = vmatpush1.xpose.msra.mxu0 0.0
    %5705 = vmatprep.subr.mxu0 0.0
    %5706 = vmatpush1.xpose.msra.mxu0 0.0
    %5707 = vmatprep.subr.mxu0 0.0
    %5708 = vmatpush1.xpose.msra.mxu0 0.0
    %5709 = vmatprep.subr.mxu0 0.0
    %5710 = vmatpush1.xpose.msra.mxu0 0.0
    %5711 = vmatprep.subr.mxu0 0.0
    %5712 = vmatpush1.xpose.msra.mxu0 0.0
    %5713 = vmatprep.subr.mxu0 0.0
    %5714 = vmatpush1.xpose.msra.mxu0 0.0
    %5715 = vmatprep.subr.mxu0 0.0
    %5716 = vmatpush1.xpose.msra.mxu0 0.0
    %5717 = vmatprep.mubr.f32.mxu0 0.0
    %v5718 = vand.u32 %v5274, 4294901760
    %5719 = vmatmul.mubr.f32.gmra.mrb[0].mxu0 %v5718
    %v5720 = vpop.f32.mrb[0].mxu0
    %v5721 = vadd.f32 %v5649, %v5720
    %v5722 = vpop.f32.mrb[0].mxu0
    %5723 = vdwg.mxu0
    %5724 = vrot.lane.b32.xlu0 %v607, 112
    %v5725 = vpop.permute.xlu0 %5724
    %5726 = vrot.lane.b32.xlu0 %v607, 80
    %v5727 = vpop.permute.xlu0 %5726
    %v5728 = vsel %vm613, %v5725, 0
    %v5730 = vsel %vm613, %v5727, 0
    %5732 = vmatprep.subr.mxu0 0.0
    %v5733 = vand.u32 %v5730, 4294901760
    %5734 = vmatpush1.xpose.msra.mxu0 %v5733
    %5735 = vmatprep.subr.mxu0 0.0
    %5736 = vmatpush1.xpose.msra.mxu0 0.0
    %5737 = vmatprep.subr.mxu0 0.0
    %5738 = vmatpush1.xpose.msra.mxu0 0.0
    %5739 = vmatprep.subr.mxu0 0.0
    %5740 = vmatpush1.xpose.msra.mxu0 0.0
    %5741 = vmatprep.subr.mxu0 0.0
    %5742 = vmatpush1.xpose.msra.mxu0 0.0
    %5743 = vmatprep.subr.mxu0 0.0
    %5744 = vmatpush1.xpose.msra.mxu0 0.0
    %5745 = vmatprep.subr.mxu0 0.0
    %5746 = vmatpush1.xpose.msra.mxu0 0.0
    %5747 = vmatprep.subr.mxu0 0.0
    %5748 = vmatpush1.xpose.msra.mxu0 0.0
    %5749 = vmatprep.subr.mxu0 0.0
    %5750 = vmatpush1.xpose.msra.mxu0 0.0
    %5751 = vmatprep.subr.mxu0 0.0
    %5752 = vmatpush1.xpose.msra.mxu0 0.0
    %5753 = vmatprep.subr.mxu0 0.0
    %5754 = vmatpush1.xpose.msra.mxu0 0.0
    %5755 = vmatprep.subr.mxu0 0.0
    %5756 = vmatpush1.xpose.msra.mxu0 0.0
    %5757 = vmatprep.subr.mxu0 0.0
    %5758 = vmatpush1.xpose.msra.mxu0 0.0
    %5759 = vmatprep.subr.mxu0 0.0
    %5760 = vmatpush1.xpose.msra.mxu0 0.0
    %5761 = vmatprep.subr.mxu0 0.0
    %5762 = vmatpush1.xpose.msra.mxu0 0.0
    %5763 = vmatprep.subr.mxu0 0.0
    %5764 = vmatpush1.xpose.msra.mxu0 0.0
    %5765 = vmatprep.subr.mxu0 0.0
    %5766 = vmatpush1.xpose.msra.mxu0 0.0
    %5767 = vmatprep.subr.mxu0 0.0
    %5768 = vmatpush1.xpose.msra.mxu0 0.0
    %5769 = vmatprep.subr.mxu0 0.0
    %5770 = vmatpush1.xpose.msra.mxu0 0.0
    %5771 = vmatprep.subr.mxu0 0.0
    %5772 = vmatpush1.xpose.msra.mxu0 0.0
    %5773 = vmatprep.subr.mxu0 0.0
    %5774 = vmatpush1.xpose.msra.mxu0 0.0
    %5775 = vmatprep.subr.mxu0 0.0
    %5776 = vmatpush1.xpose.msra.mxu0 0.0
    %5777 = vmatprep.subr.mxu0 0.0
    %5778 = vmatpush1.xpose.msra.mxu0 0.0
    %5779 = vmatprep.subr.mxu0 0.0
    %5780 = vmatpush1.xpose.msra.mxu0 0.0
    %5781 = vmatprep.subr.mxu0 0.0
    %5782 = vmatpush1.xpose.msra.mxu0 0.0
    %5783 = vmatprep.subr.mxu0 0.0
    %5784 = vmatpush1.xpose.msra.mxu0 0.0
    %5785 = vmatprep.subr.mxu0 0.0
    %5786 = vmatpush1.xpose.msra.mxu0 0.0
    %5787 = vmatprep.subr.mxu0 0.0
    %5788 = vmatpush1.xpose.msra.mxu0 0.0
    %5789 = vmatprep.subr.mxu0 0.0
    %5790 = vmatpush1.xpose.msra.mxu0 0.0
    %5791 = vmatprep.subr.mxu0 0.0
    %5792 = vmatpush1.xpose.msra.mxu0 0.0
    %5793 = vmatprep.subr.mxu0 0.0
    %5794 = vmatpush1.xpose.msra.mxu0 0.0
    %5795 = vmatprep.subr.mxu0 0.0
    %5796 = vmatpush1.xpose.msra.mxu0 0.0
    %5797 = vmatprep.mubr.f32.mxu0 0.0
    %v5798 = vand.u32 %v5728, 4294901760
    %v5799 = vsub.f32 %v5728, %v5798
    %v5800 = vand.u32 %v5799, 4294901760
    %v5801 = vsub.f32 %v5799, %v5800
    %v5802 = vand.u32 %v5801, 4294901760
    %5803 = vmatmul.mubr.f32.gmra.mrb[0].mxu0 %v5802
    %v5804 = vpop.f32.mrb[0].mxu0
    %v5805 = vadd.f32 0.0, %v5804
    %v5806 = vpop.f32.mrb[0].mxu0
    %5807 = vdwg.mxu0
    %5808 = vmatprep.subr.mxu0 0.0
    %v5809 = vand.u32 %v5730, 4294901760
    %v5810 = vsub.f32 %v5730, %v5809
    %v5811 = vand.u32 %v5810, 4294901760
    %v5812 = vsub.f32 %v5810, %v5811
    %v5813 = vand.u32 %v5812, 4294901760
    %5814 = vmatpush1.xpose.msra.mxu0 %v5813
    %5815 = vmatprep.subr.mxu0 0.0
    %5816 = vmatpush1.xpose.msra.mxu0 0.0
    %5817 = vmatprep.subr.mxu0 0.0
    %5818 = vmatpush1.xpose.msra.mxu0 0.0
    %5819 = vmatprep.subr.mxu0 0.0
    %5820 = vmatpush1.xpose.msra.mxu0 0.0
    %5821 = vmatprep.subr.mxu0 0.0
    %5822 = vmatpush1.xpose.msra.mxu0 0.0
    %5823 = vmatprep.subr.mxu0 0.0
    %5824 = vmatpush1.xpose.msra.mxu0 0.0
    %5825 = vmatprep.subr.mxu0 0.0
    %5826 = vmatpush1.xpose.msra.mxu0 0.0
    %5827 = vmatprep.subr.mxu0 0.0
    %5828 = vmatpush1.xpose.msra.mxu0 0.0
    %5829 = vmatprep.subr.mxu0 0.0
    %5830 = vmatpush1.xpose.msra.mxu0 0.0
    %5831 = vmatprep.subr.mxu0 0.0
    %5832 = vmatpush1.xpose.msra.mxu0 0.0
    %5833 = vmatprep.subr.mxu0 0.0
    %5834 = vmatpush1.xpose.msra.mxu0 0.0
    %5835 = vmatprep.subr.mxu0 0.0
    %5836 = vmatpush1.xpose.msra.mxu0 0.0
    %5837 = vmatprep.subr.mxu0 0.0
    %5838 = vmatpush1.xpose.msra.mxu0 0.0
    %5839 = vmatprep.subr.mxu0 0.0
    %5840 = vmatpush1.xpose.msra.mxu0 0.0
    %5841 = vmatprep.subr.mxu0 0.0
    %5842 = vmatpush1.xpose.msra.mxu0 0.0
    %5843 = vmatprep.subr.mxu0 0.0
    %5844 = vmatpush1.xpose.msra.mxu0 0.0
    %5845 = vmatprep.subr.mxu0 0.0
    %5846 = vmatpush1.xpose.msra.mxu0 0.0
    %5847 = vmatprep.subr.mxu0 0.0
    %5848 = vmatpush1.xpose.msra.mxu0 0.0
    %5849 = vmatprep.subr.mxu0 0.0
    %5850 = vmatpush1.xpose.msra.mxu0 0.0
    %5851 = vmatprep.subr.mxu0 0.0
    %5852 = vmatpush1.xpose.msra.mxu0 0.0
    %5853 = vmatprep.subr.mxu0 0.0
    %5854 = vmatpush1.xpose.msra.mxu0 0.0
    %5855 = vmatprep.subr.mxu0 0.0
    %5856 = vmatpush1.xpose.msra.mxu0 0.0
    %5857 = vmatprep.subr.mxu0 0.0
    %5858 = vmatpush1.xpose.msra.mxu0 0.0
    %5859 = vmatprep.subr.mxu0 0.0
    %5860 = vmatpush1.xpose.msra.mxu0 0.0
    %5861 = vmatprep.subr.mxu0 0.0
    %5862 = vmatpush1.xpose.msra.mxu0 0.0
    %5863 = vmatprep.subr.mxu0 0.0
    %5864 = vmatpush1.xpose.msra.mxu0 0.0
    %5865 = vmatprep.subr.mxu0 0.0
    %5866 = vmatpush1.xpose.msra.mxu0 0.0
    %5867 = vmatprep.subr.mxu0 0.0
    %5868 = vmatpush1.xpose.msra.mxu0 0.0
    %5869 = vmatprep.subr.mxu0 0.0
    %5870 = vmatpush1.xpose.msra.mxu0 0.0
    %5871 = vmatprep.subr.mxu0 0.0
    %5872 = vmatpush1.xpose.msra.mxu0 0.0
    %5873 = vmatprep.subr.mxu0 0.0
    %5874 = vmatpush1.xpose.msra.mxu0 0.0
    %5875 = vmatprep.subr.mxu0 0.0
    %5876 = vmatpush1.xpose.msra.mxu0 0.0
    %5877 = vmatprep.mubr.f32.mxu0 0.0
    %v5878 = vand.u32 %v5728, 4294901760
    %5879 = vmatmul.mubr.f32.gmra.mrb[0].mxu0 %v5878
    %v5880 = vpop.f32.mrb[0].mxu0
    %v5881 = vadd.f32 %v5805, %v5880
    %v5882 = vpop.f32.mrb[0].mxu0
    %5883 = vdwg.mxu0
    %5884 = vmatprep.subr.mxu0 0.0
    %v5885 = vand.u32 %v5730, 4294901760
    %v5886 = vsub.f32 %v5730, %v5885
    %5887 = vmatpush1.xpose.msra.mxu0 %v5886
    %5888 = vmatprep.subr.mxu0 0.0
    %5889 = vmatpush1.xpose.msra.mxu0 0.0
    %5890 = vmatprep.subr.mxu0 0.0
    %5891 = vmatpush1.xpose.msra.mxu0 0.0
    %5892 = vmatprep.subr.mxu0 0.0
    %5893 = vmatpush1.xpose.msra.mxu0 0.0
    %5894 = vmatprep.subr.mxu0 0.0
    %5895 = vmatpush1.xpose.msra.mxu0 0.0
    %5896 = vmatprep.subr.mxu0 0.0
    %5897 = vmatpush1.xpose.msra.mxu0 0.0
    %5898 = vmatprep.subr.mxu0 0.0
    %5899 = vmatpush1.xpose.msra.mxu0 0.0
    %5900 = vmatprep.subr.mxu0 0.0
    %5901 = vmatpush1.xpose.msra.mxu0 0.0
    %5902 = vmatprep.subr.mxu0 0.0
    %5903 = vmatpush1.xpose.msra.mxu0 0.0
    %5904 = vmatprep.subr.mxu0 0.0
    %5905 = vmatpush1.xpose.msra.mxu0 0.0
    %5906 = vmatprep.subr.mxu0 0.0
    %5907 = vmatpush1.xpose.msra.mxu0 0.0
    %5908 = vmatprep.subr.mxu0 0.0
    %5909 = vmatpush1.xpose.msra.mxu0 0.0
    %5910 = vmatprep.subr.mxu0 0.0
    %5911 = vmatpush1.xpose.msra.mxu0 0.0
    %5912 = vmatprep.subr.mxu0 0.0
    %5913 = vmatpush1.xpose.msra.mxu0 0.0
    %5914 = vmatprep.subr.mxu0 0.0
    %5915 = vmatpush1.xpose.msra.mxu0 0.0
    %5916 = vmatprep.subr.mxu0 0.0
    %5917 = vmatpush1.xpose.msra.mxu0 0.0
    %5918 = vmatprep.subr.mxu0 0.0
    %5919 = vmatpush1.xpose.msra.mxu0 0.0
    %5920 = vmatprep.subr.mxu0 0.0
    %5921 = vmatpush1.xpose.msra.mxu0 0.0
    %5922 = vmatprep.subr.mxu0 0.0
    %5923 = vmatpush1.xpose.msra.mxu0 0.0
    %5924 = vmatprep.subr.mxu0 0.0
    %5925 = vmatpush1.xpose.msra.mxu0 0.0
    %5926 = vmatprep.subr.mxu0 0.0
    %5927 = vmatpush1.xpose.msra.mxu0 0.0
    %5928 = vmatprep.subr.mxu0 0.0
    %5929 = vmatpush1.xpose.msra.mxu0 0.0
    %5930 = vmatprep.subr.mxu0 0.0
    %5931 = vmatpush1.xpose.msra.mxu0 0.0
    %5932 = vmatprep.subr.mxu0 0.0
    %5933 = vmatpush1.xpose.msra.mxu0 0.0
    %5934 = vmatprep.subr.mxu0 0.0
    %5935 = vmatpush1.xpose.msra.mxu0 0.0
    %5936 = vmatprep.subr.mxu0 0.0
    %5937 = vmatpush1.xpose.msra.mxu0 0.0
    %5938 = vmatprep.subr.mxu0 0.0
    %5939 = vmatpush1.xpose.msra.mxu0 0.0
    %5940 = vmatprep.subr.mxu0 0.0
    %5941 = vmatpush1.xpose.msra.mxu0 0.0
    %5942 = vmatprep.subr.mxu0 0.0
    %5943 = vmatpush1.xpose.msra.mxu0 0.0
    %5944 = vmatprep.subr.mxu0 0.0
    %5945 = vmatpush1.xpose.msra.mxu0 0.0
    %5946 = vmatprep.subr.mxu0 0.0
    %5947 = vmatpush1.xpose.msra.mxu0 0.0
    %5948 = vmatprep.subr.mxu0 0.0
    %5949 = vmatpush1.xpose.msra.mxu0 0.0
    %5950 = vmatprep.mubr.f32.mxu0 0.0
    %v5951 = vand.u32 %v5728, 4294901760
    %v5952 = vsub.f32 %v5728, %v5951
    %5953 = vmatmul.mubr.f32.gmra.mrb[0].mxu0 %v5952
    %v5954 = vpop.f32.mrb[0].mxu0
    %v5955 = vadd.f32 %v5881, %v5954
    %v5956 = vpop.f32.mrb[0].mxu0
    %5957 = vdwg.mxu0
    %5958 = vmatprep.subr.mxu0 0.0
    %v5959 = vand.u32 %v5730, 4294901760
    %5960 = vmatpush1.xpose.msra.mxu0 %v5959
    %5961 = vmatprep.subr.mxu0 0.0
    %5962 = vmatpush1.xpose.msra.mxu0 0.0
    %5963 = vmatprep.subr.mxu0 0.0
    %5964 = vmatpush1.xpose.msra.mxu0 0.0
    %5965 = vmatprep.subr.mxu0 0.0
    %5966 = vmatpush1.xpose.msra.mxu0 0.0
    %5967 = vmatprep.subr.mxu0 0.0
    %5968 = vmatpush1.xpose.msra.mxu0 0.0
    %5969 = vmatprep.subr.mxu0 0.0
    %5970 = vmatpush1.xpose.msra.mxu0 0.0
    %5971 = vmatprep.subr.mxu0 0.0
    %5972 = vmatpush1.xpose.msra.mxu0 0.0
    %5973 = vmatprep.subr.mxu0 0.0
    %5974 = vmatpush1.xpose.msra.mxu0 0.0
    %5975 = vmatprep.subr.mxu0 0.0
    %5976 = vmatpush1.xpose.msra.mxu0 0.0
    %5977 = vmatprep.subr.mxu0 0.0
    %5978 = vmatpush1.xpose.msra.mxu0 0.0
    %5979 = vmatprep.subr.mxu0 0.0
    %5980 = vmatpush1.xpose.msra.mxu0 0.0
    %5981 = vmatprep.subr.mxu0 0.0
    %5982 = vmatpush1.xpose.msra.mxu0 0.0
    %5983 = vmatprep.subr.mxu0 0.0
    %5984 = vmatpush1.xpose.msra.mxu0 0.0
    %5985 = vmatprep.subr.mxu0 0.0
    %5986 = vmatpush1.xpose.msra.mxu0 0.0
    %5987 = vmatprep.subr.mxu0 0.0
    %5988 = vmatpush1.xpose.msra.mxu0 0.0
    %5989 = vmatprep.subr.mxu0 0.0
    %5990 = vmatpush1.xpose.msra.mxu0 0.0
    %5991 = vmatprep.subr.mxu0 0.0
    %5992 = vmatpush1.xpose.msra.mxu0 0.0
    %5993 = vmatprep.subr.mxu0 0.0
    %5994 = vmatpush1.xpose.msra.mxu0 0.0
    %5995 = vmatprep.subr.mxu0 0.0
    %5996 = vmatpush1.xpose.msra.mxu0 0.0
    %5997 = vmatprep.subr.mxu0 0.0
    %5998 = vmatpush1.xpose.msra.mxu0 0.0
    %5999 = vmatprep.subr.mxu0 0.0
    %6000 = vmatpush1.xpose.msra.mxu0 0.0
    %6001 = vmatprep.subr.mxu0 0.0
    %6002 = vmatpush1.xpose.msra.mxu0 0.0
    %6003 = vmatprep.subr.mxu0 0.0
    %6004 = vmatpush1.xpose.msra.mxu0 0.0
    %6005 = vmatprep.subr.mxu0 0.0
    %6006 = vmatpush1.xpose.msra.mxu0 0.0
    %6007 = vmatprep.subr.mxu0 0.0
    %6008 = vmatpush1.xpose.msra.mxu0 0.0
    %6009 = vmatprep.subr.mxu0 0.0
    %6010 = vmatpush1.xpose.msra.mxu0 0.0
    %6011 = vmatprep.subr.mxu0 0.0
    %6012 = vmatpush1.xpose.msra.mxu0 0.0
    %6013 = vmatprep.subr.mxu0 0.0
    %6014 = vmatpush1.xpose.msra.mxu0 0.0
    %6015 = vmatprep.subr.mxu0 0.0
    %6016 = vmatpush1.xpose.msra.mxu0 0.0
    %6017 = vmatprep.subr.mxu0 0.0
    %6018 = vmatpush1.xpose.msra.mxu0 0.0
    %6019 = vmatprep.subr.mxu0 0.0
    %6020 = vmatpush1.xpose.msra.mxu0 0.0
    %6021 = vmatprep.subr.mxu0 0.0
    %6022 = vmatpush1.xpose.msra.mxu0 0.0
    %6023 = vmatprep.mubr.f32.mxu0 0.0
    %v6024 = vand.u32 %v5728, 4294901760
    %v6025 = vsub.f32 %v5728, %v6024
    %v6026 = vand.u32 %v6025, 4294901760
    %6027 = vmatmul.mubr.f32.gmra.mrb[0].mxu0 %v6026
    %v6028 = vpop.f32.mrb[0].mxu0
    %v6029 = vadd.f32 %v5955, %v6028
    %v6030 = vpop.f32.mrb[0].mxu0
    %6031 = vdwg.mxu0
    %6032 = vmatprep.subr.mxu0 0.0
    %v6033 = vand.u32 %v5730, 4294901760
    %v6034 = vsub.f32 %v5730, %v6033
    %v6035 = vand.u32 %v6034, 4294901760
    %6036 = vmatpush1.xpose.msra.mxu0 %v6035
    %6037 = vmatprep.subr.mxu0 0.0
    %6038 = vmatpush1.xpose.msra.mxu0 0.0
    %6039 = vmatprep.subr.mxu0 0.0
    %6040 = vmatpush1.xpose.msra.mxu0 0.0
    %6041 = vmatprep.subr.mxu0 0.0
    %6042 = vmatpush1.xpose.msra.mxu0 0.0
    %6043 = vmatprep.subr.mxu0 0.0
    %6044 = vmatpush1.xpose.msra.mxu0 0.0
    %6045 = vmatprep.subr.mxu0 0.0
    %6046 = vmatpush1.xpose.msra.mxu0 0.0
    %6047 = vmatprep.subr.mxu0 0.0
    %6048 = vmatpush1.xpose.msra.mxu0 0.0
    %6049 = vmatprep.subr.mxu0 0.0
    %6050 = vmatpush1.xpose.msra.mxu0 0.0
    %6051 = vmatprep.subr.mxu0 0.0
    %6052 = vmatpush1.xpose.msra.mxu0 0.0
    %6053 = vmatprep.subr.mxu0 0.0
    %6054 = vmatpush1.xpose.msra.mxu0 0.0
    %6055 = vmatprep.subr.mxu0 0.0
    %6056 = vmatpush1.xpose.msra.mxu0 0.0
    %6057 = vmatprep.subr.mxu0 0.0
    %6058 = vmatpush1.xpose.msra.mxu0 0.0
    %6059 = vmatprep.subr.mxu0 0.0
    %6060 = vmatpush1.xpose.msra.mxu0 0.0
    %6061 = vmatprep.subr.mxu0 0.0
    %6062 = vmatpush1.xpose.msra.mxu0 0.0
    %6063 = vmatprep.subr.mxu0 0.0
    %6064 = vmatpush1.xpose.msra.mxu0 0.0
    %6065 = vmatprep.subr.mxu0 0.0
    %6066 = vmatpush1.xpose.msra.mxu0 0.0
    %6067 = vmatprep.subr.mxu0 0.0
    %6068 = vmatpush1.xpose.msra.mxu0 0.0
    %6069 = vmatprep.subr.mxu0 0.0
    %6070 = vmatpush1.xpose.msra.mxu0 0.0
    %6071 = vmatprep.subr.mxu0 0.0
    %6072 = vmatpush1.xpose.msra.mxu0 0.0
    %6073 = vmatprep.subr.mxu0 0.0
    %6074 = vmatpush1.xpose.msra.mxu0 0.0
    %6075 = vmatprep.subr.mxu0 0.0
    %6076 = vmatpush1.xpose.msra.mxu0 0.0
    %6077 = vmatprep.subr.mxu0 0.0
    %6078 = vmatpush1.xpose.msra.mxu0 0.0
    %6079 = vmatprep.subr.mxu0 0.0
    %6080 = vmatpush1.xpose.msra.mxu0 0.0
    %6081 = vmatprep.subr.mxu0 0.0
    %6082 = vmatpush1.xpose.msra.mxu0 0.0
    %6083 = vmatprep.subr.mxu0 0.0
    %6084 = vmatpush1.xpose.msra.mxu0 0.0
    %6085 = vmatprep.subr.mxu0 0.0
    %6086 = vmatpush1.xpose.msra.mxu0 0.0
    %6087 = vmatprep.subr.mxu0 0.0
    %6088 = vmatpush1.xpose.msra.mxu0 0.0
    %6089 = vmatprep.subr.mxu0 0.0
    %6090 = vmatpush1.xpose.msra.mxu0 0.0
    %6091 = vmatprep.subr.mxu0 0.0
    %6092 = vmatpush1.xpose.msra.mxu0 0.0
    %6093 = vmatprep.subr.mxu0 0.0
    %6094 = vmatpush1.xpose.msra.mxu0 0.0
    %6095 = vmatprep.subr.mxu0 0.0
    %6096 = vmatpush1.xpose.msra.mxu0 0.0
    %6097 = vmatprep.subr.mxu0 0.0
    %6098 = vmatpush1.xpose.msra.mxu0 0.0
    %6099 = vmatprep.mubr.f32.mxu0 0.0
    %v6100 = vand.u32 %v5728, 4294901760
    %6101 = vmatmul.mubr.f32.gmra.mrb[0].mxu0 %v6100
    %v6102 = vpop.f32.mrb[0].mxu0
    %v6103 = vadd.f32 %v6029, %v6102
    %v6104 = vpop.f32.mrb[0].mxu0
    %6105 = vdwg.mxu0
    %6106 = vmatprep.subr.mxu0 0.0
    %v6107 = vand.u32 %v5730, 4294901760
    %6108 = vmatpush1.xpose.msra.mxu0 %v6107
    %6109 = vmatprep.subr.mxu0 0.0
    %6110 = vmatpush1.xpose.msra.mxu0 0.0
    %6111 = vmatprep.subr.mxu0 0.0
    %6112 = vmatpush1.xpose.msra.mxu0 0.0
    %6113 = vmatprep.subr.mxu0 0.0
    %6114 = vmatpush1.xpose.msra.mxu0 0.0
    %6115 = vmatprep.subr.mxu0 0.0
    %6116 = vmatpush1.xpose.msra.mxu0 0.0
    %6117 = vmatprep.subr.mxu0 0.0
    %6118 = vmatpush1.xpose.msra.mxu0 0.0
    %6119 = vmatprep.subr.mxu0 0.0
    %6120 = vmatpush1.xpose.msra.mxu0 0.0
    %6121 = vmatprep.subr.mxu0 0.0
    %6122 = vmatpush1.xpose.msra.mxu0 0.0
    %6123 = vmatprep.subr.mxu0 0.0
    %6124 = vmatpush1.xpose.msra.mxu0 0.0
    %6125 = vmatprep.subr.mxu0 0.0
    %6126 = vmatpush1.xpose.msra.mxu0 0.0
    %6127 = vmatprep.subr.mxu0 0.0
    %6128 = vmatpush1.xpose.msra.mxu0 0.0
    %6129 = vmatprep.subr.mxu0 0.0
    %6130 = vmatpush1.xpose.msra.mxu0 0.0
    %6131 = vmatprep.subr.mxu0 0.0
    %6132 = vmatpush1.xpose.msra.mxu0 0.0
    %6133 = vmatprep.subr.mxu0 0.0
    %6134 = vmatpush1.xpose.msra.mxu0 0.0
    %6135 = vmatprep.subr.mxu0 0.0
    %6136 = vmatpush1.xpose.msra.mxu0 0.0
    %6137 = vmatprep.subr.mxu0 0.0
    %6138 = vmatpush1.xpose.msra.mxu0 0.0
    %6139 = vmatprep.subr.mxu0 0.0
    %6140 = vmatpush1.xpose.msra.mxu0 0.0
    %6141 = vmatprep.subr.mxu0 0.0
    %6142 = vmatpush1.xpose.msra.mxu0 0.0
    %6143 = vmatprep.subr.mxu0 0.0
    %6144 = vmatpush1.xpose.msra.mxu0 0.0
    %6145 = vmatprep.subr.mxu0 0.0
    %6146 = vmatpush1.xpose.msra.mxu0 0.0
    %6147 = vmatprep.subr.mxu0 0.0
    %6148 = vmatpush1.xpose.msra.mxu0 0.0
    %6149 = vmatprep.subr.mxu0 0.0
    %6150 = vmatpush1.xpose.msra.mxu0 0.0
    %6151 = vmatprep.subr.mxu0 0.0
    %6152 = vmatpush1.xpose.msra.mxu0 0.0
    %6153 = vmatprep.subr.mxu0 0.0
    %6154 = vmatpush1.xpose.msra.mxu0 0.0
    %6155 = vmatprep.subr.mxu0 0.0
    %6156 = vmatpush1.xpose.msra.mxu0 0.0
    %6157 = vmatprep.subr.mxu0 0.0
    %6158 = vmatpush1.xpose.msra.mxu0 0.0
    %6159 = vmatprep.subr.mxu0 0.0
    %6160 = vmatpush1.xpose.msra.mxu0 0.0
    %6161 = vmatprep.subr.mxu0 0.0
    %6162 = vmatpush1.xpose.msra.mxu0 0.0
    %6163 = vmatprep.subr.mxu0 0.0
    %6164 = vmatpush1.xpose.msra.mxu0 0.0
    %6165 = vmatprep.subr.mxu0 0.0
    %6166 = vmatpush1.xpose.msra.mxu0 0.0
    %6167 = vmatprep.subr.mxu0 0.0
    %6168 = vmatpush1.xpose.msra.mxu0 0.0
    %6169 = vmatprep.subr.mxu0 0.0
    %6170 = vmatpush1.xpose.msra.mxu0 0.0
    %6171 = vmatprep.mubr.f32.mxu0 0.0
    %v6172 = vand.u32 %v5728, 4294901760
    %6173 = vmatmul.mubr.f32.gmra.mrb[0].mxu0 %v6172
    %v6174 = vpop.f32.mrb[0].mxu0
    %v6175 = vadd.f32 %v6103, %v6174
    %v6176 = vpop.f32.mrb[0].mxu0
    %6177 = vdwg.mxu0
    %v6178 = vsel %vm613, %v5721, -inf
    %6179 = vmax.xlane.f32.xlu0 %v6178
    %v6180 = vpop.xlane.xlu0 %6179
    %v6181 = vsel %vm613, %v6175, -inf
    %6182 = vmax.xlane.f32.xlu0 %v6181
    %v6183 = vpop.xlane.xlu0 %6182
    %v6184 = vsub.f32 %v5721, %v6180
    %v6185 = vsub.f32 %v6175, %v6183
    %v6186 = vmul.f32 %v6184, 1.442695
    %v6187 = vpow.pop %v6186
    %v6188 = vmul.f32 %v6185, 1.442695
    %v6189 = vpow.pop %v6188
    %v6190 = vsel %vm613, %v6187, 0.0
    %6191 = vadd.xlane.f32.xlu0 %v6190
    %v6192 = vpop.xlane.xlu0 %6191
    %v6193 = vsel %vm613, %v6189, 0.0
    %6194 = vadd.xlane.f32.xlu0 %v6193
    %v6195 = vpop.xlane.xlu0 %6194
    %v6196 = vrcp.pop %v6192
    %v6197 = vrcp.pop %v6195
    %v6198 = vmul.f32 %v6187, %v6196
    %v6199 = vmul.f32 %v6189, %v6197
    %6200 = vrot.lane.b32.xlu0 %v601, 48
    %v6201 = vpop.permute.xlu0 %6200
    %v6204 = vsel %vm613, %v6198, 0
    %6206 = vmatprep.subr.mxu0 0.0
    %v6207 = vand.u32 %v6201, 4294901760
    %6208 = vmatpush1.msra.mxu0 %v6207
    %6209 = vmatprep.subr.mxu0 0.0
    %6210 = vmatpush1.msra.mxu0 0.0
    %6211 = vmatprep.subr.mxu0 0.0
    %6212 = vmatpush1.msra.mxu0 0.0
    %6213 = vmatprep.subr.mxu0 0.0
    %6214 = vmatpush1.msra.mxu0 0.0
    %6215 = vmatprep.subr.mxu0 0.0
    %6216 = vmatpush1.msra.mxu0 0.0
    %6217 = vmatprep.subr.mxu0 0.0
    %6218 = vmatpush1.msra.mxu0 0.0
    %6219 = vmatprep.subr.mxu0 0.0
    %6220 = vmatpush1.msra.mxu0 0.0
    %6221 = vmatprep.subr.mxu0 0.0
    %6222 = vmatpush1.msra.mxu0 0.0
    %6223 = vmatprep.subr.mxu0 0.0
    %6224 = vmatpush1.msra.mxu0 0.0
    %6225 = vmatprep.subr.mxu0 0.0
    %6226 = vmatpush1.msra.mxu0 0.0
    %6227 = vmatprep.subr.mxu0 0.0
    %6228 = vmatpush1.msra.mxu0 0.0
    %6229 = vmatprep.subr.mxu0 0.0
    %6230 = vmatpush1.msra.mxu0 0.0
    %6231 = vmatprep.subr.mxu0 0.0
    %6232 = vmatpush1.msra.mxu0 0.0
    %6233 = vmatprep.subr.mxu0 0.0
    %6234 = vmatpush1.msra.mxu0 0.0
    %6235 = vmatprep.subr.mxu0 0.0
    %6236 = vmatpush1.msra.mxu0 0.0
    %6237 = vmatprep.subr.mxu0 0.0
    %6238 = vmatpush1.msra.mxu0 0.0
    %6239 = vmatprep.subr.mxu0 0.0
    %6240 = vmatpush1.msra.mxu0 0.0
    %6241 = vmatprep.subr.mxu0 0.0
    %6242 = vmatpush1.msra.mxu0 0.0
    %6243 = vmatprep.subr.mxu0 0.0
    %6244 = vmatpush1.msra.mxu0 0.0
    %6245 = vmatprep.subr.mxu0 0.0
    %6246 = vmatpush1.msra.mxu0 0.0
    %6247 = vmatprep.subr.mxu0 0.0
    %6248 = vmatpush1.msra.mxu0 0.0
    %6249 = vmatprep.subr.mxu0 0.0
    %6250 = vmatpush1.msra.mxu0 0.0
    %6251 = vmatprep.subr.mxu0 0.0
    %6252 = vmatpush1.msra.mxu0 0.0
    %6253 = vmatprep.subr.mxu0 0.0
    %6254 = vmatpush1.msra.mxu0 0.0
    %6255 = vmatprep.subr.mxu0 0.0
    %6256 = vmatpush1.msra.mxu0 0.0
    %6257 = vmatprep.subr.mxu0 0.0
    %6258 = vmatpush1.msra.mxu0 0.0
    %6259 = vmatprep.subr.mxu0 0.0
    %6260 = vmatpush1.msra.mxu0 0.0
    %6261 = vmatprep.subr.mxu0 0.0
    %6262 = vmatpush1.msra.mxu0 0.0
    %6263 = vmatprep.subr.mxu0 0.0
    %6264 = vmatpush1.msra.mxu0 0.0
    %6265 = vmatprep.subr.mxu0 0.0
    %6266 = vmatpush1.msra.mxu0 0.0
    %6267 = vmatprep.subr.mxu0 0.0
    %6268 = vmatpush1.msra.mxu0 0.0
    %6269 = vmatprep.subr.mxu0 0.0
    %6270 = vmatpush1.msra.mxu0 0.0
    %6271 = vmatprep.mubr.f32.mxu0 0.0
    %v6272 = vand.u32 %v6204, 4294901760
    %v6273 = vsub.f32 %v6204, %v6272
    %v6274 = vand.u32 %v6273, 4294901760
    %v6275 = vsub.f32 %v6273, %v6274
    %v6276 = vand.u32 %v6275, 4294901760
    %6277 = vmatmul.mubr.f32.gmra.mrb[0].mxu0 %v6276
    %v6278 = vpop.f32.mrb[0].mxu0
    %v6279 = vadd.f32 0.0, %v6278
    %v6280 = vpop.f32.mrb[0].mxu0
    %6281 = vdwg.mxu0
    %6282 = vmatprep.subr.mxu0 0.0
    %v6283 = vand.u32 %v6201, 4294901760
    %v6284 = vsub.f32 %v6201, %v6283
    %v6285 = vand.u32 %v6284, 4294901760
    %v6286 = vsub.f32 %v6284, %v6285
    %v6287 = vand.u32 %v6286, 4294901760
    %6288 = vmatpush1.msra.mxu0 %v6287
    %6289 = vmatprep.subr.mxu0 0.0
    %6290 = vmatpush1.msra.mxu0 0.0
    %6291 = vmatprep.subr.mxu0 0.0
    %6292 = vmatpush1.msra.mxu0 0.0
    %6293 = vmatprep.subr.mxu0 0.0
    %6294 = vmatpush1.msra.mxu0 0.0
    %6295 = vmatprep.subr.mxu0 0.0
    %6296 = vmatpush1.msra.mxu0 0.0
    %6297 = vmatprep.subr.mxu0 0.0
    %6298 = vmatpush1.msra.mxu0 0.0
    %6299 = vmatprep.subr.mxu0 0.0
    %6300 = vmatpush1.msra.mxu0 0.0
    %6301 = vmatprep.subr.mxu0 0.0
    %6302 = vmatpush1.msra.mxu0 0.0
    %6303 = vmatprep.subr.mxu0 0.0
    %6304 = vmatpush1.msra.mxu0 0.0
    %6305 = vmatprep.subr.mxu0 0.0
    %6306 = vmatpush1.msra.mxu0 0.0
    %6307 = vmatprep.subr.mxu0 0.0
    %6308 = vmatpush1.msra.mxu0 0.0
    %6309 = vmatprep.subr.mxu0 0.0
    %6310 = vmatpush1.msra.mxu0 0.0
    %6311 = vmatprep.subr.mxu0 0.0
    %6312 = vmatpush1.msra.mxu0 0.0
    %6313 = vmatprep.subr.mxu0 0.0
    %6314 = vmatpush1.msra.mxu0 0.0
    %6315 = vmatprep.subr.mxu0 0.0
    %6316 = vmatpush1.msra.mxu0 0.0
    %6317 = vmatprep.subr.mxu0 0.0
    %6318 = vmatpush1.msra.mxu0 0.0
    %6319 = vmatprep.subr.mxu0 0.0
    %6320 = vmatpush1.msra.mxu0 0.0
    %6321 = vmatprep.subr.mxu0 0.0
    %6322 = vmatpush1.msra.mxu0 0.0
    %6323 = vmatprep.subr.mxu0 0.0
    %6324 = vmatpush1.msra.mxu0 0.0
    %6325 = vmatprep.subr.mxu0 0.0
    %6326 = vmatpush1.msra.mxu0 0.0
    %6327 = vmatprep.subr.mxu0 0.0
    %6328 = vmatpush1.msra.mxu0 0.0
    %6329 = vmatprep.subr.mxu0 0.0
    %6330 = vmatpush1.msra.mxu0 0.0
    %6331 = vmatprep.subr.mxu0 0.0
    %6332 = vmatpush1.msra.mxu0 0.0
    %6333 = vmatprep.subr.mxu0 0.0
    %6334 = vmatpush1.msra.mxu0 0.0
    %6335 = vmatprep.subr.mxu0 0.0
    %6336 = vmatpush1.msra.mxu0 0.0
    %6337 = vmatprep.subr.mxu0 0.0
    %6338 = vmatpush1.msra.mxu0 0.0
    %6339 = vmatprep.subr.mxu0 0.0
    %6340 = vmatpush1.msra.mxu0 0.0
    %6341 = vmatprep.subr.mxu0 0.0
    %6342 = vmatpush1.msra.mxu0 0.0
    %6343 = vmatprep.subr.mxu0 0.0
    %6344 = vmatpush1.msra.mxu0 0.0
    %6345 = vmatprep.subr.mxu0 0.0
    %6346 = vmatpush1.msra.mxu0 0.0
    %6347 = vmatprep.subr.mxu0 0.0
    %6348 = vmatpush1.msra.mxu0 0.0
    %6349 = vmatprep.subr.mxu0 0.0
    %6350 = vmatpush1.msra.mxu0 0.0
    %6351 = vmatprep.mubr.f32.mxu0 0.0
    %v6352 = vand.u32 %v6204, 4294901760
    %6353 = vmatmul.mubr.f32.gmra.mrb[0].mxu0 %v6352
    %v6354 = vpop.f32.mrb[0].mxu0
    %v6355 = vadd.f32 %v6279, %v6354
    %v6356 = vpop.f32.mrb[0].mxu0
    %6357 = vdwg.mxu0
    %6358 = vmatprep.subr.mxu0 0.0
    %v6359 = vand.u32 %v6201, 4294901760
    %v6360 = vsub.f32 %v6201, %v6359
    %6361 = vmatpush1.msra.mxu0 %v6360
    %6362 = vmatprep.subr.mxu0 0.0
    %6363 = vmatpush1.msra.mxu0 0.0
    %6364 = vmatprep.subr.mxu0 0.0
    %6365 = vmatpush1.msra.mxu0 0.0
    %6366 = vmatprep.subr.mxu0 0.0
    %6367 = vmatpush1.msra.mxu0 0.0
    %6368 = vmatprep.subr.mxu0 0.0
    %6369 = vmatpush1.msra.mxu0 0.0
    %6370 = vmatprep.subr.mxu0 0.0
    %6371 = vmatpush1.msra.mxu0 0.0
    %6372 = vmatprep.subr.mxu0 0.0
    %6373 = vmatpush1.msra.mxu0 0.0
    %6374 = vmatprep.subr.mxu0 0.0
    %6375 = vmatpush1.msra.mxu0 0.0
    %6376 = vmatprep.subr.mxu0 0.0
    %6377 = vmatpush1.msra.mxu0 0.0
    %6378 = vmatprep.subr.mxu0 0.0
    %6379 = vmatpush1.msra.mxu0 0.0
    %6380 = vmatprep.subr.mxu0 0.0
    %6381 = vmatpush1.msra.mxu0 0.0
    %6382 = vmatprep.subr.mxu0 0.0
    %6383 = vmatpush1.msra.mxu0 0.0
    %6384 = vmatprep.subr.mxu0 0.0
    %6385 = vmatpush1.msra.mxu0 0.0
    %6386 = vmatprep.subr.mxu0 0.0
    %6387 = vmatpush1.msra.mxu0 0.0
    %6388 = vmatprep.subr.mxu0 0.0
    %6389 = vmatpush1.msra.mxu0 0.0
    %6390 = vmatprep.subr.mxu0 0.0
    %6391 = vmatpush1.msra.mxu0 0.0
    %6392 = vmatprep.subr.mxu0 0.0
    %6393 = vmatpush1.msra.mxu0 0.0
    %6394 = vmatprep.subr.mxu0 0.0
    %6395 = vmatpush1.msra.mxu0 0.0
    %6396 = vmatprep.subr.mxu0 0.0
    %6397 = vmatpush1.msra.mxu0 0.0
    %6398 = vmatprep.subr.mxu0 0.0
    %6399 = vmatpush1.msra.mxu0 0.0
    %6400 = vmatprep.subr.mxu0 0.0
    %6401 = vmatpush1.msra.mxu0 0.0
    %6402 = vmatprep.subr.mxu0 0.0
    %6403 = vmatpush1.msra.mxu0 0.0
    %6404 = vmatprep.subr.mxu0 0.0
    %6405 = vmatpush1.msra.mxu0 0.0
    %6406 = vmatprep.subr.mxu0 0.0
    %6407 = vmatpush1.msra.mxu0 0.0
    %6408 = vmatprep.subr.mxu0 0.0
    %6409 = vmatpush1.msra.mxu0 0.0
    %6410 = vmatprep.subr.mxu0 0.0
    %6411 = vmatpush1.msra.mxu0 0.0
    %6412 = vmatprep.subr.mxu0 0.0
    %6413 = vmatpush1.msra.mxu0 0.0
    %6414 = vmatprep.subr.mxu0 0.0
    %6415 = vmatpush1.msra.mxu0 0.0
    %6416 = vmatprep.subr.mxu0 0.0
    %6417 = vmatpush1.msra.mxu0 0.0
    %6418 = vmatprep.subr.mxu0 0.0
    %6419 = vmatpush1.msra.mxu0 0.0
    %6420 = vmatprep.subr.mxu0 0.0
    %6421 = vmatpush1.msra.mxu0 0.0
    %6422 = vmatprep.subr.mxu0 0.0
    %6423 = vmatpush1.msra.mxu0 0.0
    %6424 = vmatprep.mubr.f32.mxu0 0.0
    %v6425 = vand.u32 %v6204, 4294901760
    %v6426 = vsub.f32 %v6204, %v6425
    %6427 = vmatmul.mubr.f32.gmra.mrb[0].mxu0 %v6426
    %v6428 = vpop.f32.mrb[0].mxu0
    %v6429 = vadd.f32 %v6355, %v6428
    %v6430 = vpop.f32.mrb[0].mxu0
    %6431 = vdwg.mxu0
    %6432 = vmatprep.subr.mxu0 0.0
    %v6433 = vand.u32 %v6201, 4294901760
    %6434 = vmatpush1.msra.mxu0 %v6433
    %6435 = vmatprep.subr.mxu0 0.0
    %6436 = vmatpush1.msra.mxu0 0.0
    %6437 = vmatprep.subr.mxu0 0.0
    %6438 = vmatpush1.msra.mxu0 0.0
    %6439 = vmatprep.subr.mxu0 0.0
    %6440 = vmatpush1.msra.mxu0 0.0
    %6441 = vmatprep.subr.mxu0 0.0
    %6442 = vmatpush1.msra.mxu0 0.0
    %6443 = vmatprep.subr.mxu0 0.0
    %6444 = vmatpush1.msra.mxu0 0.0
    %6445 = vmatprep.subr.mxu0 0.0
    %6446 = vmatpush1.msra.mxu0 0.0
    %6447 = vmatprep.subr.mxu0 0.0
    %6448 = vmatpush1.msra.mxu0 0.0
    %6449 = vmatprep.subr.mxu0 0.0
    %6450 = vmatpush1.msra.mxu0 0.0
    %6451 = vmatprep.subr.mxu0 0.0
    %6452 = vmatpush1.msra.mxu0 0.0
    %6453 = vmatprep.subr.mxu0 0.0
    %6454 = vmatpush1.msra.mxu0 0.0
    %6455 = vmatprep.subr.mxu0 0.0
    %6456 = vmatpush1.msra.mxu0 0.0
    %6457 = vmatprep.subr.mxu0 0.0
    %6458 = vmatpush1.msra.mxu0 0.0
    %6459 = vmatprep.subr.mxu0 0.0
    %6460 = vmatpush1.msra.mxu0 0.0
    %6461 = vmatprep.subr.mxu0 0.0
    %6462 = vmatpush1.msra.mxu0 0.0
    %6463 = vmatprep.subr.mxu0 0.0
    %6464 = vmatpush1.msra.mxu0 0.0
    %6465 = vmatprep.subr.mxu0 0.0
    %6466 = vmatpush1.msra.mxu0 0.0
    %6467 = vmatprep.subr.mxu0 0.0
    %6468 = vmatpush1.msra.mxu0 0.0
    %6469 = vmatprep.subr.mxu0 0.0
    %6470 = vmatpush1.msra.mxu0 0.0
    %6471 = vmatprep.subr.mxu0 0.0
    %6472 = vmatpush1.msra.mxu0 0.0
    %6473 = vmatprep.subr.mxu0 0.0
    %6474 = vmatpush1.msra.mxu0 0.0
    %6475 = vmatprep.subr.mxu0 0.0
    %6476 = vmatpush1.msra.mxu0 0.0
    %6477 = vmatprep.subr.mxu0 0.0
    %6478 = vmatpush1.msra.mxu0 0.0
    %6479 = vmatprep.subr.mxu0 0.0
    %6480 = vmatpush1.msra.mxu0 0.0
    %6481 = vmatprep.subr.mxu0 0.0
    %6482 = vmatpush1.msra.mxu0 0.0
    %6483 = vmatprep.subr.mxu0 0.0
    %6484 = vmatpush1.msra.mxu0 0.0
    %6485 = vmatprep.subr.mxu0 0.0
    %6486 = vmatpush1.msra.mxu0 0.0
    %6487 = vmatprep.subr.mxu0 0.0
    %6488 = vmatpush1.msra.mxu0 0.0
    %6489 = vmatprep.subr.mxu0 0.0
    %6490 = vmatpush1.msra.mxu0 0.0
    %6491 = vmatprep.subr.mxu0 0.0
    %6492 = vmatpush1.msra.mxu0 0.0
    %6493 = vmatprep.subr.mxu0 0.0
    %6494 = vmatpush1.msra.mxu0 0.0
    %6495 = vmatprep.subr.mxu0 0.0
    %6496 = vmatpush1.msra.mxu0 0.0
    %6497 = vmatprep.mubr.f32.mxu0 0.0
    %v6498 = vand.u32 %v6204, 4294901760
    %v6499 = vsub.f32 %v6204, %v6498
    %v6500 = vand.u32 %v6499, 4294901760
    %6501 = vmatmul.mubr.f32.gmra.mrb[0].mxu0 %v6500
    %v6502 = vpop.f32.mrb[0].mxu0
    %v6503 = vadd.f32 %v6429, %v6502
    %v6504 = vpop.f32.mrb[0].mxu0
    %6505 = vdwg.mxu0
    %6506 = vmatprep.subr.mxu0 0.0
    %v6507 = vand.u32 %v6201, 4294901760
    %v6508 = vsub.f32 %v6201, %v6507
    %v6509 = vand.u32 %v6508, 4294901760
    %6510 = vmatpush1.msra.mxu0 %v6509
    %6511 = vmatprep.subr.mxu0 0.0
    %6512 = vmatpush1.msra.mxu0 0.0
    %6513 = vmatprep.subr.mxu0 0.0
    %6514 = vmatpush1.msra.mxu0 0.0
    %6515 = vmatprep.subr.mxu0 0.0
    %6516 = vmatpush1.msra.mxu0 0.0
    %6517 = vmatprep.subr.mxu0 0.0
    %6518 = vmatpush1.msra.mxu0 0.0
    %6519 = vmatprep.subr.mxu0 0.0
    %6520 = vmatpush1.msra.mxu0 0.0
    %6521 = vmatprep.subr.mxu0 0.0
    %6522 = vmatpush1.msra.mxu0 0.0
    %6523 = vmatprep.subr.mxu0 0.0
    %6524 = vmatpush1.msra.mxu0 0.0
    %6525 = vmatprep.subr.mxu0 0.0
    %6526 = vmatpush1.msra.mxu0 0.0
    %6527 = vmatprep.subr.mxu0 0.0
    %6528 = vmatpush1.msra.mxu0 0.0
    %6529 = vmatprep.subr.mxu0 0.0
    %6530 = vmatpush1.msra.mxu0 0.0
    %6531 = vmatprep.subr.mxu0 0.0
    %6532 = vmatpush1.msra.mxu0 0.0
    %6533 = vmatprep.subr.mxu0 0.0
    %6534 = vmatpush1.msra.mxu0 0.0
    %6535 = vmatprep.subr.mxu0 0.0
    %6536 = vmatpush1.msra.mxu0 0.0
    %6537 = vmatprep.subr.mxu0 0.0
    %6538 = vmatpush1.msra.mxu0 0.0
    %6539 = vmatprep.subr.mxu0 0.0
    %6540 = vmatpush1.msra.mxu0 0.0
    %6541 = vmatprep.subr.mxu0 0.0
    %6542 = vmatpush1.msra.mxu0 0.0
    %6543 = vmatprep.subr.mxu0 0.0
    %6544 = vmatpush1.msra.mxu0 0.0
    %6545 = vmatprep.subr.mxu0 0.0
    %6546 = vmatpush1.msra.mxu0 0.0
    %6547 = vmatprep.subr.mxu0 0.0
    %6548 = vmatpush1.msra.mxu0 0.0
    %6549 = vmatprep.subr.mxu0 0.0
    %6550 = vmatpush1.msra.mxu0 0.0
    %6551 = vmatprep.subr.mxu0 0.0
    %6552 = vmatpush1.msra.mxu0 0.0
    %6553 = vmatprep.subr.mxu0 0.0
    %6554 = vmatpush1.msra.mxu0 0.0
    %6555 = vmatprep.subr.mxu0 0.0
    %6556 = vmatpush1.msra.mxu0 0.0
    %6557 = vmatprep.subr.mxu0 0.0
    %6558 = vmatpush1.msra.mxu0 0.0
    %6559 = vmatprep.subr.mxu0 0.0
    %6560 = vmatpush1.msra.mxu0 0.0
    %6561 = vmatprep.subr.mxu0 0.0
    %6562 = vmatpush1.msra.mxu0 0.0
    %6563 = vmatprep.subr.mxu0 0.0
    %6564 = vmatpush1.msra.mxu0 0.0
    %6565 = vmatprep.subr.mxu0 0.0
    %6566 = vmatpush1.msra.mxu0 0.0
    %6567 = vmatprep.subr.mxu0 0.0
    %6568 = vmatpush1.msra.mxu0 0.0
    %6569 = vmatprep.subr.mxu0 0.0
    %6570 = vmatpush1.msra.mxu0 0.0
    %6571 = vmatprep.subr.mxu0 0.0
    %6572 = vmatpush1.msra.mxu0 0.0
    %6573 = vmatprep.mubr.f32.mxu0 0.0
    %v6574 = vand.u32 %v6204, 4294901760
    %6575 = vmatmul.mubr.f32.gmra.mrb[0].mxu0 %v6574
    %v6576 = vpop.f32.mrb[0].mxu0
    %v6577 = vadd.f32 %v6503, %v6576
    %v6578 = vpop.f32.mrb[0].mxu0
    %6579 = vdwg.mxu0
    %6580 = vmatprep.subr.mxu0 0.0
    %v6581 = vand.u32 %v6201, 4294901760
    %6582 = vmatpush1.msra.mxu0 %v6581
    %6583 = vmatprep.subr.mxu0 0.0
    %6584 = vmatpush1.msra.mxu0 0.0
    %6585 = vmatprep.subr.mxu0 0.0
    %6586 = vmatpush1.msra.mxu0 0.0
    %6587 = vmatprep.subr.mxu0 0.0
    %6588 = vmatpush1.msra.mxu0 0.0
    %6589 = vmatprep.subr.mxu0 0.0
    %6590 = vmatpush1.msra.mxu0 0.0
    %6591 = vmatprep.subr.mxu0 0.0
    %6592 = vmatpush1.msra.mxu0 0.0
    %6593 = vmatprep.subr.mxu0 0.0
    %6594 = vmatpush1.msra.mxu0 0.0
    %6595 = vmatprep.subr.mxu0 0.0
    %6596 = vmatpush1.msra.mxu0 0.0
    %6597 = vmatprep.subr.mxu0 0.0
    %6598 = vmatpush1.msra.mxu0 0.0
    %6599 = vmatprep.subr.mxu0 0.0
    %6600 = vmatpush1.msra.mxu0 0.0
    %6601 = vmatprep.subr.mxu0 0.0
    %6602 = vmatpush1.msra.mxu0 0.0
    %6603 = vmatprep.subr.mxu0 0.0
    %6604 = vmatpush1.msra.mxu0 0.0
    %6605 = vmatprep.subr.mxu0 0.0
    %6606 = vmatpush1.msra.mxu0 0.0
    %6607 = vmatprep.subr.mxu0 0.0
    %6608 = vmatpush1.msra.mxu0 0.0
    %6609 = vmatprep.subr.mxu0 0.0
    %6610 = vmatpush1.msra.mxu0 0.0
    %6611 = vmatprep.subr.mxu0 0.0
    %6612 = vmatpush1.msra.mxu0 0.0
    %6613 = vmatprep.subr.mxu0 0.0
    %6614 = vmatpush1.msra.mxu0 0.0
    %6615 = vmatprep.subr.mxu0 0.0
    %6616 = vmatpush1.msra.mxu0 0.0
    %6617 = vmatprep.subr.mxu0 0.0
    %6618 = vmatpush1.msra.mxu0 0.0
    %6619 = vmatprep.subr.mxu0 0.0
    %6620 = vmatpush1.msra.mxu0 0.0
    %6621 = vmatprep.subr.mxu0 0.0
    %6622 = vmatpush1.msra.mxu0 0.0
    %6623 = vmatprep.subr.mxu0 0.0
    %6624 = vmatpush1.msra.mxu0 0.0
    %6625 = vmatprep.subr.mxu0 0.0
    %6626 = vmatpush1.msra.mxu0 0.0
    %6627 = vmatprep.subr.mxu0 0.0
    %6628 = vmatpush1.msra.mxu0 0.0
    %6629 = vmatprep.subr.mxu0 0.0
    %6630 = vmatpush1.msra.mxu0 0.0
    %6631 = vmatprep.subr.mxu0 0.0
    %6632 = vmatpush1.msra.mxu0 0.0
    %6633 = vmatprep.subr.mxu0 0.0
    %6634 = vmatpush1.msra.mxu0 0.0
    %6635 = vmatprep.subr.mxu0 0.0
    %6636 = vmatpush1.msra.mxu0 0.0
    %6637 = vmatprep.subr.mxu0 0.0
    %6638 = vmatpush1.msra.mxu0 0.0
    %6639 = vmatprep.subr.mxu0 0.0
    %6640 = vmatpush1.msra.mxu0 0.0
    %6641 = vmatprep.subr.mxu0 0.0
    %6642 = vmatpush1.msra.mxu0 0.0
    %6643 = vmatprep.subr.mxu0 0.0
    %6644 = vmatpush1.msra.mxu0 0.0
    %6645 = vmatprep.mubr.f32.mxu0 0.0
    %v6646 = vand.u32 %v6204, 4294901760
    %6647 = vmatmul.mubr.f32.gmra.mrb[0].mxu0 %v6646
    %v6648 = vpop.f32.mrb[0].mxu0
    %v6649 = vadd.f32 %v6577, %v6648
    %v6650 = vpop.f32.mrb[0].mxu0
    %6651 = vdwg.mxu0
    %6652 = vrot.lane.b32.xlu0 %v607, 48
    %v6653 = vpop.permute.xlu0 %6652
    %v6656 = vsel %vm613, %v6199, 0
    %6658 = vmatprep.subr.mxu0 0.0
    %v6659 = vand.u32 %v6653, 4294901760
    %6660 = vmatpush1.msra.mxu0 %v6659
    %6661 = vmatprep.subr.mxu0 0.0
    %6662 = vmatpush1.msra.mxu0 0.0
    %6663 = vmatprep.subr.mxu0 0.0
    %6664 = vmatpush1.msra.mxu0 0.0
    %6665 = vmatprep.subr.mxu0 0.0
    %6666 = vmatpush1.msra.mxu0 0.0
    %6667 = vmatprep.subr.mxu0 0.0
    %6668 = vmatpush1.msra.mxu0 0.0
    %6669 = vmatprep.subr.mxu0 0.0
    %6670 = vmatpush1.msra.mxu0 0.0
    %6671 = vmatprep.subr.mxu0 0.0
    %6672 = vmatpush1.msra.mxu0 0.0
    %6673 = vmatprep.subr.mxu0 0.0
    %6674 = vmatpush1.msra.mxu0 0.0
    %6675 = vmatprep.subr.mxu0 0.0
    %6676 = vmatpush1.msra.mxu0 0.0
    %6677 = vmatprep.subr.mxu0 0.0
    %6678 = vmatpush1.msra.mxu0 0.0
    %6679 = vmatprep.subr.mxu0 0.0
    %6680 = vmatpush1.msra.mxu0 0.0
    %6681 = vmatprep.subr.mxu0 0.0
    %6682 = vmatpush1.msra.mxu0 0.0
    %6683 = vmatprep.subr.mxu0 0.0
    %6684 = vmatpush1.msra.mxu0 0.0
    %6685 = vmatprep.subr.mxu0 0.0
    %6686 = vmatpush1.msra.mxu0 0.0
    %6687 = vmatprep.subr.mxu0 0.0
    %6688 = vmatpush1.msra.mxu0 0.0
    %6689 = vmatprep.subr.mxu0 0.0
    %6690 = vmatpush1.msra.mxu0 0.0
    %6691 = vmatprep.subr.mxu0 0.0
    %6692 = vmatpush1.msra.mxu0 0.0
    %6693 = vmatprep.subr.mxu0 0.0
    %6694 = vmatpush1.msra.mxu0 0.0
    %6695 = vmatprep.subr.mxu0 0.0
    %6696 = vmatpush1.msra.mxu0 0.0
    %6697 = vmatprep.subr.mxu0 0.0
    %6698 = vmatpush1.msra.mxu0 0.0
    %6699 = vmatprep.subr.mxu0 0.0
    %6700 = vmatpush1.msra.mxu0 0.0
    %6701 = vmatprep.subr.mxu0 0.0
    %6702 = vmatpush1.msra.mxu0 0.0
    %6703 = vmatprep.subr.mxu0 0.0
    %6704 = vmatpush1.msra.mxu0 0.0
    %6705 = vmatprep.subr.mxu0 0.0
    %6706 = vmatpush1.msra.mxu0 0.0
    %6707 = vmatprep.subr.mxu0 0.0
    %6708 = vmatpush1.msra.mxu0 0.0
    %6709 = vmatprep.subr.mxu0 0.0
    %6710 = vmatpush1.msra.mxu0 0.0
    %6711 = vmatprep.subr.mxu0 0.0
    %6712 = vmatpush1.msra.mxu0 0.0
    %6713 = vmatprep.subr.mxu0 0.0
    %6714 = vmatpush1.msra.mxu0 0.0
    %6715 = vmatprep.subr.mxu0 0.0
    %6716 = vmatpush1.msra.mxu0 0.0
    %6717 = vmatprep.subr.mxu0 0.0
    %6718 = vmatpush1.msra.mxu0 0.0
    %6719 = vmatprep.subr.mxu0 0.0
    %6720 = vmatpush1.msra.mxu0 0.0
    %6721 = vmatprep.subr.mxu0 0.0
    %6722 = vmatpush1.msra.mxu0 0.0
    %6723 = vmatprep.mubr.f32.mxu0 0.0
    %v6724 = vand.u32 %v6656, 4294901760
    %v6725 = vsub.f32 %v6656, %v6724
    %v6726 = vand.u32 %v6725, 4294901760
    %v6727 = vsub.f32 %v6725, %v6726
    %v6728 = vand.u32 %v6727, 4294901760
    %6729 = vmatmul.mubr.f32.gmra.mrb[0].mxu0 %v6728
    %v6730 = vpop.f32.mrb[0].mxu0
    %v6731 = vadd.f32 0.0, %v6730
    %v6732 = vpop.f32.mrb[0].mxu0
    %6733 = vdwg.mxu0
    %6734 = vmatprep.subr.mxu0 0.0
    %v6735 = vand.u32 %v6653, 4294901760
    %v6736 = vsub.f32 %v6653, %v6735
    %v6737 = vand.u32 %v6736, 4294901760
    %v6738 = vsub.f32 %v6736, %v6737
    %v6739 = vand.u32 %v6738, 4294901760
    %6740 = vmatpush1.msra.mxu0 %v6739
    %6741 = vmatprep.subr.mxu0 0.0
    %6742 = vmatpush1.msra.mxu0 0.0
    %6743 = vmatprep.subr.mxu0 0.0
    %6744 = vmatpush1.msra.mxu0 0.0
    %6745 = vmatprep.subr.mxu0 0.0
    %6746 = vmatpush1.msra.mxu0 0.0
    %6747 = vmatprep.subr.mxu0 0.0
    %6748 = vmatpush1.msra.mxu0 0.0
    %6749 = vmatprep.subr.mxu0 0.0
    %6750 = vmatpush1.msra.mxu0 0.0
    %6751 = vmatprep.subr.mxu0 0.0
    %6752 = vmatpush1.msra.mxu0 0.0
    %6753 = vmatprep.subr.mxu0 0.0
    %6754 = vmatpush1.msra.mxu0 0.0
    %6755 = vmatprep.subr.mxu0 0.0
    %6756 = vmatpush1.msra.mxu0 0.0
    %6757 = vmatprep.subr.mxu0 0.0
    %6758 = vmatpush1.msra.mxu0 0.0
    %6759 = vmatprep.subr.mxu0 0.0
    %6760 = vmatpush1.msra.mxu0 0.0
    %6761 = vmatprep.subr.mxu0 0.0
    %6762 = vmatpush1.msra.mxu0 0.0
    %6763 = vmatprep.subr.mxu0 0.0
    %6764 = vmatpush1.msra.mxu0 0.0
    %6765 = vmatprep.subr.mxu0 0.0
    %6766 = vmatpush1.msra.mxu0 0.0
    %6767 = vmatprep.subr.mxu0 0.0
    %6768 = vmatpush1.msra.mxu0 0.0
    %6769 = vmatprep.subr.mxu0 0.0
    %6770 = vmatpush1.msra.mxu0 0.0
    %6771 = vmatprep.subr.mxu0 0.0
    %6772 = vmatpush1.msra.mxu0 0.0
    %6773 = vmatprep.subr.mxu0 0.0
    %6774 = vmatpush1.msra.mxu0 0.0
    %6775 = vmatprep.subr.mxu0 0.0
    %6776 = vmatpush1.msra.mxu0 0.0
    %6777 = vmatprep.subr.mxu0 0.0
    %6778 = vmatpush1.msra.mxu0 0.0
    %6779 = vmatprep.subr.mxu0 0.0
    %6780 = vmatpush1.msra.mxu0 0.0
    %6781 = vmatprep.subr.mxu0 0.0
    %6782 = vmatpush1.msra.mxu0 0.0
    %6783 = vmatprep.subr.mxu0 0.0
    %6784 = vmatpush1.msra.mxu0 0.0
    %6785 = vmatprep.subr.mxu0 0.0
    %6786 = vmatpush1.msra.mxu0 0.0
    %6787 = vmatprep.subr.mxu0 0.0
    %6788 = vmatpush1.msra.mxu0 0.0
    %6789 = vmatprep.subr.mxu0 0.0
    %6790 = vmatpush1.msra.mxu0 0.0
    %6791 = vmatprep.subr.mxu0 0.0
    %6792 = vmatpush1.msra.mxu0 0.0
    %6793 = vmatprep.subr.mxu0 0.0
    %6794 = vmatpush1.msra.mxu0 0.0
    %6795 = vmatprep.subr.mxu0 0.0
    %6796 = vmatpush1.msra.mxu0 0.0
    %6797 = vmatprep.subr.mxu0 0.0
    %6798 = vmatpush1.msra.mxu0 0.0
    %6799 = vmatprep.subr.mxu0 0.0
    %6800 = vmatpush1.msra.mxu0 0.0
    %6801 = vmatprep.subr.mxu0 0.0
    %6802 = vmatpush1.msra.mxu0 0.0
    %6803 = vmatprep.mubr.f32.mxu0 0.0
    %v6804 = vand.u32 %v6656, 4294901760
    %6805 = vmatmul.mubr.f32.gmra.mrb[0].mxu0 %v6804
    %v6806 = vpop.f32.mrb[0].mxu0
    %v6807 = vadd.f32 %v6731, %v6806
    %v6808 = vpop.f32.mrb[0].mxu0
    %6809 = vdwg.mxu0
    %6810 = vmatprep.subr.mxu0 0.0
    %v6811 = vand.u32 %v6653, 4294901760
    %v6812 = vsub.f32 %v6653, %v6811
    %6813 = vmatpush1.msra.mxu0 %v6812
    %6814 = vmatprep.subr.mxu0 0.0
    %6815 = vmatpush1.msra.mxu0 0.0
    %6816 = vmatprep.subr.mxu0 0.0
    %6817 = vmatpush1.msra.mxu0 0.0
    %6818 = vmatprep.subr.mxu0 0.0
    %6819 = vmatpush1.msra.mxu0 0.0
    %6820 = vmatprep.subr.mxu0 0.0
    %6821 = vmatpush1.msra.mxu0 0.0
    %6822 = vmatprep.subr.mxu0 0.0
    %6823 = vmatpush1.msra.mxu0 0.0
    %6824 = vmatprep.subr.mxu0 0.0
    %6825 = vmatpush1.msra.mxu0 0.0
    %6826 = vmatprep.subr.mxu0 0.0
    %6827 = vmatpush1.msra.mxu0 0.0
    %6828 = vmatprep.subr.mxu0 0.0
    %6829 = vmatpush1.msra.mxu0 0.0
    %6830 = vmatprep.subr.mxu0 0.0
    %6831 = vmatpush1.msra.mxu0 0.0
    %6832 = vmatprep.subr.mxu0 0.0
    %6833 = vmatpush1.msra.mxu0 0.0
    %6834 = vmatprep.subr.mxu0 0.0
    %6835 = vmatpush1.msra.mxu0 0.0
    %6836 = vmatprep.subr.mxu0 0.0
    %6837 = vmatpush1.msra.mxu0 0.0
    %6838 = vmatprep.subr.mxu0 0.0
    %6839 = vmatpush1.msra.mxu0 0.0
    %6840 = vmatprep.subr.mxu0 0.0
    %6841 = vmatpush1.msra.mxu0 0.0
    %6842 = vmatprep.subr.mxu0 0.0
    %6843 = vmatpush1.msra.mxu0 0.0
    %6844 = vmatprep.subr.mxu0 0.0
    %6845 = vmatpush1.msra.mxu0 0.0
    %6846 = vmatprep.subr.mxu0 0.0
    %6847 = vmatpush1.msra.mxu0 0.0
    %6848 = vmatprep.subr.mxu0 0.0
    %6849 = vmatpush1.msra.mxu0 0.0
    %6850 = vmatprep.subr.mxu0 0.0
    %6851 = vmatpush1.msra.mxu0 0.0
    %6852 = vmatprep.subr.mxu0 0.0
    %6853 = vmatpush1.msra.mxu0 0.0
    %6854 = vmatprep.subr.mxu0 0.0
    %6855 = vmatpush1.msra.mxu0 0.0
    %6856 = vmatprep.subr.mxu0 0.0
    %6857 = vmatpush1.msra.mxu0 0.0
    %6858 = vmatprep.subr.mxu0 0.0
    %6859 = vmatpush1.msra.mxu0 0.0
    %6860 = vmatprep.subr.mxu0 0.0
    %6861 = vmatpush1.msra.mxu0 0.0
    %6862 = vmatprep.subr.mxu0 0.0
    %6863 = vmatpush1.msra.mxu0 0.0
    %6864 = vmatprep.subr.mxu0 0.0
    %6865 = vmatpush1.msra.mxu0 0.0
    %6866 = vmatprep.subr.mxu0 0.0
    %6867 = vmatpush1.msra.mxu0 0.0
    %6868 = vmatprep.subr.mxu0 0.0
    %6869 = vmatpush1.msra.mxu0 0.0
    %6870 = vmatprep.subr.mxu0 0.0
    %6871 = vmatpush1.msra.mxu0 0.0
    %6872 = vmatprep.subr.mxu0 0.0
    %6873 = vmatpush1.msra.mxu0 0.0
    %6874 = vmatprep.subr.mxu0 0.0
    %6875 = vmatpush1.msra.mxu0 0.0
    %6876 = vmatprep.mubr.f32.mxu0 0.0
    %v6877 = vand.u32 %v6656, 4294901760
    %v6878 = vsub.f32 %v6656, %v6877
    %6879 = vmatmul.mubr.f32.gmra.mrb[0].mxu0 %v6878
    %v6880 = vpop.f32.mrb[0].mxu0
    %v6881 = vadd.f32 %v6807, %v6880
    %v6882 = vpop.f32.mrb[0].mxu0
    %6883 = vdwg.mxu0
    %6884 = vmatprep.subr.mxu0 0.0
    %v6885 = vand.u32 %v6653, 4294901760
    %6886 = vmatpush1.msra.mxu0 %v6885
    %6887 = vmatprep.subr.mxu0 0.0
    %6888 = vmatpush1.msra.mxu0 0.0
    %6889 = vmatprep.subr.mxu0 0.0
    %6890 = vmatpush1.msra.mxu0 0.0
    %6891 = vmatprep.subr.mxu0 0.0
    %6892 = vmatpush1.msra.mxu0 0.0
    %6893 = vmatprep.subr.mxu0 0.0
    %6894 = vmatpush1.msra.mxu0 0.0
    %6895 = vmatprep.subr.mxu0 0.0
    %6896 = vmatpush1.msra.mxu0 0.0
    %6897 = vmatprep.subr.mxu0 0.0
    %6898 = vmatpush1.msra.mxu0 0.0
    %6899 = vmatprep.subr.mxu0 0.0
    %6900 = vmatpush1.msra.mxu0 0.0
    %6901 = vmatprep.subr.mxu0 0.0
    %6902 = vmatpush1.msra.mxu0 0.0
    %6903 = vmatprep.subr.mxu0 0.0
    %6904 = vmatpush1.msra.mxu0 0.0
    %6905 = vmatprep.subr.mxu0 0.0
    %6906 = vmatpush1.msra.mxu0 0.0
    %6907 = vmatprep.subr.mxu0 0.0
    %6908 = vmatpush1.msra.mxu0 0.0
    %6909 = vmatprep.subr.mxu0 0.0
    %6910 = vmatpush1.msra.mxu0 0.0
    %6911 = vmatprep.subr.mxu0 0.0
    %6912 = vmatpush1.msra.mxu0 0.0
    %6913 = vmatprep.subr.mxu0 0.0
    %6914 = vmatpush1.msra.mxu0 0.0
    %6915 = vmatprep.subr.mxu0 0.0
    %6916 = vmatpush1.msra.mxu0 0.0
    %6917 = vmatprep.subr.mxu0 0.0
    %6918 = vmatpush1.msra.mxu0 0.0
    %6919 = vmatprep.subr.mxu0 0.0
    %6920 = vmatpush1.msra.mxu0 0.0
    %6921 = vmatprep.subr.mxu0 0.0
    %6922 = vmatpush1.msra.mxu0 0.0
    %6923 = vmatprep.subr.mxu0 0.0
    %6924 = vmatpush1.msra.mxu0 0.0
    %6925 = vmatprep.subr.mxu0 0.0
    %6926 = vmatpush1.msra.mxu0 0.0
    %6927 = vmatprep.subr.mxu0 0.0
    %6928 = vmatpush1.msra.mxu0 0.0
    %6929 = vmatprep.subr.mxu0 0.0
    %6930 = vmatpush1.msra.mxu0 0.0
    %6931 = vmatprep.subr.mxu0 0.0
    %6932 = vmatpush1.msra.mxu0 0.0
    %6933 = vmatprep.subr.mxu0 0.0
    %6934 = vmatpush1.msra.mxu0 0.0
    %6935 = vmatprep.subr.mxu0 0.0
    %6936 = vmatpush1.msra.mxu0 0.0
    %6937 = vmatprep.subr.mxu0 0.0
    %6938 = vmatpush1.msra.mxu0 0.0
    %6939 = vmatprep.subr.mxu0 0.0
    %6940 = vmatpush1.msra.mxu0 0.0
    %6941 = vmatprep.subr.mxu0 0.0
    %6942 = vmatpush1.msra.mxu0 0.0
    %6943 = vmatprep.subr.mxu0 0.0
    %6944 = vmatpush1.msra.mxu0 0.0
    %6945 = vmatprep.subr.mxu0 0.0
    %6946 = vmatpush1.msra.mxu0 0.0
    %6947 = vmatprep.subr.mxu0 0.0
    %6948 = vmatpush1.msra.mxu0 0.0
    %6949 = vmatprep.mubr.f32.mxu0 0.0
    %v6950 = vand.u32 %v6656, 4294901760
    %v6951 = vsub.f32 %v6656, %v6950
    %v6952 = vand.u32 %v6951, 4294901760
    %6953 = vmatmul.mubr.f32.gmra.mrb[0].mxu0 %v6952
    %v6954 = vpop.f32.mrb[0].mxu0
    %v6955 = vadd.f32 %v6881, %v6954
    %v6956 = vpop.f32.mrb[0].mxu0
    %6957 = vdwg.mxu0
    %6958 = vmatprep.subr.mxu0 0.0
    %v6959 = vand.u32 %v6653, 4294901760
    %v6960 = vsub.f32 %v6653, %v6959
    %v6961 = vand.u32 %v6960, 4294901760
    %6962 = vmatpush1.msra.mxu0 %v6961
    %6963 = vmatprep.subr.mxu0 0.0
    %6964 = vmatpush1.msra.mxu0 0.0
    %6965 = vmatprep.subr.mxu0 0.0
    %6966 = vmatpush1.msra.mxu0 0.0
    %6967 = vmatprep.subr.mxu0 0.0
    %6968 = vmatpush1.msra.mxu0 0.0
    %6969 = vmatprep.subr.mxu0 0.0
    %6970 = vmatpush1.msra.mxu0 0.0
    %6971 = vmatprep.subr.mxu0 0.0
    %6972 = vmatpush1.msra.mxu0 0.0
    %6973 = vmatprep.subr.mxu0 0.0
    %6974 = vmatpush1.msra.mxu0 0.0
    %6975 = vmatprep.subr.mxu0 0.0
    %6976 = vmatpush1.msra.mxu0 0.0
    %6977 = vmatprep.subr.mxu0 0.0
    %6978 = vmatpush1.msra.mxu0 0.0
    %6979 = vmatprep.subr.mxu0 0.0
    %6980 = vmatpush1.msra.mxu0 0.0
    %6981 = vmatprep.subr.mxu0 0.0
    %6982 = vmatpush1.msra.mxu0 0.0
    %6983 = vmatprep.subr.mxu0 0.0
    %6984 = vmatpush1.msra.mxu0 0.0
    %6985 = vmatprep.subr.mxu0 0.0
    %6986 = vmatpush1.msra.mxu0 0.0
    %6987 = vmatprep.subr.mxu0 0.0
    %6988 = vmatpush1.msra.mxu0 0.0
    %6989 = vmatprep.subr.mxu0 0.0
    %6990 = vmatpush1.msra.mxu0 0.0
    %6991 = vmatprep.subr.mxu0 0.0
    %6992 = vmatpush1.msra.mxu0 0.0
    %6993 = vmatprep.subr.mxu0 0.0
    %6994 = vmatpush1.msra.mxu0 0.0
    %6995 = vmatprep.subr.mxu0 0.0
    %6996 = vmatpush1.msra.mxu0 0.0
    %6997 = vmatprep.subr.mxu0 0.0
    %6998 = vmatpush1.msra.mxu0 0.0
    %6999 = vmatprep.subr.mxu0 0.0
    %7000 = vmatpush1.msra.mxu0 0.0
    %7001 = vmatprep.subr.mxu0 0.0
    %7002 = vmatpush1.msra.mxu0 0.0
    %7003 = vmatprep.subr.mxu0 0.0
    %7004 = vmatpush1.msra.mxu0 0.0
    %7005 = vmatprep.subr.mxu0 0.0
    %7006 = vmatpush1.msra.mxu0 0.0
    %7007 = vmatprep.subr.mxu0 0.0
    %7008 = vmatpush1.msra.mxu0 0.0
    %7009 = vmatprep.subr.mxu0 0.0
    %7010 = vmatpush1.msra.mxu0 0.0
    %7011 = vmatprep.subr.mxu0 0.0
    %7012 = vmatpush1.msra.mxu0 0.0
    %7013 = vmatprep.subr.mxu0 0.0
    %7014 = vmatpush1.msra.mxu0 0.0
    %7015 = vmatprep.subr.mxu0 0.0
    %7016 = vmatpush1.msra.mxu0 0.0
    %7017 = vmatprep.subr.mxu0 0.0
    %7018 = vmatpush1.msra.mxu0 0.0
    %7019 = vmatprep.subr.mxu0 0.0
    %7020 = vmatpush1.msra.mxu0 0.0
    %7021 = vmatprep.subr.mxu0 0.0
    %7022 = vmatpush1.msra.mxu0 0.0
    %7023 = vmatprep.subr.mxu0 0.0
    %7024 = vmatpush1.msra.mxu0 0.0
    %7025 = vmatprep.mubr.f32.mxu0 0.0
    %v7026 = vand.u32 %v6656, 4294901760
    %7027 = vmatmul.mubr.f32.gmra.mrb[0].mxu0 %v7026
    %v7028 = vpop.f32.mrb[0].mxu0
    %v7029 = vadd.f32 %v6955, %v7028
    %v7030 = vpop.f32.mrb[0].mxu0
    %7031 = vdwg.mxu0
    %7032 = vmatprep.subr.mxu0 0.0
    %v7033 = vand.u32 %v6653, 4294901760
    %7034 = vmatpush1.msra.mxu0 %v7033
    %7035 = vmatprep.subr.mxu0 0.0
    %7036 = vmatpush1.msra.mxu0 0.0
    %7037 = vmatprep.subr.mxu0 0.0
    %7038 = vmatpush1.msra.mxu0 0.0
    %7039 = vmatprep.subr.mxu0 0.0
    %7040 = vmatpush1.msra.mxu0 0.0
    %7041 = vmatprep.subr.mxu0 0.0
    %7042 = vmatpush1.msra.mxu0 0.0
    %7043 = vmatprep.subr.mxu0 0.0
    %7044 = vmatpush1.msra.mxu0 0.0
    %7045 = vmatprep.subr.mxu0 0.0
    %7046 = vmatpush1.msra.mxu0 0.0
    %7047 = vmatprep.subr.mxu0 0.0
    %7048 = vmatpush1.msra.mxu0 0.0
    %7049 = vmatprep.subr.mxu0 0.0
    %7050 = vmatpush1.msra.mxu0 0.0
    %7051 = vmatprep.subr.mxu0 0.0
    %7052 = vmatpush1.msra.mxu0 0.0
    %7053 = vmatprep.subr.mxu0 0.0
    %7054 = vmatpush1.msra.mxu0 0.0
    %7055 = vmatprep.subr.mxu0 0.0
    %7056 = vmatpush1.msra.mxu0 0.0
    %7057 = vmatprep.subr.mxu0 0.0
    %7058 = vmatpush1.msra.mxu0 0.0
    %7059 = vmatprep.subr.mxu0 0.0
    %7060 = vmatpush1.msra.mxu0 0.0
    %7061 = vmatprep.subr.mxu0 0.0
    %7062 = vmatpush1.msra.mxu0 0.0
    %7063 = vmatprep.subr.mxu0 0.0
    %7064 = vmatpush1.msra.mxu0 0.0
    %7065 = vmatprep.subr.mxu0 0.0
    %7066 = vmatpush1.msra.mxu0 0.0
    %7067 = vmatprep.subr.mxu0 0.0
    %7068 = vmatpush1.msra.mxu0 0.0
    %7069 = vmatprep.subr.mxu0 0.0
    %7070 = vmatpush1.msra.mxu0 0.0
    %7071 = vmatprep.subr.mxu0 0.0
    %7072 = vmatpush1.msra.mxu0 0.0
    %7073 = vmatprep.subr.mxu0 0.0
    %7074 = vmatpush1.msra.mxu0 0.0
    %7075 = vmatprep.subr.mxu0 0.0
    %7076 = vmatpush1.msra.mxu0 0.0
    %7077 = vmatprep.subr.mxu0 0.0
    %7078 = vmatpush1.msra.mxu0 0.0
    %7079 = vmatprep.subr.mxu0 0.0
    %7080 = vmatpush1.msra.mxu0 0.0
    %7081 = vmatprep.subr.mxu0 0.0
    %7082 = vmatpush1.msra.mxu0 0.0
    %7083 = vmatprep.subr.mxu0 0.0
    %7084 = vmatpush1.msra.mxu0 0.0
    %7085 = vmatprep.subr.mxu0 0.0
    %7086 = vmatpush1.msra.mxu0 0.0
    %7087 = vmatprep.subr.mxu0 0.0
    %7088 = vmatpush1.msra.mxu0 0.0
    %7089 = vmatprep.subr.mxu0 0.0
    %7090 = vmatpush1.msra.mxu0 0.0
    %7091 = vmatprep.subr.mxu0 0.0
    %7092 = vmatpush1.msra.mxu0 0.0
    %7093 = vmatprep.subr.mxu0 0.0
    %7094 = vmatpush1.msra.mxu0 0.0
    %7095 = vmatprep.subr.mxu0 0.0
    %7096 = vmatpush1.msra.mxu0 0.0
    %7097 = vmatprep.mubr.f32.mxu0 0.0
    %v7098 = vand.u32 %v6656, 4294901760
    %7099 = vmatmul.mubr.f32.gmra.mrb[0].mxu0 %v7098
    %v7100 = vpop.f32.mrb[0].mxu0
    %v7101 = vadd.f32 %v7029, %v7100
    %v7102 = vpop.f32.mrb[0].mxu0
    %7103 = vdwg.mxu0
    %s7104 = scalar_lea.vmem [#allocation7], 16
    %v7105 = vld [vmem:[%s7104] sm:$0xff]
    %v7107 = vsel %vm613, %v6649, 0
    %v7110 = vsel %vm613, %v7101, 0
    %7112 = vmatprep.subr.mxu0 0.0
    %v7113 = vand.u32 %v7105, 4294901760
    %7114 = vmatpush1.msra.mxu0 %v7113
    %7115 = vmatprep.subr.mxu0 0.0
    %7116 = vmatpush1.msra.mxu0 0.0
    %7117 = vmatprep.subr.mxu0 0.0
    %7118 = vmatpush1.msra.mxu0 0.0
    %7119 = vmatprep.subr.mxu0 0.0
    %7120 = vmatpush1.msra.mxu0 0.0
    %7121 = vmatprep.subr.mxu0 0.0
    %7122 = vmatpush1.msra.mxu0 0.0
    %7123 = vmatprep.subr.mxu0 0.0
    %7124 = vmatpush1.msra.mxu0 0.0
    %7125 = vmatprep.subr.mxu0 0.0
    %7126 = vmatpush1.msra.mxu0 0.0
    %7127 = vmatprep.subr.mxu0 0.0
    %7128 = vmatpush1.msra.mxu0 0.0
    %7129 = vmatprep.subr.mxu0 0.0
    %7130 = vmatpush1.msra.mxu0 0.0
    %7131 = vmatprep.subr.mxu0 0.0
    %7132 = vmatpush1.msra.mxu0 0.0
    %7133 = vmatprep.subr.mxu0 0.0
    %7134 = vmatpush1.msra.mxu0 0.0
    %7135 = vmatprep.subr.mxu0 0.0
    %7136 = vmatpush1.msra.mxu0 0.0
    %7137 = vmatprep.subr.mxu0 0.0
    %7138 = vmatpush1.msra.mxu0 0.0
    %7139 = vmatprep.subr.mxu0 0.0
    %7140 = vmatpush1.msra.mxu0 0.0
    %7141 = vmatprep.subr.mxu0 0.0
    %7142 = vmatpush1.msra.mxu0 0.0
    %7143 = vmatprep.subr.mxu0 0.0
    %7144 = vmatpush1.msra.mxu0 0.0
    %7145 = vmatprep.subr.mxu0 0.0
    %7146 = vmatpush1.msra.mxu0 0.0
    %7147 = vmatprep.subr.mxu0 0.0
    %7148 = vmatpush1.msra.mxu0 0.0
    %7149 = vmatprep.subr.mxu0 0.0
    %7150 = vmatpush1.msra.mxu0 0.0
    %7151 = vmatprep.subr.mxu0 0.0
    %7152 = vmatpush1.msra.mxu0 0.0
    %7153 = vmatprep.subr.mxu0 0.0
    %7154 = vmatpush1.msra.mxu0 0.0
    %7155 = vmatprep.subr.mxu0 0.0
    %7156 = vmatpush1.msra.mxu0 0.0
    %7157 = vmatprep.subr.mxu0 0.0
    %7158 = vmatpush1.msra.mxu0 0.0
    %7159 = vmatprep.subr.mxu0 0.0
    %7160 = vmatpush1.msra.mxu0 0.0
    %7161 = vmatprep.subr.mxu0 0.0
    %7162 = vmatpush1.msra.mxu0 0.0
    %7163 = vmatprep.subr.mxu0 0.0
    %7164 = vmatpush1.msra.mxu0 0.0
    %7165 = vmatprep.subr.mxu0 0.0
    %7166 = vmatpush1.msra.mxu0 0.0
    %7167 = vmatprep.subr.mxu0 0.0
    %7168 = vmatpush1.msra.mxu0 0.0
    %7169 = vmatprep.subr.mxu0 0.0
    %7170 = vmatpush1.msra.mxu0 0.0
    %7171 = vmatprep.subr.mxu0 0.0
    %7172 = vmatpush1.msra.mxu0 0.0
    %7173 = vmatprep.subr.mxu0 0.0
    %7174 = vmatpush1.msra.mxu0 0.0
    %7175 = vmatprep.subr.mxu0 0.0
    %7176 = vmatpush1.msra.mxu0 0.0
    %7177 = vmatprep.mubr.f32.mxu0 0.0
    %v7178 = vand.u32 %v7107, 4294901760
    %v7179 = vsub.f32 %v7107, %v7178
    %v7180 = vand.u32 %v7179, 4294901760
    %v7181 = vsub.f32 %v7179, %v7180
    %v7182 = vand.u32 %v7181, 4294901760
    %7183 = vmatmul.mubr.f32.gmra.mrb[0].mxu0 %v7182
    %v7184 = vpop.f32.mrb[0].mxu0
    %v7185 = vadd.f32 0.0, %v7184
    %v7186 = vpop.f32.mrb[0].mxu0
    %7187 = vmatprep.mubr.f32.mxu0 0.0
    %v7188 = vand.u32 %v7110, 4294901760
    %v7189 = vsub.f32 %v7110, %v7188
    %v7190 = vand.u32 %v7189, 4294901760
    %v7191 = vsub.f32 %v7189, %v7190
    %v7192 = vand.u32 %v7191, 4294901760
    %7193 = vmatmul.mubr.f32.gmra.mrb[0].mxu0 %v7192
    %v7194 = vpop.f32.mrb[0].mxu0
    %v7195 = vadd.f32 0.0, %v7194
    %v7196 = vpop.f32.mrb[0].mxu0
    %7197 = vdwg.mxu0
    %7198 = vmatprep.subr.mxu0 0.0
    %v7199 = vand.u32 %v7105, 4294901760
    %v7200 = vsub.f32 %v7105, %v7199
    %v7201 = vand.u32 %v7200, 4294901760
    %v7202 = vsub.f32 %v7200, %v7201
    %v7203 = vand.u32 %v7202, 4294901760
    %7204 = vmatpush1.msra.mxu0 %v7203
    %7205 = vmatprep.subr.mxu0 0.0
    %7206 = vmatpush1.msra.mxu0 0.0
    %7207 = vmatprep.subr.mxu0 0.0
    %7208 = vmatpush1.msra.mxu0 0.0
    %7209 = vmatprep.subr.mxu0 0.0
    %7210 = vmatpush1.msra.mxu0 0.0
    %7211 = vmatprep.subr.mxu0 0.0
    %7212 = vmatpush1.msra.mxu0 0.0
    %7213 = vmatprep.subr.mxu0 0.0
    %7214 = vmatpush1.msra.mxu0 0.0
    %7215 = vmatprep.subr.mxu0 0.0
    %7216 = vmatpush1.msra.mxu0 0.0
    %7217 = vmatprep.subr.mxu0 0.0
    %7218 = vmatpush1.msra.mxu0 0.0
    %7219 = vmatprep.subr.mxu0 0.0
    %7220 = vmatpush1.msra.mxu0 0.0
    %7221 = vmatprep.subr.mxu0 0.0
    %7222 = vmatpush1.msra.mxu0 0.0
    %7223 = vmatprep.subr.mxu0 0.0
    %7224 = vmatpush1.msra.mxu0 0.0
    %7225 = vmatprep.subr.mxu0 0.0
    %7226 = vmatpush1.msra.mxu0 0.0
    %7227 = vmatprep.subr.mxu0 0.0
    %7228 = vmatpush1.msra.mxu0 0.0
    %7229 = vmatprep.subr.mxu0 0.0
    %7230 = vmatpush1.msra.mxu0 0.0
    %7231 = vmatprep.subr.mxu0 0.0
    %7232 = vmatpush1.msra.mxu0 0.0
    %7233 = vmatprep.subr.mxu0 0.0
    %7234 = vmatpush1.msra.mxu0 0.0
    %7235 = vmatprep.subr.mxu0 0.0
    %7236 = vmatpush1.msra.mxu0 0.0
    %7237 = vmatprep.subr.mxu0 0.0
    %7238 = vmatpush1.msra.mxu0 0.0
    %7239 = vmatprep.subr.mxu0 0.0
    %7240 = vmatpush1.msra.mxu0 0.0
    %7241 = vmatprep.subr.mxu0 0.0
    %7242 = vmatpush1.msra.mxu0 0.0
    %7243 = vmatprep.subr.mxu0 0.0
    %7244 = vmatpush1.msra.mxu0 0.0
    %7245 = vmatprep.subr.mxu0 0.0
    %7246 = vmatpush1.msra.mxu0 0.0
    %7247 = vmatprep.subr.mxu0 0.0
    %7248 = vmatpush1.msra.mxu0 0.0
    %7249 = vmatprep.subr.mxu0 0.0
    %7250 = vmatpush1.msra.mxu0 0.0
    %7251 = vmatprep.subr.mxu0 0.0
    %7252 = vmatpush1.msra.mxu0 0.0
    %7253 = vmatprep.subr.mxu0 0.0
    %7254 = vmatpush1.msra.mxu0 0.0
    %7255 = vmatprep.subr.mxu0 0.0
    %7256 = vmatpush1.msra.mxu0 0.0
    %7257 = vmatprep.subr.mxu0 0.0
    %7258 = vmatpush1.msra.mxu0 0.0
    %7259 = vmatprep.subr.mxu0 0.0
    %7260 = vmatpush1.msra.mxu0 0.0
    %7261 = vmatprep.subr.mxu0 0.0
    %7262 = vmatpush1.msra.mxu0 0.0
    %7263 = vmatprep.subr.mxu0 0.0
    %7264 = vmatpush1.msra.mxu0 0.0
    %7265 = vmatprep.subr.mxu0 0.0
    %7266 = vmatpush1.msra.mxu0 0.0
    %7267 = vmatprep.mubr.f32.mxu0 0.0
    %v7268 = vand.u32 %v7107, 4294901760
    %7269 = vmatmul.mubr.f32.gmra.mrb[0].mxu0 %v7268
    %v7270 = vpop.f32.mrb[0].mxu0
    %v7271 = vadd.f32 %v7185, %v7270
    %v7272 = vpop.f32.mrb[0].mxu0
    %7273 = vmatprep.mubr.f32.mxu0 0.0
    %v7274 = vand.u32 %v7110, 4294901760
    %7275 = vmatmul.mubr.f32.gmra.mrb[0].mxu0 %v7274
    %v7276 = vpop.f32.mrb[0].mxu0
    %v7277 = vadd.f32 %v7195, %v7276
    %v7278 = vpop.f32.mrb[0].mxu0
    %7279 = vdwg.mxu0
    %7280 = vmatprep.subr.mxu0 0.0
    %v7281 = vand.u32 %v7105, 4294901760
    %v7282 = vsub.f32 %v7105, %v7281
    %7283 = vmatpush1.msra.mxu0 %v7282
    %7284 = vmatprep.subr.mxu0 0.0
    %7285 = vmatpush1.msra.mxu0 0.0
    %7286 = vmatprep.subr.mxu0 0.0
    %7287 = vmatpush1.msra.mxu0 0.0
    %7288 = vmatprep.subr.mxu0 0.0
    %7289 = vmatpush1.msra.mxu0 0.0
    %7290 = vmatprep.subr.mxu0 0.0
    %7291 = vmatpush1.msra.mxu0 0.0
    %7292 = vmatprep.subr.mxu0 0.0
    %7293 = vmatpush1.msra.mxu0 0.0
    %7294 = vmatprep.subr.mxu0 0.0
    %7295 = vmatpush1.msra.mxu0 0.0
    %7296 = vmatprep.subr.mxu0 0.0
    %7297 = vmatpush1.msra.mxu0 0.0
    %7298 = vmatprep.subr.mxu0 0.0
    %7299 = vmatpush1.msra.mxu0 0.0
    %7300 = vmatprep.subr.mxu0 0.0
    %7301 = vmatpush1.msra.mxu0 0.0
    %7302 = vmatprep.subr.mxu0 0.0
    %7303 = vmatpush1.msra.mxu0 0.0
    %7304 = vmatprep.subr.mxu0 0.0
    %7305 = vmatpush1.msra.mxu0 0.0
    %7306 = vmatprep.subr.mxu0 0.0
    %7307 = vmatpush1.msra.mxu0 0.0
    %7308 = vmatprep.subr.mxu0 0.0
    %7309 = vmatpush1.msra.mxu0 0.0
    %7310 = vmatprep.subr.mxu0 0.0
    %7311 = vmatpush1.msra.mxu0 0.0
    %7312 = vmatprep.subr.mxu0 0.0
    %7313 = vmatpush1.msra.mxu0 0.0
    %7314 = vmatprep.subr.mxu0 0.0
    %7315 = vmatpush1.msra.mxu0 0.0
    %7316 = vmatprep.subr.mxu0 0.0
    %7317 = vmatpush1.msra.mxu0 0.0
    %7318 = vmatprep.subr.mxu0 0.0
    %7319 = vmatpush1.msra.mxu0 0.0
    %7320 = vmatprep.subr.mxu0 0.0
    %7321 = vmatpush1.msra.mxu0 0.0
    %7322 = vmatprep.subr.mxu0 0.0
    %7323 = vmatpush1.msra.mxu0 0.0
    %7324 = vmatprep.subr.mxu0 0.0
    %7325 = vmatpush1.msra.mxu0 0.0
    %7326 = vmatprep.subr.mxu0 0.0
    %7327 = vmatpush1.msra.mxu0 0.0
    %7328 = vmatprep.subr.mxu0 0.0
    %7329 = vmatpush1.msra.mxu0 0.0
    %7330 = vmatprep.subr.mxu0 0.0
    %7331 = vmatpush1.msra.mxu0 0.0
    %7332 = vmatprep.subr.mxu0 0.0
    %7333 = vmatpush1.msra.mxu0 0.0
    %7334 = vmatprep.subr.mxu0 0.0
    %7335 = vmatpush1.msra.mxu0 0.0
    %7336 = vmatprep.subr.mxu0 0.0
    %7337 = vmatpush1.msra.mxu0 0.0
    %7338 = vmatprep.subr.mxu0 0.0
    %7339 = vmatpush1.msra.mxu0 0.0
    %7340 = vmatprep.subr.mxu0 0.0
    %7341 = vmatpush1.msra.mxu0 0.0
    %7342 = vmatprep.subr.mxu0 0.0
    %7343 = vmatpush1.msra.mxu0 0.0
    %7344 = vmatprep.subr.mxu0 0.0
    %7345 = vmatpush1.msra.mxu0 0.0
    %7346 = vmatprep.mubr.f32.mxu0 0.0
    %v7347 = vand.u32 %v7107, 4294901760
    %v7348 = vsub.f32 %v7107, %v7347
    %7349 = vmatmul.mubr.f32.gmra.mrb[0].mxu0 %v7348
    %v7350 = vpop.f32.mrb[0].mxu0
    %v7351 = vadd.f32 %v7271, %v7350
    %v7352 = vpop.f32.mrb[0].mxu0
    %7353 = vmatprep.mubr.f32.mxu0 0.0
    %v7354 = vand.u32 %v7110, 4294901760
    %v7355 = vsub.f32 %v7110, %v7354
    %7356 = vmatmul.mubr.f32.gmra.mrb[0].mxu0 %v7355
    %v7357 = vpop.f32.mrb[0].mxu0
    %v7358 = vadd.f32 %v7277, %v7357
    %v7359 = vpop.f32.mrb[0].mxu0
    %7360 = vdwg.mxu0
    %7361 = vmatprep.subr.mxu0 0.0
    %v7362 = vand.u32 %v7105, 4294901760
    %7363 = vmatpush1.msra.mxu0 %v7362
    %7364 = vmatprep.subr.mxu0 0.0
    %7365 = vmatpush1.msra.mxu0 0.0
    %7366 = vmatprep.subr.mxu0 0.0
    %7367 = vmatpush1.msra.mxu0 0.0
    %7368 = vmatprep.subr.mxu0 0.0
    %7369 = vmatpush1.msra.mxu0 0.0
    %7370 = vmatprep.subr.mxu0 0.0
    %7371 = vmatpush1.msra.mxu0 0.0
    %7372 = vmatprep.subr.mxu0 0.0
    %7373 = vmatpush1.msra.mxu0 0.0
    %7374 = vmatprep.subr.mxu0 0.0
    %7375 = vmatpush1.msra.mxu0 0.0
    %7376 = vmatprep.subr.mxu0 0.0
    %7377 = vmatpush1.msra.mxu0 0.0
    %7378 = vmatprep.subr.mxu0 0.0
    %7379 = vmatpush1.msra.mxu0 0.0
    %7380 = vmatprep.subr.mxu0 0.0
    %7381 = vmatpush1.msra.mxu0 0.0
    %7382 = vmatprep.subr.mxu0 0.0
    %7383 = vmatpush1.msra.mxu0 0.0
    %7384 = vmatprep.subr.mxu0 0.0
    %7385 = vmatpush1.msra.mxu0 0.0
    %7386 = vmatprep.subr.mxu0 0.0
    %7387 = vmatpush1.msra.mxu0 0.0
    %7388 = vmatprep.subr.mxu0 0.0
    %7389 = vmatpush1.msra.mxu0 0.0
    %7390 = vmatprep.subr.mxu0 0.0
    %7391 = vmatpush1.msra.mxu0 0.0
    %7392 = vmatprep.subr.mxu0 0.0
    %7393 = vmatpush1.msra.mxu0 0.0
    %7394 = vmatprep.subr.mxu0 0.0
    %7395 = vmatpush1.msra.mxu0 0.0
    %7396 = vmatprep.subr.mxu0 0.0
    %7397 = vmatpush1.msra.mxu0 0.0
    %7398 = vmatprep.subr.mxu0 0.0
    %7399 = vmatpush1.msra.mxu0 0.0
    %7400 = vmatprep.subr.mxu0 0.0
    %7401 = vmatpush1.msra.mxu0 0.0
    %7402 = vmatprep.subr.mxu0 0.0
    %7403 = vmatpush1.msra.mxu0 0.0
    %7404 = vmatprep.subr.mxu0 0.0
    %7405 = vmatpush1.msra.mxu0 0.0
    %7406 = vmatprep.subr.mxu0 0.0
    %7407 = vmatpush1.msra.mxu0 0.0
    %7408 = vmatprep.subr.mxu0 0.0
    %7409 = vmatpush1.msra.mxu0 0.0
    %7410 = vmatprep.subr.mxu0 0.0
    %7411 = vmatpush1.msra.mxu0 0.0
    %7412 = vmatprep.subr.mxu0 0.0
    %7413 = vmatpush1.msra.mxu0 0.0
    %7414 = vmatprep.subr.mxu0 0.0
    %7415 = vmatpush1.msra.mxu0 0.0
    %7416 = vmatprep.subr.mxu0 0.0
    %7417 = vmatpush1.msra.mxu0 0.0
    %7418 = vmatprep.subr.mxu0 0.0
    %7419 = vmatpush1.msra.mxu0 0.0
    %7420 = vmatprep.subr.mxu0 0.0
    %7421 = vmatpush1.msra.mxu0 0.0
    %7422 = vmatprep.subr.mxu0 0.0
    %7423 = vmatpush1.msra.mxu0 0.0
    %7424 = vmatprep.subr.mxu0 0.0
    %7425 = vmatpush1.msra.mxu0 0.0
    %7426 = vmatprep.mubr.f32.mxu0 0.0
    %v7427 = vand.u32 %v7107, 4294901760
    %v7428 = vsub.f32 %v7107, %v7427
    %v7429 = vand.u32 %v7428, 4294901760
    %7430 = vmatmul.mubr.f32.gmra.mrb[0].mxu0 %v7429
    %v7431 = vpop.f32.mrb[0].mxu0
    %v7432 = vadd.f32 %v7351, %v7431
    %v7433 = vpop.f32.mrb[0].mxu0
    %7434 = vmatprep.mubr.f32.mxu0 0.0
    %v7435 = vand.u32 %v7110, 4294901760
    %v7436 = vsub.f32 %v7110, %v7435
    %v7437 = vand.u32 %v7436, 4294901760
    %7438 = vmatmul.mubr.f32.gmra.mrb[0].mxu0 %v7437
    %v7439 = vpop.f32.mrb[0].mxu0
    %v7440 = vadd.f32 %v7358, %v7439
    %v7441 = vpop.f32.mrb[0].mxu0
    %7442 = vdwg.mxu0
    %7443 = vmatprep.subr.mxu0 0.0
    %v7444 = vand.u32 %v7105, 4294901760
    %v7445 = vsub.f32 %v7105, %v7444
    %v7446 = vand.u32 %v7445, 4294901760
    %7447 = vmatpush1.msra.mxu0 %v7446
    %7448 = vmatprep.subr.mxu0 0.0
    %7449 = vmatpush1.msra.mxu0 0.0
    %7450 = vmatprep.subr.mxu0 0.0
    %7451 = vmatpush1.msra.mxu0 0.0
    %7452 = vmatprep.subr.mxu0 0.0
    %7453 = vmatpush1.msra.mxu0 0.0
    %7454 = vmatprep.subr.mxu0 0.0
    %7455 = vmatpush1.msra.mxu0 0.0
    %7456 = vmatprep.subr.mxu0 0.0
    %7457 = vmatpush1.msra.mxu0 0.0
    %7458 = vmatprep.subr.mxu0 0.0
    %7459 = vmatpush1.msra.mxu0 0.0
    %7460 = vmatprep.subr.mxu0 0.0
    %7461 = vmatpush1.msra.mxu0 0.0
    %7462 = vmatprep.subr.mxu0 0.0
    %7463 = vmatpush1.msra.mxu0 0.0
    %7464 = vmatprep.subr.mxu0 0.0
    %7465 = vmatpush1.msra.mxu0 0.0
    %7466 = vmatprep.subr.mxu0 0.0
    %7467 = vmatpush1.msra.mxu0 0.0
    %7468 = vmatprep.subr.mxu0 0.0
    %7469 = vmatpush1.msra.mxu0 0.0
    %7470 = vmatprep.subr.mxu0 0.0
    %7471 = vmatpush1.msra.mxu0 0.0
    %7472 = vmatprep.subr.mxu0 0.0
    %7473 = vmatpush1.msra.mxu0 0.0
    %7474 = vmatprep.subr.mxu0 0.0
    %7475 = vmatpush1.msra.mxu0 0.0
    %7476 = vmatprep.subr.mxu0 0.0
    %7477 = vmatpush1.msra.mxu0 0.0
    %7478 = vmatprep.subr.mxu0 0.0
    %7479 = vmatpush1.msra.mxu0 0.0
    %7480 = vmatprep.subr.mxu0 0.0
    %7481 = vmatpush1.msra.mxu0 0.0
    %7482 = vmatprep.subr.mxu0 0.0
    %7483 = vmatpush1.msra.mxu0 0.0
    %7484 = vmatprep.subr.mxu0 0.0
    %7485 = vmatpush1.msra.mxu0 0.0
    %7486 = vmatprep.subr.mxu0 0.0
    %7487 = vmatpush1.msra.mxu0 0.0
    %7488 = vmatprep.subr.mxu0 0.0
    %7489 = vmatpush1.msra.mxu0 0.0
    %7490 = vmatprep.subr.mxu0 0.0
    %7491 = vmatpush1.msra.mxu0 0.0
    %7492 = vmatprep.subr.mxu0 0.0
    %7493 = vmatpush1.msra.mxu0 0.0
    %7494 = vmatprep.subr.mxu0 0.0
    %7495 = vmatpush1.msra.mxu0 0.0
    %7496 = vmatprep.subr.mxu0 0.0
    %7497 = vmatpush1.msra.mxu0 0.0
    %7498 = vmatprep.subr.mxu0 0.0
    %7499 = vmatpush1.msra.mxu0 0.0
    %7500 = vmatprep.subr.mxu0 0.0
    %7501 = vmatpush1.msra.mxu0 0.0
    %7502 = vmatprep.subr.mxu0 0.0
    %7503 = vmatpush1.msra.mxu0 0.0
    %7504 = vmatprep.subr.mxu0 0.0
    %7505 = vmatpush1.msra.mxu0 0.0
    %7506 = vmatprep.subr.mxu0 0.0
    %7507 = vmatpush1.msra.mxu0 0.0
    %7508 = vmatprep.subr.mxu0 0.0
    %7509 = vmatpush1.msra.mxu0 0.0
    %7510 = vmatprep.mubr.f32.mxu0 0.0
    %v7511 = vand.u32 %v7107, 4294901760
    %7512 = vmatmul.mubr.f32.gmra.mrb[0].mxu0 %v7511
    %v7513 = vpop.f32.mrb[0].mxu0
    %v7514 = vadd.f32 %v7432, %v7513
    %v7515 = vpop.f32.mrb[0].mxu0
    %7516 = vmatprep.mubr.f32.mxu0 0.0
    %v7517 = vand.u32 %v7110, 4294901760
    %7518 = vmatmul.mubr.f32.gmra.mrb[0].mxu0 %v7517
    %v7519 = vpop.f32.mrb[0].mxu0
    %v7520 = vadd.f32 %v7440, %v7519
    %v7521 = vpop.f32.mrb[0].mxu0
    %7522 = vdwg.mxu0
    %7523 = vmatprep.subr.mxu0 0.0
    %v7524 = vand.u32 %v7105, 4294901760
    %7525 = vmatpush1.msra.mxu0 %v7524
    %7526 = vmatprep.subr.mxu0 0.0
    %7527 = vmatpush1.msra.mxu0 0.0
    %7528 = vmatprep.subr.mxu0 0.0
    %7529 = vmatpush1.msra.mxu0 0.0
    %7530 = vmatprep.subr.mxu0 0.0
    %7531 = vmatpush1.msra.mxu0 0.0
    %7532 = vmatprep.subr.mxu0 0.0
    %7533 = vmatpush1.msra.mxu0 0.0
    %7534 = vmatprep.subr.mxu0 0.0
    %7535 = vmatpush1.msra.mxu0 0.0
    %7536 = vmatprep.subr.mxu0 0.0
    %7537 = vmatpush1.msra.mxu0 0.0
    %7538 = vmatprep.subr.mxu0 0.0
    %7539 = vmatpush1.msra.mxu0 0.0
    %7540 = vmatprep.subr.mxu0 0.0
    %7541 = vmatpush1.msra.mxu0 0.0
    %7542 = vmatprep.subr.mxu0 0.0
    %7543 = vmatpush1.msra.mxu0 0.0
    %7544 = vmatprep.subr.mxu0 0.0
    %7545 = vmatpush1.msra.mxu0 0.0
    %7546 = vmatprep.subr.mxu0 0.0
    %7547 = vmatpush1.msra.mxu0 0.0
    %7548 = vmatprep.subr.mxu0 0.0
    %7549 = vmatpush1.msra.mxu0 0.0
    %7550 = vmatprep.subr.mxu0 0.0
    %7551 = vmatpush1.msra.mxu0 0.0
    %7552 = vmatprep.subr.mxu0 0.0
    %7553 = vmatpush1.msra.mxu0 0.0
    %7554 = vmatprep.subr.mxu0 0.0
    %7555 = vmatpush1.msra.mxu0 0.0
    %7556 = vmatprep.subr.mxu0 0.0
    %7557 = vmatpush1.msra.mxu0 0.0
    %7558 = vmatprep.subr.mxu0 0.0
    %7559 = vmatpush1.msra.mxu0 0.0
    %7560 = vmatprep.subr.mxu0 0.0
    %7561 = vmatpush1.msra.mxu0 0.0
    %7562 = vmatprep.subr.mxu0 0.0
    %7563 = vmatpush1.msra.mxu0 0.0
    %7564 = vmatprep.subr.mxu0 0.0
    %7565 = vmatpush1.msra.mxu0 0.0
    %7566 = vmatprep.subr.mxu0 0.0
    %7567 = vmatpush1.msra.mxu0 0.0
    %7568 = vmatprep.subr.mxu0 0.0
    %7569 = vmatpush1.msra.mxu0 0.0
    %7570 = vmatprep.subr.mxu0 0.0
    %7571 = vmatpush1.msra.mxu0 0.0
    %7572 = vmatprep.subr.mxu0 0.0
    %7573 = vmatpush1.msra.mxu0 0.0
    %7574 = vmatprep.subr.mxu0 0.0
    %7575 = vmatpush1.msra.mxu0 0.0
    %7576 = vmatprep.subr.mxu0 0.0
    %7577 = vmatpush1.msra.mxu0 0.0
    %7578 = vmatprep.subr.mxu0 0.0
    %7579 = vmatpush1.msra.mxu0 0.0
    %7580 = vmatprep.subr.mxu0 0.0
    %7581 = vmatpush1.msra.mxu0 0.0
    %7582 = vmatprep.subr.mxu0 0.0
    %7583 = vmatpush1.msra.mxu0 0.0
    %7584 = vmatprep.subr.mxu0 0.0
    %7585 = vmatpush1.msra.mxu0 0.0
    %7586 = vmatprep.subr.mxu0 0.0
    %7587 = vmatpush1.msra.mxu0 0.0
    %7588 = vmatprep.mubr.f32.mxu0 0.0
    %v7589 = vand.u32 %v7107, 4294901760
    %7590 = vmatmul.mubr.f32.gmra.mrb[0].mxu0 %v7589
    %v7591 = vpop.f32.mrb[0].mxu0
    %v7592 = vadd.f32 %v7514, %v7591
    %v7593 = vpop.f32.mrb[0].mxu0
    %7594 = vmatprep.mubr.f32.mxu0 0.0
    %v7595 = vand.u32 %v7110, 4294901760
    %7596 = vmatmul.mubr.f32.gmra.mrb[0].mxu0 %v7595
    %v7597 = vpop.f32.mrb[0].mxu0
    %v7598 = vadd.f32 %v7520, %v7597
    %v7599 = vpop.f32.mrb[0].mxu0
    %7600 = vdwg.mxu0
    %v7601 = vadd.f32 %v5261, %v7592
    %v7602 = vadd.f32 %v5267, %v7598
    %7603 = vrot.lane.b32.xlu0 %v601, 104
    %v7604 = vpop.permute.xlu0 %7603
    %7605 = vrot.lane.b32.xlu0 %v601, 72
    %v7606 = vpop.permute.xlu0 %7605
    %v7607 = vsel %vm613, %v7604, 0
    %v7609 = vsel %vm613, %v7606, 0
    %7611 = vmatprep.subr.mxu0 0.0
    %v7612 = vand.u32 %v7609, 4294901760
    %7613 = vmatpush1.xpose.msra.mxu0 %v7612
    %7614 = vmatprep.subr.mxu0 0.0
    %7615 = vmatpush1.xpose.msra.mxu0 0.0
    %7616 = vmatprep.subr.mxu0 0.0
    %7617 = vmatpush1.xpose.msra.mxu0 0.0
    %7618 = vmatprep.subr.mxu0 0.0
    %7619 = vmatpush1.xpose.msra.mxu0 0.0
    %7620 = vmatprep.subr.mxu0 0.0
    %7621 = vmatpush1.xpose.msra.mxu0 0.0
    %7622 = vmatprep.subr.mxu0 0.0
    %7623 = vmatpush1.xpose.msra.mxu0 0.0
    %7624 = vmatprep.subr.mxu0 0.0
    %7625 = vmatpush1.xpose.msra.mxu0 0.0
    %7626 = vmatprep.subr.mxu0 0.0
    %7627 = vmatpush1.xpose.msra.mxu0 0.0
    %7628 = vmatprep.subr.mxu0 0.0
    %7629 = vmatpush1.xpose.msra.mxu0 0.0
    %7630 = vmatprep.subr.mxu0 0.0
    %7631 = vmatpush1.xpose.msra.mxu0 0.0
    %7632 = vmatprep.subr.mxu0 0.0
    %7633 = vmatpush1.xpose.msra.mxu0 0.0
    %7634 = vmatprep.subr.mxu0 0.0
    %7635 = vmatpush1.xpose.msra.mxu0 0.0
    %7636 = vmatprep.subr.mxu0 0.0
    %7637 = vmatpush1.xpose.msra.mxu0 0.0
    %7638 = vmatprep.subr.mxu0 0.0
    %7639 = vmatpush1.xpose.msra.mxu0 0.0
    %7640 = vmatprep.subr.mxu0 0.0
    %7641 = vmatpush1.xpose.msra.mxu0 0.0
    %7642 = vmatprep.subr.mxu0 0.0
    %7643 = vmatpush1.xpose.msra.mxu0 0.0
    %7644 = vmatprep.subr.mxu0 0.0
    %7645 = vmatpush1.xpose.msra.mxu0 0.0
    %7646 = vmatprep.subr.mxu0 0.0
    %7647 = vmatpush1.xpose.msra.mxu0 0.0
    %7648 = vmatprep.subr.mxu0 0.0
    %7649 = vmatpush1.xpose.msra.mxu0 0.0
    %7650 = vmatprep.subr.mxu0 0.0
    %7651 = vmatpush1.xpose.msra.mxu0 0.0
    %7652 = vmatprep.subr.mxu0 0.0
    %7653 = vmatpush1.xpose.msra.mxu0 0.0
    %7654 = vmatprep.subr.mxu0 0.0
    %7655 = vmatpush1.xpose.msra.mxu0 0.0
    %7656 = vmatprep.subr.mxu0 0.0
    %7657 = vmatpush1.xpose.msra.mxu0 0.0
    %7658 = vmatprep.subr.mxu0 0.0
    %7659 = vmatpush1.xpose.msra.mxu0 0.0
    %7660 = vmatprep.subr.mxu0 0.0
    %7661 = vmatpush1.xpose.msra.mxu0 0.0
    %7662 = vmatprep.subr.mxu0 0.0
    %7663 = vmatpush1.xpose.msra.mxu0 0.0
    %7664 = vmatprep.subr.mxu0 0.0
    %7665 = vmatpush1.xpose.msra.mxu0 0.0
    %7666 = vmatprep.subr.mxu0 0.0
    %7667 = vmatpush1.xpose.msra.mxu0 0.0
    %7668 = vmatprep.subr.mxu0 0.0
    %7669 = vmatpush1.xpose.msra.mxu0 0.0
    %7670 = vmatprep.subr.mxu0 0.0
    %7671 = vmatpush1.xpose.msra.mxu0 0.0
    %7672 = vmatprep.subr.mxu0 0.0
    %7673 = vmatpush1.xpose.msra.mxu0 0.0
    %7674 = vmatprep.subr.mxu0 0.0
    %7675 = vmatpush1.xpose.msra.mxu0 0.0
    %7676 = vmatprep.mubr.f32.mxu0 0.0
    %v7677 = vand.u32 %v7607, 4294901760
    %v7678 = vsub.f32 %v7607, %v7677
    %v7679 = vand.u32 %v7678, 4294901760
    %v7680 = vsub.f32 %v7678, %v7679
    %v7681 = vand.u32 %v7680, 4294901760
    %7682 = vmatmul.mubr.f32.gmra.mrb[0].mxu0 %v7681
    %v7683 = vpop.f32.mrb[0].mxu0
    %v7684 = vadd.f32 0.0, %v7683
    %v7685 = vpop.f32.mrb[0].mxu0
    %7686 = vdwg.mxu0
    %7687 = vmatprep.subr.mxu0 0.0
    %v7688 = vand.u32 %v7609, 4294901760
    %v7689 = vsub.f32 %v7609, %v7688
    %v7690 = vand.u32 %v7689, 4294901760
    %v7691 = vsub.f32 %v7689, %v7690
    %v7692 = vand.u32 %v7691, 4294901760
    %7693 = vmatpush1.xpose.msra.mxu0 %v7692
    %7694 = vmatprep.subr.mxu0 0.0
    %7695 = vmatpush1.xpose.msra.mxu0 0.0
    %7696 = vmatprep.subr.mxu0 0.0
    %7697 = vmatpush1.xpose.msra.mxu0 0.0
    %7698 = vmatprep.subr.mxu0 0.0
    %7699 = vmatpush1.xpose.msra.mxu0 0.0
    %7700 = vmatprep.subr.mxu0 0.0
    %7701 = vmatpush1.xpose.msra.mxu0 0.0
    %7702 = vmatprep.subr.mxu0 0.0
    %7703 = vmatpush1.xpose.msra.mxu0 0.0
    %7704 = vmatprep.subr.mxu0 0.0
    %7705 = vmatpush1.xpose.msra.mxu0 0.0
    %7706 = vmatprep.subr.mxu0 0.0
    %7707 = vmatpush1.xpose.msra.mxu0 0.0
    %7708 = vmatprep.subr.mxu0 0.0
    %7709 = vmatpush1.xpose.msra.mxu0 0.0
    %7710 = vmatprep.subr.mxu0 0.0
    %7711 = vmatpush1.xpose.msra.mxu0 0.0
    %7712 = vmatprep.subr.mxu0 0.0
    %7713 = vmatpush1.xpose.msra.mxu0 0.0
    %7714 = vmatprep.subr.mxu0 0.0
    %7715 = vmatpush1.xpose.msra.mxu0 0.0
    %7716 = vmatprep.subr.mxu0 0.0
    %7717 = vmatpush1.xpose.msra.mxu0 0.0
    %7718 = vmatprep.subr.mxu0 0.0
    %7719 = vmatpush1.xpose.msra.mxu0 0.0
    %7720 = vmatprep.subr.mxu0 0.0
    %7721 = vmatpush1.xpose.msra.mxu0 0.0
    %7722 = vmatprep.subr.mxu0 0.0
    %7723 = vmatpush1.xpose.msra.mxu0 0.0
    %7724 = vmatprep.subr.mxu0 0.0
    %7725 = vmatpush1.xpose.msra.mxu0 0.0
    %7726 = vmatprep.subr.mxu0 0.0
    %7727 = vmatpush1.xpose.msra.mxu0 0.0
    %7728 = vmatprep.subr.mxu0 0.0
    %7729 = vmatpush1.xpose.msra.mxu0 0.0
    %7730 = vmatprep.subr.mxu0 0.0
    %7731 = vmatpush1.xpose.msra.mxu0 0.0
    %7732 = vmatprep.subr.mxu0 0.0
    %7733 = vmatpush1.xpose.msra.mxu0 0.0
    %7734 = vmatprep.subr.mxu0 0.0
    %7735 = vmatpush1.xpose.msra.mxu0 0.0
    %7736 = vmatprep.subr.mxu0 0.0
    %7737 = vmatpush1.xpose.msra.mxu0 0.0
    %7738 = vmatprep.subr.mxu0 0.0
    %7739 = vmatpush1.xpose.msra.mxu0 0.0
    %7740 = vmatprep.subr.mxu0 0.0
    %7741 = vmatpush1.xpose.msra.mxu0 0.0
    %7742 = vmatprep.subr.mxu0 0.0
    %7743 = vmatpush1.xpose.msra.mxu0 0.0
    %7744 = vmatprep.subr.mxu0 0.0
    %7745 = vmatpush1.xpose.msra.mxu0 0.0
    %7746 = vmatprep.subr.mxu0 0.0
    %7747 = vmatpush1.xpose.msra.mxu0 0.0
    %7748 = vmatprep.subr.mxu0 0.0
    %7749 = vmatpush1.xpose.msra.mxu0 0.0
    %7750 = vmatprep.subr.mxu0 0.0
    %7751 = vmatpush1.xpose.msra.mxu0 0.0
    %7752 = vmatprep.subr.mxu0 0.0
    %7753 = vmatpush1.xpose.msra.mxu0 0.0
    %7754 = vmatprep.subr.mxu0 0.0
    %7755 = vmatpush1.xpose.msra.mxu0 0.0
    %7756 = vmatprep.mubr.f32.mxu0 0.0
    %v7757 = vand.u32 %v7607, 4294901760
    %7758 = vmatmul.mubr.f32.gmra.mrb[0].mxu0 %v7757
    %v7759 = vpop.f32.mrb[0].mxu0
    %v7760 = vadd.f32 %v7684, %v7759
    %v7761 = vpop.f32.mrb[0].mxu0
    %7762 = vdwg.mxu0
    %7763 = vmatprep.subr.mxu0 0.0
    %v7764 = vand.u32 %v7609, 4294901760
    %v7765 = vsub.f32 %v7609, %v7764
    %7766 = vmatpush1.xpose.msra.mxu0 %v7765
    %7767 = vmatprep.subr.mxu0 0.0
    %7768 = vmatpush1.xpose.msra.mxu0 0.0
    %7769 = vmatprep.subr.mxu0 0.0
    %7770 = vmatpush1.xpose.msra.mxu0 0.0
    %7771 = vmatprep.subr.mxu0 0.0
    %7772 = vmatpush1.xpose.msra.mxu0 0.0
    %7773 = vmatprep.subr.mxu0 0.0
    %7774 = vmatpush1.xpose.msra.mxu0 0.0
    %7775 = vmatprep.subr.mxu0 0.0
    %7776 = vmatpush1.xpose.msra.mxu0 0.0
    %7777 = vmatprep.subr.mxu0 0.0
    %7778 = vmatpush1.xpose.msra.mxu0 0.0
    %7779 = vmatprep.subr.mxu0 0.0
    %7780 = vmatpush1.xpose.msra.mxu0 0.0
    %7781 = vmatprep.subr.mxu0 0.0
    %7782 = vmatpush1.xpose.msra.mxu0 0.0
    %7783 = vmatprep.subr.mxu0 0.0
    %7784 = vmatpush1.xpose.msra.mxu0 0.0
    %7785 = vmatprep.subr.mxu0 0.0
    %7786 = vmatpush1.xpose.msra.mxu0 0.0
    %7787 = vmatprep.subr.mxu0 0.0
    %7788 = vmatpush1.xpose.msra.mxu0 0.0
    %7789 = vmatprep.subr.mxu0 0.0
    %7790 = vmatpush1.xpose.msra.mxu0 0.0
    %7791 = vmatprep.subr.mxu0 0.0
    %7792 = vmatpush1.xpose.msra.mxu0 0.0
    %7793 = vmatprep.subr.mxu0 0.0
    %7794 = vmatpush1.xpose.msra.mxu0 0.0
    %7795 = vmatprep.subr.mxu0 0.0
    %7796 = vmatpush1.xpose.msra.mxu0 0.0
    %7797 = vmatprep.subr.mxu0 0.0
    %7798 = vmatpush1.xpose.msra.mxu0 0.0
    %7799 = vmatprep.subr.mxu0 0.0
    %7800 = vmatpush1.xpose.msra.mxu0 0.0
    %7801 = vmatprep.subr.mxu0 0.0
    %7802 = vmatpush1.xpose.msra.mxu0 0.0
    %7803 = vmatprep.subr.mxu0 0.0
    %7804 = vmatpush1.xpose.msra.mxu0 0.0
    %7805 = vmatprep.subr.mxu0 0.0
    %7806 = vmatpush1.xpose.msra.mxu0 0.0
    %7807 = vmatprep.subr.mxu0 0.0
    %7808 = vmatpush1.xpose.msra.mxu0 0.0
    %7809 = vmatprep.subr.mxu0 0.0
    %7810 = vmatpush1.xpose.msra.mxu0 0.0
    %7811 = vmatprep.subr.mxu0 0.0
    %7812 = vmatpush1.xpose.msra.mxu0 0.0
    %7813 = vmatprep.subr.mxu0 0.0
    %7814 = vmatpush1.xpose.msra.mxu0 0.0
    %7815 = vmatprep.subr.mxu0 0.0
    %7816 = vmatpush1.xpose.msra.mxu0 0.0
    %7817 = vmatprep.subr.mxu0 0.0
    %7818 = vmatpush1.xpose.msra.mxu0 0.0
    %7819 = vmatprep.subr.mxu0 0.0
    %7820 = vmatpush1.xpose.msra.mxu0 0.0
    %7821 = vmatprep.subr.mxu0 0.0
    %7822 = vmatpush1.xpose.msra.mxu0 0.0
    %7823 = vmatprep.subr.mxu0 0.0
    %7824 = vmatpush1.xpose.msra.mxu0 0.0
    %7825 = vmatprep.subr.mxu0 0.0
    %7826 = vmatpush1.xpose.msra.mxu0 0.0
    %7827 = vmatprep.subr.mxu0 0.0
    %7828 = vmatpush1.xpose.msra.mxu0 0.0
    %7829 = vmatprep.mubr.f32.mxu0 0.0
    %v7830 = vand.u32 %v7607, 4294901760
    %v7831 = vsub.f32 %v7607, %v7830
    %7832 = vmatmul.mubr.f32.gmra.mrb[0].mxu0 %v7831
    %v7833 = vpop.f32.mrb[0].mxu0
    %v7834 = vadd.f32 %v7760, %v7833
    %v7835 = vpop.f32.mrb[0].mxu0
    %7836 = vdwg.mxu0
    %7837 = vmatprep.subr.mxu0 0.0
    %v7838 = vand.u32 %v7609, 4294901760
    %7839 = vmatpush1.xpose.msra.mxu0 %v7838
    %7840 = vmatprep.subr.mxu0 0.0
    %7841 = vmatpush1.xpose.msra.mxu0 0.0
    %7842 = vmatprep.subr.mxu0 0.0
    %7843 = vmatpush1.xpose.msra.mxu0 0.0
    %7844 = vmatprep.subr.mxu0 0.0
    %7845 = vmatpush1.xpose.msra.mxu0 0.0
    %7846 = vmatprep.subr.mxu0 0.0
    %7847 = vmatpush1.xpose.msra.mxu0 0.0
    %7848 = vmatprep.subr.mxu0 0.0
    %7849 = vmatpush1.xpose.msra.mxu0 0.0
    %7850 = vmatprep.subr.mxu0 0.0
    %7851 = vmatpush1.xpose.msra.mxu0 0.0
    %7852 = vmatprep.subr.mxu0 0.0
    %7853 = vmatpush1.xpose.msra.mxu0 0.0
    %7854 = vmatprep.subr.mxu0 0.0
    %7855 = vmatpush1.xpose.msra.mxu0 0.0
    %7856 = vmatprep.subr.mxu0 0.0
    %7857 = vmatpush1.xpose.msra.mxu0 0.0
    %7858 = vmatprep.subr.mxu0 0.0
    %7859 = vmatpush1.xpose.msra.mxu0 0.0
    %7860 = vmatprep.subr.mxu0 0.0
    %7861 = vmatpush1.xpose.msra.mxu0 0.0
    %7862 = vmatprep.subr.mxu0 0.0
    %7863 = vmatpush1.xpose.msra.mxu0 0.0
    %7864 = vmatprep.subr.mxu0 0.0
    %7865 = vmatpush1.xpose.msra.mxu0 0.0
    %7866 = vmatprep.subr.mxu0 0.0
    %7867 = vmatpush1.xpose.msra.mxu0 0.0
    %7868 = vmatprep.subr.mxu0 0.0
    %7869 = vmatpush1.xpose.msra.mxu0 0.0
    %7870 = vmatprep.subr.mxu0 0.0
    %7871 = vmatpush1.xpose.msra.mxu0 0.0
    %7872 = vmatprep.subr.mxu0 0.0
    %7873 = vmatpush1.xpose.msra.mxu0 0.0
    %7874 = vmatprep.subr.mxu0 0.0
    %7875 = vmatpush1.xpose.msra.mxu0 0.0
    %7876 = vmatprep.subr.mxu0 0.0
    %7877 = vmatpush1.xpose.msra.mxu0 0.0
    %7878 = vmatprep.subr.mxu0 0.0
    %7879 = vmatpush1.xpose.msra.mxu0 0.0
    %7880 = vmatprep.subr.mxu0 0.0
    %7881 = vmatpush1.xpose.msra.mxu0 0.0
    %7882 = vmatprep.subr.mxu0 0.0
    %7883 = vmatpush1.xpose.msra.mxu0 0.0
    %7884 = vmatprep.subr.mxu0 0.0
    %7885 = vmatpush1.xpose.msra.mxu0 0.0
    %7886 = vmatprep.subr.mxu0 0.0
    %7887 = vmatpush1.xpose.msra.mxu0 0.0
    %7888 = vmatprep.subr.mxu0 0.0
    %7889 = vmatpush1.xpose.msra.mxu0 0.0
    %7890 = vmatprep.subr.mxu0 0.0
    %7891 = vmatpush1.xpose.msra.mxu0 0.0
    %7892 = vmatprep.subr.mxu0 0.0
    %7893 = vmatpush1.xpose.msra.mxu0 0.0
    %7894 = vmatprep.subr.mxu0 0.0
    %7895 = vmatpush1.xpose.msra.mxu0 0.0
    %7896 = vmatprep.subr.mxu0 0.0
    %7897 = vmatpush1.xpose.msra.mxu0 0.0
    %7898 = vmatprep.subr.mxu0 0.0
    %7899 = vmatpush1.xpose.msra.mxu0 0.0
    %7900 = vmatprep.subr.mxu0 0.0
    %7901 = vmatpush1.xpose.msra.mxu0 0.0
    %7902 = vmatprep.mubr.f32.mxu0 0.0
    %v7903 = vand.u32 %v7607, 4294901760
    %v7904 = vsub.f32 %v7607, %v7903
    %v7905 = vand.u32 %v7904, 4294901760
    %7906 = vmatmul.mubr.f32.gmra.mrb[0].mxu0 %v7905
    %v7907 = vpop.f32.mrb[0].mxu0
    %v7908 = vadd.f32 %v7834, %v7907
    %v7909 = vpop.f32.mrb[0].mxu0
    %7910 = vdwg.mxu0
    %7911 = vmatprep.subr.mxu0 0.0
    %v7912 = vand.u32 %v7609, 4294901760
    %v7913 = vsub.f32 %v7609, %v7912
    %v7914 = vand.u32 %v7913, 4294901760
    %7915 = vmatpush1.xpose.msra.mxu0 %v7914
    %7916 = vmatprep.subr.mxu0 0.0
    %7917 = vmatpush1.xpose.msra.mxu0 0.0
    %7918 = vmatprep.subr.mxu0 0.0
    %7919 = vmatpush1.xpose.msra.mxu0 0.0
    %7920 = vmatprep.subr.mxu0 0.0
    %7921 = vmatpush1.xpose.msra.mxu0 0.0
    %7922 = vmatprep.subr.mxu0 0.0
    %7923 = vmatpush1.xpose.msra.mxu0 0.0
    %7924 = vmatprep.subr.mxu0 0.0
    %7925 = vmatpush1.xpose.msra.mxu0 0.0
    %7926 = vmatprep.subr.mxu0 0.0
    %7927 = vmatpush1.xpose.msra.mxu0 0.0
    %7928 = vmatprep.subr.mxu0 0.0
    %7929 = vmatpush1.xpose.msra.mxu0 0.0
    %7930 = vmatprep.subr.mxu0 0.0
    %7931 = vmatpush1.xpose.msra.mxu0 0.0
    %7932 = vmatprep.subr.mxu0 0.0
    %7933 = vmatpush1.xpose.msra.mxu0 0.0
    %7934 = vmatprep.subr.mxu0 0.0
    %7935 = vmatpush1.xpose.msra.mxu0 0.0
    %7936 = vmatprep.subr.mxu0 0.0
    %7937 = vmatpush1.xpose.msra.mxu0 0.0
    %7938 = vmatprep.subr.mxu0 0.0
    %7939 = vmatpush1.xpose.msra.mxu0 0.0
    %7940 = vmatprep.subr.mxu0 0.0
    %7941 = vmatpush1.xpose.msra.mxu0 0.0
    %7942 = vmatprep.subr.mxu0 0.0
    %7943 = vmatpush1.xpose.msra.mxu0 0.0
    %7944 = vmatprep.subr.mxu0 0.0
    %7945 = vmatpush1.xpose.msra.mxu0 0.0
    %7946 = vmatprep.subr.mxu0 0.0
    %7947 = vmatpush1.xpose.msra.mxu0 0.0
    %7948 = vmatprep.subr.mxu0 0.0
    %7949 = vmatpush1.xpose.msra.mxu0 0.0
    %7950 = vmatprep.subr.mxu0 0.0
    %7951 = vmatpush1.xpose.msra.mxu0 0.0
    %7952 = vmatprep.subr.mxu0 0.0
    %7953 = vmatpush1.xpose.msra.mxu0 0.0
    %7954 = vmatprep.subr.mxu0 0.0
    %7955 = vmatpush1.xpose.msra.mxu0 0.0
    %7956 = vmatprep.subr.mxu0 0.0
    %7957 = vmatpush1.xpose.msra.mxu0 0.0
    %7958 = vmatprep.subr.mxu0 0.0
    %7959 = vmatpush1.xpose.msra.mxu0 0.0
    %7960 = vmatprep.subr.mxu0 0.0
    %7961 = vmatpush1.xpose.msra.mxu0 0.0
    %7962 = vmatprep.subr.mxu0 0.0
    %7963 = vmatpush1.xpose.msra.mxu0 0.0
    %7964 = vmatprep.subr.mxu0 0.0
    %7965 = vmatpush1.xpose.msra.mxu0 0.0
    %7966 = vmatprep.subr.mxu0 0.0
    %7967 = vmatpush1.xpose.msra.mxu0 0.0
    %7968 = vmatprep.subr.mxu0 0.0
    %7969 = vmatpush1.xpose.msra.mxu0 0.0
    %7970 = vmatprep.subr.mxu0 0.0
    %7971 = vmatpush1.xpose.msra.mxu0 0.0
    %7972 = vmatprep.subr.mxu0 0.0
    %7973 = vmatpush1.xpose.msra.mxu0 0.0
    %7974 = vmatprep.subr.mxu0 0.0
    %7975 = vmatpush1.xpose.msra.mxu0 0.0
    %7976 = vmatprep.subr.mxu0 0.0
    %7977 = vmatpush1.xpose.msra.mxu0 0.0
    %7978 = vmatprep.mubr.f32.mxu0 0.0
    %v7979 = vand.u32 %v7607, 4294901760
    %7980 = vmatmul.mubr.f32.gmra.mrb[0].mxu0 %v7979
    %v7981 = vpop.f32.mrb[0].mxu0
    %v7982 = vadd.f32 %v7908, %v7981
    %v7983 = vpop.f32.mrb[0].mxu0
    %7984 = vdwg.mxu0
    %7985 = vmatprep.subr.mxu0 0.0
    %v7986 = vand.u32 %v7609, 4294901760
    %7987 = vmatpush1.xpose.msra.mxu0 %v7986
    %7988 = vmatprep.subr.mxu0 0.0
    %7989 = vmatpush1.xpose.msra.mxu0 0.0
    %7990 = vmatprep.subr.mxu0 0.0
    %7991 = vmatpush1.xpose.msra.mxu0 0.0
    %7992 = vmatprep.subr.mxu0 0.0
    %7993 = vmatpush1.xpose.msra.mxu0 0.0
    %7994 = vmatprep.subr.mxu0 0.0
    %7995 = vmatpush1.xpose.msra.mxu0 0.0
    %7996 = vmatprep.subr.mxu0 0.0
    %7997 = vmatpush1.xpose.msra.mxu0 0.0
    %7998 = vmatprep.subr.mxu0 0.0
    %7999 = vmatpush1.xpose.msra.mxu0 0.0
    %8000 = vmatprep.subr.mxu0 0.0
    %8001 = vmatpush1.xpose.msra.mxu0 0.0
    %8002 = vmatprep.subr.mxu0 0.0
    %8003 = vmatpush1.xpose.msra.mxu0 0.0
    %8004 = vmatprep.subr.mxu0 0.0
    %8005 = vmatpush1.xpose.msra.mxu0 0.0
    %8006 = vmatprep.subr.mxu0 0.0
    %8007 = vmatpush1.xpose.msra.mxu0 0.0
    %8008 = vmatprep.subr.mxu0 0.0
    %8009 = vmatpush1.xpose.msra.mxu0 0.0
    %8010 = vmatprep.subr.mxu0 0.0
    %8011 = vmatpush1.xpose.msra.mxu0 0.0
    %8012 = vmatprep.subr.mxu0 0.0
    %8013 = vmatpush1.xpose.msra.mxu0 0.0
    %8014 = vmatprep.subr.mxu0 0.0
    %8015 = vmatpush1.xpose.msra.mxu0 0.0
    %8016 = vmatprep.subr.mxu0 0.0
    %8017 = vmatpush1.xpose.msra.mxu0 0.0
    %8018 = vmatprep.subr.mxu0 0.0
    %8019 = vmatpush1.xpose.msra.mxu0 0.0
    %8020 = vmatprep.subr.mxu0 0.0
    %8021 = vmatpush1.xpose.msra.mxu0 0.0
    %8022 = vmatprep.subr.mxu0 0.0
    %8023 = vmatpush1.xpose.msra.mxu0 0.0
    %8024 = vmatprep.subr.mxu0 0.0
    %8025 = vmatpush1.xpose.msra.mxu0 0.0
    %8026 = vmatprep.subr.mxu0 0.0
    %8027 = vmatpush1.xpose.msra.mxu0 0.0
    %8028 = vmatprep.subr.mxu0 0.0
    %8029 = vmatpush1.xpose.msra.mxu0 0.0
    %8030 = vmatprep.subr.mxu0 0.0
    %8031 = vmatpush1.xpose.msra.mxu0 0.0
    %8032 = vmatprep.subr.mxu0 0.0
    %8033 = vmatpush1.xpose.msra.mxu0 0.0
    %8034 = vmatprep.subr.mxu0 0.0
    %8035 = vmatpush1.xpose.msra.mxu0 0.0
    %8036 = vmatprep.subr.mxu0 0.0
    %8037 = vmatpush1.xpose.msra.mxu0 0.0
    %8038 = vmatprep.subr.mxu0 0.0
    %8039 = vmatpush1.xpose.msra.mxu0 0.0
    %8040 = vmatprep.subr.mxu0 0.0
    %8041 = vmatpush1.xpose.msra.mxu0 0.0
    %8042 = vmatprep.subr.mxu0 0.0
    %8043 = vmatpush1.xpose.msra.mxu0 0.0
    %8044 = vmatprep.subr.mxu0 0.0
    %8045 = vmatpush1.xpose.msra.mxu0 0.0
    %8046 = vmatprep.subr.mxu0 0.0
    %8047 = vmatpush1.xpose.msra.mxu0 0.0
    %8048 = vmatprep.subr.mxu0 0.0
    %8049 = vmatpush1.xpose.msra.mxu0 0.0
    %8050 = vmatprep.mubr.f32.mxu0 0.0
    %v8051 = vand.u32 %v7607, 4294901760
    %8052 = vmatmul.mubr.f32.gmra.mrb[0].mxu0 %v8051
    %v8053 = vpop.f32.mrb[0].mxu0
    %v8054 = vadd.f32 %v7982, %v8053
    %v8055 = vpop.f32.mrb[0].mxu0
    %8056 = vdwg.mxu0
    %8057 = vrot.lane.b32.xlu0 %v607, 104
    %v8058 = vpop.permute.xlu0 %8057
    %8059 = vrot.lane.b32.xlu0 %v607, 72
    %v8060 = vpop.permute.xlu0 %8059
    %v8061 = vsel %vm613, %v8058, 0
    %v8063 = vsel %vm613, %v8060, 0
    %8065 = vmatprep.subr.mxu0 0.0
    %v8066 = vand.u32 %v8063, 4294901760
    %8067 = vmatpush1.xpose.msra.mxu0 %v8066
    %8068 = vmatprep.subr.mxu0 0.0
    %8069 = vmatpush1.xpose.msra.mxu0 0.0
    %8070 = vmatprep.subr.mxu0 0.0
    %8071 = vmatpush1.xpose.msra.mxu0 0.0
    %8072 = vmatprep.subr.mxu0 0.0
    %8073 = vmatpush1.xpose.msra.mxu0 0.0
    %8074 = vmatprep.subr.mxu0 0.0
    %8075 = vmatpush1.xpose.msra.mxu0 0.0
    %8076 = vmatprep.subr.mxu0 0.0
    %8077 = vmatpush1.xpose.msra.mxu0 0.0
    %8078 = vmatprep.subr.mxu0 0.0
    %8079 = vmatpush1.xpose.msra.mxu0 0.0
    %8080 = vmatprep.subr.mxu0 0.0
    %8081 = vmatpush1.xpose.msra.mxu0 0.0
    %8082 = vmatprep.subr.mxu0 0.0
    %8083 = vmatpush1.xpose.msra.mxu0 0.0
    %8084 = vmatprep.subr.mxu0 0.0
    %8085 = vmatpush1.xpose.msra.mxu0 0.0
    %8086 = vmatprep.subr.mxu0 0.0
    %8087 = vmatpush1.xpose.msra.mxu0 0.0
    %8088 = vmatprep.subr.mxu0 0.0
    %8089 = vmatpush1.xpose.msra.mxu0 0.0
    %8090 = vmatprep.subr.mxu0 0.0
    %8091 = vmatpush1.xpose.msra.mxu0 0.0
    %8092 = vmatprep.subr.mxu0 0.0
    %8093 = vmatpush1.xpose.msra.mxu0 0.0
    %8094 = vmatprep.subr.mxu0 0.0
    %8095 = vmatpush1.xpose.msra.mxu0 0.0
    %8096 = vmatprep.subr.mxu0 0.0
    %8097 = vmatpush1.xpose.msra.mxu0 0.0
    %8098 = vmatprep.subr.mxu0 0.0
    %8099 = vmatpush1.xpose.msra.mxu0 0.0
    %8100 = vmatprep.subr.mxu0 0.0
    %8101 = vmatpush1.xpose.msra.mxu0 0.0
    %8102 = vmatprep.subr.mxu0 0.0
    %8103 = vmatpush1.xpose.msra.mxu0 0.0
    %8104 = vmatprep.subr.mxu0 0.0
    %8105 = vmatpush1.xpose.msra.mxu0 0.0
    %8106 = vmatprep.subr.mxu0 0.0
    %8107 = vmatpush1.xpose.msra.mxu0 0.0
    %8108 = vmatprep.subr.mxu0 0.0
    %8109 = vmatpush1.xpose.msra.mxu0 0.0
    %8110 = vmatprep.subr.mxu0 0.0
    %8111 = vmatpush1.xpose.msra.mxu0 0.0
    %8112 = vmatprep.subr.mxu0 0.0
    %8113 = vmatpush1.xpose.msra.mxu0 0.0
    %8114 = vmatprep.subr.mxu0 0.0
    %8115 = vmatpush1.xpose.msra.mxu0 0.0
    %8116 = vmatprep.subr.mxu0 0.0
    %8117 = vmatpush1.xpose.msra.mxu0 0.0
    %8118 = vmatprep.subr.mxu0 0.0
    %8119 = vmatpush1.xpose.msra.mxu0 0.0
    %8120 = vmatprep.subr.mxu0 0.0
    %8121 = vmatpush1.xpose.msra.mxu0 0.0
    %8122 = vmatprep.subr.mxu0 0.0
    %8123 = vmatpush1.xpose.msra.mxu0 0.0
    %8124 = vmatprep.subr.mxu0 0.0
    %8125 = vmatpush1.xpose.msra.mxu0 0.0
    %8126 = vmatprep.subr.mxu0 0.0
    %8127 = vmatpush1.xpose.msra.mxu0 0.0
    %8128 = vmatprep.subr.mxu0 0.0
    %8129 = vmatpush1.xpose.msra.mxu0 0.0
    %8130 = vmatprep.mubr.f32.mxu0 0.0
    %v8131 = vand.u32 %v8061, 4294901760
    %v8132 = vsub.f32 %v8061, %v8131
    %v8133 = vand.u32 %v8132, 4294901760
    %v8134 = vsub.f32 %v8132, %v8133
    %v8135 = vand.u32 %v8134, 4294901760
    %8136 = vmatmul.mubr.f32.gmra.mrb[0].mxu0 %v8135
    %v8137 = vpop.f32.mrb[0].mxu0
    %v8138 = vadd.f32 0.0, %v8137
    %v8139 = vpop.f32.mrb[0].mxu0
    %8140 = vdwg.mxu0
    %8141 = vmatprep.subr.mxu0 0.0
    %v8142 = vand.u32 %v8063, 4294901760
    %v8143 = vsub.f32 %v8063, %v8142
    %v8144 = vand.u32 %v8143, 4294901760
    %v8145 = vsub.f32 %v8143, %v8144
    %v8146 = vand.u32 %v8145, 4294901760
    %8147 = vmatpush1.xpose.msra.mxu0 %v8146
    %8148 = vmatprep.subr.mxu0 0.0
    %8149 = vmatpush1.xpose.msra.mxu0 0.0
    %8150 = vmatprep.subr.mxu0 0.0
    %8151 = vmatpush1.xpose.msra.mxu0 0.0
    %8152 = vmatprep.subr.mxu0 0.0
    %8153 = vmatpush1.xpose.msra.mxu0 0.0
    %8154 = vmatprep.subr.mxu0 0.0
    %8155 = vmatpush1.xpose.msra.mxu0 0.0
    %8156 = vmatprep.subr.mxu0 0.0
    %8157 = vmatpush1.xpose.msra.mxu0 0.0
    %8158 = vmatprep.subr.mxu0 0.0
    %8159 = vmatpush1.xpose.msra.mxu0 0.0
    %8160 = vmatprep.subr.mxu0 0.0
    %8161 = vmatpush1.xpose.msra.mxu0 0.0
    %8162 = vmatprep.subr.mxu0 0.0
    %8163 = vmatpush1.xpose.msra.mxu0 0.0
    %8164 = vmatprep.subr.mxu0 0.0
    %8165 = vmatpush1.xpose.msra.mxu0 0.0
    %8166 = vmatprep.subr.mxu0 0.0
    %8167 = vmatpush1.xpose.msra.mxu0 0.0
    %8168 = vmatprep.subr.mxu0 0.0
    %8169 = vmatpush1.xpose.msra.mxu0 0.0
    %8170 = vmatprep.subr.mxu0 0.0
    %8171 = vmatpush1.xpose.msra.mxu0 0.0
    %8172 = vmatprep.subr.mxu0 0.0
    %8173 = vmatpush1.xpose.msra.mxu0 0.0
    %8174 = vmatprep.subr.mxu0 0.0
    %8175 = vmatpush1.xpose.msra.mxu0 0.0
    %8176 = vmatprep.subr.mxu0 0.0
    %8177 = vmatpush1.xpose.msra.mxu0 0.0
    %8178 = vmatprep.subr.mxu0 0.0
    %8179 = vmatpush1.xpose.msra.mxu0 0.0
    %8180 = vmatprep.subr.mxu0 0.0
    %8181 = vmatpush1.xpose.msra.mxu0 0.0
    %8182 = vmatprep.subr.mxu0 0.0
    %8183 = vmatpush1.xpose.msra.mxu0 0.0
    %8184 = vmatprep.subr.mxu0 0.0
    %8185 = vmatpush1.xpose.msra.mxu0 0.0
    %8186 = vmatprep.subr.mxu0 0.0
    %8187 = vmatpush1.xpose.msra.mxu0 0.0
    %8188 = vmatprep.subr.mxu0 0.0
    %8189 = vmatpush1.xpose.msra.mxu0 0.0
    %8190 = vmatprep.subr.mxu0 0.0
    %8191 = vmatpush1.xpose.msra.mxu0 0.0
    %8192 = vmatprep.subr.mxu0 0.0
    %8193 = vmatpush1.xpose.msra.mxu0 0.0
    %8194 = vmatprep.subr.mxu0 0.0
    %8195 = vmatpush1.xpose.msra.mxu0 0.0
    %8196 = vmatprep.subr.mxu0 0.0
    %8197 = vmatpush1.xpose.msra.mxu0 0.0
    %8198 = vmatprep.subr.mxu0 0.0
    %8199 = vmatpush1.xpose.msra.mxu0 0.0
    %8200 = vmatprep.subr.mxu0 0.0
    %8201 = vmatpush1.xpose.msra.mxu0 0.0
    %8202 = vmatprep.subr.mxu0 0.0
    %8203 = vmatpush1.xpose.msra.mxu0 0.0
    %8204 = vmatprep.subr.mxu0 0.0
    %8205 = vmatpush1.xpose.msra.mxu0 0.0
    %8206 = vmatprep.subr.mxu0 0.0
    %8207 = vmatpush1.xpose.msra.mxu0 0.0
    %8208 = vmatprep.subr.mxu0 0.0
    %8209 = vmatpush1.xpose.msra.mxu0 0.0
    %8210 = vmatprep.mubr.f32.mxu0 0.0
    %v8211 = vand.u32 %v8061, 4294901760
    %8212 = vmatmul.mubr.f32.gmra.mrb[0].mxu0 %v8211
    %v8213 = vpop.f32.mrb[0].mxu0
    %v8214 = vadd.f32 %v8138, %v8213
    %v8215 = vpop.f32.mrb[0].mxu0
    %8216 = vdwg.mxu0
    %8217 = vmatprep.subr.mxu0 0.0
    %v8218 = vand.u32 %v8063, 4294901760
    %v8219 = vsub.f32 %v8063, %v8218
    %8220 = vmatpush1.xpose.msra.mxu0 %v8219
    %8221 = vmatprep.subr.mxu0 0.0
    %8222 = vmatpush1.xpose.msra.mxu0 0.0
    %8223 = vmatprep.subr.mxu0 0.0
    %8224 = vmatpush1.xpose.msra.mxu0 0.0
    %8225 = vmatprep.subr.mxu0 0.0
    %8226 = vmatpush1.xpose.msra.mxu0 0.0
    %8227 = vmatprep.subr.mxu0 0.0
    %8228 = vmatpush1.xpose.msra.mxu0 0.0
    %8229 = vmatprep.subr.mxu0 0.0
    %8230 = vmatpush1.xpose.msra.mxu0 0.0
    %8231 = vmatprep.subr.mxu0 0.0
    %8232 = vmatpush1.xpose.msra.mxu0 0.0
    %8233 = vmatprep.subr.mxu0 0.0
    %8234 = vmatpush1.xpose.msra.mxu0 0.0
    %8235 = vmatprep.subr.mxu0 0.0
    %8236 = vmatpush1.xpose.msra.mxu0 0.0
    %8237 = vmatprep.subr.mxu0 0.0
    %8238 = vmatpush1.xpose.msra.mxu0 0.0
    %8239 = vmatprep.subr.mxu0 0.0
    %8240 = vmatpush1.xpose.msra.mxu0 0.0
    %8241 = vmatprep.subr.mxu0 0.0
    %8242 = vmatpush1.xpose.msra.mxu0 0.0
    %8243 = vmatprep.subr.mxu0 0.0
    %8244 = vmatpush1.xpose.msra.mxu0 0.0
    %8245 = vmatprep.subr.mxu0 0.0
    %8246 = vmatpush1.xpose.msra.mxu0 0.0
    %8247 = vmatprep.subr.mxu0 0.0
    %8248 = vmatpush1.xpose.msra.mxu0 0.0
    %8249 = vmatprep.subr.mxu0 0.0
    %8250 = vmatpush1.xpose.msra.mxu0 0.0
    %8251 = vmatprep.subr.mxu0 0.0
    %8252 = vmatpush1.xpose.msra.mxu0 0.0
    %8253 = vmatprep.subr.mxu0 0.0
    %8254 = vmatpush1.xpose.msra.mxu0 0.0
    %8255 = vmatprep.subr.mxu0 0.0
    %8256 = vmatpush1.xpose.msra.mxu0 0.0
    %8257 = vmatprep.subr.mxu0 0.0
    %8258 = vmatpush1.xpose.msra.mxu0 0.0
    %8259 = vmatprep.subr.mxu0 0.0
    %8260 = vmatpush1.xpose.msra.mxu0 0.0
    %8261 = vmatprep.subr.mxu0 0.0
    %8262 = vmatpush1.xpose.msra.mxu0 0.0
    %8263 = vmatprep.subr.mxu0 0.0
    %8264 = vmatpush1.xpose.msra.mxu0 0.0
    %8265 = vmatprep.subr.mxu0 0.0
    %8266 = vmatpush1.xpose.msra.mxu0 0.0
    %8267 = vmatprep.subr.mxu0 0.0
    %8268 = vmatpush1.xpose.msra.mxu0 0.0
    %8269 = vmatprep.subr.mxu0 0.0
    %8270 = vmatpush1.xpose.msra.mxu0 0.0
    %8271 = vmatprep.subr.mxu0 0.0
    %8272 = vmatpush1.xpose.msra.mxu0 0.0
    %8273 = vmatprep.subr.mxu0 0.0
    %8274 = vmatpush1.xpose.msra.mxu0 0.0
    %8275 = vmatprep.subr.mxu0 0.0
    %8276 = vmatpush1.xpose.msra.mxu0 0.0
    %8277 = vmatprep.subr.mxu0 0.0
    %8278 = vmatpush1.xpose.msra.mxu0 0.0
    %8279 = vmatprep.subr.mxu0 0.0
    %8280 = vmatpush1.xpose.msra.mxu0 0.0
    %8281 = vmatprep.subr.mxu0 0.0
    %8282 = vmatpush1.xpose.msra.mxu0 0.0
    %8283 = vmatprep.mubr.f32.mxu0 0.0
    %v8284 = vand.u32 %v8061, 4294901760
    %v8285 = vsub.f32 %v8061, %v8284
    %8286 = vmatmul.mubr.f32.gmra.mrb[0].mxu0 %v8285
    %v8287 = vpop.f32.mrb[0].mxu0
    %v8288 = vadd.f32 %v8214, %v8287
    %v8289 = vpop.f32.mrb[0].mxu0
    %8290 = vdwg.mxu0
    %8291 = vmatprep.subr.mxu0 0.0
    %v8292 = vand.u32 %v8063, 4294901760
    %8293 = vmatpush1.xpose.msra.mxu0 %v8292
    %8294 = vmatprep.subr.mxu0 0.0
    %8295 = vmatpush1.xpose.msra.mxu0 0.0
    %8296 = vmatprep.subr.mxu0 0.0
    %8297 = vmatpush1.xpose.msra.mxu0 0.0
    %8298 = vmatprep.subr.mxu0 0.0
    %8299 = vmatpush1.xpose.msra.mxu0 0.0
    %8300 = vmatprep.subr.mxu0 0.0
    %8301 = vmatpush1.xpose.msra.mxu0 0.0
    %8302 = vmatprep.subr.mxu0 0.0
    %8303 = vmatpush1.xpose.msra.mxu0 0.0
    %8304 = vmatprep.subr.mxu0 0.0
    %8305 = vmatpush1.xpose.msra.mxu0 0.0
    %8306 = vmatprep.subr.mxu0 0.0
    %8307 = vmatpush1.xpose.msra.mxu0 0.0
    %8308 = vmatprep.subr.mxu0 0.0
    %8309 = vmatpush1.xpose.msra.mxu0 0.0
    %8310 = vmatprep.subr.mxu0 0.0
    %8311 = vmatpush1.xpose.msra.mxu0 0.0
    %8312 = vmatprep.subr.mxu0 0.0
    %8313 = vmatpush1.xpose.msra.mxu0 0.0
    %8314 = vmatprep.subr.mxu0 0.0
    %8315 = vmatpush1.xpose.msra.mxu0 0.0
    %8316 = vmatprep.subr.mxu0 0.0
    %8317 = vmatpush1.xpose.msra.mxu0 0.0
    %8318 = vmatprep.subr.mxu0 0.0
    %8319 = vmatpush1.xpose.msra.mxu0 0.0
    %8320 = vmatprep.subr.mxu0 0.0
    %8321 = vmatpush1.xpose.msra.mxu0 0.0
    %8322 = vmatprep.subr.mxu0 0.0
    %8323 = vmatpush1.xpose.msra.mxu0 0.0
    %8324 = vmatprep.subr.mxu0 0.0
    %8325 = vmatpush1.xpose.msra.mxu0 0.0
    %8326 = vmatprep.subr.mxu0 0.0
    %8327 = vmatpush1.xpose.msra.mxu0 0.0
    %8328 = vmatprep.subr.mxu0 0.0
    %8329 = vmatpush1.xpose.msra.mxu0 0.0
    %8330 = vmatprep.subr.mxu0 0.0
    %8331 = vmatpush1.xpose.msra.mxu0 0.0
    %8332 = vmatprep.subr.mxu0 0.0
    %8333 = vmatpush1.xpose.msra.mxu0 0.0
    %8334 = vmatprep.subr.mxu0 0.0
    %8335 = vmatpush1.xpose.msra.mxu0 0.0
    %8336 = vmatprep.subr.mxu0 0.0
    %8337 = vmatpush1.xpose.msra.mxu0 0.0
    %8338 = vmatprep.subr.mxu0 0.0
    %8339 = vmatpush1.xpose.msra.mxu0 0.0
    %8340 = vmatprep.subr.mxu0 0.0
    %8341 = vmatpush1.xpose.msra.mxu0 0.0
    %8342 = vmatprep.subr.mxu0 0.0
    %8343 = vmatpush1.xpose.msra.mxu0 0.0
    %8344 = vmatprep.subr.mxu0 0.0
    %8345 = vmatpush1.xpose.msra.mxu0 0.0
    %8346 = vmatprep.subr.mxu0 0.0
    %8347 = vmatpush1.xpose.msra.mxu0 0.0
    %8348 = vmatprep.subr.mxu0 0.0
    %8349 = vmatpush1.xpose.msra.mxu0 0.0
    %8350 = vmatprep.subr.mxu0 0.0
    %8351 = vmatpush1.xpose.msra.mxu0 0.0
    %8352 = vmatprep.subr.mxu0 0.0
    %8353 = vmatpush1.xpose.msra.mxu0 0.0
    %8354 = vmatprep.subr.mxu0 0.0
    %8355 = vmatpush1.xpose.msra.mxu0 0.0
    %8356 = vmatprep.mubr.f32.mxu0 0.0
    %v8357 = vand.u32 %v8061, 4294901760
    %v8358 = vsub.f32 %v8061, %v8357
    %v8359 = vand.u32 %v8358, 4294901760
    %8360 = vmatmul.mubr.f32.gmra.mrb[0].mxu0 %v8359
    %v8361 = vpop.f32.mrb[0].mxu0
    %v8362 = vadd.f32 %v8288, %v8361
    %v8363 = vpop.f32.mrb[0].mxu0
    %8364 = vdwg.mxu0
    %8365 = vmatprep.subr.mxu0 0.0
    %v8366 = vand.u32 %v8063, 4294901760
    %v8367 = vsub.f32 %v8063, %v8366
    %v8368 = vand.u32 %v8367, 4294901760
    %8369 = vmatpush1.xpose.msra.mxu0 %v8368
    %8370 = vmatprep.subr.mxu0 0.0
    %8371 = vmatpush1.xpose.msra.mxu0 0.0
    %8372 = vmatprep.subr.mxu0 0.0
    %8373 = vmatpush1.xpose.msra.mxu0 0.0
    %8374 = vmatprep.subr.mxu0 0.0
    %8375 = vmatpush1.xpose.msra.mxu0 0.0
    %8376 = vmatprep.subr.mxu0 0.0
    %8377 = vmatpush1.xpose.msra.mxu0 0.0
    %8378 = vmatprep.subr.mxu0 0.0
    %8379 = vmatpush1.xpose.msra.mxu0 0.0
    %8380 = vmatprep.subr.mxu0 0.0
    %8381 = vmatpush1.xpose.msra.mxu0 0.0
    %8382 = vmatprep.subr.mxu0 0.0
    %8383 = vmatpush1.xpose.msra.mxu0 0.0
    %8384 = vmatprep.subr.mxu0 0.0
    %8385 = vmatpush1.xpose.msra.mxu0 0.0
    %8386 = vmatprep.subr.mxu0 0.0
    %8387 = vmatpush1.xpose.msra.mxu0 0.0
    %8388 = vmatprep.subr.mxu0 0.0
    %8389 = vmatpush1.xpose.msra.mxu0 0.0
    %8390 = vmatprep.subr.mxu0 0.0
    %8391 = vmatpush1.xpose.msra.mxu0 0.0
    %8392 = vmatprep.subr.mxu0 0.0
    %8393 = vmatpush1.xpose.msra.mxu0 0.0
    %8394 = vmatprep.subr.mxu0 0.0
    %8395 = vmatpush1.xpose.msra.mxu0 0.0
    %8396 = vmatprep.subr.mxu0 0.0
    %8397 = vmatpush1.xpose.msra.mxu0 0.0
    %8398 = vmatprep.subr.mxu0 0.0
    %8399 = vmatpush1.xpose.msra.mxu0 0.0
    %8400 = vmatprep.subr.mxu0 0.0
    %8401 = vmatpush1.xpose.msra.mxu0 0.0
    %8402 = vmatprep.subr.mxu0 0.0
    %8403 = vmatpush1.xpose.msra.mxu0 0.0
    %8404 = vmatprep.subr.mxu0 0.0
    %8405 = vmatpush1.xpose.msra.mxu0 0.0
    %8406 = vmatprep.subr.mxu0 0.0
    %8407 = vmatpush1.xpose.msra.mxu0 0.0
    %8408 = vmatprep.subr.mxu0 0.0
    %8409 = vmatpush1.xpose.msra.mxu0 0.0
    %8410 = vmatprep.subr.mxu0 0.0
    %8411 = vmatpush1.xpose.msra.mxu0 0.0
    %8412 = vmatprep.subr.mxu0 0.0
    %8413 = vmatpush1.xpose.msra.mxu0 0.0
    %8414 = vmatprep.subr.mxu0 0.0
    %8415 = vmatpush1.xpose.msra.mxu0 0.0
    %8416 = vmatprep.subr.mxu0 0.0
    %8417 = vmatpush1.xpose.msra.mxu0 0.0
    %8418 = vmatprep.subr.mxu0 0.0
    %8419 = vmatpush1.xpose.msra.mxu0 0.0
    %8420 = vmatprep.subr.mxu0 0.0
    %8421 = vmatpush1.xpose.msra.mxu0 0.0
    %8422 = vmatprep.subr.mxu0 0.0
    %8423 = vmatpush1.xpose.msra.mxu0 0.0
    %8424 = vmatprep.subr.mxu0 0.0
    %8425 = vmatpush1.xpose.msra.mxu0 0.0
    %8426 = vmatprep.subr.mxu0 0.0
    %8427 = vmatpush1.xpose.msra.mxu0 0.0
    %8428 = vmatprep.subr.mxu0 0.0
    %8429 = vmatpush1.xpose.msra.mxu0 0.0
    %8430 = vmatprep.subr.mxu0 0.0
    %8431 = vmatpush1.xpose.msra.mxu0 0.0
    %8432 = vmatprep.mubr.f32.mxu0 0.0
    %v8433 = vand.u32 %v8061, 4294901760
    %8434 = vmatmul.mubr.f32.gmra.mrb[0].mxu0 %v8433
    %v8435 = vpop.f32.mrb[0].mxu0
    %v8436 = vadd.f32 %v8362, %v8435
    %v8437 = vpop.f32.mrb[0].mxu0
    %8438 = vdwg.mxu0
    %8439 = vmatprep.subr.mxu0 0.0
    %v8440 = vand.u32 %v8063, 4294901760
    %8441 = vmatpush1.xpose.msra.mxu0 %v8440
    %8442 = vmatprep.subr.mxu0 0.0
    %8443 = vmatpush1.xpose.msra.mxu0 0.0
    %8444 = vmatprep.subr.mxu0 0.0
    %8445 = vmatpush1.xpose.msra.mxu0 0.0
    %8446 = vmatprep.subr.mxu0 0.0
    %8447 = vmatpush1.xpose.msra.mxu0 0.0
    %8448 = vmatprep.subr.mxu0 0.0
    %8449 = vmatpush1.xpose.msra.mxu0 0.0
    %8450 = vmatprep.subr.mxu0 0.0
    %8451 = vmatpush1.xpose.msra.mxu0 0.0
    %8452 = vmatprep.subr.mxu0 0.0
    %8453 = vmatpush1.xpose.msra.mxu0 0.0
    %8454 = vmatprep.subr.mxu0 0.0
    %8455 = vmatpush1.xpose.msra.mxu0 0.0
    %8456 = vmatprep.subr.mxu0 0.0
    %8457 = vmatpush1.xpose.msra.mxu0 0.0
    %8458 = vmatprep.subr.mxu0 0.0
    %8459 = vmatpush1.xpose.msra.mxu0 0.0
    %8460 = vmatprep.subr.mxu0 0.0
    %8461 = vmatpush1.xpose.msra.mxu0 0.0
    %8462 = vmatprep.subr.mxu0 0.0
    %8463 = vmatpush1.xpose.msra.mxu0 0.0
    %8464 = vmatprep.subr.mxu0 0.0
    %8465 = vmatpush1.xpose.msra.mxu0 0.0
    %8466 = vmatprep.subr.mxu0 0.0
    %8467 = vmatpush1.xpose.msra.mxu0 0.0
    %8468 = vmatprep.subr.mxu0 0.0
    %8469 = vmatpush1.xpose.msra.mxu0 0.0
    %8470 = vmatprep.subr.mxu0 0.0
    %8471 = vmatpush1.xpose.msra.mxu0 0.0
    %8472 = vmatprep.subr.mxu0 0.0
    %8473 = vmatpush1.xpose.msra.mxu0 0.0
    %8474 = vmatprep.subr.mxu0 0.0
    %8475 = vmatpush1.xpose.msra.mxu0 0.0
    %8476 = vmatprep.subr.mxu0 0.0
    %8477 = vmatpush1.xpose.msra.mxu0 0.0
    %8478 = vmatprep.subr.mxu0 0.0
    %8479 = vmatpush1.xpose.msra.mxu0 0.0
    %8480 = vmatprep.subr.mxu0 0.0
    %8481 = vmatpush1.xpose.msra.mxu0 0.0
    %8482 = vmatprep.subr.mxu0 0.0
    %8483 = vmatpush1.xpose.msra.mxu0 0.0
    %8484 = vmatprep.subr.mxu0 0.0
    %8485 = vmatpush1.xpose.msra.mxu0 0.0
    %8486 = vmatprep.subr.mxu0 0.0
    %8487 = vmatpush1.xpose.msra.mxu0 0.0
    %8488 = vmatprep.subr.mxu0 0.0
    %8489 = vmatpush1.xpose.msra.mxu0 0.0
    %8490 = vmatprep.subr.mxu0 0.0
    %8491 = vmatpush1.xpose.msra.mxu0 0.0
    %8492 = vmatprep.subr.mxu0 0.0
    %8493 = vmatpush1.xpose.msra.mxu0 0.0
    %8494 = vmatprep.subr.mxu0 0.0
    %8495 = vmatpush1.xpose.msra.mxu0 0.0
    %8496 = vmatprep.subr.mxu0 0.0
    %8497 = vmatpush1.xpose.msra.mxu0 0.0
    %8498 = vmatprep.subr.mxu0 0.0
    %8499 = vmatpush1.xpose.msra.mxu0 0.0
    %8500 = vmatprep.subr.mxu0 0.0
    %8501 = vmatpush1.xpose.msra.mxu0 0.0
    %8502 = vmatprep.subr.mxu0 0.0
    %8503 = vmatpush1.xpose.msra.mxu0 0.0
    %8504 = vmatprep.mubr.f32.mxu0 0.0
    %v8505 = vand.u32 %v8061, 4294901760
    %8506 = vmatmul.mubr.f32.gmra.mrb[0].mxu0 %v8505
    %v8507 = vpop.f32.mrb[0].mxu0
    %v8508 = vadd.f32 %v8436, %v8507
    %v8509 = vpop.f32.mrb[0].mxu0
    %8510 = vdwg.mxu0
    %v8511 = vsel %vm613, %v8054, -inf
    %8512 = vmax.xlane.f32.xlu0 %v8511
    %v8513 = vpop.xlane.xlu0 %8512
    %v8514 = vsel %vm613, %v8508, -inf
    %8515 = vmax.xlane.f32.xlu0 %v8514
    %v8516 = vpop.xlane.xlu0 %8515
    %v8517 = vsub.f32 %v8054, %v8513
    %v8518 = vsub.f32 %v8508, %v8516
    %v8519 = vmul.f32 %v8517, 1.442695
    %v8520 = vpow.pop %v8519
    %v8521 = vmul.f32 %v8518, 1.442695
    %v8522 = vpow.pop %v8521
    %v8523 = vsel %vm613, %v8520, 0.0
    %8524 = vadd.xlane.f32.xlu0 %v8523
    %v8525 = vpop.xlane.xlu0 %8524
    %v8526 = vsel %vm613, %v8522, 0.0
    %8527 = vadd.xlane.f32.xlu0 %v8526
    %v8528 = vpop.xlane.xlu0 %8527
    %v8529 = vrcp.pop %v8525
    %v8530 = vrcp.pop %v8528
    %v8531 = vmul.f32 %v8520, %v8529
    %v8532 = vmul.f32 %v8522, %v8530
    %8533 = vrot.lane.b32.xlu0 %v601, 40
    %v8534 = vpop.permute.xlu0 %8533
    %v8537 = vsel %vm613, %v8531, 0
    %8539 = vmatprep.subr.mxu0 0.0
    %v8540 = vand.u32 %v8534, 4294901760
    %8541 = vmatpush1.msra.mxu0 %v8540
    %8542 = vmatprep.subr.mxu0 0.0
    %8543 = vmatpush1.msra.mxu0 0.0
    %8544 = vmatprep.subr.mxu0 0.0
    %8545 = vmatpush1.msra.mxu0 0.0
    %8546 = vmatprep.subr.mxu0 0.0
    %8547 = vmatpush1.msra.mxu0 0.0
    %8548 = vmatprep.subr.mxu0 0.0
    %8549 = vmatpush1.msra.mxu0 0.0
    %8550 = vmatprep.subr.mxu0 0.0
    %8551 = vmatpush1.msra.mxu0 0.0
    %8552 = vmatprep.subr.mxu0 0.0
    %8553 = vmatpush1.msra.mxu0 0.0
    %8554 = vmatprep.subr.mxu0 0.0
    %8555 = vmatpush1.msra.mxu0 0.0
    %8556 = vmatprep.subr.mxu0 0.0
    %8557 = vmatpush1.msra.mxu0 0.0
    %8558 = vmatprep.subr.mxu0 0.0
    %8559 = vmatpush1.msra.mxu0 0.0
    %8560 = vmatprep.subr.mxu0 0.0
    %8561 = vmatpush1.msra.mxu0 0.0
    %8562 = vmatprep.subr.mxu0 0.0
    %8563 = vmatpush1.msra.mxu0 0.0
    %8564 = vmatprep.subr.mxu0 0.0
    %8565 = vmatpush1.msra.mxu0 0.0
    %8566 = vmatprep.subr.mxu0 0.0
    %8567 = vmatpush1.msra.mxu0 0.0
    %8568 = vmatprep.subr.mxu0 0.0
    %8569 = vmatpush1.msra.mxu0 0.0
    %8570 = vmatprep.subr.mxu0 0.0
    %8571 = vmatpush1.msra.mxu0 0.0
    %8572 = vmatprep.subr.mxu0 0.0
    %8573 = vmatpush1.msra.mxu0 0.0
    %8574 = vmatprep.subr.mxu0 0.0
    %8575 = vmatpush1.msra.mxu0 0.0
    %8576 = vmatprep.subr.mxu0 0.0
    %8577 = vmatpush1.msra.mxu0 0.0
    %8578 = vmatprep.subr.mxu0 0.0
    %8579 = vmatpush1.msra.mxu0 0.0
    %8580 = vmatprep.subr.mxu0 0.0
    %8581 = vmatpush1.msra.mxu0 0.0
    %8582 = vmatprep.subr.mxu0 0.0
    %8583 = vmatpush1.msra.mxu0 0.0
    %8584 = vmatprep.subr.mxu0 0.0
    %8585 = vmatpush1.msra.mxu0 0.0
    %8586 = vmatprep.subr.mxu0 0.0
    %8587 = vmatpush1.msra.mxu0 0.0
    %8588 = vmatprep.subr.mxu0 0.0
    %8589 = vmatpush1.msra.mxu0 0.0
    %8590 = vmatprep.subr.mxu0 0.0
    %8591 = vmatpush1.msra.mxu0 0.0
    %8592 = vmatprep.subr.mxu0 0.0
    %8593 = vmatpush1.msra.mxu0 0.0
    %8594 = vmatprep.subr.mxu0 0.0
    %8595 = vmatpush1.msra.mxu0 0.0
    %8596 = vmatprep.subr.mxu0 0.0
    %8597 = vmatpush1.msra.mxu0 0.0
    %8598 = vmatprep.subr.mxu0 0.0
    %8599 = vmatpush1.msra.mxu0 0.0
    %8600 = vmatprep.subr.mxu0 0.0
    %8601 = vmatpush1.msra.mxu0 0.0
    %8602 = vmatprep.subr.mxu0 0.0
    %8603 = vmatpush1.msra.mxu0 0.0
    %8604 = vmatprep.mubr.f32.mxu0 0.0
    %v8605 = vand.u32 %v8537, 4294901760
    %v8606 = vsub.f32 %v8537, %v8605
    %v8607 = vand.u32 %v8606, 4294901760
    %v8608 = vsub.f32 %v8606, %v8607
    %v8609 = vand.u32 %v8608, 4294901760
    %8610 = vmatmul.mubr.f32.gmra.mrb[0].mxu0 %v8609
    %v8611 = vpop.f32.mrb[0].mxu0
    %v8612 = vadd.f32 0.0, %v8611
    %v8613 = vpop.f32.mrb[0].mxu0
    %8614 = vdwg.mxu0
    %8615 = vmatprep.subr.mxu0 0.0
    %v8616 = vand.u32 %v8534, 4294901760
    %v8617 = vsub.f32 %v8534, %v8616
    %v8618 = vand.u32 %v8617, 4294901760
    %v8619 = vsub.f32 %v8617, %v8618
    %v8620 = vand.u32 %v8619, 4294901760
    %8621 = vmatpush1.msra.mxu0 %v8620
    %8622 = vmatprep.subr.mxu0 0.0
    %8623 = vmatpush1.msra.mxu0 0.0
    %8624 = vmatprep.subr.mxu0 0.0
    %8625 = vmatpush1.msra.mxu0 0.0
    %8626 = vmatprep.subr.mxu0 0.0
    %8627 = vmatpush1.msra.mxu0 0.0
    %8628 = vmatprep.subr.mxu0 0.0
    %8629 = vmatpush1.msra.mxu0 0.0
    %8630 = vmatprep.subr.mxu0 0.0
    %8631 = vmatpush1.msra.mxu0 0.0
    %8632 = vmatprep.subr.mxu0 0.0
    %8633 = vmatpush1.msra.mxu0 0.0
    %8634 = vmatprep.subr.mxu0 0.0
    %8635 = vmatpush1.msra.mxu0 0.0
    %8636 = vmatprep.subr.mxu0 0.0
    %8637 = vmatpush1.msra.mxu0 0.0
    %8638 = vmatprep.subr.mxu0 0.0
    %8639 = vmatpush1.msra.mxu0 0.0
    %8640 = vmatprep.subr.mxu0 0.0
    %8641 = vmatpush1.msra.mxu0 0.0
    %8642 = vmatprep.subr.mxu0 0.0
    %8643 = vmatpush1.msra.mxu0 0.0
    %8644 = vmatprep.subr.mxu0 0.0
    %8645 = vmatpush1.msra.mxu0 0.0
    %8646 = vmatprep.subr.mxu0 0.0
    %8647 = vmatpush1.msra.mxu0 0.0
    %8648 = vmatprep.subr.mxu0 0.0
    %8649 = vmatpush1.msra.mxu0 0.0
    %8650 = vmatprep.subr.mxu0 0.0
    %8651 = vmatpush1.msra.mxu0 0.0
    %8652 = vmatprep.subr.mxu0 0.0
    %8653 = vmatpush1.msra.mxu0 0.0
    %8654 = vmatprep.subr.mxu0 0.0
    %8655 = vmatpush1.msra.mxu0 0.0
    %8656 = vmatprep.subr.mxu0 0.0
    %8657 = vmatpush1.msra.mxu0 0.0
    %8658 = vmatprep.subr.mxu0 0.0
    %8659 = vmatpush1.msra.mxu0 0.0
    %8660 = vmatprep.subr.mxu0 0.0
    %8661 = vmatpush1.msra.mxu0 0.0
    %8662 = vmatprep.subr.mxu0 0.0
    %8663 = vmatpush1.msra.mxu0 0.0
    %8664 = vmatprep.subr.mxu0 0.0
    %8665 = vmatpush1.msra.mxu0 0.0
    %8666 = vmatprep.subr.mxu0 0.0
    %8667 = vmatpush1.msra.mxu0 0.0
    %8668 = vmatprep.subr.mxu0 0.0
    %8669 = vmatpush1.msra.mxu0 0.0
    %8670 = vmatprep.subr.mxu0 0.0
    %8671 = vmatpush1.msra.mxu0 0.0
    %8672 = vmatprep.subr.mxu0 0.0
    %8673 = vmatpush1.msra.mxu0 0.0
    %8674 = vmatprep.subr.mxu0 0.0
    %8675 = vmatpush1.msra.mxu0 0.0
    %8676 = vmatprep.subr.mxu0 0.0
    %8677 = vmatpush1.msra.mxu0 0.0
    %8678 = vmatprep.subr.mxu0 0.0
    %8679 = vmatpush1.msra.mxu0 0.0
    %8680 = vmatprep.subr.mxu0 0.0
    %8681 = vmatpush1.msra.mxu0 0.0
    %8682 = vmatprep.subr.mxu0 0.0
    %8683 = vmatpush1.msra.mxu0 0.0
    %8684 = vmatprep.mubr.f32.mxu0 0.0
    %v8685 = vand.u32 %v8537, 4294901760
    %8686 = vmatmul.mubr.f32.gmra.mrb[0].mxu0 %v8685
    %v8687 = vpop.f32.mrb[0].mxu0
    %v8688 = vadd.f32 %v8612, %v8687
    %v8689 = vpop.f32.mrb[0].mxu0
    %8690 = vdwg.mxu0
    %8691 = vmatprep.subr.mxu0 0.0
    %v8692 = vand.u32 %v8534, 4294901760
    %v8693 = vsub.f32 %v8534, %v8692
    %8694 = vmatpush1.msra.mxu0 %v8693
    %8695 = vmatprep.subr.mxu0 0.0
    %8696 = vmatpush1.msra.mxu0 0.0
    %8697 = vmatprep.subr.mxu0 0.0
    %8698 = vmatpush1.msra.mxu0 0.0
    %8699 = vmatprep.subr.mxu0 0.0
    %8700 = vmatpush1.msra.mxu0 0.0
    %8701 = vmatprep.subr.mxu0 0.0
    %8702 = vmatpush1.msra.mxu0 0.0
    %8703 = vmatprep.subr.mxu0 0.0
    %8704 = vmatpush1.msra.mxu0 0.0
    %8705 = vmatprep.subr.mxu0 0.0
    %8706 = vmatpush1.msra.mxu0 0.0
    %8707 = vmatprep.subr.mxu0 0.0
    %8708 = vmatpush1.msra.mxu0 0.0
    %8709 = vmatprep.subr.mxu0 0.0
    %8710 = vmatpush1.msra.mxu0 0.0
    %8711 = vmatprep.subr.mxu0 0.0
    %8712 = vmatpush1.msra.mxu0 0.0
    %8713 = vmatprep.subr.mxu0 0.0
    %8714 = vmatpush1.msra.mxu0 0.0
    %8715 = vmatprep.subr.mxu0 0.0
    %8716 = vmatpush1.msra.mxu0 0.0
    %8717 = vmatprep.subr.mxu0 0.0
    %8718 = vmatpush1.msra.mxu0 0.0
    %8719 = vmatprep.subr.mxu0 0.0
    %8720 = vmatpush1.msra.mxu0 0.0
    %8721 = vmatprep.subr.mxu0 0.0
    %8722 = vmatpush1.msra.mxu0 0.0
    %8723 = vmatprep.subr.mxu0 0.0
    %8724 = vmatpush1.msra.mxu0 0.0
    %8725 = vmatprep.subr.mxu0 0.0
    %8726 = vmatpush1.msra.mxu0 0.0
    %8727 = vmatprep.subr.mxu0 0.0
    %8728 = vmatpush1.msra.mxu0 0.0
    %8729 = vmatprep.subr.mxu0 0.0
    %8730 = vmatpush1.msra.mxu0 0.0
    %8731 = vmatprep.subr.mxu0 0.0
    %8732 = vmatpush1.msra.mxu0 0.0
    %8733 = vmatprep.subr.mxu0 0.0
    %8734 = vmatpush1.msra.mxu0 0.0
    %8735 = vmatprep.subr.mxu0 0.0
    %8736 = vmatpush1.msra.mxu0 0.0
    %8737 = vmatprep.subr.mxu0 0.0
    %8738 = vmatpush1.msra.mxu0 0.0
    %8739 = vmatprep.subr.mxu0 0.0
    %8740 = vmatpush1.msra.mxu0 0.0
    %8741 = vmatprep.subr.mxu0 0.0
    %8742 = vmatpush1.msra.mxu0 0.0
    %8743 = vmatprep.subr.mxu0 0.0
    %8744 = vmatpush1.msra.mxu0 0.0
    %8745 = vmatprep.subr.mxu0 0.0
    %8746 = vmatpush1.msra.mxu0 0.0
    %8747 = vmatprep.subr.mxu0 0.0
    %8748 = vmatpush1.msra.mxu0 0.0
    %8749 = vmatprep.subr.mxu0 0.0
    %8750 = vmatpush1.msra.mxu0 0.0
    %8751 = vmatprep.subr.mxu0 0.0
    %8752 = vmatpush1.msra.mxu0 0.0
    %8753 = vmatprep.subr.mxu0 0.0
    %8754 = vmatpush1.msra.mxu0 0.0
    %8755 = vmatprep.subr.mxu0 0.0
    %8756 = vmatpush1.msra.mxu0 0.0
    %8757 = vmatprep.mubr.f32.mxu0 0.0
    %v8758 = vand.u32 %v8537, 4294901760
    %v8759 = vsub.f32 %v8537, %v8758
    %8760 = vmatmul.mubr.f32.gmra.mrb[0].mxu0 %v8759
    %v8761 = vpop.f32.mrb[0].mxu0
    %v8762 = vadd.f32 %v8688, %v8761
    %v8763 = vpop.f32.mrb[0].mxu0
    %8764 = vdwg.mxu0
    %8765 = vmatprep.subr.mxu0 0.0
    %v8766 = vand.u32 %v8534, 4294901760
    %8767 = vmatpush1.msra.mxu0 %v8766
    %8768 = vmatprep.subr.mxu0 0.0
    %8769 = vmatpush1.msra.mxu0 0.0
    %8770 = vmatprep.subr.mxu0 0.0
    %8771 = vmatpush1.msra.mxu0 0.0
    %8772 = vmatprep.subr.mxu0 0.0
    %8773 = vmatpush1.msra.mxu0 0.0
    %8774 = vmatprep.subr.mxu0 0.0
    %8775 = vmatpush1.msra.mxu0 0.0
    %8776 = vmatprep.subr.mxu0 0.0
    %8777 = vmatpush1.msra.mxu0 0.0
    %8778 = vmatprep.subr.mxu0 0.0
    %8779 = vmatpush1.msra.mxu0 0.0
    %8780 = vmatprep.subr.mxu0 0.0
    %8781 = vmatpush1.msra.mxu0 0.0
    %8782 = vmatprep.subr.mxu0 0.0
    %8783 = vmatpush1.msra.mxu0 0.0
    %8784 = vmatprep.subr.mxu0 0.0
    %8785 = vmatpush1.msra.mxu0 0.0
    %8786 = vmatprep.subr.mxu0 0.0
    %8787 = vmatpush1.msra.mxu0 0.0
    %8788 = vmatprep.subr.mxu0 0.0
    %8789 = vmatpush1.msra.mxu0 0.0
    %8790 = vmatprep.subr.mxu0 0.0
    %8791 = vmatpush1.msra.mxu0 0.0
    %8792 = vmatprep.subr.mxu0 0.0
    %8793 = vmatpush1.msra.mxu0 0.0
    %8794 = vmatprep.subr.mxu0 0.0
    %8795 = vmatpush1.msra.mxu0 0.0
    %8796 = vmatprep.subr.mxu0 0.0
    %8797 = vmatpush1.msra.mxu0 0.0
    %8798 = vmatprep.subr.mxu0 0.0
    %8799 = vmatpush1.msra.mxu0 0.0
    %8800 = vmatprep.subr.mxu0 0.0
    %8801 = vmatpush1.msra.mxu0 0.0
    %8802 = vmatprep.subr.mxu0 0.0
    %8803 = vmatpush1.msra.mxu0 0.0
    %8804 = vmatprep.subr.mxu0 0.0
    %8805 = vmatpush1.msra.mxu0 0.0
    %8806 = vmatprep.subr.mxu0 0.0
    %8807 = vmatpush1.msra.mxu0 0.0
    %8808 = vmatprep.subr.mxu0 0.0
    %8809 = vmatpush1.msra.mxu0 0.0
    %8810 = vmatprep.subr.mxu0 0.0
    %8811 = vmatpush1.msra.mxu0 0.0
    %8812 = vmatprep.subr.mxu0 0.0
    %8813 = vmatpush1.msra.mxu0 0.0
    %8814 = vmatprep.subr.mxu0 0.0
    %8815 = vmatpush1.msra.mxu0 0.0
    %8816 = vmatprep.subr.mxu0 0.0
    %8817 = vmatpush1.msra.mxu0 0.0
    %8818 = vmatprep.subr.mxu0 0.0
    %8819 = vmatpush1.msra.mxu0 0.0
    %8820 = vmatprep.subr.mxu0 0.0
    %8821 = vmatpush1.msra.mxu0 0.0
    %8822 = vmatprep.subr.mxu0 0.0
    %8823 = vmatpush1.msra.mxu0 0.0
    %8824 = vmatprep.subr.mxu0 0.0
    %8825 = vmatpush1.msra.mxu0 0.0
    %8826 = vmatprep.subr.mxu0 0.0
    %8827 = vmatpush1.msra.mxu0 0.0
    %8828 = vmatprep.subr.mxu0 0.0
    %8829 = vmatpush1.msra.mxu0 0.0
    %8830 = vmatprep.mubr.f32.mxu0 0.0
    %v8831 = vand.u32 %v8537, 4294901760
    %v8832 = vsub.f32 %v8537, %v8831
    %v8833 = vand.u32 %v8832, 4294901760
    %8834 = vmatmul.mubr.f32.gmra.mrb[0].mxu0 %v8833
    %v8835 = vpop.f32.mrb[0].mxu0
    %v8836 = vadd.f32 %v8762, %v8835
    %v8837 = vpop.f32.mrb[0].mxu0
    %8838 = vdwg.mxu0
    %8839 = vmatprep.subr.mxu0 0.0
    %v8840 = vand.u32 %v8534, 4294901760
    %v8841 = vsub.f32 %v8534, %v8840
    %v8842 = vand.u32 %v8841, 4294901760
    %8843 = vmatpush1.msra.mxu0 %v8842
    %8844 = vmatprep.subr.mxu0 0.0
    %8845 = vmatpush1.msra.mxu0 0.0
    %8846 = vmatprep.subr.mxu0 0.0
    %8847 = vmatpush1.msra.mxu0 0.0
    %8848 = vmatprep.subr.mxu0 0.0
    %8849 = vmatpush1.msra.mxu0 0.0
    %8850 = vmatprep.subr.mxu0 0.0
    %8851 = vmatpush1.msra.mxu0 0.0
    %8852 = vmatprep.subr.mxu0 0.0
    %8853 = vmatpush1.msra.mxu0 0.0
    %8854 = vmatprep.subr.mxu0 0.0
    %8855 = vmatpush1.msra.mxu0 0.0
    %8856 = vmatprep.subr.mxu0 0.0
    %8857 = vmatpush1.msra.mxu0 0.0
    %8858 = vmatprep.subr.mxu0 0.0
    %8859 = vmatpush1.msra.mxu0 0.0
    %8860 = vmatprep.subr.mxu0 0.0
    %8861 = vmatpush1.msra.mxu0 0.0
    %8862 = vmatprep.subr.mxu0 0.0
    %8863 = vmatpush1.msra.mxu0 0.0
    %8864 = vmatprep.subr.mxu0 0.0
    %8865 = vmatpush1.msra.mxu0 0.0
    %8866 = vmatprep.subr.mxu0 0.0
    %8867 = vmatpush1.msra.mxu0 0.0
    %8868 = vmatprep.subr.mxu0 0.0
    %8869 = vmatpush1.msra.mxu0 0.0
    %8870 = vmatprep.subr.mxu0 0.0
    %8871 = vmatpush1.msra.mxu0 0.0
    %8872 = vmatprep.subr.mxu0 0.0
    %8873 = vmatpush1.msra.mxu0 0.0
    %8874 = vmatprep.subr.mxu0 0.0
    %8875 = vmatpush1.msra.mxu0 0.0
    %8876 = vmatprep.subr.mxu0 0.0
    %8877 = vmatpush1.msra.mxu0 0.0
    %8878 = vmatprep.subr.mxu0 0.0
    %8879 = vmatpush1.msra.mxu0 0.0
    %8880 = vmatprep.subr.mxu0 0.0
    %8881 = vmatpush1.msra.mxu0 0.0
    %8882 = vmatprep.subr.mxu0 0.0
    %8883 = vmatpush1.msra.mxu0 0.0
    %8884 = vmatprep.subr.mxu0 0.0
    %8885 = vmatpush1.msra.mxu0 0.0
    %8886 = vmatprep.subr.mxu0 0.0
    %8887 = vmatpush1.msra.mxu0 0.0
    %8888 = vmatprep.subr.mxu0 0.0
    %8889 = vmatpush1.msra.mxu0 0.0
    %8890 = vmatprep.subr.mxu0 0.0
    %8891 = vmatpush1.msra.mxu0 0.0
    %8892 = vmatprep.subr.mxu0 0.0
    %8893 = vmatpush1.msra.mxu0 0.0
    %8894 = vmatprep.subr.mxu0 0.0
    %8895 = vmatpush1.msra.mxu0 0.0
    %8896 = vmatprep.subr.mxu0 0.0
    %8897 = vmatpush1.msra.mxu0 0.0
    %8898 = vmatprep.subr.mxu0 0.0
    %8899 = vmatpush1.msra.mxu0 0.0
    %8900 = vmatprep.subr.mxu0 0.0
    %8901 = vmatpush1.msra.mxu0 0.0
    %8902 = vmatprep.subr.mxu0 0.0
    %8903 = vmatpush1.msra.mxu0 0.0
    %8904 = vmatprep.subr.mxu0 0.0
    %8905 = vmatpush1.msra.mxu0 0.0
    %8906 = vmatprep.mubr.f32.mxu0 0.0
    %v8907 = vand.u32 %v8537, 4294901760
    %8908 = vmatmul.mubr.f32.gmra.mrb[0].mxu0 %v8907
    %v8909 = vpop.f32.mrb[0].mxu0
    %v8910 = vadd.f32 %v8836, %v8909
    %v8911 = vpop.f32.mrb[0].mxu0
    %8912 = vdwg.mxu0
    %8913 = vmatprep.subr.mxu0 0.0
    %v8914 = vand.u32 %v8534, 4294901760
    %8915 = vmatpush1.msra.mxu0 %v8914
    %8916 = vmatprep.subr.mxu0 0.0
    %8917 = vmatpush1.msra.mxu0 0.0
    %8918 = vmatprep.subr.mxu0 0.0
    %8919 = vmatpush1.msra.mxu0 0.0
    %8920 = vmatprep.subr.mxu0 0.0
    %8921 = vmatpush1.msra.mxu0 0.0
    %8922 = vmatprep.subr.mxu0 0.0
    %8923 = vmatpush1.msra.mxu0 0.0
    %8924 = vmatprep.subr.mxu0 0.0
    %8925 = vmatpush1.msra.mxu0 0.0
    %8926 = vmatprep.subr.mxu0 0.0
    %8927 = vmatpush1.msra.mxu0 0.0
    %8928 = vmatprep.subr.mxu0 0.0
    %8929 = vmatpush1.msra.mxu0 0.0
    %8930 = vmatprep.subr.mxu0 0.0
    %8931 = vmatpush1.msra.mxu0 0.0
    %8932 = vmatprep.subr.mxu0 0.0
    %8933 = vmatpush1.msra.mxu0 0.0
    %8934 = vmatprep.subr.mxu0 0.0
    %8935 = vmatpush1.msra.mxu0 0.0
    %8936 = vmatprep.subr.mxu0 0.0
    %8937 = vmatpush1.msra.mxu0 0.0
    %8938 = vmatprep.subr.mxu0 0.0
    %8939 = vmatpush1.msra.mxu0 0.0
    %8940 = vmatprep.subr.mxu0 0.0
    %8941 = vmatpush1.msra.mxu0 0.0
    %8942 = vmatprep.subr.mxu0 0.0
    %8943 = vmatpush1.msra.mxu0 0.0
    %8944 = vmatprep.subr.mxu0 0.0
    %8945 = vmatpush1.msra.mxu0 0.0
    %8946 = vmatprep.subr.mxu0 0.0
    %8947 = vmatpush1.msra.mxu0 0.0
    %8948 = vmatprep.subr.mxu0 0.0
    %8949 = vmatpush1.msra.mxu0 0.0
    %8950 = vmatprep.subr.mxu0 0.0
    %8951 = vmatpush1.msra.mxu0 0.0
    %8952 = vmatprep.subr.mxu0 0.0
    %8953 = vmatpush1.msra.mxu0 0.0
    %8954 = vmatprep.subr.mxu0 0.0
    %8955 = vmatpush1.msra.mxu0 0.0
    %8956 = vmatprep.subr.mxu0 0.0
    %8957 = vmatpush1.msra.mxu0 0.0
    %8958 = vmatprep.subr.mxu0 0.0
    %8959 = vmatpush1.msra.mxu0 0.0
    %8960 = vmatprep.subr.mxu0 0.0
    %8961 = vmatpush1.msra.mxu0 0.0
    %8962 = vmatprep.subr.mxu0 0.0
    %8963 = vmatpush1.msra.mxu0 0.0
    %8964 = vmatprep.subr.mxu0 0.0
    %8965 = vmatpush1.msra.mxu0 0.0
    %8966 = vmatprep.subr.mxu0 0.0
    %8967 = vmatpush1.msra.mxu0 0.0
    %8968 = vmatprep.subr.mxu0 0.0
    %8969 = vmatpush1.msra.mxu0 0.0
    %8970 = vmatprep.subr.mxu0 0.0
    %8971 = vmatpush1.msra.mxu0 0.0
    %8972 = vmatprep.subr.mxu0 0.0
    %8973 = vmatpush1.msra.mxu0 0.0
    %8974 = vmatprep.subr.mxu0 0.0
    %8975 = vmatpush1.msra.mxu0 0.0
    %8976 = vmatprep.subr.mxu0 0.0
    %8977 = vmatpush1.msra.mxu0 0.0
    %8978 = vmatprep.mubr.f32.mxu0 0.0
    %v8979 = vand.u32 %v8537, 4294901760
    %8980 = vmatmul.mubr.f32.gmra.mrb[0].mxu0 %v8979
    %v8981 = vpop.f32.mrb[0].mxu0
    %v8982 = vadd.f32 %v8910, %v8981
    %v8983 = vpop.f32.mrb[0].mxu0
    %8984 = vdwg.mxu0
    %8985 = vrot.lane.b32.xlu0 %v607, 40
    %v8986 = vpop.permute.xlu0 %8985
    %v8989 = vsel %vm613, %v8532, 0
    %8991 = vmatprep.subr.mxu0 0.0
    %v8992 = vand.u32 %v8986, 4294901760
    %8993 = vmatpush1.msra.mxu0 %v8992
    %8994 = vmatprep.subr.mxu0 0.0
    %8995 = vmatpush1.msra.mxu0 0.0
    %8996 = vmatprep.subr.mxu0 0.0
    %8997 = vmatpush1.msra.mxu0 0.0
    %8998 = vmatprep.subr.mxu0 0.0
    %8999 = vmatpush1.msra.mxu0 0.0
    %9000 = vmatprep.subr.mxu0 0.0
    %9001 = vmatpush1.msra.mxu0 0.0
    %9002 = vmatprep.subr.mxu0 0.0
    %9003 = vmatpush1.msra.mxu0 0.0
    %9004 = vmatprep.subr.mxu0 0.0
    %9005 = vmatpush1.msra.mxu0 0.0
    %9006 = vmatprep.subr.mxu0 0.0
    %9007 = vmatpush1.msra.mxu0 0.0
    %9008 = vmatprep.subr.mxu0 0.0
    %9009 = vmatpush1.msra.mxu0 0.0
    %9010 = vmatprep.subr.mxu0 0.0
    %9011 = vmatpush1.msra.mxu0 0.0
    %9012 = vmatprep.subr.mxu0 0.0
    %9013 = vmatpush1.msra.mxu0 0.0
    %9014 = vmatprep.subr.mxu0 0.0
    %9015 = vmatpush1.msra.mxu0 0.0
    %9016 = vmatprep.subr.mxu0 0.0
    %9017 = vmatpush1.msra.mxu0 0.0
    %9018 = vmatprep.subr.mxu0 0.0
    %9019 = vmatpush1.msra.mxu0 0.0
    %9020 = vmatprep.subr.mxu0 0.0
    %9021 = vmatpush1.msra.mxu0 0.0
    %9022 = vmatprep.subr.mxu0 0.0
    %9023 = vmatpush1.msra.mxu0 0.0
    %9024 = vmatprep.subr.mxu0 0.0
    %9025 = vmatpush1.msra.mxu0 0.0
    %9026 = vmatprep.subr.mxu0 0.0
    %9027 = vmatpush1.msra.mxu0 0.0
    %9028 = vmatprep.subr.mxu0 0.0
    %9029 = vmatpush1.msra.mxu0 0.0
    %9030 = vmatprep.subr.mxu0 0.0
    %9031 = vmatpush1.msra.mxu0 0.0
    %9032 = vmatprep.subr.mxu0 0.0
    %9033 = vmatpush1.msra.mxu0 0.0
    %9034 = vmatprep.subr.mxu0 0.0
    %9035 = vmatpush1.msra.mxu0 0.0
    %9036 = vmatprep.subr.mxu0 0.0
    %9037 = vmatpush1.msra.mxu0 0.0
    %9038 = vmatprep.subr.mxu0 0.0
    %9039 = vmatpush1.msra.mxu0 0.0
    %9040 = vmatprep.subr.mxu0 0.0
    %9041 = vmatpush1.msra.mxu0 0.0
    %9042 = vmatprep.subr.mxu0 0.0
    %9043 = vmatpush1.msra.mxu0 0.0
    %9044 = vmatprep.subr.mxu0 0.0
    %9045 = vmatpush1.msra.mxu0 0.0
    %9046 = vmatprep.subr.mxu0 0.0
    %9047 = vmatpush1.msra.mxu0 0.0
    %9048 = vmatprep.subr.mxu0 0.0
    %9049 = vmatpush1.msra.mxu0 0.0
    %9050 = vmatprep.subr.mxu0 0.0
    %9051 = vmatpush1.msra.mxu0 0.0
    %9052 = vmatprep.subr.mxu0 0.0
    %9053 = vmatpush1.msra.mxu0 0.0
    %9054 = vmatprep.subr.mxu0 0.0
    %9055 = vmatpush1.msra.mxu0 0.0
    %9056 = vmatprep.mubr.f32.mxu0 0.0
    %v9057 = vand.u32 %v8989, 4294901760
    %v9058 = vsub.f32 %v8989, %v9057
    %v9059 = vand.u32 %v9058, 4294901760
    %v9060 = vsub.f32 %v9058, %v9059
    %v9061 = vand.u32 %v9060, 4294901760
    %9062 = vmatmul.mubr.f32.gmra.mrb[0].mxu0 %v9061
    %v9063 = vpop.f32.mrb[0].mxu0
    %v9064 = vadd.f32 0.0, %v9063
    %v9065 = vpop.f32.mrb[0].mxu0
    %9066 = vdwg.mxu0
    %9067 = vmatprep.subr.mxu0 0.0
    %v9068 = vand.u32 %v8986, 4294901760
    %v9069 = vsub.f32 %v8986, %v9068
    %v9070 = vand.u32 %v9069, 4294901760
    %v9071 = vsub.f32 %v9069, %v9070
    %v9072 = vand.u32 %v9071, 4294901760
    %9073 = vmatpush1.msra.mxu0 %v9072
    %9074 = vmatprep.subr.mxu0 0.0
    %9075 = vmatpush1.msra.mxu0 0.0
    %9076 = vmatprep.subr.mxu0 0.0
    %9077 = vmatpush1.msra.mxu0 0.0
    %9078 = vmatprep.subr.mxu0 0.0
    %9079 = vmatpush1.msra.mxu0 0.0
    %9080 = vmatprep.subr.mxu0 0.0
    %9081 = vmatpush1.msra.mxu0 0.0
    %9082 = vmatprep.subr.mxu0 0.0
    %9083 = vmatpush1.msra.mxu0 0.0
    %9084 = vmatprep.subr.mxu0 0.0
    %9085 = vmatpush1.msra.mxu0 0.0
    %9086 = vmatprep.subr.mxu0 0.0
    %9087 = vmatpush1.msra.mxu0 0.0
    %9088 = vmatprep.subr.mxu0 0.0
    %9089 = vmatpush1.msra.mxu0 0.0
    %9090 = vmatprep.subr.mxu0 0.0
    %9091 = vmatpush1.msra.mxu0 0.0
    %9092 = vmatprep.subr.mxu0 0.0
    %9093 = vmatpush1.msra.mxu0 0.0
    %9094 = vmatprep.subr.mxu0 0.0
    %9095 = vmatpush1.msra.mxu0 0.0
    %9096 = vmatprep.subr.mxu0 0.0
    %9097 = vmatpush1.msra.mxu0 0.0
    %9098 = vmatprep.subr.mxu0 0.0
    %9099 = vmatpush1.msra.mxu0 0.0
    %9100 = vmatprep.subr.mxu0 0.0
    %9101 = vmatpush1.msra.mxu0 0.0
    %9102 = vmatprep.subr.mxu0 0.0
    %9103 = vmatpush1.msra.mxu0 0.0
    %9104 = vmatprep.subr.mxu0 0.0
    %9105 = vmatpush1.msra.mxu0 0.0
    %9106 = vmatprep.subr.mxu0 0.0
    %9107 = vmatpush1.msra.mxu0 0.0
    %9108 = vmatprep.subr.mxu0 0.0
    %9109 = vmatpush1.msra.mxu0 0.0
    %9110 = vmatprep.subr.mxu0 0.0
    %9111 = vmatpush1.msra.mxu0 0.0
    %9112 = vmatprep.subr.mxu0 0.0
    %9113 = vmatpush1.msra.mxu0 0.0
    %9114 = vmatprep.subr.mxu0 0.0
    %9115 = vmatpush1.msra.mxu0 0.0
    %9116 = vmatprep.subr.mxu0 0.0
    %9117 = vmatpush1.msra.mxu0 0.0
    %9118 = vmatprep.subr.mxu0 0.0
    %9119 = vmatpush1.msra.mxu0 0.0
    %9120 = vmatprep.subr.mxu0 0.0
    %9121 = vmatpush1.msra.mxu0 0.0
    %9122 = vmatprep.subr.mxu0 0.0
    %9123 = vmatpush1.msra.mxu0 0.0
    %9124 = vmatprep.subr.mxu0 0.0
    %9125 = vmatpush1.msra.mxu0 0.0
    %9126 = vmatprep.subr.mxu0 0.0
    %9127 = vmatpush1.msra.mxu0 0.0
    %9128 = vmatprep.subr.mxu0 0.0
    %9129 = vmatpush1.msra.mxu0 0.0
    %9130 = vmatprep.subr.mxu0 0.0
    %9131 = vmatpush1.msra.mxu0 0.0
    %9132 = vmatprep.subr.mxu0 0.0
    %9133 = vmatpush1.msra.mxu0 0.0
    %9134 = vmatprep.subr.mxu0 0.0
    %9135 = vmatpush1.msra.mxu0 0.0
    %9136 = vmatprep.mubr.f32.mxu0 0.0
    %v9137 = vand.u32 %v8989, 4294901760
    %9138 = vmatmul.mubr.f32.gmra.mrb[0].mxu0 %v9137
    %v9139 = vpop.f32.mrb[0].mxu0
    %v9140 = vadd.f32 %v9064, %v9139
    %v9141 = vpop.f32.mrb[0].mxu0
    %9142 = vdwg.mxu0
    %9143 = vmatprep.subr.mxu0 0.0
    %v9144 = vand.u32 %v8986, 4294901760
    %v9145 = vsub.f32 %v8986, %v9144
    %9146 = vmatpush1.msra.mxu0 %v9145
    %9147 = vmatprep.subr.mxu0 0.0
    %9148 = vmatpush1.msra.mxu0 0.0
    %9149 = vmatprep.subr.mxu0 0.0
    %9150 = vmatpush1.msra.mxu0 0.0
    %9151 = vmatprep.subr.mxu0 0.0
    %9152 = vmatpush1.msra.mxu0 0.0
    %9153 = vmatprep.subr.mxu0 0.0
    %9154 = vmatpush1.msra.mxu0 0.0
    %9155 = vmatprep.subr.mxu0 0.0
    %9156 = vmatpush1.msra.mxu0 0.0
    %9157 = vmatprep.subr.mxu0 0.0
    %9158 = vmatpush1.msra.mxu0 0.0
    %9159 = vmatprep.subr.mxu0 0.0
    %9160 = vmatpush1.msra.mxu0 0.0
    %9161 = vmatprep.subr.mxu0 0.0
    %9162 = vmatpush1.msra.mxu0 0.0
    %9163 = vmatprep.subr.mxu0 0.0
    %9164 = vmatpush1.msra.mxu0 0.0
    %9165 = vmatprep.subr.mxu0 0.0
    %9166 = vmatpush1.msra.mxu0 0.0
    %9167 = vmatprep.subr.mxu0 0.0
    %9168 = vmatpush1.msra.mxu0 0.0
    %9169 = vmatprep.subr.mxu0 0.0
    %9170 = vmatpush1.msra.mxu0 0.0
    %9171 = vmatprep.subr.mxu0 0.0
    %9172 = vmatpush1.msra.mxu0 0.0
    %9173 = vmatprep.subr.mxu0 0.0
    %9174 = vmatpush1.msra.mxu0 0.0
    %9175 = vmatprep.subr.mxu0 0.0
    %9176 = vmatpush1.msra.mxu0 0.0
    %9177 = vmatprep.subr.mxu0 0.0
    %9178 = vmatpush1.msra.mxu0 0.0
    %9179 = vmatprep.subr.mxu0 0.0
    %9180 = vmatpush1.msra.mxu0 0.0
    %9181 = vmatprep.subr.mxu0 0.0
    %9182 = vmatpush1.msra.mxu0 0.0
    %9183 = vmatprep.subr.mxu0 0.0
    %9184 = vmatpush1.msra.mxu0 0.0
    %9185 = vmatprep.subr.mxu0 0.0
    %9186 = vmatpush1.msra.mxu0 0.0
    %9187 = vmatprep.subr.mxu0 0.0
    %9188 = vmatpush1.msra.mxu0 0.0
    %9189 = vmatprep.subr.mxu0 0.0
    %9190 = vmatpush1.msra.mxu0 0.0
    %9191 = vmatprep.subr.mxu0 0.0
    %9192 = vmatpush1.msra.mxu0 0.0
    %9193 = vmatprep.subr.mxu0 0.0
    %9194 = vmatpush1.msra.mxu0 0.0
    %9195 = vmatprep.subr.mxu0 0.0
    %9196 = vmatpush1.msra.mxu0 0.0
    %9197 = vmatprep.subr.mxu0 0.0
    %9198 = vmatpush1.msra.mxu0 0.0
    %9199 = vmatprep.subr.mxu0 0.0
    %9200 = vmatpush1.msra.mxu0 0.0
    %9201 = vmatprep.subr.mxu0 0.0
    %9202 = vmatpush1.msra.mxu0 0.0
    %9203 = vmatprep.subr.mxu0 0.0
    %9204 = vmatpush1.msra.mxu0 0.0
    %9205 = vmatprep.subr.mxu0 0.0
    %9206 = vmatpush1.msra.mxu0 0.0
    %9207 = vmatprep.subr.mxu0 0.0
    %9208 = vmatpush1.msra.mxu0 0.0
    %9209 = vmatprep.mubr.f32.mxu0 0.0
    %v9210 = vand.u32 %v8989, 4294901760
    %v9211 = vsub.f32 %v8989, %v9210
    %9212 = vmatmul.mubr.f32.gmra.mrb[0].mxu0 %v9211
    %v9213 = vpop.f32.mrb[0].mxu0
    %v9214 = vadd.f32 %v9140, %v9213
    %v9215 = vpop.f32.mrb[0].mxu0
    %9216 = vdwg.mxu0
    %9217 = vmatprep.subr.mxu0 0.0
    %v9218 = vand.u32 %v8986, 4294901760
    %9219 = vmatpush1.msra.mxu0 %v9218
    %9220 = vmatprep.subr.mxu0 0.0
    %9221 = vmatpush1.msra.mxu0 0.0
    %9222 = vmatprep.subr.mxu0 0.0
    %9223 = vmatpush1.msra.mxu0 0.0
    %9224 = vmatprep.subr.mxu0 0.0
    %9225 = vmatpush1.msra.mxu0 0.0
    %9226 = vmatprep.subr.mxu0 0.0
    %9227 = vmatpush1.msra.mxu0 0.0
    %9228 = vmatprep.subr.mxu0 0.0
    %9229 = vmatpush1.msra.mxu0 0.0
    %9230 = vmatprep.subr.mxu0 0.0
    %9231 = vmatpush1.msra.mxu0 0.0
    %9232 = vmatprep.subr.mxu0 0.0
    %9233 = vmatpush1.msra.mxu0 0.0
    %9234 = vmatprep.subr.mxu0 0.0
    %9235 = vmatpush1.msra.mxu0 0.0
    %9236 = vmatprep.subr.mxu0 0.0
    %9237 = vmatpush1.msra.mxu0 0.0
    %9238 = vmatprep.subr.mxu0 0.0
    %9239 = vmatpush1.msra.mxu0 0.0
    %9240 = vmatprep.subr.mxu0 0.0
    %9241 = vmatpush1.msra.mxu0 0.0
    %9242 = vmatprep.subr.mxu0 0.0
    %9243 = vmatpush1.msra.mxu0 0.0
    %9244 = vmatprep.subr.mxu0 0.0
    %9245 = vmatpush1.msra.mxu0 0.0
    %9246 = vmatprep.subr.mxu0 0.0
    %9247 = vmatpush1.msra.mxu0 0.0
    %9248 = vmatprep.subr.mxu0 0.0
    %9249 = vmatpush1.msra.mxu0 0.0
    %9250 = vmatprep.subr.mxu0 0.0
    %9251 = vmatpush1.msra.mxu0 0.0
    %9252 = vmatprep.subr.mxu0 0.0
    %9253 = vmatpush1.msra.mxu0 0.0
    %9254 = vmatprep.subr.mxu0 0.0
    %9255 = vmatpush1.msra.mxu0 0.0
    %9256 = vmatprep.subr.mxu0 0.0
    %9257 = vmatpush1.msra.mxu0 0.0
    %9258 = vmatprep.subr.mxu0 0.0
    %9259 = vmatpush1.msra.mxu0 0.0
    %9260 = vmatprep.subr.mxu0 0.0
    %9261 = vmatpush1.msra.mxu0 0.0
    %9262 = vmatprep.subr.mxu0 0.0
    %9263 = vmatpush1.msra.mxu0 0.0
    %9264 = vmatprep.subr.mxu0 0.0
    %9265 = vmatpush1.msra.mxu0 0.0
    %9266 = vmatprep.subr.mxu0 0.0
    %9267 = vmatpush1.msra.mxu0 0.0
    %9268 = vmatprep.subr.mxu0 0.0
    %9269 = vmatpush1.msra.mxu0 0.0
    %9270 = vmatprep.subr.mxu0 0.0
    %9271 = vmatpush1.msra.mxu0 0.0
    %9272 = vmatprep.subr.mxu0 0.0
    %9273 = vmatpush1.msra.mxu0 0.0
    %9274 = vmatprep.subr.mxu0 0.0
    %9275 = vmatpush1.msra.mxu0 0.0
    %9276 = vmatprep.subr.mxu0 0.0
    %9277 = vmatpush1.msra.mxu0 0.0
    %9278 = vmatprep.subr.mxu0 0.0
    %9279 = vmatpush1.msra.mxu0 0.0
    %9280 = vmatprep.subr.mxu0 0.0
    %9281 = vmatpush1.msra.mxu0 0.0
    %9282 = vmatprep.mubr.f32.mxu0 0.0
    %v9283 = vand.u32 %v8989, 4294901760
    %v9284 = vsub.f32 %v8989, %v9283
    %v9285 = vand.u32 %v9284, 4294901760
    %9286 = vmatmul.mubr.f32.gmra.mrb[0].mxu0 %v9285
    %v9287 = vpop.f32.mrb[0].mxu0
    %v9288 = vadd.f32 %v9214, %v9287
    %v9289 = vpop.f32.mrb[0].mxu0
    %9290 = vdwg.mxu0
    %9291 = vmatprep.subr.mxu0 0.0
    %v9292 = vand.u32 %v8986, 4294901760
    %v9293 = vsub.f32 %v8986, %v9292
    %v9294 = vand.u32 %v9293, 4294901760
    %9295 = vmatpush1.msra.mxu0 %v9294
    %9296 = vmatprep.subr.mxu0 0.0
    %9297 = vmatpush1.msra.mxu0 0.0
    %9298 = vmatprep.subr.mxu0 0.0
    %9299 = vmatpush1.msra.mxu0 0.0
    %9300 = vmatprep.subr.mxu0 0.0
    %9301 = vmatpush1.msra.mxu0 0.0
    %9302 = vmatprep.subr.mxu0 0.0
    %9303 = vmatpush1.msra.mxu0 0.0
    %9304 = vmatprep.subr.mxu0 0.0
    %9305 = vmatpush1.msra.mxu0 0.0
    %9306 = vmatprep.subr.mxu0 0.0
    %9307 = vmatpush1.msra.mxu0 0.0
    %9308 = vmatprep.subr.mxu0 0.0
    %9309 = vmatpush1.msra.mxu0 0.0
    %9310 = vmatprep.subr.mxu0 0.0
    %9311 = vmatpush1.msra.mxu0 0.0
    %9312 = vmatprep.subr.mxu0 0.0
    %9313 = vmatpush1.msra.mxu0 0.0
    %9314 = vmatprep.subr.mxu0 0.0
    %9315 = vmatpush1.msra.mxu0 0.0
    %9316 = vmatprep.subr.mxu0 0.0
    %9317 = vmatpush1.msra.mxu0 0.0
    %9318 = vmatprep.subr.mxu0 0.0
    %9319 = vmatpush1.msra.mxu0 0.0
    %9320 = vmatprep.subr.mxu0 0.0
    %9321 = vmatpush1.msra.mxu0 0.0
    %9322 = vmatprep.subr.mxu0 0.0
    %9323 = vmatpush1.msra.mxu0 0.0
    %9324 = vmatprep.subr.mxu0 0.0
    %9325 = vmatpush1.msra.mxu0 0.0
    %9326 = vmatprep.subr.mxu0 0.0
    %9327 = vmatpush1.msra.mxu0 0.0
    %9328 = vmatprep.subr.mxu0 0.0
    %9329 = vmatpush1.msra.mxu0 0.0
    %9330 = vmatprep.subr.mxu0 0.0
    %9331 = vmatpush1.msra.mxu0 0.0
    %9332 = vmatprep.subr.mxu0 0.0
    %9333 = vmatpush1.msra.mxu0 0.0
    %9334 = vmatprep.subr.mxu0 0.0
    %9335 = vmatpush1.msra.mxu0 0.0
    %9336 = vmatprep.subr.mxu0 0.0
    %9337 = vmatpush1.msra.mxu0 0.0
    %9338 = vmatprep.subr.mxu0 0.0
    %9339 = vmatpush1.msra.mxu0 0.0
    %9340 = vmatprep.subr.mxu0 0.0
    %9341 = vmatpush1.msra.mxu0 0.0
    %9342 = vmatprep.subr.mxu0 0.0
    %9343 = vmatpush1.msra.mxu0 0.0
    %9344 = vmatprep.subr.mxu0 0.0
    %9345 = vmatpush1.msra.mxu0 0.0
    %9346 = vmatprep.subr.mxu0 0.0
    %9347 = vmatpush1.msra.mxu0 0.0
    %9348 = vmatprep.subr.mxu0 0.0
    %9349 = vmatpush1.msra.mxu0 0.0
    %9350 = vmatprep.subr.mxu0 0.0
    %9351 = vmatpush1.msra.mxu0 0.0
    %9352 = vmatprep.subr.mxu0 0.0
    %9353 = vmatpush1.msra.mxu0 0.0
    %9354 = vmatprep.subr.mxu0 0.0
    %9355 = vmatpush1.msra.mxu0 0.0
    %9356 = vmatprep.subr.mxu0 0.0
    %9357 = vmatpush1.msra.mxu0 0.0
    %9358 = vmatprep.mubr.f32.mxu0 0.0
    %v9359 = vand.u32 %v8989, 4294901760
    %9360 = vmatmul.mubr.f32.gmra.mrb[0].mxu0 %v9359
    %v9361 = vpop.f32.mrb[0].mxu0
    %v9362 = vadd.f32 %v9288, %v9361
    %v9363 = vpop.f32.mrb[0].mxu0
    %9364 = vdwg.mxu0
    %9365 = vmatprep.subr.mxu0 0.0
    %v9366 = vand.u32 %v8986, 4294901760
    %9367 = vmatpush1.msra.mxu0 %v9366
    %9368 = vmatprep.subr.mxu0 0.0
    %9369 = vmatpush1.msra.mxu0 0.0
    %9370 = vmatprep.subr.mxu0 0.0
    %9371 = vmatpush1.msra.mxu0 0.0
    %9372 = vmatprep.subr.mxu0 0.0
    %9373 = vmatpush1.msra.mxu0 0.0
    %9374 = vmatprep.subr.mxu0 0.0
    %9375 = vmatpush1.msra.mxu0 0.0
    %9376 = vmatprep.subr.mxu0 0.0
    %9377 = vmatpush1.msra.mxu0 0.0
    %9378 = vmatprep.subr.mxu0 0.0
    %9379 = vmatpush1.msra.mxu0 0.0
    %9380 = vmatprep.subr.mxu0 0.0
    %9381 = vmatpush1.msra.mxu0 0.0
    %9382 = vmatprep.subr.mxu0 0.0
    %9383 = vmatpush1.msra.mxu0 0.0
    %9384 = vmatprep.subr.mxu0 0.0
    %9385 = vmatpush1.msra.mxu0 0.0
    %9386 = vmatprep.subr.mxu0 0.0
    %9387 = vmatpush1.msra.mxu0 0.0
    %9388 = vmatprep.subr.mxu0 0.0
    %9389 = vmatpush1.msra.mxu0 0.0
    %9390 = vmatprep.subr.mxu0 0.0
    %9391 = vmatpush1.msra.mxu0 0.0
    %9392 = vmatprep.subr.mxu0 0.0
    %9393 = vmatpush1.msra.mxu0 0.0
    %9394 = vmatprep.subr.mxu0 0.0
    %9395 = vmatpush1.msra.mxu0 0.0
    %9396 = vmatprep.subr.mxu0 0.0
    %9397 = vmatpush1.msra.mxu0 0.0
    %9398 = vmatprep.subr.mxu0 0.0
    %9399 = vmatpush1.msra.mxu0 0.0
    %9400 = vmatprep.subr.mxu0 0.0
    %9401 = vmatpush1.msra.mxu0 0.0
    %9402 = vmatprep.subr.mxu0 0.0
    %9403 = vmatpush1.msra.mxu0 0.0
    %9404 = vmatprep.subr.mxu0 0.0
    %9405 = vmatpush1.msra.mxu0 0.0
    %9406 = vmatprep.subr.mxu0 0.0
    %9407 = vmatpush1.msra.mxu0 0.0
    %9408 = vmatprep.subr.mxu0 0.0
    %9409 = vmatpush1.msra.mxu0 0.0
    %9410 = vmatprep.subr.mxu0 0.0
    %9411 = vmatpush1.msra.mxu0 0.0
    %9412 = vmatprep.subr.mxu0 0.0
    %9413 = vmatpush1.msra.mxu0 0.0
    %9414 = vmatprep.subr.mxu0 0.0
    %9415 = vmatpush1.msra.mxu0 0.0
    %9416 = vmatprep.subr.mxu0 0.0
    %9417 = vmatpush1.msra.mxu0 0.0
    %9418 = vmatprep.subr.mxu0 0.0
    %9419 = vmatpush1.msra.mxu0 0.0
    %9420 = vmatprep.subr.mxu0 0.0
    %9421 = vmatpush1.msra.mxu0 0.0
    %9422 = vmatprep.subr.mxu0 0.0
    %9423 = vmatpush1.msra.mxu0 0.0
    %9424 = vmatprep.subr.mxu0 0.0
    %9425 = vmatpush1.msra.mxu0 0.0
    %9426 = vmatprep.subr.mxu0 0.0
    %9427 = vmatpush1.msra.mxu0 0.0
    %9428 = vmatprep.subr.mxu0 0.0
    %9429 = vmatpush1.msra.mxu0 0.0
    %9430 = vmatprep.mubr.f32.mxu0 0.0
    %v9431 = vand.u32 %v8989, 4294901760
    %9432 = vmatmul.mubr.f32.gmra.mrb[0].mxu0 %v9431
    %v9433 = vpop.f32.mrb[0].mxu0
    %v9434 = vadd.f32 %v9362, %v9433
    %v9435 = vpop.f32.mrb[0].mxu0
    %9436 = vdwg.mxu0
    %s9437 = scalar_lea.vmem [#allocation7], 24
    %v9438 = vld [vmem:[%s9437] sm:$0xff]
    %v9440 = vsel %vm613, %v8982, 0
    %v9443 = vsel %vm613, %v9434, 0
    %9445 = vmatprep.subr.mxu0 0.0
    %v9446 = vand.u32 %v9438, 4294901760
    %9447 = vmatpush1.msra.mxu0 %v9446
    %9448 = vmatprep.subr.mxu0 0.0
    %9449 = vmatpush1.msra.mxu0 0.0
    %9450 = vmatprep.subr.mxu0 0.0
    %9451 = vmatpush1.msra.mxu0 0.0
    %9452 = vmatprep.subr.mxu0 0.0
    %9453 = vmatpush1.msra.mxu0 0.0
    %9454 = vmatprep.subr.mxu0 0.0
    %9455 = vmatpush1.msra.mxu0 0.0
    %9456 = vmatprep.subr.mxu0 0.0
    %9457 = vmatpush1.msra.mxu0 0.0
    %9458 = vmatprep.subr.mxu0 0.0
    %9459 = vmatpush1.msra.mxu0 0.0
    %9460 = vmatprep.subr.mxu0 0.0
    %9461 = vmatpush1.msra.mxu0 0.0
    %9462 = vmatprep.subr.mxu0 0.0
    %9463 = vmatpush1.msra.mxu0 0.0
    %9464 = vmatprep.subr.mxu0 0.0
    %9465 = vmatpush1.msra.mxu0 0.0
    %9466 = vmatprep.subr.mxu0 0.0
    %9467 = vmatpush1.msra.mxu0 0.0
    %9468 = vmatprep.subr.mxu0 0.0
    %9469 = vmatpush1.msra.mxu0 0.0
    %9470 = vmatprep.subr.mxu0 0.0
    %9471 = vmatpush1.msra.mxu0 0.0
    %9472 = vmatprep.subr.mxu0 0.0
    %9473 = vmatpush1.msra.mxu0 0.0
    %9474 = vmatprep.subr.mxu0 0.0
    %9475 = vmatpush1.msra.mxu0 0.0
    %9476 = vmatprep.subr.mxu0 0.0
    %9477 = vmatpush1.msra.mxu0 0.0
    %9478 = vmatprep.subr.mxu0 0.0
    %9479 = vmatpush1.msra.mxu0 0.0
    %9480 = vmatprep.subr.mxu0 0.0
    %9481 = vmatpush1.msra.mxu0 0.0
    %9482 = vmatprep.subr.mxu0 0.0
    %9483 = vmatpush1.msra.mxu0 0.0
    %9484 = vmatprep.subr.mxu0 0.0
    %9485 = vmatpush1.msra.mxu0 0.0
    %9486 = vmatprep.subr.mxu0 0.0
    %9487 = vmatpush1.msra.mxu0 0.0
    %9488 = vmatprep.subr.mxu0 0.0
    %9489 = vmatpush1.msra.mxu0 0.0
    %9490 = vmatprep.subr.mxu0 0.0
    %9491 = vmatpush1.msra.mxu0 0.0
    %9492 = vmatprep.subr.mxu0 0.0
    %9493 = vmatpush1.msra.mxu0 0.0
    %9494 = vmatprep.subr.mxu0 0.0
    %9495 = vmatpush1.msra.mxu0 0.0
    %9496 = vmatprep.subr.mxu0 0.0
    %9497 = vmatpush1.msra.mxu0 0.0
    %9498 = vmatprep.subr.mxu0 0.0
    %9499 = vmatpush1.msra.mxu0 0.0
    %9500 = vmatprep.subr.mxu0 0.0
    %9501 = vmatpush1.msra.mxu0 0.0
    %9502 = vmatprep.subr.mxu0 0.0
    %9503 = vmatpush1.msra.mxu0 0.0
    %9504 = vmatprep.subr.mxu0 0.0
    %9505 = vmatpush1.msra.mxu0 0.0
    %9506 = vmatprep.subr.mxu0 0.0
    %9507 = vmatpush1.msra.mxu0 0.0
    %9508 = vmatprep.subr.mxu0 0.0
    %9509 = vmatpush1.msra.mxu0 0.0
    %9510 = vmatprep.mubr.f32.mxu0 0.0
    %v9511 = vand.u32 %v9440, 4294901760
    %v9512 = vsub.f32 %v9440, %v9511
    %v9513 = vand.u32 %v9512, 4294901760
    %v9514 = vsub.f32 %v9512, %v9513
    %v9515 = vand.u32 %v9514, 4294901760
    %9516 = vmatmul.mubr.f32.gmra.mrb[0].mxu0 %v9515
    %v9517 = vpop.f32.mrb[0].mxu0
    %v9518 = vadd.f32 0.0, %v9517
    %v9519 = vpop.f32.mrb[0].mxu0
    %9520 = vmatprep.mubr.f32.mxu0 0.0
    %v9521 = vand.u32 %v9443, 4294901760
    %v9522 = vsub.f32 %v9443, %v9521
    %v9523 = vand.u32 %v9522, 4294901760
    %v9524 = vsub.f32 %v9522, %v9523
    %v9525 = vand.u32 %v9524, 4294901760
    %9526 = vmatmul.mubr.f32.gmra.mrb[0].mxu0 %v9525
    %v9527 = vpop.f32.mrb[0].mxu0
    %v9528 = vadd.f32 0.0, %v9527
    %v9529 = vpop.f32.mrb[0].mxu0
    %9530 = vdwg.mxu0
    %9531 = vmatprep.subr.mxu0 0.0
    %v9532 = vand.u32 %v9438, 4294901760
    %v9533 = vsub.f32 %v9438, %v9532
    %v9534 = vand.u32 %v9533, 4294901760
    %v9535 = vsub.f32 %v9533, %v9534
    %v9536 = vand.u32 %v9535, 4294901760
    %9537 = vmatpush1.msra.mxu0 %v9536
    %9538 = vmatprep.subr.mxu0 0.0
    %9539 = vmatpush1.msra.mxu0 0.0
    %9540 = vmatprep.subr.mxu0 0.0
    %9541 = vmatpush1.msra.mxu0 0.0
    %9542 = vmatprep.subr.mxu0 0.0
    %9543 = vmatpush1.msra.mxu0 0.0
    %9544 = vmatprep.subr.mxu0 0.0
    %9545 = vmatpush1.msra.mxu0 0.0
    %9546 = vmatprep.subr.mxu0 0.0
    %9547 = vmatpush1.msra.mxu0 0.0
    %9548 = vmatprep.subr.mxu0 0.0
    %9549 = vmatpush1.msra.mxu0 0.0
    %9550 = vmatprep.subr.mxu0 0.0
    %9551 = vmatpush1.msra.mxu0 0.0
    %9552 = vmatprep.subr.mxu0 0.0
    %9553 = vmatpush1.msra.mxu0 0.0
    %9554 = vmatprep.subr.mxu0 0.0
    %9555 = vmatpush1.msra.mxu0 0.0
    %9556 = vmatprep.subr.mxu0 0.0
    %9557 = vmatpush1.msra.mxu0 0.0
    %9558 = vmatprep.subr.mxu0 0.0
    %9559 = vmatpush1.msra.mxu0 0.0
    %9560 = vmatprep.subr.mxu0 0.0
    %9561 = vmatpush1.msra.mxu0 0.0
    %9562 = vmatprep.subr.mxu0 0.0
    %9563 = vmatpush1.msra.mxu0 0.0
    %9564 = vmatprep.subr.mxu0 0.0
    %9565 = vmatpush1.msra.mxu0 0.0
    %9566 = vmatprep.subr.mxu0 0.0
    %9567 = vmatpush1.msra.mxu0 0.0
    %9568 = vmatprep.subr.mxu0 0.0
    %9569 = vmatpush1.msra.mxu0 0.0
    %9570 = vmatprep.subr.mxu0 0.0
    %9571 = vmatpush1.msra.mxu0 0.0
    %9572 = vmatprep.subr.mxu0 0.0
    %9573 = vmatpush1.msra.mxu0 0.0
    %9574 = vmatprep.subr.mxu0 0.0
    %9575 = vmatpush1.msra.mxu0 0.0
    %9576 = vmatprep.subr.mxu0 0.0
    %9577 = vmatpush1.msra.mxu0 0.0
    %9578 = vmatprep.subr.mxu0 0.0
    %9579 = vmatpush1.msra.mxu0 0.0
    %9580 = vmatprep.subr.mxu0 0.0
    %9581 = vmatpush1.msra.mxu0 0.0
    %9582 = vmatprep.subr.mxu0 0.0
    %9583 = vmatpush1.msra.mxu0 0.0
    %9584 = vmatprep.subr.mxu0 0.0
    %9585 = vmatpush1.msra.mxu0 0.0
    %9586 = vmatprep.subr.mxu0 0.0
    %9587 = vmatpush1.msra.mxu0 0.0
    %9588 = vmatprep.subr.mxu0 0.0
    %9589 = vmatpush1.msra.mxu0 0.0
    %9590 = vmatprep.subr.mxu0 0.0
    %9591 = vmatpush1.msra.mxu0 0.0
    %9592 = vmatprep.subr.mxu0 0.0
    %9593 = vmatpush1.msra.mxu0 0.0
    %9594 = vmatprep.subr.mxu0 0.0
    %9595 = vmatpush1.msra.mxu0 0.0
    %9596 = vmatprep.subr.mxu0 0.0
    %9597 = vmatpush1.msra.mxu0 0.0
    %9598 = vmatprep.subr.mxu0 0.0
    %9599 = vmatpush1.msra.mxu0 0.0
    %9600 = vmatprep.mubr.f32.mxu0 0.0
    %v9601 = vand.u32 %v9440, 4294901760
    %9602 = vmatmul.mubr.f32.gmra.mrb[0].mxu0 %v9601
    %v9603 = vpop.f32.mrb[0].mxu0
    %v9604 = vadd.f32 %v9518, %v9603
    %v9605 = vpop.f32.mrb[0].mxu0
    %9606 = vmatprep.mubr.f32.mxu0 0.0
    %v9607 = vand.u32 %v9443, 4294901760
    %9608 = vmatmul.mubr.f32.gmra.mrb[0].mxu0 %v9607
    %v9609 = vpop.f32.mrb[0].mxu0
    %v9610 = vadd.f32 %v9528, %v9609
    %v9611 = vpop.f32.mrb[0].mxu0
    %9612 = vdwg.mxu0
    %9613 = vmatprep.subr.mxu0 0.0
    %v9614 = vand.u32 %v9438, 4294901760
    %v9615 = vsub.f32 %v9438, %v9614
    %9616 = vmatpush1.msra.mxu0 %v9615
    %9617 = vmatprep.subr.mxu0 0.0
    %9618 = vmatpush1.msra.mxu0 0.0
    %9619 = vmatprep.subr.mxu0 0.0
    %9620 = vmatpush1.msra.mxu0 0.0
    %9621 = vmatprep.subr.mxu0 0.0
    %9622 = vmatpush1.msra.mxu0 0.0
    %9623 = vmatprep.subr.mxu0 0.0
    %9624 = vmatpush1.msra.mxu0 0.0
    %9625 = vmatprep.subr.mxu0 0.0
    %9626 = vmatpush1.msra.mxu0 0.0
    %9627 = vmatprep.subr.mxu0 0.0
    %9628 = vmatpush1.msra.mxu0 0.0
    %9629 = vmatprep.subr.mxu0 0.0
    %9630 = vmatpush1.msra.mxu0 0.0
    %9631 = vmatprep.subr.mxu0 0.0
    %9632 = vmatpush1.msra.mxu0 0.0
    %9633 = vmatprep.subr.mxu0 0.0
    %9634 = vmatpush1.msra.mxu0 0.0
    %9635 = vmatprep.subr.mxu0 0.0
    %9636 = vmatpush1.msra.mxu0 0.0
    %9637 = vmatprep.subr.mxu0 0.0
    %9638 = vmatpush1.msra.mxu0 0.0
    %9639 = vmatprep.subr.mxu0 0.0
    %9640 = vmatpush1.msra.mxu0 0.0
    %9641 = vmatprep.subr.mxu0 0.0
    %9642 = vmatpush1.msra.mxu0 0.0
    %9643 = vmatprep.subr.mxu0 0.0
    %9644 = vmatpush1.msra.mxu0 0.0
    %9645 = vmatprep.subr.mxu0 0.0
    %9646 = vmatpush1.msra.mxu0 0.0
    %9647 = vmatprep.subr.mxu0 0.0
    %9648 = vmatpush1.msra.mxu0 0.0
    %9649 = vmatprep.subr.mxu0 0.0
    %9650 = vmatpush1.msra.mxu0 0.0
    %9651 = vmatprep.subr.mxu0 0.0
    %9652 = vmatpush1.msra.mxu0 0.0
    %9653 = vmatprep.subr.mxu0 0.0
    %9654 = vmatpush1.msra.mxu0 0.0
    %9655 = vmatprep.subr.mxu0 0.0
    %9656 = vmatpush1.msra.mxu0 0.0
    %9657 = vmatprep.subr.mxu0 0.0
    %9658 = vmatpush1.msra.mxu0 0.0
    %9659 = vmatprep.subr.mxu0 0.0
    %9660 = vmatpush1.msra.mxu0 0.0
    %9661 = vmatprep.subr.mxu0 0.0
    %9662 = vmatpush1.msra.mxu0 0.0
    %9663 = vmatprep.subr.mxu0 0.0
    %9664 = vmatpush1.msra.mxu0 0.0
    %9665 = vmatprep.subr.mxu0 0.0
    %9666 = vmatpush1.msra.mxu0 0.0
    %9667 = vmatprep.subr.mxu0 0.0
    %9668 = vmatpush1.msra.mxu0 0.0
    %9669 = vmatprep.subr.mxu0 0.0
    %9670 = vmatpush1.msra.mxu0 0.0
    %9671 = vmatprep.subr.mxu0 0.0
    %9672 = vmatpush1.msra.mxu0 0.0
    %9673 = vmatprep.subr.mxu0 0.0
    %9674 = vmatpush1.msra.mxu0 0.0
    %9675 = vmatprep.subr.mxu0 0.0
    %9676 = vmatpush1.msra.mxu0 0.0
    %9677 = vmatprep.subr.mxu0 0.0
    %9678 = vmatpush1.msra.mxu0 0.0
    %9679 = vmatprep.mubr.f32.mxu0 0.0
    %v9680 = vand.u32 %v9440, 4294901760
    %v9681 = vsub.f32 %v9440, %v9680
    %9682 = vmatmul.mubr.f32.gmra.mrb[0].mxu0 %v9681
    %v9683 = vpop.f32.mrb[0].mxu0
    %v9684 = vadd.f32 %v9604, %v9683
    %v9685 = vpop.f32.mrb[0].mxu0
    %9686 = vmatprep.mubr.f32.mxu0 0.0
    %v9687 = vand.u32 %v9443, 4294901760
    %v9688 = vsub.f32 %v9443, %v9687
    %9689 = vmatmul.mubr.f32.gmra.mrb[0].mxu0 %v9688
    %v9690 = vpop.f32.mrb[0].mxu0
    %v9691 = vadd.f32 %v9610, %v9690
    %v9692 = vpop.f32.mrb[0].mxu0
    %9693 = vdwg.mxu0
    %9694 = vmatprep.subr.mxu0 0.0
    %v9695 = vand.u32 %v9438, 4294901760
    %9696 = vmatpush1.msra.mxu0 %v9695
    %9697 = vmatprep.subr.mxu0 0.0
    %9698 = vmatpush1.msra.mxu0 0.0
    %9699 = vmatprep.subr.mxu0 0.0
    %9700 = vmatpush1.msra.mxu0 0.0
    %9701 = vmatprep.subr.mxu0 0.0
    %9702 = vmatpush1.msra.mxu0 0.0
    %9703 = vmatprep.subr.mxu0 0.0
    %9704 = vmatpush1.msra.mxu0 0.0
    %9705 = vmatprep.subr.mxu0 0.0
    %9706 = vmatpush1.msra.mxu0 0.0
    %9707 = vmatprep.subr.mxu0 0.0
    %9708 = vmatpush1.msra.mxu0 0.0
    %9709 = vmatprep.subr.mxu0 0.0
    %9710 = vmatpush1.msra.mxu0 0.0
    %9711 = vmatprep.subr.mxu0 0.0
    %9712 = vmatpush1.msra.mxu0 0.0
    %9713 = vmatprep.subr.mxu0 0.0
    %9714 = vmatpush1.msra.mxu0 0.0
    %9715 = vmatprep.subr.mxu0 0.0
    %9716 = vmatpush1.msra.mxu0 0.0
    %9717 = vmatprep.subr.mxu0 0.0
    %9718 = vmatpush1.msra.mxu0 0.0
    %9719 = vmatprep.subr.mxu0 0.0
    %9720 = vmatpush1.msra.mxu0 0.0
    %9721 = vmatprep.subr.mxu0 0.0
    %9722 = vmatpush1.msra.mxu0 0.0
    %9723 = vmatprep.subr.mxu0 0.0
    %9724 = vmatpush1.msra.mxu0 0.0
    %9725 = vmatprep.subr.mxu0 0.0
    %9726 = vmatpush1.msra.mxu0 0.0
    %9727 = vmatprep.subr.mxu0 0.0
    %9728 = vmatpush1.msra.mxu0 0.0
    %9729 = vmatprep.subr.mxu0 0.0
    %9730 = vmatpush1.msra.mxu0 0.0
    %9731 = vmatprep.subr.mxu0 0.0
    %9732 = vmatpush1.msra.mxu0 0.0
    %9733 = vmatprep.subr.mxu0 0.0
    %9734 = vmatpush1.msra.mxu0 0.0
    %9735 = vmatprep.subr.mxu0 0.0
    %9736 = vmatpush1.msra.mxu0 0.0
    %9737 = vmatprep.subr.mxu0 0.0
    %9738 = vmatpush1.msra.mxu0 0.0
    %9739 = vmatprep.subr.mxu0 0.0
    %9740 = vmatpush1.msra.mxu0 0.0
    %9741 = vmatprep.subr.mxu0 0.0
    %9742 = vmatpush1.msra.mxu0 0.0
    %9743 = vmatprep.subr.mxu0 0.0
    %9744 = vmatpush1.msra.mxu0 0.0
    %9745 = vmatprep.subr.mxu0 0.0
    %9746 = vmatpush1.msra.mxu0 0.0
    %9747 = vmatprep.subr.mxu0 0.0
    %9748 = vmatpush1.msra.mxu0 0.0
    %9749 = vmatprep.subr.mxu0 0.0
    %9750 = vmatpush1.msra.mxu0 0.0
    %9751 = vmatprep.subr.mxu0 0.0
    %9752 = vmatpush1.msra.mxu0 0.0
    %9753 = vmatprep.subr.mxu0 0.0
    %9754 = vmatpush1.msra.mxu0 0.0
    %9755 = vmatprep.subr.mxu0 0.0
    %9756 = vmatpush1.msra.mxu0 0.0
    %9757 = vmatprep.subr.mxu0 0.0
    %9758 = vmatpush1.msra.mxu0 0.0
    %9759 = vmatprep.mubr.f32.mxu0 0.0
    %v9760 = vand.u32 %v9440, 4294901760
    %v9761 = vsub.f32 %v9440, %v9760
    %v9762 = vand.u32 %v9761, 4294901760
    %9763 = vmatmul.mubr.f32.gmra.mrb[0].mxu0 %v9762
    %v9764 = vpop.f32.mrb[0].mxu0
    %v9765 = vadd.f32 %v9684, %v9764
    %v9766 = vpop.f32.mrb[0].mxu0
    %9767 = vmatprep.mubr.f32.mxu0 0.0
    %v9768 = vand.u32 %v9443, 4294901760
    %v9769 = vsub.f32 %v9443, %v9768
    %v9770 = vand.u32 %v9769, 4294901760
    %9771 = vmatmul.mubr.f32.gmra.mrb[0].mxu0 %v9770
    %v9772 = vpop.f32.mrb[0].mxu0
    %v9773 = vadd.f32 %v9691, %v9772
    %v9774 = vpop.f32.mrb[0].mxu0
    %9775 = vdwg.mxu0
    %9776 = vmatprep.subr.mxu0 0.0
    %v9777 = vand.u32 %v9438, 4294901760
    %v9778 = vsub.f32 %v9438, %v9777
    %v9779 = vand.u32 %v9778, 4294901760
    %9780 = vmatpush1.msra.mxu0 %v9779
    %9781 = vmatprep.subr.mxu0 0.0
    %9782 = vmatpush1.msra.mxu0 0.0
    %9783 = vmatprep.subr.mxu0 0.0
    %9784 = vmatpush1.msra.mxu0 0.0
    %9785 = vmatprep.subr.mxu0 0.0
    %9786 = vmatpush1.msra.mxu0 0.0
    %9787 = vmatprep.subr.mxu0 0.0
    %9788 = vmatpush1.msra.mxu0 0.0
    %9789 = vmatprep.subr.mxu0 0.0
    %9790 = vmatpush1.msra.mxu0 0.0
    %9791 = vmatprep.subr.mxu0 0.0
    %9792 = vmatpush1.msra.mxu0 0.0
    %9793 = vmatprep.subr.mxu0 0.0
    %9794 = vmatpush1.msra.mxu0 0.0
    %9795 = vmatprep.subr.mxu0 0.0
    %9796 = vmatpush1.msra.mxu0 0.0
    %9797 = vmatprep.subr.mxu0 0.0
    %9798 = vmatpush1.msra.mxu0 0.0
    %9799 = vmatprep.subr.mxu0 0.0
    %9800 = vmatpush1.msra.mxu0 0.0
    %9801 = vmatprep.subr.mxu0 0.0
    %9802 = vmatpush1.msra.mxu0 0.0
    %9803 = vmatprep.subr.mxu0 0.0
    %9804 = vmatpush1.msra.mxu0 0.0
    %9805 = vmatprep.subr.mxu0 0.0
    %9806 = vmatpush1.msra.mxu0 0.0
    %9807 = vmatprep.subr.mxu0 0.0
    %9808 = vmatpush1.msra.mxu0 0.0
    %9809 = vmatprep.subr.mxu0 0.0
    %9810 = vmatpush1.msra.mxu0 0.0
    %9811 = vmatprep.subr.mxu0 0.0
    %9812 = vmatpush1.msra.mxu0 0.0
    %9813 = vmatprep.subr.mxu0 0.0
    %9814 = vmatpush1.msra.mxu0 0.0
    %9815 = vmatprep.subr.mxu0 0.0
    %9816 = vmatpush1.msra.mxu0 0.0
    %9817 = vmatprep.subr.mxu0 0.0
    %9818 = vmatpush1.msra.mxu0 0.0
    %9819 = vmatprep.subr.mxu0 0.0
    %9820 = vmatpush1.msra.mxu0 0.0
    %9821 = vmatprep.subr.mxu0 0.0
    %9822 = vmatpush1.msra.mxu0 0.0
    %9823 = vmatprep.subr.mxu0 0.0
    %9824 = vmatpush1.msra.mxu0 0.0
    %9825 = vmatprep.subr.mxu0 0.0
    %9826 = vmatpush1.msra.mxu0 0.0
    %9827 = vmatprep.subr.mxu0 0.0
    %9828 = vmatpush1.msra.mxu0 0.0
    %9829 = vmatprep.subr.mxu0 0.0
    %9830 = vmatpush1.msra.mxu0 0.0
    %9831 = vmatprep.subr.mxu0 0.0
    %9832 = vmatpush1.msra.mxu0 0.0
    %9833 = vmatprep.subr.mxu0 0.0
    %9834 = vmatpush1.msra.mxu0 0.0
    %9835 = vmatprep.subr.mxu0 0.0
    %9836 = vmatpush1.msra.mxu0 0.0
    %9837 = vmatprep.subr.mxu0 0.0
    %9838 = vmatpush1.msra.mxu0 0.0
    %9839 = vmatprep.subr.mxu0 0.0
    %9840 = vmatpush1.msra.mxu0 0.0
    %9841 = vmatprep.subr.mxu0 0.0
    %9842 = vmatpush1.msra.mxu0 0.0
    %9843 = vmatprep.mubr.f32.mxu0 0.0
    %v9844 = vand.u32 %v9440, 4294901760
    %9845 = vmatmul.mubr.f32.gmra.mrb[0].mxu0 %v9844
    %v9846 = vpop.f32.mrb[0].mxu0
    %v9847 = vadd.f32 %v9765, %v9846
    %v9848 = vpop.f32.mrb[0].mxu0
    %9849 = vmatprep.mubr.f32.mxu0 0.0
    %v9850 = vand.u32 %v9443, 4294901760
    %9851 = vmatmul.mubr.f32.gmra.mrb[0].mxu0 %v9850
    %v9852 = vpop.f32.mrb[0].mxu0
    %v9853 = vadd.f32 %v9773, %v9852
    %v9854 = vpop.f32.mrb[0].mxu0
    %9855 = vdwg.mxu0
    %9856 = vmatprep.subr.mxu0 0.0
    %v9857 = vand.u32 %v9438, 4294901760
    %9858 = vmatpush1.msra.mxu0 %v9857
    %9859 = vmatprep.subr.mxu0 0.0
    %9860 = vmatpush1.msra.mxu0 0.0
    %9861 = vmatprep.subr.mxu0 0.0
    %9862 = vmatpush1.msra.mxu0 0.0
    %9863 = vmatprep.subr.mxu0 0.0
    %9864 = vmatpush1.msra.mxu0 0.0
    %9865 = vmatprep.subr.mxu0 0.0
    %9866 = vmatpush1.msra.mxu0 0.0
    %9867 = vmatprep.subr.mxu0 0.0
    %9868 = vmatpush1.msra.mxu0 0.0
    %9869 = vmatprep.subr.mxu0 0.0
    %9870 = vmatpush1.msra.mxu0 0.0
    %9871 = vmatprep.subr.mxu0 0.0
    %9872 = vmatpush1.msra.mxu0 0.0
    %9873 = vmatprep.subr.mxu0 0.0
    %9874 = vmatpush1.msra.mxu0 0.0
    %9875 = vmatprep.subr.mxu0 0.0
    %9876 = vmatpush1.msra.mxu0 0.0
    %9877 = vmatprep.subr.mxu0 0.0
    %9878 = vmatpush1.msra.mxu0 0.0
    %9879 = vmatprep.subr.mxu0 0.0
    %9880 = vmatpush1.msra.mxu0 0.0
    %9881 = vmatprep.subr.mxu0 0.0
    %9882 = vmatpush1.msra.mxu0 0.0
    %9883 = vmatprep.subr.mxu0 0.0
    %9884 = vmatpush1.msra.mxu0 0.0
    %9885 = vmatprep.subr.mxu0 0.0
    %9886 = vmatpush1.msra.mxu0 0.0
    %9887 = vmatprep.subr.mxu0 0.0
    %9888 = vmatpush1.msra.mxu0 0.0
    %9889 = vmatprep.subr.mxu0 0.0
    %9890 = vmatpush1.msra.mxu0 0.0
    %9891 = vmatprep.subr.mxu0 0.0
    %9892 = vmatpush1.msra.mxu0 0.0
    %9893 = vmatprep.subr.mxu0 0.0
    %9894 = vmatpush1.msra.mxu0 0.0
    %9895 = vmatprep.subr.mxu0 0.0
    %9896 = vmatpush1.msra.mxu0 0.0
    %9897 = vmatprep.subr.mxu0 0.0
    %9898 = vmatpush1.msra.mxu0 0.0
    %9899 = vmatprep.subr.mxu0 0.0
    %9900 = vmatpush1.msra.mxu0 0.0
    %9901 = vmatprep.subr.mxu0 0.0
    %9902 = vmatpush1.msra.mxu0 0.0
    %9903 = vmatprep.subr.mxu0 0.0
    %9904 = vmatpush1.msra.mxu0 0.0
    %9905 = vmatprep.subr.mxu0 0.0
    %9906 = vmatpush1.msra.mxu0 0.0
    %9907 = vmatprep.subr.mxu0 0.0
    %9908 = vmatpush1.msra.mxu0 0.0
    %9909 = vmatprep.subr.mxu0 0.0
    %9910 = vmatpush1.msra.mxu0 0.0
    %9911 = vmatprep.subr.mxu0 0.0
    %9912 = vmatpush1.msra.mxu0 0.0
    %9913 = vmatprep.subr.mxu0 0.0
    %9914 = vmatpush1.msra.mxu0 0.0
    %9915 = vmatprep.subr.mxu0 0.0
    %9916 = vmatpush1.msra.mxu0 0.0
    %9917 = vmatprep.subr.mxu0 0.0
    %9918 = vmatpush1.msra.mxu0 0.0
    %9919 = vmatprep.subr.mxu0 0.0
    %9920 = vmatpush1.msra.mxu0 0.0
    %9921 = vmatprep.mubr.f32.mxu0 0.0
    %v9922 = vand.u32 %v9440, 4294901760
    %9923 = vmatmul.mubr.f32.gmra.mrb[0].mxu0 %v9922
    %v9924 = vpop.f32.mrb[0].mxu0
    %v9925 = vadd.f32 %v9847, %v9924
    %v9926 = vpop.f32.mrb[0].mxu0
    %9927 = vmatprep.mubr.f32.mxu0 0.0
    %v9928 = vand.u32 %v9443, 4294901760
    %9929 = vmatmul.mubr.f32.gmra.mrb[0].mxu0 %v9928
    %v9930 = vpop.f32.mrb[0].mxu0
    %v9931 = vadd.f32 %v9853, %v9930
    %v9932 = vpop.f32.mrb[0].mxu0
    %9933 = vdwg.mxu0
    %v9934 = vadd.f32 %v7601, %v9925
    %v9935 = vadd.f32 %v7602, %v9931
    %v9936 = vld [vmem:[%s4] sm:$0x1]
    %v9938 = vlaneseq
    %v9939 = vshrl.u32 %v9938, 7
    %v9940 = vsub.s32 0, %v9939
    %v9941 = vrot.slane %v9936, %v9940
    %v9943 = vadd.f32 %v9934, %v9941
    %v9944 = vadd.f32 %v9935, %v9941
    %9945 = vst.msk [vmem:[#allocation8] sm:$0xff] %vm75, %v9943
    %9946 = vst.msk [vmem:[#allocation8 + $0x8] sm:$0xff] %vm75, %v9944
    // Predicated region
    $region34: #{tpu_custom_call.1} parent=1 // pred_check
      _
    $region35: #{tpu_custom_call.1} parent=1 // pred_check_branch
      %9948 = sbr.rel (0) target = $region37
    $region36: #{tpu_custom_call.1} parent=1 // pred_region
      %s9950 = ssub.s32 256, 256
      %9951 = vsyncadd [#allocation4], %s9950
      %s9952 = sshll.u32 [#allocation8], 4
      %s9953 = int_to_ptr.vmem [resolvable:$true] %s9952
      %9958 = dma.vmem_to_hbm [thread:$0]  %s9953, 256, %s5, [#allocation4], 128, 128, 8
    $region37: #{tpu_custom_call.1} parent=1 // pred_fallthru
      _
    // Predicated region
    $region38: #{tpu_custom_call.1} parent=1 // pred_check
      _
    $region39: #{tpu_custom_call.1} parent=1 // pred_check_branch
      %9960 = sbr.rel (0) target = $region41
    $region40: #{tpu_custom_call.1} parent=1 // pred_region
      %9961 = dma.done [#allocation4], 256
    $region41: #{tpu_custom_call.1} parent=1 // pred_fallthru
      _
    %9962 = vsyncpa [#allocation3], 1
    %9963 = vsyncpa [#allocation6], 1
    %9964 = vsyncpa [#allocation4], 1

</llo_original>
